<compile_context>
chip_gen: v7x
topology: tpu7x:2x2x1
jax: 0.10.0
libtpu: 0.0.40
codegen_flags: <defaults>
</compile_context>

<pallas_src>
import functools

import jax
import jax.numpy as jnp
from jax.experimental import pallas as pl
from jax.experimental.pallas import tpu as pltpu


_MAX_TAPS = 49          # largest K*K among the convs (the 7x7 conv)


# ----------------------------------------------------------------------------
# In-kernel helpers (all activations laid out as (channels, N) with N in lanes)
# ----------------------------------------------------------------------------
def _pointwise(act, w_ref, b_ref):
    """1x1 conv + bias + ReLU.  act: (Cin, N), w: (Cout, Cin), b: (Cout, 1)."""
    y = jnp.dot(w_ref[...], act, preferred_element_type=jnp.float32)
    return jnp.maximum(y + b_ref[...], 0.0)


def _dilated_conv(act, w_ref, b_ref, *, slab_ref, get_mask, K, dil, W, N, cs):
    """KxK stride-1 'same' conv + bias + ReLU on a (Cin, N) activation.

    Every tap is a lane roll of the flat spatial axis plus a (memoized)
    boundary mask implementing zero padding.  All K*K masked taps are stored
    into the shared VMEM scratch slab, then the whole conv is ONE matmul
    against the host-flattened (Cout, K*K*Cin) weight.
    """
    pad = dil * (K - 1) // 2
    tap = 0
    for kh in range(K):
        dh = kh * dil - pad
        for kw in range(K):
            dw = kw * dil - pad
            off = dh * W + dw                       # flat shift of the source
            if off == 0:
                xs = act
            else:
                # xs[:, c] = act[:, (c + off) mod N]   (== jnp.roll semantics)
                xs = pltpu.roll(act, (-off) % N, axis=1)
            m = get_mask(dh, dw)                    # hoisted / memoized mask
            if m is not None:
                xs = xs * m
            slab_ref[tap * cs:(tap + 1) * cs, :] = xs
            tap += 1
    rows = K * K * cs
    y = jnp.dot(w_ref[...], slab_ref[0:rows, :],
                preferred_element_type=jnp.float32)
    return jnp.maximum(y + b_ref[...], 0.0)


# ----------------------------------------------------------------------------
# Fused Context_Exploration_Block kernel (one grid step = nimg images)
# ----------------------------------------------------------------------------
def _ceb_kernel(H, W, cs,
                x_ref, hidx_ref, widx_ref,
                w_cr_ref, b_cr_ref,
                w_p1_ref, b_p1_ref, w_p1dc_ref, b_p1dc_ref,
                w_p2_ref, b_p2_ref, w_p2dc_ref, b_p2dc_ref,
                w_p3_ref, b_p3_ref, w_p3dc_ref, b_p3dc_ref,
                w_p4_ref, b_p4_ref, w_p4dc_ref, b_p4dc_ref,
                w_fus_ref, b_fus_ref,
                o_ref,
                slab_ref):
    N = x_ref.shape[-1]
    x = x_ref[0]                                          # (C, N)

    # Per-lane (row, col) indices inside the image, exact int32, host-built.
    h_b = jnp.broadcast_to(hidx_ref[...], (cs, N))
    w_b = jnp.broadcast_to(widx_ref[...], (cs, N))

    # Boundary masks depend only on the (dh, dw) offset pair, which repeats
    # across the 7 spatial convs -> build each distinct mask exactly once.
    mask_cache = {}

    def get_mask(dh, dw):
        if dh == 0 and dw == 0:
            return None
        key = (dh, dw)
        if key not in mask_cache:
            conds = []
            if dh > 0:
                conds.append(h_b < (H - dh))
            elif dh < 0:
                conds.append(h_b >= (-dh))
            if dw > 0:
                conds.append(w_b < (W - dw))
            elif dw < 0:
                conds.append(w_b >= (-dw))
            m = conds[0]
            for c in conds[1:]:
                m = jnp.logical_and(m, c)
            mask_cache[key] = m.astype(jnp.float32)
        return mask_cache[key]

    conv = functools.partial(_dilated_conv, slab_ref=slab_ref,
                             get_mask=get_mask, W=W, N=N, cs=cs)

    # All four 1x1 channel reductions fused into one (4*cs, C) matmul.
    cr = jnp.maximum(
        jnp.dot(w_cr_ref[...], x, preferred_element_type=jnp.float32)
        + b_cr_ref[...], 0.0)                             # (4*cs, N)

    p1 = _pointwise(cr[0 * cs:1 * cs], w_p1_ref, b_p1_ref)
    p1_dc = conv(p1, w_p1dc_ref, b_p1dc_ref, K=3, dil=1)

    p2 = conv(cr[1 * cs:2 * cs] + p1_dc, w_p2_ref, b_p2_ref, K=3, dil=1)
    p2_dc = conv(p2, w_p2dc_ref, b_p2dc_ref, K=3, dil=2)

    p3 = conv(cr[2 * cs:3 * cs] + p2_dc, w_p3_ref, b_p3_ref, K=5, dil=1)
    p3_dc = conv(p3, w_p3dc_ref, b_p3dc_ref, K=3, dil=4)

    p4 = conv(cr[3 * cs:4 * cs] + p3_dc, w_p4_ref, b_p4_ref, K=7, dil=1)
    p4_dc = conv(p4, w_p4dc_ref, b_p4dc_ref, K=3, dil=8)

    cat = jnp.concatenate([p1_dc, p2_dc, p3_dc, p4_dc], axis=0)   # (4*cs, N)
    ce = jnp.maximum(
        jnp.dot(w_fus_ref[...], cat, preferred_element_type=jnp.float32)
        + b_fus_ref[...], 0.0)
    o_ref[0] = ce


# ----------------------------------------------------------------------------
# Host wrapper
# ----------------------------------------------------------------------------
_PARAM_ORDER = ('cr', 'p1', 'p1_dc', 'p2', 'p2_dc',
                'p3', 'p3_dc', 'p4', 'p4_dc', 'fusion')


def _full_spec(shape):
    nd = len(shape)
    return pl.BlockSpec(shape, lambda b, _nd=nd: (0,) * _nd)


def context_exploration_forward(x_nchw, kparams, *, batch_in_lanes=True):
    """x_nchw: (B, C, H, W) f32 (PyTorch layout).  kparams: name -> (w, b).

    batch_in_lanes=True : (C, B*H*W) layout, grid=(1,)  -> best on v5e/v6e.
    batch_in_lanes=False: (C, H*W)  per step, grid=(B,) -> keeps both v7x TCs busy.
    """
    B, C, H, W = x_nchw.shape
    cs = C // 4
    L = H * W

    if batch_in_lanes:
        nsteps, nimg = 1, B
        xk = jnp.transpose(x_nchw.reshape(B, C, L), (1, 0, 2)).reshape(1, C, B * L)
    else:
        nsteps, nimg = B, 1
        xk = x_nchw.reshape(B, C, L)
    N = nimg * L

    # Exact integer per-lane (h, w) indices (built on host, constant data).
    pix = jnp.arange(N, dtype=jnp.int32) % L
    h_idx = (pix // W).reshape(1, N)
    w_idx = (pix % W).reshape(1, N)

    args = [xk, h_idx, w_idx]
    in_specs = [pl.BlockSpec((1, C, N), lambda b: (b, 0, 0)),
                _full_spec((1, N)), _full_spec((1, N))]

    flops = 0
    bytes_accessed = 2 * B * C * L * 4                 # input + output
    for name in _PARAM_ORDER:
        w, bias = kparams[name]
        args += [w, bias]
        in_specs += [_full_spec(w.shape), _full_spec(bias.shape)]
        flops += 2 * int(w.shape[0]) * int(w.shape[1]) * (B * L)
        bytes_accessed += int(w.size + bias.size) * 4

    out = pl.pallas_call(
        functools.partial(_ceb_kernel, H, W, cs),
        out_shape=jax.ShapeDtypeStruct((nsteps, C, N), jnp.float32),
        grid=(nsteps,),
        in_specs=in_specs,
        out_specs=pl.BlockSpec((1, C, N), lambda b: (b, 0, 0)),
        scratch_shapes=[pltpu.VMEM((_MAX_TAPS * cs, N), jnp.float32)],
        compiler_params=pltpu.CompilerParams(
            dimension_semantics=("parallel",)),
        cost_estimate=pl.CostEstimate(flops=int(flops), transcendentals=0,
                                      bytes_accessed=int(bytes_accessed)),
    )(*args)

    if batch_in_lanes:
        out = out.reshape(C, B, L).transpose(1, 0, 2)
    return out.reshape(B, C, H, W)


# ----------------------------------------------------------------------------
# Parameter construction (Conv2d + BatchNorm2d, eval-mode folding)
# ----------------------------------------------------------------------------
def _make_raw_block(key, cin, cout, K):
    kw_, kb, kg, kbe, km, kv = jax.random.split(key, 6)
    w = jax.random.normal(kw_, (K, K, cin, cout), jnp.float32)
    w = w * (1.0 / (cin * K * K) ** 0.5)
    conv_b = 0.1 * jax.random.normal(kb, (cout,), jnp.float32)
    gamma = 1.0 + 0.1 * jax.random.normal(kg, (cout,), jnp.float32)
    beta = 0.1 * jax.random.normal(kbe, (cout,), jnp.float32)
    run_mean = 0.1 * jax.random.normal(km, (cout,), jnp.float32)
    run_var = 0.5 + 0.5 * jnp.abs(jax.random.normal(kv, (cout,), jnp.float32))
    eps = 1e-5
    scale = gamma / jnp.sqrt(run_var + eps)            # BN fold (eval mode)
    bias = beta + scale * (conv_b - run_mean)
    return w, scale, bias                              # HWIO weight


def make_raw_params(key, input_channels):
    cs = input_channels // 4
    specs = {
        'p1_cr': (input_channels, cs, 1), 'p2_cr': (input_channels, cs, 1),
        'p3_cr': (input_channels, cs, 1), 'p4_cr': (input_channels, cs, 1),
        'p1': (cs, cs, 1), 'p1_dc': (cs, cs, 3),
        'p2': (cs, cs, 3), 'p2_dc': (cs, cs, 3),
        'p3': (cs, cs, 5), 'p3_dc': (cs, cs, 3),
        'p4': (cs, cs, 7), 'p4_dc': (cs, cs, 3),
        'fusion': (input_channels, input_channels, 1),
    }
    keys = jax.random.split(key, len(specs))
    return {name: _make_raw_block(k, cin, cout, K)
            for k, (name, (cin, cout, K)) in zip(keys, specs.items())}


def build_kernel_params(raw):
    """Fold BN scale into the weights and flatten to the kernel layouts."""
    def pw(name):                                       # 1x1 conv -> (Cout, Cin)
        w, scale, bias = raw[name]
        wm = (w[0, 0] * scale[None, :]).T
        return wm.astype(jnp.float32), bias.reshape(-1, 1).astype(jnp.float32)

    def sp(name):                                       # KxK conv -> (Cout, K*K*Cin)
        w, scale, bias = raw[name]
        K, _, cin, cout = w.shape
        wf = w * scale[None, None, None, :]             # (K, K, cin, cout)
        wk = jnp.transpose(wf, (3, 0, 1, 2)).reshape(cout, K * K * cin)
        return wk.astype(jnp.float32), bias.reshape(-1, 1).astype(jnp.float32)

    w_crs, b_crs = zip(*(pw(f'p{i}_cr') for i in range(1, 5)))
    return {
        'cr': (jnp.concatenate(w_crs, axis=0), jnp.concatenate(b_crs, axis=0)),
        'p1': pw('p1'),
        'p1_dc': sp('p1_dc'),
        'p2': sp('p2'),
        'p2_dc': sp('p2_dc'),
        'p3': sp('p3'),
        'p3_dc': sp('p3_dc'),
        'p4': sp('p4'),
        'p4_dc': sp('p4_dc'),
        'fusion': pw('fusion'),
    }


# ----------------------------------------------------------------------------
# Pure-JAX reference (lax conv, NCHW) built from the same raw parameters
# ----------------------------------------------------------------------------
def context_exploration_ref(x, raw):
    def conv(name, inp, K, dil, residual=None):
        w, scale, bias = raw[name]
        pad = dil * (K - 1) // 2
        y = jax.lax.conv_general_dilated(
            inp, w, window_strides=(1, 1),
            padding=[(pad, pad), (pad, pad)],
            rhs_dilation=(dil, dil),
            dimension_numbers=('NCHW', 'HWIO', 'NCHW'))
        y = jnp.maximum(y * scale.reshape(1, -1, 1, 1)
                        + bias.reshape(1, -1, 1, 1), 0.0)
        if residual is not None:
            y = y + residual
        return y

    p1_in = conv('p1_cr', x, 1, 1)
    p1 = conv('p1', p1_in, 1, 1)
    p1_dc = conv('p1_dc', p1, 3, 1)
    p2_in = conv('p2_cr', x, 1, 1, residual=p1_dc)
    p2 = conv('p2', p2_in, 3, 1)
    p2_dc = conv('p2_dc', p2, 3, 2)
    p3_in = conv('p3_cr', x, 1, 1, residual=p2_dc)
    p3 = conv('p3', p3_in, 5, 1)
    p3_dc = conv('p3_dc', p3, 3, 4)
    p4_in = conv('p4_cr', x, 1, 1, residual=p3_dc)
    p4 = conv('p4', p4_in, 7, 1)
    p4_dc = conv('p4_dc', p4, 3, 8)
    cat = jnp.concatenate([p1_dc, p2_dc, p3_dc, p4_dc], axis=1)
    return conv('fusion', cat, 1, 1)


# ----------------------------------------------------------------------------
if __name__ == "__main__":
    INPUT_CHANNELS = 32          # channels_single = 8
    B, H, W = 2, 16, 16

    root = jax.random.PRNGKey(0)
    kx, kp = jax.random.split(root)
    # PyTorch-style NCHW input.
    x = jax.random.normal(kx, (B, INPUT_CHANNELS, H, W), jnp.float32)

    raw = make_raw_params(kp, INPUT_CHANNELS)
    kparams = build_kernel_params(raw)

    fwd = jax.jit(context_exploration_forward)          # batch folded into lanes
    out = jax.block_until_ready(fwd(x, kparams))

    ref = jax.block_until_ready(context_exploration_ref(x, raw))

    assert out.shape == (B, INPUT_CHANNELS, H, W)
    max_err = float(jnp.max(jnp.abs(out - ref)))
    assert jnp.allclose(out, ref, atol=1e-3, rtol=1e-3), max_err

    print("KERNEL_OK")
</pallas_src>

<mosaic_0001>
module attributes {stable_mosaic.version = 11 : i64} {
  func.func @_ceb_kernel(%arg0: i32, %arg1: memref<1x32x512xf32, #tpu.memory_space<vmem>>, %arg2: memref<1x512xi32, #tpu.memory_space<vmem>>, %arg3: memref<1x512xi32, #tpu.memory_space<vmem>>, %arg4: memref<32x32xf32, #tpu.memory_space<vmem>>, %arg5: memref<32x1xf32, #tpu.memory_space<vmem>>, %arg6: memref<8x8xf32, #tpu.memory_space<vmem>>, %arg7: memref<8x1xf32, #tpu.memory_space<vmem>>, %arg8: memref<8x72xf32, #tpu.memory_space<vmem>>, %arg9: memref<8x1xf32, #tpu.memory_space<vmem>>, %arg10: memref<8x72xf32, #tpu.memory_space<vmem>>, %arg11: memref<8x1xf32, #tpu.memory_space<vmem>>, %arg12: memref<8x72xf32, #tpu.memory_space<vmem>>, %arg13: memref<8x1xf32, #tpu.memory_space<vmem>>, %arg14: memref<8x200xf32, #tpu.memory_space<vmem>>, %arg15: memref<8x1xf32, #tpu.memory_space<vmem>>, %arg16: memref<8x72xf32, #tpu.memory_space<vmem>>, %arg17: memref<8x1xf32, #tpu.memory_space<vmem>>, %arg18: memref<8x392xf32, #tpu.memory_space<vmem>>, %arg19: memref<8x1xf32, #tpu.memory_space<vmem>>, %arg20: memref<8x72xf32, #tpu.memory_space<vmem>>, %arg21: memref<8x1xf32, #tpu.memory_space<vmem>>, %arg22: memref<32x32xf32, #tpu.memory_space<vmem>>, %arg23: memref<32x1xf32, #tpu.memory_space<vmem>>, %arg24: memref<1x32x512xf32, #tpu.memory_space<vmem>>, %arg25: memref<392x512xf32, #tpu.memory_space<vmem>>) attributes {dimension_semantics = [#tpu.dimension_semantics<parallel>], iteration_bounds = array<i64: 1>, scalar_prefetch = 0 : i64, scratch_operands = 1 : i64, tpu.core_type = #tpu.core_type<tc>, window_params = [{transform_indices = @transform_0, window_bounds = array<i64: 1, 32, 512>}, {pipeline_mode = #tpu.pipeline_mode<synchronous>, transform_indices = @transform_1, window_bounds = array<i64: 1, 512>}, {pipeline_mode = #tpu.pipeline_mode<synchronous>, transform_indices = @transform_2, window_bounds = array<i64: 1, 512>}, {pipeline_mode = #tpu.pipeline_mode<synchronous>, transform_indices = @transform_3, window_bounds = array<i64: 32, 32>}, {pipeline_mode = #tpu.pipeline_mode<synchronous>, transform_indices = @transform_4, window_bounds = array<i64: 32, 1>}, {pipeline_mode = #tpu.pipeline_mode<synchronous>, transform_indices = @transform_5, window_bounds = array<i64: 8, 8>}, {pipeline_mode = #tpu.pipeline_mode<synchronous>, transform_indices = @transform_6, window_bounds = array<i64: 8, 1>}, {pipeline_mode = #tpu.pipeline_mode<synchronous>, transform_indices = @transform_7, window_bounds = array<i64: 8, 72>}, {pipeline_mode = #tpu.pipeline_mode<synchronous>, transform_indices = @transform_8, window_bounds = array<i64: 8, 1>}, {pipeline_mode = #tpu.pipeline_mode<synchronous>, transform_indices = @transform_9, window_bounds = array<i64: 8, 72>}, {pipeline_mode = #tpu.pipeline_mode<synchronous>, transform_indices = @transform_10, window_bounds = array<i64: 8, 1>}, {pipeline_mode = #tpu.pipeline_mode<synchronous>, transform_indices = @transform_11, window_bounds = array<i64: 8, 72>}, {pipeline_mode = #tpu.pipeline_mode<synchronous>, transform_indices = @transform_12, window_bounds = array<i64: 8, 1>}, {pipeline_mode = #tpu.pipeline_mode<synchronous>, transform_indices = @transform_13, window_bounds = array<i64: 8, 200>}, {pipeline_mode = #tpu.pipeline_mode<synchronous>, transform_indices = @transform_14, window_bounds = array<i64: 8, 1>}, {pipeline_mode = #tpu.pipeline_mode<synchronous>, transform_indices = @transform_15, window_bounds = array<i64: 8, 72>}, {pipeline_mode = #tpu.pipeline_mode<synchronous>, transform_indices = @transform_16, window_bounds = array<i64: 8, 1>}, {pipeline_mode = #tpu.pipeline_mode<synchronous>, transform_indices = @transform_17, window_bounds = array<i64: 8, 392>}, {pipeline_mode = #tpu.pipeline_mode<synchronous>, transform_indices = @transform_18, window_bounds = array<i64: 8, 1>}, {pipeline_mode = #tpu.pipeline_mode<synchronous>, transform_indices = @transform_19, window_bounds = array<i64: 8, 72>}, {pipeline_mode = #tpu.pipeline_mode<synchronous>, transform_indices = @transform_20, window_bounds = array<i64: 8, 1>}, {pipeline_mode = #tpu.pipeline_mode<synchronous>, transform_indices = @transform_21, window_bounds = array<i64: 32, 32>}, {pipeline_mode = #tpu.pipeline_mode<synchronous>, transform_indices = @transform_22, window_bounds = array<i64: 32, 1>}, {transform_indices = @transform_23, window_bounds = array<i64: 1, 32, 512>}]} {
    %c0 = arith.constant 0 : index
    %c0_0 = arith.constant 0 : index
    %c0_1 = arith.constant 0 : index
    %0 = vector.load %arg1[%c0, %c0_0, %c0_1] : memref<1x32x512xf32, #tpu.memory_space<vmem>>, vector<1x32x512xf32>
    %1 = vector.shape_cast %0 : vector<1x32x512xf32> to vector<32x512xf32>
    %c0_2 = arith.constant 0 : index
    %c0_3 = arith.constant 0 : index
    %2 = vector.load %arg2[%c0_2, %c0_3] : memref<1x512xi32, #tpu.memory_space<vmem>>, vector<1x512xi32>
    %3 = vector.shape_cast %2 : vector<1x512xi32> to vector<1x512xi32>
    %4 = vector.broadcast %3 : vector<1x512xi32> to vector<8x512xi32>
    %c0_4 = arith.constant 0 : index
    %c0_5 = arith.constant 0 : index
    %5 = vector.load %arg3[%c0_4, %c0_5] : memref<1x512xi32, #tpu.memory_space<vmem>>, vector<1x512xi32>
    %6 = vector.shape_cast %5 : vector<1x512xi32> to vector<1x512xi32>
    %7 = vector.broadcast %6 : vector<1x512xi32> to vector<8x512xi32>
    %c0_6 = arith.constant 0 : index
    %c0_7 = arith.constant 0 : index
    %8 = vector.load %arg4[%c0_6, %c0_7] : memref<32x32xf32, #tpu.memory_space<vmem>>, vector<32x32xf32>
    %cst = arith.constant dense<0.000000e+00> : vector<32x512xf32>
    %9 = tpu.matmul %8, %1, %cst {dimension_numbers = #tpu.dot_dimension_numbers<[1], [0], [0], [1], [0, 0, 1, 1], [], []>} : vector<32x32xf32>, vector<32x512xf32>, vector<32x512xf32> -> vector<32x512xf32>
    %c0_8 = arith.constant 0 : index
    %c0_9 = arith.constant 0 : index
    %10 = vector.load %arg5[%c0_8, %c0_9] : memref<32x1xf32, #tpu.memory_space<vmem>>, vector<32x1xf32>
    %11 = vector.broadcast %10 : vector<32x1xf32> to vector<32x512xf32>
    %12 = arith.addf %9, %11 : vector<32x512xf32>
    %cst_10 = arith.constant 0.000000e+00 : f32
    %13 = vector.broadcast %cst_10 : f32 to vector<32x512xf32>
    %14 = arith.maximumf %12, %13 : vector<32x512xf32>
    %15 = vector.extract_strided_slice %14 {offsets = [0, 0], sizes = [8, 512], strides = [1, 1]} : vector<32x512xf32> to vector<8x512xf32>
    %c0_11 = arith.constant 0 : index
    %c0_12 = arith.constant 0 : index
    %16 = vector.load %arg6[%c0_11, %c0_12] : memref<8x8xf32, #tpu.memory_space<vmem>>, vector<8x8xf32>
    %cst_13 = arith.constant dense<0.000000e+00> : vector<8x512xf32>
    %17 = tpu.matmul %16, %15, %cst_13 {dimension_numbers = #tpu.dot_dimension_numbers<[1], [0], [0], [1], [0, 0, 1, 1], [], []>} : vector<8x8xf32>, vector<8x512xf32>, vector<8x512xf32> -> vector<8x512xf32>
    %c0_14 = arith.constant 0 : index
    %c0_15 = arith.constant 0 : index
    %18 = vector.load %arg7[%c0_14, %c0_15] : memref<8x1xf32, #tpu.memory_space<vmem>>, vector<8x1xf32>
    %19 = vector.broadcast %18 : vector<8x1xf32> to vector<8x512xf32>
    %20 = arith.addf %17, %19 : vector<8x512xf32>
    %cst_16 = arith.constant 0.000000e+00 : f32
    %21 = vector.broadcast %cst_16 : f32 to vector<8x512xf32>
    %22 = arith.maximumf %20, %21 : vector<8x512xf32>
    %c17_i32 = arith.constant 17 : i32
    %23 = tpu.dynamic_rotate %22 by %c17_i32 dim 1 : vector<8x512xf32>, i32 -> vector<8x512xf32>
    %c1_i32 = arith.constant 1 : i32
    %24 = vector.broadcast %c1_i32 : i32 to vector<8x512xi32>
    %25 = arith.cmpi sge, %4, %24 : vector<8x512xi32>
    %c1_i32_17 = arith.constant 1 : i32
    %26 = vector.broadcast %c1_i32_17 : i32 to vector<8x512xi32>
    %27 = arith.cmpi sge, %7, %26 : vector<8x512xi32>
    %28 = arith.andi %25, %27 : vector<8x512xi1>
    %29 = arith.extui %28 : vector<8x512xi1> to vector<8x512xi32>
    %30 = arith.sitofp %29 : vector<8x512xi32> to vector<8x512xf32>
    %31 = arith.mulf %23, %30 : vector<8x512xf32>
    %c0_18 = arith.constant 0 : index
    %c0_19 = arith.constant 0 : index
    %32 = vector.load %arg25[%c0_18, %c0_19] : memref<392x512xf32, #tpu.memory_space<vmem>>, vector<8x512xf32>
    tpu.vector_store %arg25[%c0_18, %c0_19], %31 {strides = array<i32>} : memref<392x512xf32, #tpu.memory_space<vmem>>, vector<8x512xf32>,
    %c16_i32 = arith.constant 16 : i32
    %33 = tpu.dynamic_rotate %22 by %c16_i32 dim 1 : vector<8x512xf32>, i32 -> vector<8x512xf32>
    %c1_i32_20 = arith.constant 1 : i32
    %34 = vector.broadcast %c1_i32_20 : i32 to vector<8x512xi32>
    %35 = arith.cmpi sge, %4, %34 : vector<8x512xi32>
    %36 = arith.extui %35 : vector<8x512xi1> to vector<8x512xi32>
    %37 = arith.sitofp %36 : vector<8x512xi32> to vector<8x512xf32>
    %38 = arith.mulf %33, %37 : vector<8x512xf32>
    %c8 = arith.constant 8 : index
    %c0_21 = arith.constant 0 : index
    %39 = vector.load %arg25[%c8, %c0_21] : memref<392x512xf32, #tpu.memory_space<vmem>>, vector<8x512xf32>
    tpu.vector_store %arg25[%c8, %c0_21], %38 {strides = array<i32>} : memref<392x512xf32, #tpu.memory_space<vmem>>, vector<8x512xf32>,
    %c15_i32 = arith.constant 15 : i32
    %40 = tpu.dynamic_rotate %22 by %c15_i32 dim 1 : vector<8x512xf32>, i32 -> vector<8x512xf32>
    %c1_i32_22 = arith.constant 1 : i32
    %41 = vector.broadcast %c1_i32_22 : i32 to vector<8x512xi32>
    %42 = arith.cmpi sge, %4, %41 : vector<8x512xi32>
    %c15_i32_23 = arith.constant 15 : i32
    %43 = vector.broadcast %c15_i32_23 : i32 to vector<8x512xi32>
    %44 = arith.cmpi slt, %7, %43 : vector<8x512xi32>
    %45 = arith.andi %42, %44 : vector<8x512xi1>
    %46 = arith.extui %45 : vector<8x512xi1> to vector<8x512xi32>
    %47 = arith.sitofp %46 : vector<8x512xi32> to vector<8x512xf32>
    %48 = arith.mulf %40, %47 : vector<8x512xf32>
    %c16 = arith.constant 16 : index
    %c0_24 = arith.constant 0 : index
    %49 = vector.load %arg25[%c16, %c0_24] : memref<392x512xf32, #tpu.memory_space<vmem>>, vector<8x512xf32>
    tpu.vector_store %arg25[%c16, %c0_24], %48 {strides = array<i32>} : memref<392x512xf32, #tpu.memory_space<vmem>>, vector<8x512xf32>,
    %c1_i32_25 = arith.constant 1 : i32
    %50 = tpu.dynamic_rotate %22 by %c1_i32_25 dim 1 : vector<8x512xf32>, i32 -> vector<8x512xf32>
    %c1_i32_26 = arith.constant 1 : i32
    %51 = vector.broadcast %c1_i32_26 : i32 to vector<8x512xi32>
    %52 = arith.cmpi sge, %7, %51 : vector<8x512xi32>
    %53 = arith.extui %52 : vector<8x512xi1> to vector<8x512xi32>
    %54 = arith.sitofp %53 : vector<8x512xi32> to vector<8x512xf32>
    %55 = arith.mulf %50, %54 : vector<8x512xf32>
    %c24 = arith.constant 24 : index
    %c0_27 = arith.constant 0 : index
    %56 = vector.load %arg25[%c24, %c0_27] : memref<392x512xf32, #tpu.memory_space<vmem>>, vector<8x512xf32>
    tpu.vector_store %arg25[%c24, %c0_27], %55 {strides = array<i32>} : memref<392x512xf32, #tpu.memory_space<vmem>>, vector<8x512xf32>,
    %c32 = arith.constant 32 : index
    %c0_28 = arith.constant 0 : index
    %57 = vector.load %arg25[%c32, %c0_28] : memref<392x512xf32, #tpu.memory_space<vmem>>, vector<8x512xf32>
    tpu.vector_store %arg25[%c32, %c0_28], %22 {strides = array<i32>} : memref<392x512xf32, #tpu.memory_space<vmem>>, vector<8x512xf32>,
    %c511_i32 = arith.constant 511 : i32
    %58 = tpu.dynamic_rotate %22 by %c511_i32 dim 1 : vector<8x512xf32>, i32 -> vector<8x512xf32>
    %c15_i32_29 = arith.constant 15 : i32
    %59 = vector.broadcast %c15_i32_29 : i32 to vector<8x512xi32>
    %60 = arith.cmpi slt, %7, %59 : vector<8x512xi32>
    %61 = arith.extui %60 : vector<8x512xi1> to vector<8x512xi32>
    %62 = arith.sitofp %61 : vector<8x512xi32> to vector<8x512xf32>
    %63 = arith.mulf %58, %62 : vector<8x512xf32>
    %c40 = arith.constant 40 : index
    %c0_30 = arith.constant 0 : index
    %64 = vector.load %arg25[%c40, %c0_30] : memref<392x512xf32, #tpu.memory_space<vmem>>, vector<8x512xf32>
    tpu.vector_store %arg25[%c40, %c0_30], %63 {strides = array<i32>} : memref<392x512xf32, #tpu.memory_space<vmem>>, vector<8x512xf32>,
    %c497_i32 = arith.constant 497 : i32
    %65 = tpu.dynamic_rotate %22 by %c497_i32 dim 1 : vector<8x512xf32>, i32 -> vector<8x512xf32>
    %c15_i32_31 = arith.constant 15 : i32
    %66 = vector.broadcast %c15_i32_31 : i32 to vector<8x512xi32>
    %67 = arith.cmpi slt, %4, %66 : vector<8x512xi32>
    %c1_i32_32 = arith.constant 1 : i32
    %68 = vector.broadcast %c1_i32_32 : i32 to vector<8x512xi32>
    %69 = arith.cmpi sge, %7, %68 : vector<8x512xi32>
    %70 = arith.andi %67, %69 : vector<8x512xi1>
    %71 = arith.extui %70 : vector<8x512xi1> to vector<8x512xi32>
    %72 = arith.sitofp %71 : vector<8x512xi32> to vector<8x512xf32>
    %73 = arith.mulf %65, %72 : vector<8x512xf32>
    %c48 = arith.constant 48 : index
    %c0_33 = arith.constant 0 : index
    %74 = vector.load %arg25[%c48, %c0_33] : memref<392x512xf32, #tpu.memory_space<vmem>>, vector<8x512xf32>
    tpu.vector_store %arg25[%c48, %c0_33], %73 {strides = array<i32>} : memref<392x512xf32, #tpu.memory_space<vmem>>, vector<8x512xf32>,
    %c496_i32 = arith.constant 496 : i32
    %75 = tpu.dynamic_rotate %22 by %c496_i32 dim 1 : vector<8x512xf32>, i32 -> vector<8x512xf32>
    %c15_i32_34 = arith.constant 15 : i32
    %76 = vector.broadcast %c15_i32_34 : i32 to vector<8x512xi32>
    %77 = arith.cmpi slt, %4, %76 : vector<8x512xi32>
    %78 = arith.extui %77 : vector<8x512xi1> to vector<8x512xi32>
    %79 = arith.sitofp %78 : vector<8x512xi32> to vector<8x512xf32>
    %80 = arith.mulf %75, %79 : vector<8x512xf32>
    %c56 = arith.constant 56 : index
    %c0_35 = arith.constant 0 : index
    %81 = vector.load %arg25[%c56, %c0_35] : memref<392x512xf32, #tpu.memory_space<vmem>>, vector<8x512xf32>
    tpu.vector_store %arg25[%c56, %c0_35], %80 {strides = array<i32>} : memref<392x512xf32, #tpu.memory_space<vmem>>, vector<8x512xf32>,
    %c495_i32 = arith.constant 495 : i32
    %82 = tpu.dynamic_rotate %22 by %c495_i32 dim 1 : vector<8x512xf32>, i32 -> vector<8x512xf32>
    %c15_i32_36 = arith.constant 15 : i32
    %83 = vector.broadcast %c15_i32_36 : i32 to vector<8x512xi32>
    %84 = arith.cmpi slt, %4, %83 : vector<8x512xi32>
    %c15_i32_37 = arith.constant 15 : i32
    %85 = vector.broadcast %c15_i32_37 : i32 to vector<8x512xi32>
    %86 = arith.cmpi slt, %7, %85 : vector<8x512xi32>
    %87 = arith.andi %84, %86 : vector<8x512xi1>
    %88 = arith.extui %87 : vector<8x512xi1> to vector<8x512xi32>
    %89 = arith.sitofp %88 : vector<8x512xi32> to vector<8x512xf32>
    %90 = arith.mulf %82, %89 : vector<8x512xf32>
    %c64 = arith.constant 64 : index
    %c0_38 = arith.constant 0 : index
    %91 = vector.load %arg25[%c64, %c0_38] : memref<392x512xf32, #tpu.memory_space<vmem>>, vector<8x512xf32>
    tpu.vector_store %arg25[%c64, %c0_38], %90 {strides = array<i32>} : memref<392x512xf32, #tpu.memory_space<vmem>>, vector<8x512xf32>,
    %c0_39 = arith.constant 0 : index
    %c0_40 = arith.constant 0 : index
    %92 = vector.load %arg8[%c0_39, %c0_40] : memref<8x72xf32, #tpu.memory_space<vmem>>, vector<8x72xf32>
    %c0_41 = arith.constant 0 : index
    %c0_42 = arith.constant 0 : index
    %93 = vector.load %arg25[%c0_41, %c0_42] : memref<392x512xf32, #tpu.memory_space<vmem>>, vector<72x512xf32>
    %cst_43 = arith.constant dense<0.000000e+00> : vector<8x512xf32>
    %94 = tpu.matmul %92, %93, %cst_43 {dimension_numbers = #tpu.dot_dimension_numbers<[1], [0], [0], [1], [0, 0, 1, 1], [], []>} : vector<8x72xf32>, vector<72x512xf32>, vector<8x512xf32> -> vector<8x512xf32>
    %c0_44 = arith.constant 0 : index
    %c0_45 = arith.constant 0 : index
    %95 = vector.load %arg9[%c0_44, %c0_45] : memref<8x1xf32, #tpu.memory_space<vmem>>, vector<8x1xf32>
    %96 = vector.broadcast %95 : vector<8x1xf32> to vector<8x512xf32>
    %97 = arith.addf %94, %96 : vector<8x512xf32>
    %cst_46 = arith.constant 0.000000e+00 : f32
    %98 = vector.broadcast %cst_46 : f32 to vector<8x512xf32>
    %99 = arith.maximumf %97, %98 : vector<8x512xf32>
    %100 = vector.extract_strided_slice %14 {offsets = [8, 0], sizes = [8, 512], strides = [1, 1]} : vector<32x512xf32> to vector<8x512xf32>
    %101 = arith.addf %100, %99 : vector<8x512xf32>
    %c17_i32_47 = arith.constant 17 : i32
    %102 = tpu.dynamic_rotate %101 by %c17_i32_47 dim 1 : vector<8x512xf32>, i32 -> vector<8x512xf32>
    %103 = arith.mulf %102, %30 : vector<8x512xf32>
    %c0_48 = arith.constant 0 : index
    %c0_49 = arith.constant 0 : index
    %104 = vector.load %arg25[%c0_48, %c0_49] : memref<392x512xf32, #tpu.memory_space<vmem>>, vector<8x512xf32>
    tpu.vector_store %arg25[%c0_48, %c0_49], %103 {strides = array<i32>} : memref<392x512xf32, #tpu.memory_space<vmem>>, vector<8x512xf32>,
    %c16_i32_50 = arith.constant 16 : i32
    %105 = tpu.dynamic_rotate %101 by %c16_i32_50 dim 1 : vector<8x512xf32>, i32 -> vector<8x512xf32>
    %106 = arith.mulf %105, %37 : vector<8x512xf32>
    %c8_51 = arith.constant 8 : index
    %c0_52 = arith.constant 0 : index
    %107 = vector.load %arg25[%c8_51, %c0_52] : memref<392x512xf32, #tpu.memory_space<vmem>>, vector<8x512xf32>
    tpu.vector_store %arg25[%c8_51, %c0_52], %106 {strides = array<i32>} : memref<392x512xf32, #tpu.memory_space<vmem>>, vector<8x512xf32>,
    %c15_i32_53 = arith.constant 15 : i32
    %108 = tpu.dynamic_rotate %101 by %c15_i32_53 dim 1 : vector<8x512xf32>, i32 -> vector<8x512xf32>
    %109 = arith.mulf %108, %47 : vector<8x512xf32>
    %c16_54 = arith.constant 16 : index
    %c0_55 = arith.constant 0 : index
    %110 = vector.load %arg25[%c16_54, %c0_55] : memref<392x512xf32, #tpu.memory_space<vmem>>, vector<8x512xf32>
    tpu.vector_store %arg25[%c16_54, %c0_55], %109 {strides = array<i32>} : memref<392x512xf32, #tpu.memory_space<vmem>>, vector<8x512xf32>,
    %c1_i32_56 = arith.constant 1 : i32
    %111 = tpu.dynamic_rotate %101 by %c1_i32_56 dim 1 : vector<8x512xf32>, i32 -> vector<8x512xf32>
    %112 = arith.mulf %111, %54 : vector<8x512xf32>
    %c24_57 = arith.constant 24 : index
    %c0_58 = arith.constant 0 : index
    %113 = vector.load %arg25[%c24_57, %c0_58] : memref<392x512xf32, #tpu.memory_space<vmem>>, vector<8x512xf32>
    tpu.vector_store %arg25[%c24_57, %c0_58], %112 {strides = array<i32>} : memref<392x512xf32, #tpu.memory_space<vmem>>, vector<8x512xf32>,
    %c32_59 = arith.constant 32 : index
    %c0_60 = arith.constant 0 : index
    %114 = vector.load %arg25[%c32_59, %c0_60] : memref<392x512xf32, #tpu.memory_space<vmem>>, vector<8x512xf32>
    tpu.vector_store %arg25[%c32_59, %c0_60], %101 {strides = array<i32>} : memref<392x512xf32, #tpu.memory_space<vmem>>, vector<8x512xf32>,
    %c511_i32_61 = arith.constant 511 : i32
    %115 = tpu.dynamic_rotate %101 by %c511_i32_61 dim 1 : vector<8x512xf32>, i32 -> vector<8x512xf32>
    %116 = arith.mulf %115, %62 : vector<8x512xf32>
    %c40_62 = arith.constant 40 : index
    %c0_63 = arith.constant 0 : index
    %117 = vector.load %arg25[%c40_62, %c0_63] : memref<392x512xf32, #tpu.memory_space<vmem>>, vector<8x512xf32>
    tpu.vector_store %arg25[%c40_62, %c0_63], %116 {strides = array<i32>} : memref<392x512xf32, #tpu.memory_space<vmem>>, vector<8x512xf32>,
    %c497_i32_64 = arith.constant 497 : i32
    %118 = tpu.dynamic_rotate %101 by %c497_i32_64 dim 1 : vector<8x512xf32>, i32 -> vector<8x512xf32>
    %119 = arith.mulf %118, %72 : vector<8x512xf32>
    %c48_65 = arith.constant 48 : index
    %c0_66 = arith.constant 0 : index
    %120 = vector.load %arg25[%c48_65, %c0_66] : memref<392x512xf32, #tpu.memory_space<vmem>>, vector<8x512xf32>
    tpu.vector_store %arg25[%c48_65, %c0_66], %119 {strides = array<i32>} : memref<392x512xf32, #tpu.memory_space<vmem>>, vector<8x512xf32>,
    %c496_i32_67 = arith.constant 496 : i32
    %121 = tpu.dynamic_rotate %101 by %c496_i32_67 dim 1 : vector<8x512xf32>, i32 -> vector<8x512xf32>
    %122 = arith.mulf %121, %79 : vector<8x512xf32>
    %c56_68 = arith.constant 56 : index
    %c0_69 = arith.constant 0 : index
    %123 = vector.load %arg25[%c56_68, %c0_69] : memref<392x512xf32, #tpu.memory_space<vmem>>, vector<8x512xf32>
    tpu.vector_store %arg25[%c56_68, %c0_69], %122 {strides = array<i32>} : memref<392x512xf32, #tpu.memory_space<vmem>>, vector<8x512xf32>,
    %c495_i32_70 = arith.constant 495 : i32
    %124 = tpu.dynamic_rotate %101 by %c495_i32_70 dim 1 : vector<8x512xf32>, i32 -> vector<8x512xf32>
    %125 = arith.mulf %124, %89 : vector<8x512xf32>
    %c64_71 = arith.constant 64 : index
    %c0_72 = arith.constant 0 : index
    %126 = vector.load %arg25[%c64_71, %c0_72] : memref<392x512xf32, #tpu.memory_space<vmem>>, vector<8x512xf32>
    tpu.vector_store %arg25[%c64_71, %c0_72], %125 {strides = array<i32>} : memref<392x512xf32, #tpu.memory_space<vmem>>, vector<8x512xf32>,
    %c0_73 = arith.constant 0 : index
    %c0_74 = arith.constant 0 : index
    %127 = vector.load %arg10[%c0_73, %c0_74] : memref<8x72xf32, #tpu.memory_space<vmem>>, vector<8x72xf32>
    %c0_75 = arith.constant 0 : index
    %c0_76 = arith.constant 0 : index
    %128 = vector.load %arg25[%c0_75, %c0_76] : memref<392x512xf32, #tpu.memory_space<vmem>>, vector<72x512xf32>
    %cst_77 = arith.constant dense<0.000000e+00> : vector<8x512xf32>
    %129 = tpu.matmul %127, %128, %cst_77 {dimension_numbers = #tpu.dot_dimension_numbers<[1], [0], [0], [1], [0, 0, 1, 1], [], []>} : vector<8x72xf32>, vector<72x512xf32>, vector<8x512xf32> -> vector<8x512xf32>
    %c0_78 = arith.constant 0 : index
    %c0_79 = arith.constant 0 : index
    %130 = vector.load %arg11[%c0_78, %c0_79] : memref<8x1xf32, #tpu.memory_space<vmem>>, vector<8x1xf32>
    %131 = vector.broadcast %130 : vector<8x1xf32> to vector<8x512xf32>
    %132 = arith.addf %129, %131 : vector<8x512xf32>
    %cst_80 = arith.constant 0.000000e+00 : f32
    %133 = vector.broadcast %cst_80 : f32 to vector<8x512xf32>
    %134 = arith.maximumf %132, %133 : vector<8x512xf32>
    %c34_i32 = arith.constant 34 : i32
    %135 = tpu.dynamic_rotate %134 by %c34_i32 dim 1 : vector<8x512xf32>, i32 -> vector<8x512xf32>
    %c2_i32 = arith.constant 2 : i32
    %136 = vector.broadcast %c2_i32 : i32 to vector<8x512xi32>
    %137 = arith.cmpi sge, %4, %136 : vector<8x512xi32>
    %c2_i32_81 = arith.constant 2 : i32
    %138 = vector.broadcast %c2_i32_81 : i32 to vector<8x512xi32>
    %139 = arith.cmpi sge, %7, %138 : vector<8x512xi32>
    %140 = arith.andi %137, %139 : vector<8x512xi1>
    %141 = arith.extui %140 : vector<8x512xi1> to vector<8x512xi32>
    %142 = arith.sitofp %141 : vector<8x512xi32> to vector<8x512xf32>
    %143 = arith.mulf %135, %142 : vector<8x512xf32>
    %c0_82 = arith.constant 0 : index
    %c0_83 = arith.constant 0 : index
    %144 = vector.load %arg25[%c0_82, %c0_83] : memref<392x512xf32, #tpu.memory_space<vmem>>, vector<8x512xf32>
    tpu.vector_store %arg25[%c0_82, %c0_83], %143 {strides = array<i32>} : memref<392x512xf32, #tpu.memory_space<vmem>>, vector<8x512xf32>,
    %c32_i32 = arith.constant 32 : i32
    %145 = tpu.dynamic_rotate %134 by %c32_i32 dim 1 : vector<8x512xf32>, i32 -> vector<8x512xf32>
    %c2_i32_84 = arith.constant 2 : i32
    %146 = vector.broadcast %c2_i32_84 : i32 to vector<8x512xi32>
    %147 = arith.cmpi sge, %4, %146 : vector<8x512xi32>
    %148 = arith.extui %147 : vector<8x512xi1> to vector<8x512xi32>
    %149 = arith.sitofp %148 : vector<8x512xi32> to vector<8x512xf32>
    %150 = arith.mulf %145, %149 : vector<8x512xf32>
    %c8_85 = arith.constant 8 : index
    %c0_86 = arith.constant 0 : index
    %151 = vector.load %arg25[%c8_85, %c0_86] : memref<392x512xf32, #tpu.memory_space<vmem>>, vector<8x512xf32>
    tpu.vector_store %arg25[%c8_85, %c0_86], %150 {strides = array<i32>} : memref<392x512xf32, #tpu.memory_space<vmem>>, vector<8x512xf32>,
    %c30_i32 = arith.constant 30 : i32
    %152 = tpu.dynamic_rotate %134 by %c30_i32 dim 1 : vector<8x512xf32>, i32 -> vector<8x512xf32>
    %c2_i32_87 = arith.constant 2 : i32
    %153 = vector.broadcast %c2_i32_87 : i32 to vector<8x512xi32>
    %154 = arith.cmpi sge, %4, %153 : vector<8x512xi32>
    %c14_i32 = arith.constant 14 : i32
    %155 = vector.broadcast %c14_i32 : i32 to vector<8x512xi32>
    %156 = arith.cmpi slt, %7, %155 : vector<8x512xi32>
    %157 = arith.andi %154, %156 : vector<8x512xi1>
    %158 = arith.extui %157 : vector<8x512xi1> to vector<8x512xi32>
    %159 = arith.sitofp %158 : vector<8x512xi32> to vector<8x512xf32>
    %160 = arith.mulf %152, %159 : vector<8x512xf32>
    %c16_88 = arith.constant 16 : index
    %c0_89 = arith.constant 0 : index
    %161 = vector.load %arg25[%c16_88, %c0_89] : memref<392x512xf32, #tpu.memory_space<vmem>>, vector<8x512xf32>
    tpu.vector_store %arg25[%c16_88, %c0_89], %160 {strides = array<i32>} : memref<392x512xf32, #tpu.memory_space<vmem>>, vector<8x512xf32>,
    %c2_i32_90 = arith.constant 2 : i32
    %162 = tpu.dynamic_rotate %134 by %c2_i32_90 dim 1 : vector<8x512xf32>, i32 -> vector<8x512xf32>
    %c2_i32_91 = arith.constant 2 : i32
    %163 = vector.broadcast %c2_i32_91 : i32 to vector<8x512xi32>
    %164 = arith.cmpi sge, %7, %163 : vector<8x512xi32>
    %165 = arith.extui %164 : vector<8x512xi1> to vector<8x512xi32>
    %166 = arith.sitofp %165 : vector<8x512xi32> to vector<8x512xf32>
    %167 = arith.mulf %162, %166 : vector<8x512xf32>
    %c24_92 = arith.constant 24 : index
    %c0_93 = arith.constant 0 : index
    %168 = vector.load %arg25[%c24_92, %c0_93] : memref<392x512xf32, #tpu.memory_space<vmem>>, vector<8x512xf32>
    tpu.vector_store %arg25[%c24_92, %c0_93], %167 {strides = array<i32>} : memref<392x512xf32, #tpu.memory_space<vmem>>, vector<8x512xf32>,
    %c32_94 = arith.constant 32 : index
    %c0_95 = arith.constant 0 : index
    %169 = vector.load %arg25[%c32_94, %c0_95] : memref<392x512xf32, #tpu.memory_space<vmem>>, vector<8x512xf32>
    tpu.vector_store %arg25[%c32_94, %c0_95], %134 {strides = array<i32>} : memref<392x512xf32, #tpu.memory_space<vmem>>, vector<8x512xf32>,
    %c510_i32 = arith.constant 510 : i32
    %170 = tpu.dynamic_rotate %134 by %c510_i32 dim 1 : vector<8x512xf32>, i32 -> vector<8x512xf32>
    %c14_i32_96 = arith.constant 14 : i32
    %171 = vector.broadcast %c14_i32_96 : i32 to vector<8x512xi32>
    %172 = arith.cmpi slt, %7, %171 : vector<8x512xi32>
    %173 = arith.extui %172 : vector<8x512xi1> to vector<8x512xi32>
    %174 = arith.sitofp %173 : vector<8x512xi32> to vector<8x512xf32>
    %175 = arith.mulf %170, %174 : vector<8x512xf32>
    %c40_97 = arith.constant 40 : index
    %c0_98 = arith.constant 0 : index
    %176 = vector.load %arg25[%c40_97, %c0_98] : memref<392x512xf32, #tpu.memory_space<vmem>>, vector<8x512xf32>
    tpu.vector_store %arg25[%c40_97, %c0_98], %175 {strides = array<i32>} : memref<392x512xf32, #tpu.memory_space<vmem>>, vector<8x512xf32>,
    %c482_i32 = arith.constant 482 : i32
    %177 = tpu.dynamic_rotate %134 by %c482_i32 dim 1 : vector<8x512xf32>, i32 -> vector<8x512xf32>
    %c14_i32_99 = arith.constant 14 : i32
    %178 = vector.broadcast %c14_i32_99 : i32 to vector<8x512xi32>
    %179 = arith.cmpi slt, %4, %178 : vector<8x512xi32>
    %c2_i32_100 = arith.constant 2 : i32
    %180 = vector.broadcast %c2_i32_100 : i32 to vector<8x512xi32>
    %181 = arith.cmpi sge, %7, %180 : vector<8x512xi32>
    %182 = arith.andi %179, %181 : vector<8x512xi1>
    %183 = arith.extui %182 : vector<8x512xi1> to vector<8x512xi32>
    %184 = arith.sitofp %183 : vector<8x512xi32> to vector<8x512xf32>
    %185 = arith.mulf %177, %184 : vector<8x512xf32>
    %c48_101 = arith.constant 48 : index
    %c0_102 = arith.constant 0 : index
    %186 = vector.load %arg25[%c48_101, %c0_102] : memref<392x512xf32, #tpu.memory_space<vmem>>, vector<8x512xf32>
    tpu.vector_store %arg25[%c48_101, %c0_102], %185 {strides = array<i32>} : memref<392x512xf32, #tpu.memory_space<vmem>>, vector<8x512xf32>,
    %c480_i32 = arith.constant 480 : i32
    %187 = tpu.dynamic_rotate %134 by %c480_i32 dim 1 : vector<8x512xf32>, i32 -> vector<8x512xf32>
    %c14_i32_103 = arith.constant 14 : i32
    %188 = vector.broadcast %c14_i32_103 : i32 to vector<8x512xi32>
    %189 = arith.cmpi slt, %4, %188 : vector<8x512xi32>
    %190 = arith.extui %189 : vector<8x512xi1> to vector<8x512xi32>
    %191 = arith.sitofp %190 : vector<8x512xi32> to vector<8x512xf32>
    %192 = arith.mulf %187, %191 : vector<8x512xf32>
    %c56_104 = arith.constant 56 : index
    %c0_105 = arith.constant 0 : index
    %193 = vector.load %arg25[%c56_104, %c0_105] : memref<392x512xf32, #tpu.memory_space<vmem>>, vector<8x512xf32>
    tpu.vector_store %arg25[%c56_104, %c0_105], %192 {strides = array<i32>} : memref<392x512xf32, #tpu.memory_space<vmem>>, vector<8x512xf32>,
    %c478_i32 = arith.constant 478 : i32
    %194 = tpu.dynamic_rotate %134 by %c478_i32 dim 1 : vector<8x512xf32>, i32 -> vector<8x512xf32>
    %c14_i32_106 = arith.constant 14 : i32
    %195 = vector.broadcast %c14_i32_106 : i32 to vector<8x512xi32>
    %196 = arith.cmpi slt, %4, %195 : vector<8x512xi32>
    %c14_i32_107 = arith.constant 14 : i32
    %197 = vector.broadcast %c14_i32_107 : i32 to vector<8x512xi32>
    %198 = arith.cmpi slt, %7, %197 : vector<8x512xi32>
    %199 = arith.andi %196, %198 : vector<8x512xi1>
    %200 = arith.extui %199 : vector<8x512xi1> to vector<8x512xi32>
    %201 = arith.sitofp %200 : vector<8x512xi32> to vector<8x512xf32>
    %202 = arith.mulf %194, %201 : vector<8x512xf32>
    %c64_108 = arith.constant 64 : index
    %c0_109 = arith.constant 0 : index
    %203 = vector.load %arg25[%c64_108, %c0_109] : memref<392x512xf32, #tpu.memory_space<vmem>>, vector<8x512xf32>
    tpu.vector_store %arg25[%c64_108, %c0_109], %202 {strides = array<i32>} : memref<392x512xf32, #tpu.memory_space<vmem>>, vector<8x512xf32>,
    %c0_110 = arith.constant 0 : index
    %c0_111 = arith.constant 0 : index
    %204 = vector.load %arg12[%c0_110, %c0_111] : memref<8x72xf32, #tpu.memory_space<vmem>>, vector<8x72xf32>
    %c0_112 = arith.constant 0 : index
    %c0_113 = arith.constant 0 : index
    %205 = vector.load %arg25[%c0_112, %c0_113] : memref<392x512xf32, #tpu.memory_space<vmem>>, vector<72x512xf32>
    %cst_114 = arith.constant dense<0.000000e+00> : vector<8x512xf32>
    %206 = tpu.matmul %204, %205, %cst_114 {dimension_numbers = #tpu.dot_dimension_numbers<[1], [0], [0], [1], [0, 0, 1, 1], [], []>} : vector<8x72xf32>, vector<72x512xf32>, vector<8x512xf32> -> vector<8x512xf32>
    %c0_115 = arith.constant 0 : index
    %c0_116 = arith.constant 0 : index
    %207 = vector.load %arg13[%c0_115, %c0_116] : memref<8x1xf32, #tpu.memory_space<vmem>>, vector<8x1xf32>
    %208 = vector.broadcast %207 : vector<8x1xf32> to vector<8x512xf32>
    %209 = arith.addf %206, %208 : vector<8x512xf32>
    %cst_117 = arith.constant 0.000000e+00 : f32
    %210 = vector.broadcast %cst_117 : f32 to vector<8x512xf32>
    %211 = arith.maximumf %209, %210 : vector<8x512xf32>
    %212 = vector.extract_strided_slice %14 {offsets = [16, 0], sizes = [8, 512], strides = [1, 1]} : vector<32x512xf32> to vector<8x512xf32>
    %213 = arith.addf %212, %211 : vector<8x512xf32>
    %c34_i32_118 = arith.constant 34 : i32
    %214 = tpu.dynamic_rotate %213 by %c34_i32_118 dim 1 : vector<8x512xf32>, i32 -> vector<8x512xf32>
    %215 = arith.mulf %214, %142 : vector<8x512xf32>
    %c0_119 = arith.constant 0 : index
    %c0_120 = arith.constant 0 : index
    %216 = vector.load %arg25[%c0_119, %c0_120] : memref<392x512xf32, #tpu.memory_space<vmem>>, vector<8x512xf32>
    tpu.vector_store %arg25[%c0_119, %c0_120], %215 {strides = array<i32>} : memref<392x512xf32, #tpu.memory_space<vmem>>, vector<8x512xf32>,
    %c33_i32 = arith.constant 33 : i32
    %217 = tpu.dynamic_rotate %213 by %c33_i32 dim 1 : vector<8x512xf32>, i32 -> vector<8x512xf32>
    %c2_i32_121 = arith.constant 2 : i32
    %218 = vector.broadcast %c2_i32_121 : i32 to vector<8x512xi32>
    %219 = arith.cmpi sge, %4, %218 : vector<8x512xi32>
    %c1_i32_122 = arith.constant 1 : i32
    %220 = vector.broadcast %c1_i32_122 : i32 to vector<8x512xi32>
    %221 = arith.cmpi sge, %7, %220 : vector<8x512xi32>
    %222 = arith.andi %219, %221 : vector<8x512xi1>
    %223 = arith.extui %222 : vector<8x512xi1> to vector<8x512xi32>
    %224 = arith.sitofp %223 : vector<8x512xi32> to vector<8x512xf32>
    %225 = arith.mulf %217, %224 : vector<8x512xf32>
    %c8_123 = arith.constant 8 : index
    %c0_124 = arith.constant 0 : index
    %226 = vector.load %arg25[%c8_123, %c0_124] : memref<392x512xf32, #tpu.memory_space<vmem>>, vector<8x512xf32>
    tpu.vector_store %arg25[%c8_123, %c0_124], %225 {strides = array<i32>} : memref<392x512xf32, #tpu.memory_space<vmem>>, vector<8x512xf32>,
    %c32_i32_125 = arith.constant 32 : i32
    %227 = tpu.dynamic_rotate %213 by %c32_i32_125 dim 1 : vector<8x512xf32>, i32 -> vector<8x512xf32>
    %228 = arith.mulf %227, %149 : vector<8x512xf32>
    %c16_126 = arith.constant 16 : index
    %c0_127 = arith.constant 0 : index
    %229 = vector.load %arg25[%c16_126, %c0_127] : memref<392x512xf32, #tpu.memory_space<vmem>>, vector<8x512xf32>
    tpu.vector_store %arg25[%c16_126, %c0_127], %228 {strides = array<i32>} : memref<392x512xf32, #tpu.memory_space<vmem>>, vector<8x512xf32>,
    %c31_i32 = arith.constant 31 : i32
    %230 = tpu.dynamic_rotate %213 by %c31_i32 dim 1 : vector<8x512xf32>, i32 -> vector<8x512xf32>
    %c2_i32_128 = arith.constant 2 : i32
    %231 = vector.broadcast %c2_i32_128 : i32 to vector<8x512xi32>
    %232 = arith.cmpi sge, %4, %231 : vector<8x512xi32>
    %c15_i32_129 = arith.constant 15 : i32
    %233 = vector.broadcast %c15_i32_129 : i32 to vector<8x512xi32>
    %234 = arith.cmpi slt, %7, %233 : vector<8x512xi32>
    %235 = arith.andi %232, %234 : vector<8x512xi1>
    %236 = arith.extui %235 : vector<8x512xi1> to vector<8x512xi32>
    %237 = arith.sitofp %236 : vector<8x512xi32> to vector<8x512xf32>
    %238 = arith.mulf %230, %237 : vector<8x512xf32>
    %c24_130 = arith.constant 24 : index
    %c0_131 = arith.constant 0 : index
    %239 = vector.load %arg25[%c24_130, %c0_131] : memref<392x512xf32, #tpu.memory_space<vmem>>, vector<8x512xf32>
    tpu.vector_store %arg25[%c24_130, %c0_131], %238 {strides = array<i32>} : memref<392x512xf32, #tpu.memory_space<vmem>>, vector<8x512xf32>,
    %c30_i32_132 = arith.constant 30 : i32
    %240 = tpu.dynamic_rotate %213 by %c30_i32_132 dim 1 : vector<8x512xf32>, i32 -> vector<8x512xf32>
    %241 = arith.mulf %240, %159 : vector<8x512xf32>
    %c32_133 = arith.constant 32 : index
    %c0_134 = arith.constant 0 : index
    %242 = vector.load %arg25[%c32_133, %c0_134] : memref<392x512xf32, #tpu.memory_space<vmem>>, vector<8x512xf32>
    tpu.vector_store %arg25[%c32_133, %c0_134], %241 {strides = array<i32>} : memref<392x512xf32, #tpu.memory_space<vmem>>, vector<8x512xf32>,
    %c18_i32 = arith.constant 18 : i32
    %243 = tpu.dynamic_rotate %213 by %c18_i32 dim 1 : vector<8x512xf32>, i32 -> vector<8x512xf32>
    %c1_i32_135 = arith.constant 1 : i32
    %244 = vector.broadcast %c1_i32_135 : i32 to vector<8x512xi32>
    %245 = arith.cmpi sge, %4, %244 : vector<8x512xi32>
    %c2_i32_136 = arith.constant 2 : i32
    %246 = vector.broadcast %c2_i32_136 : i32 to vector<8x512xi32>
    %247 = arith.cmpi sge, %7, %246 : vector<8x512xi32>
    %248 = arith.andi %245, %247 : vector<8x512xi1>
    %249 = arith.extui %248 : vector<8x512xi1> to vector<8x512xi32>
    %250 = arith.sitofp %249 : vector<8x512xi32> to vector<8x512xf32>
    %251 = arith.mulf %243, %250 : vector<8x512xf32>
    %c40_137 = arith.constant 40 : index
    %c0_138 = arith.constant 0 : index
    %252 = vector.load %arg25[%c40_137, %c0_138] : memref<392x512xf32, #tpu.memory_space<vmem>>, vector<8x512xf32>
    tpu.vector_store %arg25[%c40_137, %c0_138], %251 {strides = array<i32>} : memref<392x512xf32, #tpu.memory_space<vmem>>, vector<8x512xf32>,
    %c17_i32_139 = arith.constant 17 : i32
    %253 = tpu.dynamic_rotate %213 by %c17_i32_139 dim 1 : vector<8x512xf32>, i32 -> vector<8x512xf32>
    %254 = arith.mulf %253, %30 : vector<8x512xf32>
    %c48_140 = arith.constant 48 : index
    %c0_141 = arith.constant 0 : index
    %255 = vector.load %arg25[%c48_140, %c0_141] : memref<392x512xf32, #tpu.memory_space<vmem>>, vector<8x512xf32>
    tpu.vector_store %arg25[%c48_140, %c0_141], %254 {strides = array<i32>} : memref<392x512xf32, #tpu.memory_space<vmem>>, vector<8x512xf32>,
    %c16_i32_142 = arith.constant 16 : i32
    %256 = tpu.dynamic_rotate %213 by %c16_i32_142 dim 1 : vector<8x512xf32>, i32 -> vector<8x512xf32>
    %257 = arith.mulf %256, %37 : vector<8x512xf32>
    %c56_143 = arith.constant 56 : index
    %c0_144 = arith.constant 0 : index
    %258 = vector.load %arg25[%c56_143, %c0_144] : memref<392x512xf32, #tpu.memory_space<vmem>>, vector<8x512xf32>
    tpu.vector_store %arg25[%c56_143, %c0_144], %257 {strides = array<i32>} : memref<392x512xf32, #tpu.memory_space<vmem>>, vector<8x512xf32>,
    %c15_i32_145 = arith.constant 15 : i32
    %259 = tpu.dynamic_rotate %213 by %c15_i32_145 dim 1 : vector<8x512xf32>, i32 -> vector<8x512xf32>
    %260 = arith.mulf %259, %47 : vector<8x512xf32>
    %c64_146 = arith.constant 64 : index
    %c0_147 = arith.constant 0 : index
    %261 = vector.load %arg25[%c64_146, %c0_147] : memref<392x512xf32, #tpu.memory_space<vmem>>, vector<8x512xf32>
    tpu.vector_store %arg25[%c64_146, %c0_147], %260 {strides = array<i32>} : memref<392x512xf32, #tpu.memory_space<vmem>>, vector<8x512xf32>,
    %c14_i32_148 = arith.constant 14 : i32
    %262 = tpu.dynamic_rotate %213 by %c14_i32_148 dim 1 : vector<8x512xf32>, i32 -> vector<8x512xf32>
    %c1_i32_149 = arith.constant 1 : i32
    %263 = vector.broadcast %c1_i32_149 : i32 to vector<8x512xi32>
    %264 = arith.cmpi sge, %4, %263 : vector<8x512xi32>
    %c14_i32_150 = arith.constant 14 : i32
    %265 = vector.broadcast %c14_i32_150 : i32 to vector<8x512xi32>
    %266 = arith.cmpi slt, %7, %265 : vector<8x512xi32>
    %267 = arith.andi %264, %266 : vector<8x512xi1>
    %268 = arith.extui %267 : vector<8x512xi1> to vector<8x512xi32>
    %269 = arith.sitofp %268 : vector<8x512xi32> to vector<8x512xf32>
    %270 = arith.mulf %262, %269 : vector<8x512xf32>
    %c72 = arith.constant 72 : index
    %c0_151 = arith.constant 0 : index
    %271 = vector.load %arg25[%c72, %c0_151] : memref<392x512xf32, #tpu.memory_space<vmem>>, vector<8x512xf32>
    tpu.vector_store %arg25[%c72, %c0_151], %270 {strides = array<i32>} : memref<392x512xf32, #tpu.memory_space<vmem>>, vector<8x512xf32>,
    %c2_i32_152 = arith.constant 2 : i32
    %272 = tpu.dynamic_rotate %213 by %c2_i32_152 dim 1 : vector<8x512xf32>, i32 -> vector<8x512xf32>
    %273 = arith.mulf %272, %166 : vector<8x512xf32>
    %c80 = arith.constant 80 : index
    %c0_153 = arith.constant 0 : index
    %274 = vector.load %arg25[%c80, %c0_153] : memref<392x512xf32, #tpu.memory_space<vmem>>, vector<8x512xf32>
    tpu.vector_store %arg25[%c80, %c0_153], %273 {strides = array<i32>} : memref<392x512xf32, #tpu.memory_space<vmem>>, vector<8x512xf32>,
    %c1_i32_154 = arith.constant 1 : i32
    %275 = tpu.dynamic_rotate %213 by %c1_i32_154 dim 1 : vector<8x512xf32>, i32 -> vector<8x512xf32>
    %276 = arith.mulf %275, %54 : vector<8x512xf32>
    %c88 = arith.constant 88 : index
    %c0_155 = arith.constant 0 : index
    %277 = vector.load %arg25[%c88, %c0_155] : memref<392x512xf32, #tpu.memory_space<vmem>>, vector<8x512xf32>
    tpu.vector_store %arg25[%c88, %c0_155], %276 {strides = array<i32>} : memref<392x512xf32, #tpu.memory_space<vmem>>, vector<8x512xf32>,
    %c96 = arith.constant 96 : index
    %c0_156 = arith.constant 0 : index
    %278 = vector.load %arg25[%c96, %c0_156] : memref<392x512xf32, #tpu.memory_space<vmem>>, vector<8x512xf32>
    tpu.vector_store %arg25[%c96, %c0_156], %213 {strides = array<i32>} : memref<392x512xf32, #tpu.memory_space<vmem>>, vector<8x512xf32>,
    %c511_i32_157 = arith.constant 511 : i32
    %279 = tpu.dynamic_rotate %213 by %c511_i32_157 dim 1 : vector<8x512xf32>, i32 -> vector<8x512xf32>
    %280 = arith.mulf %279, %62 : vector<8x512xf32>
    %c104 = arith.constant 104 : index
    %c0_158 = arith.constant 0 : index
    %281 = vector.load %arg25[%c104, %c0_158] : memref<392x512xf32, #tpu.memory_space<vmem>>, vector<8x512xf32>
    tpu.vector_store %arg25[%c104, %c0_158], %280 {strides = array<i32>} : memref<392x512xf32, #tpu.memory_space<vmem>>, vector<8x512xf32>,
    %c510_i32_159 = arith.constant 510 : i32
    %282 = tpu.dynamic_rotate %213 by %c510_i32_159 dim 1 : vector<8x512xf32>, i32 -> vector<8x512xf32>
    %283 = arith.mulf %282, %174 : vector<8x512xf32>
    %c112 = arith.constant 112 : index
    %c0_160 = arith.constant 0 : index
    %284 = vector.load %arg25[%c112, %c0_160] : memref<392x512xf32, #tpu.memory_space<vmem>>, vector<8x512xf32>
    tpu.vector_store %arg25[%c112, %c0_160], %283 {strides = array<i32>} : memref<392x512xf32, #tpu.memory_space<vmem>>, vector<8x512xf32>,
    %c498_i32 = arith.constant 498 : i32
    %285 = tpu.dynamic_rotate %213 by %c498_i32 dim 1 : vector<8x512xf32>, i32 -> vector<8x512xf32>
    %c15_i32_161 = arith.constant 15 : i32
    %286 = vector.broadcast %c15_i32_161 : i32 to vector<8x512xi32>
    %287 = arith.cmpi slt, %4, %286 : vector<8x512xi32>
    %c2_i32_162 = arith.constant 2 : i32
    %288 = vector.broadcast %c2_i32_162 : i32 to vector<8x512xi32>
    %289 = arith.cmpi sge, %7, %288 : vector<8x512xi32>
    %290 = arith.andi %287, %289 : vector<8x512xi1>
    %291 = arith.extui %290 : vector<8x512xi1> to vector<8x512xi32>
    %292 = arith.sitofp %291 : vector<8x512xi32> to vector<8x512xf32>
    %293 = arith.mulf %285, %292 : vector<8x512xf32>
    %c120 = arith.constant 120 : index
    %c0_163 = arith.constant 0 : index
    %294 = vector.load %arg25[%c120, %c0_163] : memref<392x512xf32, #tpu.memory_space<vmem>>, vector<8x512xf32>
    tpu.vector_store %arg25[%c120, %c0_163], %293 {strides = array<i32>} : memref<392x512xf32, #tpu.memory_space<vmem>>, vector<8x512xf32>,
    %c497_i32_164 = arith.constant 497 : i32
    %295 = tpu.dynamic_rotate %213 by %c497_i32_164 dim 1 : vector<8x512xf32>, i32 -> vector<8x512xf32>
    %296 = arith.mulf %295, %72 : vector<8x512xf32>
    %c128 = arith.constant 128 : index
    %c0_165 = arith.constant 0 : index
    %297 = vector.load %arg25[%c128, %c0_165] : memref<392x512xf32, #tpu.memory_space<vmem>>, vector<8x512xf32>
    tpu.vector_store %arg25[%c128, %c0_165], %296 {strides = array<i32>} : memref<392x512xf32, #tpu.memory_space<vmem>>, vector<8x512xf32>,
    %c496_i32_166 = arith.constant 496 : i32
    %298 = tpu.dynamic_rotate %213 by %c496_i32_166 dim 1 : vector<8x512xf32>, i32 -> vector<8x512xf32>
    %299 = arith.mulf %298, %79 : vector<8x512xf32>
    %c136 = arith.constant 136 : index
    %c0_167 = arith.constant 0 : index
    %300 = vector.load %arg25[%c136, %c0_167] : memref<392x512xf32, #tpu.memory_space<vmem>>, vector<8x512xf32>
    tpu.vector_store %arg25[%c136, %c0_167], %299 {strides = array<i32>} : memref<392x512xf32, #tpu.memory_space<vmem>>, vector<8x512xf32>,
    %c495_i32_168 = arith.constant 495 : i32
    %301 = tpu.dynamic_rotate %213 by %c495_i32_168 dim 1 : vector<8x512xf32>, i32 -> vector<8x512xf32>
    %302 = arith.mulf %301, %89 : vector<8x512xf32>
    %c144 = arith.constant 144 : index
    %c0_169 = arith.constant 0 : index
    %303 = vector.load %arg25[%c144, %c0_169] : memref<392x512xf32, #tpu.memory_space<vmem>>, vector<8x512xf32>
    tpu.vector_store %arg25[%c144, %c0_169], %302 {strides = array<i32>} : memref<392x512xf32, #tpu.memory_space<vmem>>, vector<8x512xf32>,
    %c494_i32 = arith.constant 494 : i32
    %304 = tpu.dynamic_rotate %213 by %c494_i32 dim 1 : vector<8x512xf32>, i32 -> vector<8x512xf32>
    %c15_i32_170 = arith.constant 15 : i32
    %305 = vector.broadcast %c15_i32_170 : i32 to vector<8x512xi32>
    %306 = arith.cmpi slt, %4, %305 : vector<8x512xi32>
    %c14_i32_171 = arith.constant 14 : i32
    %307 = vector.broadcast %c14_i32_171 : i32 to vector<8x512xi32>
    %308 = arith.cmpi slt, %7, %307 : vector<8x512xi32>
    %309 = arith.andi %306, %308 : vector<8x512xi1>
    %310 = arith.extui %309 : vector<8x512xi1> to vector<8x512xi32>
    %311 = arith.sitofp %310 : vector<8x512xi32> to vector<8x512xf32>
    %312 = arith.mulf %304, %311 : vector<8x512xf32>
    %c152 = arith.constant 152 : index
    %c0_172 = arith.constant 0 : index
    %313 = vector.load %arg25[%c152, %c0_172] : memref<392x512xf32, #tpu.memory_space<vmem>>, vector<8x512xf32>
    tpu.vector_store %arg25[%c152, %c0_172], %312 {strides = array<i32>} : memref<392x512xf32, #tpu.memory_space<vmem>>, vector<8x512xf32>,
    %c482_i32_173 = arith.constant 482 : i32
    %314 = tpu.dynamic_rotate %213 by %c482_i32_173 dim 1 : vector<8x512xf32>, i32 -> vector<8x512xf32>
    %315 = arith.mulf %314, %184 : vector<8x512xf32>
    %c160 = arith.constant 160 : index
    %c0_174 = arith.constant 0 : index
    %316 = vector.load %arg25[%c160, %c0_174] : memref<392x512xf32, #tpu.memory_space<vmem>>, vector<8x512xf32>
    tpu.vector_store %arg25[%c160, %c0_174], %315 {strides = array<i32>} : memref<392x512xf32, #tpu.memory_space<vmem>>, vector<8x512xf32>,
    %c481_i32 = arith.constant 481 : i32
    %317 = tpu.dynamic_rotate %213 by %c481_i32 dim 1 : vector<8x512xf32>, i32 -> vector<8x512xf32>
    %c14_i32_175 = arith.constant 14 : i32
    %318 = vector.broadcast %c14_i32_175 : i32 to vector<8x512xi32>
    %319 = arith.cmpi slt, %4, %318 : vector<8x512xi32>
    %c1_i32_176 = arith.constant 1 : i32
    %320 = vector.broadcast %c1_i32_176 : i32 to vector<8x512xi32>
    %321 = arith.cmpi sge, %7, %320 : vector<8x512xi32>
    %322 = arith.andi %319, %321 : vector<8x512xi1>
    %323 = arith.extui %322 : vector<8x512xi1> to vector<8x512xi32>
    %324 = arith.sitofp %323 : vector<8x512xi32> to vector<8x512xf32>
    %325 = arith.mulf %317, %324 : vector<8x512xf32>
    %c168 = arith.constant 168 : index
    %c0_177 = arith.constant 0 : index
    %326 = vector.load %arg25[%c168, %c0_177] : memref<392x512xf32, #tpu.memory_space<vmem>>, vector<8x512xf32>
    tpu.vector_store %arg25[%c168, %c0_177], %325 {strides = array<i32>} : memref<392x512xf32, #tpu.memory_space<vmem>>, vector<8x512xf32>,
    %c480_i32_178 = arith.constant 480 : i32
    %327 = tpu.dynamic_rotate %213 by %c480_i32_178 dim 1 : vector<8x512xf32>, i32 -> vector<8x512xf32>
    %328 = arith.mulf %327, %191 : vector<8x512xf32>
    %c176 = arith.constant 176 : index
    %c0_179 = arith.constant 0 : index
    %329 = vector.load %arg25[%c176, %c0_179] : memref<392x512xf32, #tpu.memory_space<vmem>>, vector<8x512xf32>
    tpu.vector_store %arg25[%c176, %c0_179], %328 {strides = array<i32>} : memref<392x512xf32, #tpu.memory_space<vmem>>, vector<8x512xf32>,
    %c479_i32 = arith.constant 479 : i32
    %330 = tpu.dynamic_rotate %213 by %c479_i32 dim 1 : vector<8x512xf32>, i32 -> vector<8x512xf32>
    %c14_i32_180 = arith.constant 14 : i32
    %331 = vector.broadcast %c14_i32_180 : i32 to vector<8x512xi32>
    %332 = arith.cmpi slt, %4, %331 : vector<8x512xi32>
    %c15_i32_181 = arith.constant 15 : i32
    %333 = vector.broadcast %c15_i32_181 : i32 to vector<8x512xi32>
    %334 = arith.cmpi slt, %7, %333 : vector<8x512xi32>
    %335 = arith.andi %332, %334 : vector<8x512xi1>
    %336 = arith.extui %335 : vector<8x512xi1> to vector<8x512xi32>
    %337 = arith.sitofp %336 : vector<8x512xi32> to vector<8x512xf32>
    %338 = arith.mulf %330, %337 : vector<8x512xf32>
    %c184 = arith.constant 184 : index
    %c0_182 = arith.constant 0 : index
    %339 = vector.load %arg25[%c184, %c0_182] : memref<392x512xf32, #tpu.memory_space<vmem>>, vector<8x512xf32>
    tpu.vector_store %arg25[%c184, %c0_182], %338 {strides = array<i32>} : memref<392x512xf32, #tpu.memory_space<vmem>>, vector<8x512xf32>,
    %c478_i32_183 = arith.constant 478 : i32
    %340 = tpu.dynamic_rotate %213 by %c478_i32_183 dim 1 : vector<8x512xf32>, i32 -> vector<8x512xf32>
    %341 = arith.mulf %340, %201 : vector<8x512xf32>
    %c192 = arith.constant 192 : index
    %c0_184 = arith.constant 0 : index
    %342 = vector.load %arg25[%c192, %c0_184] : memref<392x512xf32, #tpu.memory_space<vmem>>, vector<8x512xf32>
    tpu.vector_store %arg25[%c192, %c0_184], %341 {strides = array<i32>} : memref<392x512xf32, #tpu.memory_space<vmem>>, vector<8x512xf32>,
    %c0_185 = arith.constant 0 : index
    %c0_186 = arith.constant 0 : index
    %343 = vector.load %arg14[%c0_185, %c0_186] : memref<8x200xf32, #tpu.memory_space<vmem>>, vector<8x200xf32>
    %c0_187 = arith.constant 0 : index
    %c0_188 = arith.constant 0 : index
    %344 = vector.load %arg25[%c0_187, %c0_188] : memref<392x512xf32, #tpu.memory_space<vmem>>, vector<200x512xf32>
    %cst_189 = arith.constant dense<0.000000e+00> : vector<8x512xf32>
    %345 = tpu.matmul %343, %344, %cst_189 {dimension_numbers = #tpu.dot_dimension_numbers<[1], [0], [0], [1], [0, 0, 1, 1], [], []>} : vector<8x200xf32>, vector<200x512xf32>, vector<8x512xf32> -> vector<8x512xf32>
    %c0_190 = arith.constant 0 : index
    %c0_191 = arith.constant 0 : index
    %346 = vector.load %arg15[%c0_190, %c0_191] : memref<8x1xf32, #tpu.memory_space<vmem>>, vector<8x1xf32>
    %347 = vector.broadcast %346 : vector<8x1xf32> to vector<8x512xf32>
    %348 = arith.addf %345, %347 : vector<8x512xf32>
    %cst_192 = arith.constant 0.000000e+00 : f32
    %349 = vector.broadcast %cst_192 : f32 to vector<8x512xf32>
    %350 = arith.maximumf %348, %349 : vector<8x512xf32>
    %c68_i32 = arith.constant 68 : i32
    %351 = tpu.dynamic_rotate %350 by %c68_i32 dim 1 : vector<8x512xf32>, i32 -> vector<8x512xf32>
    %c4_i32 = arith.constant 4 : i32
    %352 = vector.broadcast %c4_i32 : i32 to vector<8x512xi32>
    %353 = arith.cmpi sge, %4, %352 : vector<8x512xi32>
    %c4_i32_193 = arith.constant 4 : i32
    %354 = vector.broadcast %c4_i32_193 : i32 to vector<8x512xi32>
    %355 = arith.cmpi sge, %7, %354 : vector<8x512xi32>
    %356 = arith.andi %353, %355 : vector<8x512xi1>
    %357 = arith.extui %356 : vector<8x512xi1> to vector<8x512xi32>
    %358 = arith.sitofp %357 : vector<8x512xi32> to vector<8x512xf32>
    %359 = arith.mulf %351, %358 : vector<8x512xf32>
    %c0_194 = arith.constant 0 : index
    %c0_195 = arith.constant 0 : index
    %360 = vector.load %arg25[%c0_194, %c0_195] : memref<392x512xf32, #tpu.memory_space<vmem>>, vector<8x512xf32>
    tpu.vector_store %arg25[%c0_194, %c0_195], %359 {strides = array<i32>} : memref<392x512xf32, #tpu.memory_space<vmem>>, vector<8x512xf32>,
    %c64_i32 = arith.constant 64 : i32
    %361 = tpu.dynamic_rotate %350 by %c64_i32 dim 1 : vector<8x512xf32>, i32 -> vector<8x512xf32>
    %c4_i32_196 = arith.constant 4 : i32
    %362 = vector.broadcast %c4_i32_196 : i32 to vector<8x512xi32>
    %363 = arith.cmpi sge, %4, %362 : vector<8x512xi32>
    %364 = arith.extui %363 : vector<8x512xi1> to vector<8x512xi32>
    %365 = arith.sitofp %364 : vector<8x512xi32> to vector<8x512xf32>
    %366 = arith.mulf %361, %365 : vector<8x512xf32>
    %c8_197 = arith.constant 8 : index
    %c0_198 = arith.constant 0 : index
    %367 = vector.load %arg25[%c8_197, %c0_198] : memref<392x512xf32, #tpu.memory_space<vmem>>, vector<8x512xf32>
    tpu.vector_store %arg25[%c8_197, %c0_198], %366 {strides = array<i32>} : memref<392x512xf32, #tpu.memory_space<vmem>>, vector<8x512xf32>,
    %c60_i32 = arith.constant 60 : i32
    %368 = tpu.dynamic_rotate %350 by %c60_i32 dim 1 : vector<8x512xf32>, i32 -> vector<8x512xf32>
    %c4_i32_199 = arith.constant 4 : i32
    %369 = vector.broadcast %c4_i32_199 : i32 to vector<8x512xi32>
    %370 = arith.cmpi sge, %4, %369 : vector<8x512xi32>
    %c12_i32 = arith.constant 12 : i32
    %371 = vector.broadcast %c12_i32 : i32 to vector<8x512xi32>
    %372 = arith.cmpi slt, %7, %371 : vector<8x512xi32>
    %373 = arith.andi %370, %372 : vector<8x512xi1>
    %374 = arith.extui %373 : vector<8x512xi1> to vector<8x512xi32>
    %375 = arith.sitofp %374 : vector<8x512xi32> to vector<8x512xf32>
    %376 = arith.mulf %368, %375 : vector<8x512xf32>
    %c16_200 = arith.constant 16 : index
    %c0_201 = arith.constant 0 : index
    %377 = vector.load %arg25[%c16_200, %c0_201] : memref<392x512xf32, #tpu.memory_space<vmem>>, vector<8x512xf32>
    tpu.vector_store %arg25[%c16_200, %c0_201], %376 {strides = array<i32>} : memref<392x512xf32, #tpu.memory_space<vmem>>, vector<8x512xf32>,
    %c4_i32_202 = arith.constant 4 : i32
    %378 = tpu.dynamic_rotate %350 by %c4_i32_202 dim 1 : vector<8x512xf32>, i32 -> vector<8x512xf32>
    %c4_i32_203 = arith.constant 4 : i32
    %379 = vector.broadcast %c4_i32_203 : i32 to vector<8x512xi32>
    %380 = arith.cmpi sge, %7, %379 : vector<8x512xi32>
    %381 = arith.extui %380 : vector<8x512xi1> to vector<8x512xi32>
    %382 = arith.sitofp %381 : vector<8x512xi32> to vector<8x512xf32>
    %383 = arith.mulf %378, %382 : vector<8x512xf32>
    %c24_204 = arith.constant 24 : index
    %c0_205 = arith.constant 0 : index
    %384 = vector.load %arg25[%c24_204, %c0_205] : memref<392x512xf32, #tpu.memory_space<vmem>>, vector<8x512xf32>
    tpu.vector_store %arg25[%c24_204, %c0_205], %383 {strides = array<i32>} : memref<392x512xf32, #tpu.memory_space<vmem>>, vector<8x512xf32>,
    %c32_206 = arith.constant 32 : index
    %c0_207 = arith.constant 0 : index
    %385 = vector.load %arg25[%c32_206, %c0_207] : memref<392x512xf32, #tpu.memory_space<vmem>>, vector<8x512xf32>
    tpu.vector_store %arg25[%c32_206, %c0_207], %350 {strides = array<i32>} : memref<392x512xf32, #tpu.memory_space<vmem>>, vector<8x512xf32>,
    %c508_i32 = arith.constant 508 : i32
    %386 = tpu.dynamic_rotate %350 by %c508_i32 dim 1 : vector<8x512xf32>, i32 -> vector<8x512xf32>
    %c12_i32_208 = arith.constant 12 : i32
    %387 = vector.broadcast %c12_i32_208 : i32 to vector<8x512xi32>
    %388 = arith.cmpi slt, %7, %387 : vector<8x512xi32>
    %389 = arith.extui %388 : vector<8x512xi1> to vector<8x512xi32>
    %390 = arith.sitofp %389 : vector<8x512xi32> to vector<8x512xf32>
    %391 = arith.mulf %386, %390 : vector<8x512xf32>
    %c40_209 = arith.constant 40 : index
    %c0_210 = arith.constant 0 : index
    %392 = vector.load %arg25[%c40_209, %c0_210] : memref<392x512xf32, #tpu.memory_space<vmem>>, vector<8x512xf32>
    tpu.vector_store %arg25[%c40_209, %c0_210], %391 {strides = array<i32>} : memref<392x512xf32, #tpu.memory_space<vmem>>, vector<8x512xf32>,
    %c452_i32 = arith.constant 452 : i32
    %393 = tpu.dynamic_rotate %350 by %c452_i32 dim 1 : vector<8x512xf32>, i32 -> vector<8x512xf32>
    %c12_i32_211 = arith.constant 12 : i32
    %394 = vector.broadcast %c12_i32_211 : i32 to vector<8x512xi32>
    %395 = arith.cmpi slt, %4, %394 : vector<8x512xi32>
    %c4_i32_212 = arith.constant 4 : i32
    %396 = vector.broadcast %c4_i32_212 : i32 to vector<8x512xi32>
    %397 = arith.cmpi sge, %7, %396 : vector<8x512xi32>
    %398 = arith.andi %395, %397 : vector<8x512xi1>
    %399 = arith.extui %398 : vector<8x512xi1> to vector<8x512xi32>
    %400 = arith.sitofp %399 : vector<8x512xi32> to vector<8x512xf32>
    %401 = arith.mulf %393, %400 : vector<8x512xf32>
    %c48_213 = arith.constant 48 : index
    %c0_214 = arith.constant 0 : index
    %402 = vector.load %arg25[%c48_213, %c0_214] : memref<392x512xf32, #tpu.memory_space<vmem>>, vector<8x512xf32>
    tpu.vector_store %arg25[%c48_213, %c0_214], %401 {strides = array<i32>} : memref<392x512xf32, #tpu.memory_space<vmem>>, vector<8x512xf32>,
    %c448_i32 = arith.constant 448 : i32
    %403 = tpu.dynamic_rotate %350 by %c448_i32 dim 1 : vector<8x512xf32>, i32 -> vector<8x512xf32>
    %c12_i32_215 = arith.constant 12 : i32
    %404 = vector.broadcast %c12_i32_215 : i32 to vector<8x512xi32>
    %405 = arith.cmpi slt, %4, %404 : vector<8x512xi32>
    %406 = arith.extui %405 : vector<8x512xi1> to vector<8x512xi32>
    %407 = arith.sitofp %406 : vector<8x512xi32> to vector<8x512xf32>
    %408 = arith.mulf %403, %407 : vector<8x512xf32>
    %c56_216 = arith.constant 56 : index
    %c0_217 = arith.constant 0 : index
    %409 = vector.load %arg25[%c56_216, %c0_217] : memref<392x512xf32, #tpu.memory_space<vmem>>, vector<8x512xf32>
    tpu.vector_store %arg25[%c56_216, %c0_217], %408 {strides = array<i32>} : memref<392x512xf32, #tpu.memory_space<vmem>>, vector<8x512xf32>,
    %c444_i32 = arith.constant 444 : i32
    %410 = tpu.dynamic_rotate %350 by %c444_i32 dim 1 : vector<8x512xf32>, i32 -> vector<8x512xf32>
    %c12_i32_218 = arith.constant 12 : i32
    %411 = vector.broadcast %c12_i32_218 : i32 to vector<8x512xi32>
    %412 = arith.cmpi slt, %4, %411 : vector<8x512xi32>
    %c12_i32_219 = arith.constant 12 : i32
    %413 = vector.broadcast %c12_i32_219 : i32 to vector<8x512xi32>
    %414 = arith.cmpi slt, %7, %413 : vector<8x512xi32>
    %415 = arith.andi %412, %414 : vector<8x512xi1>
    %416 = arith.extui %415 : vector<8x512xi1> to vector<8x512xi32>
    %417 = arith.sitofp %416 : vector<8x512xi32> to vector<8x512xf32>
    %418 = arith.mulf %410, %417 : vector<8x512xf32>
    %c64_220 = arith.constant 64 : index
    %c0_221 = arith.constant 0 : index
    %419 = vector.load %arg25[%c64_220, %c0_221] : memref<392x512xf32, #tpu.memory_space<vmem>>, vector<8x512xf32>
    tpu.vector_store %arg25[%c64_220, %c0_221], %418 {strides = array<i32>} : memref<392x512xf32, #tpu.memory_space<vmem>>, vector<8x512xf32>,
    %c0_222 = arith.constant 0 : index
    %c0_223 = arith.constant 0 : index
    %420 = vector.load %arg16[%c0_222, %c0_223] : memref<8x72xf32, #tpu.memory_space<vmem>>, vector<8x72xf32>
    %c0_224 = arith.constant 0 : index
    %c0_225 = arith.constant 0 : index
    %421 = vector.load %arg25[%c0_224, %c0_225] : memref<392x512xf32, #tpu.memory_space<vmem>>, vector<72x512xf32>
    %cst_226 = arith.constant dense<0.000000e+00> : vector<8x512xf32>
    %422 = tpu.matmul %420, %421, %cst_226 {dimension_numbers = #tpu.dot_dimension_numbers<[1], [0], [0], [1], [0, 0, 1, 1], [], []>} : vector<8x72xf32>, vector<72x512xf32>, vector<8x512xf32> -> vector<8x512xf32>
    %c0_227 = arith.constant 0 : index
    %c0_228 = arith.constant 0 : index
    %423 = vector.load %arg17[%c0_227, %c0_228] : memref<8x1xf32, #tpu.memory_space<vmem>>, vector<8x1xf32>
    %424 = vector.broadcast %423 : vector<8x1xf32> to vector<8x512xf32>
    %425 = arith.addf %422, %424 : vector<8x512xf32>
    %cst_229 = arith.constant 0.000000e+00 : f32
    %426 = vector.broadcast %cst_229 : f32 to vector<8x512xf32>
    %427 = arith.maximumf %425, %426 : vector<8x512xf32>
    %428 = vector.extract_strided_slice %14 {offsets = [24, 0], sizes = [8, 512], strides = [1, 1]} : vector<32x512xf32> to vector<8x512xf32>
    %429 = arith.addf %428, %427 : vector<8x512xf32>
    %c51_i32 = arith.constant 51 : i32
    %430 = tpu.dynamic_rotate %429 by %c51_i32 dim 1 : vector<8x512xf32>, i32 -> vector<8x512xf32>
    %c3_i32 = arith.constant 3 : i32
    %431 = vector.broadcast %c3_i32 : i32 to vector<8x512xi32>
    %432 = arith.cmpi sge, %4, %431 : vector<8x512xi32>
    %c3_i32_230 = arith.constant 3 : i32
    %433 = vector.broadcast %c3_i32_230 : i32 to vector<8x512xi32>
    %434 = arith.cmpi sge, %7, %433 : vector<8x512xi32>
    %435 = arith.andi %432, %434 : vector<8x512xi1>
    %436 = arith.extui %435 : vector<8x512xi1> to vector<8x512xi32>
    %437 = arith.sitofp %436 : vector<8x512xi32> to vector<8x512xf32>
    %438 = arith.mulf %430, %437 : vector<8x512xf32>
    %c0_231 = arith.constant 0 : index
    %c0_232 = arith.constant 0 : index
    %439 = vector.load %arg25[%c0_231, %c0_232] : memref<392x512xf32, #tpu.memory_space<vmem>>, vector<8x512xf32>
    tpu.vector_store %arg25[%c0_231, %c0_232], %438 {strides = array<i32>} : memref<392x512xf32, #tpu.memory_space<vmem>>, vector<8x512xf32>,
    %c50_i32 = arith.constant 50 : i32
    %440 = tpu.dynamic_rotate %429 by %c50_i32 dim 1 : vector<8x512xf32>, i32 -> vector<8x512xf32>
    %c3_i32_233 = arith.constant 3 : i32
    %441 = vector.broadcast %c3_i32_233 : i32 to vector<8x512xi32>
    %442 = arith.cmpi sge, %4, %441 : vector<8x512xi32>
    %c2_i32_234 = arith.constant 2 : i32
    %443 = vector.broadcast %c2_i32_234 : i32 to vector<8x512xi32>
    %444 = arith.cmpi sge, %7, %443 : vector<8x512xi32>
    %445 = arith.andi %442, %444 : vector<8x512xi1>
    %446 = arith.extui %445 : vector<8x512xi1> to vector<8x512xi32>
    %447 = arith.sitofp %446 : vector<8x512xi32> to vector<8x512xf32>
    %448 = arith.mulf %440, %447 : vector<8x512xf32>
    %c8_235 = arith.constant 8 : index
    %c0_236 = arith.constant 0 : index
    %449 = vector.load %arg25[%c8_235, %c0_236] : memref<392x512xf32, #tpu.memory_space<vmem>>, vector<8x512xf32>
    tpu.vector_store %arg25[%c8_235, %c0_236], %448 {strides = array<i32>} : memref<392x512xf32, #tpu.memory_space<vmem>>, vector<8x512xf32>,
    %c49_i32 = arith.constant 49 : i32
    %450 = tpu.dynamic_rotate %429 by %c49_i32 dim 1 : vector<8x512xf32>, i32 -> vector<8x512xf32>
    %c3_i32_237 = arith.constant 3 : i32
    %451 = vector.broadcast %c3_i32_237 : i32 to vector<8x512xi32>
    %452 = arith.cmpi sge, %4, %451 : vector<8x512xi32>
    %c1_i32_238 = arith.constant 1 : i32
    %453 = vector.broadcast %c1_i32_238 : i32 to vector<8x512xi32>
    %454 = arith.cmpi sge, %7, %453 : vector<8x512xi32>
    %455 = arith.andi %452, %454 : vector<8x512xi1>
    %456 = arith.extui %455 : vector<8x512xi1> to vector<8x512xi32>
    %457 = arith.sitofp %456 : vector<8x512xi32> to vector<8x512xf32>
    %458 = arith.mulf %450, %457 : vector<8x512xf32>
    %c16_239 = arith.constant 16 : index
    %c0_240 = arith.constant 0 : index
    %459 = vector.load %arg25[%c16_239, %c0_240] : memref<392x512xf32, #tpu.memory_space<vmem>>, vector<8x512xf32>
    tpu.vector_store %arg25[%c16_239, %c0_240], %458 {strides = array<i32>} : memref<392x512xf32, #tpu.memory_space<vmem>>, vector<8x512xf32>,
    %c48_i32 = arith.constant 48 : i32
    %460 = tpu.dynamic_rotate %429 by %c48_i32 dim 1 : vector<8x512xf32>, i32 -> vector<8x512xf32>
    %c3_i32_241 = arith.constant 3 : i32
    %461 = vector.broadcast %c3_i32_241 : i32 to vector<8x512xi32>
    %462 = arith.cmpi sge, %4, %461 : vector<8x512xi32>
    %463 = arith.extui %462 : vector<8x512xi1> to vector<8x512xi32>
    %464 = arith.sitofp %463 : vector<8x512xi32> to vector<8x512xf32>
    %465 = arith.mulf %460, %464 : vector<8x512xf32>
    %c24_242 = arith.constant 24 : index
    %c0_243 = arith.constant 0 : index
    %466 = vector.load %arg25[%c24_242, %c0_243] : memref<392x512xf32, #tpu.memory_space<vmem>>, vector<8x512xf32>
    tpu.vector_store %arg25[%c24_242, %c0_243], %465 {strides = array<i32>} : memref<392x512xf32, #tpu.memory_space<vmem>>, vector<8x512xf32>,
    %c47_i32 = arith.constant 47 : i32
    %467 = tpu.dynamic_rotate %429 by %c47_i32 dim 1 : vector<8x512xf32>, i32 -> vector<8x512xf32>
    %c3_i32_244 = arith.constant 3 : i32
    %468 = vector.broadcast %c3_i32_244 : i32 to vector<8x512xi32>
    %469 = arith.cmpi sge, %4, %468 : vector<8x512xi32>
    %c15_i32_245 = arith.constant 15 : i32
    %470 = vector.broadcast %c15_i32_245 : i32 to vector<8x512xi32>
    %471 = arith.cmpi slt, %7, %470 : vector<8x512xi32>
    %472 = arith.andi %469, %471 : vector<8x512xi1>
    %473 = arith.extui %472 : vector<8x512xi1> to vector<8x512xi32>
    %474 = arith.sitofp %473 : vector<8x512xi32> to vector<8x512xf32>
    %475 = arith.mulf %467, %474 : vector<8x512xf32>
    %c32_246 = arith.constant 32 : index
    %c0_247 = arith.constant 0 : index
    %476 = vector.load %arg25[%c32_246, %c0_247] : memref<392x512xf32, #tpu.memory_space<vmem>>, vector<8x512xf32>
    tpu.vector_store %arg25[%c32_246, %c0_247], %475 {strides = array<i32>} : memref<392x512xf32, #tpu.memory_space<vmem>>, vector<8x512xf32>,
    %c46_i32 = arith.constant 46 : i32
    %477 = tpu.dynamic_rotate %429 by %c46_i32 dim 1 : vector<8x512xf32>, i32 -> vector<8x512xf32>
    %c3_i32_248 = arith.constant 3 : i32
    %478 = vector.broadcast %c3_i32_248 : i32 to vector<8x512xi32>
    %479 = arith.cmpi sge, %4, %478 : vector<8x512xi32>
    %c14_i32_249 = arith.constant 14 : i32
    %480 = vector.broadcast %c14_i32_249 : i32 to vector<8x512xi32>
    %481 = arith.cmpi slt, %7, %480 : vector<8x512xi32>
    %482 = arith.andi %479, %481 : vector<8x512xi1>
    %483 = arith.extui %482 : vector<8x512xi1> to vector<8x512xi32>
    %484 = arith.sitofp %483 : vector<8x512xi32> to vector<8x512xf32>
    %485 = arith.mulf %477, %484 : vector<8x512xf32>
    %c40_250 = arith.constant 40 : index
    %c0_251 = arith.constant 0 : index
    %486 = vector.load %arg25[%c40_250, %c0_251] : memref<392x512xf32, #tpu.memory_space<vmem>>, vector<8x512xf32>
    tpu.vector_store %arg25[%c40_250, %c0_251], %485 {strides = array<i32>} : memref<392x512xf32, #tpu.memory_space<vmem>>, vector<8x512xf32>,
    %c45_i32 = arith.constant 45 : i32
    %487 = tpu.dynamic_rotate %429 by %c45_i32 dim 1 : vector<8x512xf32>, i32 -> vector<8x512xf32>
    %c3_i32_252 = arith.constant 3 : i32
    %488 = vector.broadcast %c3_i32_252 : i32 to vector<8x512xi32>
    %489 = arith.cmpi sge, %4, %488 : vector<8x512xi32>
    %c13_i32 = arith.constant 13 : i32
    %490 = vector.broadcast %c13_i32 : i32 to vector<8x512xi32>
    %491 = arith.cmpi slt, %7, %490 : vector<8x512xi32>
    %492 = arith.andi %489, %491 : vector<8x512xi1>
    %493 = arith.extui %492 : vector<8x512xi1> to vector<8x512xi32>
    %494 = arith.sitofp %493 : vector<8x512xi32> to vector<8x512xf32>
    %495 = arith.mulf %487, %494 : vector<8x512xf32>
    %c48_253 = arith.constant 48 : index
    %c0_254 = arith.constant 0 : index
    %496 = vector.load %arg25[%c48_253, %c0_254] : memref<392x512xf32, #tpu.memory_space<vmem>>, vector<8x512xf32>
    tpu.vector_store %arg25[%c48_253, %c0_254], %495 {strides = array<i32>} : memref<392x512xf32, #tpu.memory_space<vmem>>, vector<8x512xf32>,
    %c35_i32 = arith.constant 35 : i32
    %497 = tpu.dynamic_rotate %429 by %c35_i32 dim 1 : vector<8x512xf32>, i32 -> vector<8x512xf32>
    %c2_i32_255 = arith.constant 2 : i32
    %498 = vector.broadcast %c2_i32_255 : i32 to vector<8x512xi32>
    %499 = arith.cmpi sge, %4, %498 : vector<8x512xi32>
    %c3_i32_256 = arith.constant 3 : i32
    %500 = vector.broadcast %c3_i32_256 : i32 to vector<8x512xi32>
    %501 = arith.cmpi sge, %7, %500 : vector<8x512xi32>
    %502 = arith.andi %499, %501 : vector<8x512xi1>
    %503 = arith.extui %502 : vector<8x512xi1> to vector<8x512xi32>
    %504 = arith.sitofp %503 : vector<8x512xi32> to vector<8x512xf32>
    %505 = arith.mulf %497, %504 : vector<8x512xf32>
    %c56_257 = arith.constant 56 : index
    %c0_258 = arith.constant 0 : index
    %506 = vector.load %arg25[%c56_257, %c0_258] : memref<392x512xf32, #tpu.memory_space<vmem>>, vector<8x512xf32>
    tpu.vector_store %arg25[%c56_257, %c0_258], %505 {strides = array<i32>} : memref<392x512xf32, #tpu.memory_space<vmem>>, vector<8x512xf32>,
    %c34_i32_259 = arith.constant 34 : i32
    %507 = tpu.dynamic_rotate %429 by %c34_i32_259 dim 1 : vector<8x512xf32>, i32 -> vector<8x512xf32>
    %508 = arith.mulf %507, %142 : vector<8x512xf32>
    %c64_260 = arith.constant 64 : index
    %c0_261 = arith.constant 0 : index
    %509 = vector.load %arg25[%c64_260, %c0_261] : memref<392x512xf32, #tpu.memory_space<vmem>>, vector<8x512xf32>
    tpu.vector_store %arg25[%c64_260, %c0_261], %508 {strides = array<i32>} : memref<392x512xf32, #tpu.memory_space<vmem>>, vector<8x512xf32>,
    %c33_i32_262 = arith.constant 33 : i32
    %510 = tpu.dynamic_rotate %429 by %c33_i32_262 dim 1 : vector<8x512xf32>, i32 -> vector<8x512xf32>
    %511 = arith.mulf %510, %224 : vector<8x512xf32>
    %c72_263 = arith.constant 72 : index
    %c0_264 = arith.constant 0 : index
    %512 = vector.load %arg25[%c72_263, %c0_264] : memref<392x512xf32, #tpu.memory_space<vmem>>, vector<8x512xf32>
    tpu.vector_store %arg25[%c72_263, %c0_264], %511 {strides = array<i32>} : memref<392x512xf32, #tpu.memory_space<vmem>>, vector<8x512xf32>,
    %c32_i32_265 = arith.constant 32 : i32
    %513 = tpu.dynamic_rotate %429 by %c32_i32_265 dim 1 : vector<8x512xf32>, i32 -> vector<8x512xf32>
    %514 = arith.mulf %513, %149 : vector<8x512xf32>
    %c80_266 = arith.constant 80 : index
    %c0_267 = arith.constant 0 : index
    %515 = vector.load %arg25[%c80_266, %c0_267] : memref<392x512xf32, #tpu.memory_space<vmem>>, vector<8x512xf32>
    tpu.vector_store %arg25[%c80_266, %c0_267], %514 {strides = array<i32>} : memref<392x512xf32, #tpu.memory_space<vmem>>, vector<8x512xf32>,
    %c31_i32_268 = arith.constant 31 : i32
    %516 = tpu.dynamic_rotate %429 by %c31_i32_268 dim 1 : vector<8x512xf32>, i32 -> vector<8x512xf32>
    %517 = arith.mulf %516, %237 : vector<8x512xf32>
    %c88_269 = arith.constant 88 : index
    %c0_270 = arith.constant 0 : index
    %518 = vector.load %arg25[%c88_269, %c0_270] : memref<392x512xf32, #tpu.memory_space<vmem>>, vector<8x512xf32>
    tpu.vector_store %arg25[%c88_269, %c0_270], %517 {strides = array<i32>} : memref<392x512xf32, #tpu.memory_space<vmem>>, vector<8x512xf32>,
    %c30_i32_271 = arith.constant 30 : i32
    %519 = tpu.dynamic_rotate %429 by %c30_i32_271 dim 1 : vector<8x512xf32>, i32 -> vector<8x512xf32>
    %520 = arith.mulf %519, %159 : vector<8x512xf32>
    %c96_272 = arith.constant 96 : index
    %c0_273 = arith.constant 0 : index
    %521 = vector.load %arg25[%c96_272, %c0_273] : memref<392x512xf32, #tpu.memory_space<vmem>>, vector<8x512xf32>
    tpu.vector_store %arg25[%c96_272, %c0_273], %520 {strides = array<i32>} : memref<392x512xf32, #tpu.memory_space<vmem>>, vector<8x512xf32>,
    %c29_i32 = arith.constant 29 : i32
    %522 = tpu.dynamic_rotate %429 by %c29_i32 dim 1 : vector<8x512xf32>, i32 -> vector<8x512xf32>
    %c2_i32_274 = arith.constant 2 : i32
    %523 = vector.broadcast %c2_i32_274 : i32 to vector<8x512xi32>
    %524 = arith.cmpi sge, %4, %523 : vector<8x512xi32>
    %c13_i32_275 = arith.constant 13 : i32
    %525 = vector.broadcast %c13_i32_275 : i32 to vector<8x512xi32>
    %526 = arith.cmpi slt, %7, %525 : vector<8x512xi32>
    %527 = arith.andi %524, %526 : vector<8x512xi1>
    %528 = arith.extui %527 : vector<8x512xi1> to vector<8x512xi32>
    %529 = arith.sitofp %528 : vector<8x512xi32> to vector<8x512xf32>
    %530 = arith.mulf %522, %529 : vector<8x512xf32>
    %c104_276 = arith.constant 104 : index
    %c0_277 = arith.constant 0 : index
    %531 = vector.load %arg25[%c104_276, %c0_277] : memref<392x512xf32, #tpu.memory_space<vmem>>, vector<8x512xf32>
    tpu.vector_store %arg25[%c104_276, %c0_277], %530 {strides = array<i32>} : memref<392x512xf32, #tpu.memory_space<vmem>>, vector<8x512xf32>,
    %c19_i32 = arith.constant 19 : i32
    %532 = tpu.dynamic_rotate %429 by %c19_i32 dim 1 : vector<8x512xf32>, i32 -> vector<8x512xf32>
    %c1_i32_278 = arith.constant 1 : i32
    %533 = vector.broadcast %c1_i32_278 : i32 to vector<8x512xi32>
    %534 = arith.cmpi sge, %4, %533 : vector<8x512xi32>
    %c3_i32_279 = arith.constant 3 : i32
    %535 = vector.broadcast %c3_i32_279 : i32 to vector<8x512xi32>
    %536 = arith.cmpi sge, %7, %535 : vector<8x512xi32>
    %537 = arith.andi %534, %536 : vector<8x512xi1>
    %538 = arith.extui %537 : vector<8x512xi1> to vector<8x512xi32>
    %539 = arith.sitofp %538 : vector<8x512xi32> to vector<8x512xf32>
    %540 = arith.mulf %532, %539 : vector<8x512xf32>
    %c112_280 = arith.constant 112 : index
    %c0_281 = arith.constant 0 : index
    %541 = vector.load %arg25[%c112_280, %c0_281] : memref<392x512xf32, #tpu.memory_space<vmem>>, vector<8x512xf32>
    tpu.vector_store %arg25[%c112_280, %c0_281], %540 {strides = array<i32>} : memref<392x512xf32, #tpu.memory_space<vmem>>, vector<8x512xf32>,
    %c18_i32_282 = arith.constant 18 : i32
    %542 = tpu.dynamic_rotate %429 by %c18_i32_282 dim 1 : vector<8x512xf32>, i32 -> vector<8x512xf32>
    %543 = arith.mulf %542, %250 : vector<8x512xf32>
    %c120_283 = arith.constant 120 : index
    %c0_284 = arith.constant 0 : index
    %544 = vector.load %arg25[%c120_283, %c0_284] : memref<392x512xf32, #tpu.memory_space<vmem>>, vector<8x512xf32>
    tpu.vector_store %arg25[%c120_283, %c0_284], %543 {strides = array<i32>} : memref<392x512xf32, #tpu.memory_space<vmem>>, vector<8x512xf32>,
    %c17_i32_285 = arith.constant 17 : i32
    %545 = tpu.dynamic_rotate %429 by %c17_i32_285 dim 1 : vector<8x512xf32>, i32 -> vector<8x512xf32>
    %546 = arith.mulf %545, %30 : vector<8x512xf32>
    %c128_286 = arith.constant 128 : index
    %c0_287 = arith.constant 0 : index
    %547 = vector.load %arg25[%c128_286, %c0_287] : memref<392x512xf32, #tpu.memory_space<vmem>>, vector<8x512xf32>
    tpu.vector_store %arg25[%c128_286, %c0_287], %546 {strides = array<i32>} : memref<392x512xf32, #tpu.memory_space<vmem>>, vector<8x512xf32>,
    %c16_i32_288 = arith.constant 16 : i32
    %548 = tpu.dynamic_rotate %429 by %c16_i32_288 dim 1 : vector<8x512xf32>, i32 -> vector<8x512xf32>
    %549 = arith.mulf %548, %37 : vector<8x512xf32>
    %c136_289 = arith.constant 136 : index
    %c0_290 = arith.constant 0 : index
    %550 = vector.load %arg25[%c136_289, %c0_290] : memref<392x512xf32, #tpu.memory_space<vmem>>, vector<8x512xf32>
    tpu.vector_store %arg25[%c136_289, %c0_290], %549 {strides = array<i32>} : memref<392x512xf32, #tpu.memory_space<vmem>>, vector<8x512xf32>,
    %c15_i32_291 = arith.constant 15 : i32
    %551 = tpu.dynamic_rotate %429 by %c15_i32_291 dim 1 : vector<8x512xf32>, i32 -> vector<8x512xf32>
    %552 = arith.mulf %551, %47 : vector<8x512xf32>
    %c144_292 = arith.constant 144 : index
    %c0_293 = arith.constant 0 : index
    %553 = vector.load %arg25[%c144_292, %c0_293] : memref<392x512xf32, #tpu.memory_space<vmem>>, vector<8x512xf32>
    tpu.vector_store %arg25[%c144_292, %c0_293], %552 {strides = array<i32>} : memref<392x512xf32, #tpu.memory_space<vmem>>, vector<8x512xf32>,
    %c14_i32_294 = arith.constant 14 : i32
    %554 = tpu.dynamic_rotate %429 by %c14_i32_294 dim 1 : vector<8x512xf32>, i32 -> vector<8x512xf32>
    %555 = arith.mulf %554, %269 : vector<8x512xf32>
    %c152_295 = arith.constant 152 : index
    %c0_296 = arith.constant 0 : index
    %556 = vector.load %arg25[%c152_295, %c0_296] : memref<392x512xf32, #tpu.memory_space<vmem>>, vector<8x512xf32>
    tpu.vector_store %arg25[%c152_295, %c0_296], %555 {strides = array<i32>} : memref<392x512xf32, #tpu.memory_space<vmem>>, vector<8x512xf32>,
    %c13_i32_297 = arith.constant 13 : i32
    %557 = tpu.dynamic_rotate %429 by %c13_i32_297 dim 1 : vector<8x512xf32>, i32 -> vector<8x512xf32>
    %c1_i32_298 = arith.constant 1 : i32
    %558 = vector.broadcast %c1_i32_298 : i32 to vector<8x512xi32>
    %559 = arith.cmpi sge, %4, %558 : vector<8x512xi32>
    %c13_i32_299 = arith.constant 13 : i32
    %560 = vector.broadcast %c13_i32_299 : i32 to vector<8x512xi32>
    %561 = arith.cmpi slt, %7, %560 : vector<8x512xi32>
    %562 = arith.andi %559, %561 : vector<8x512xi1>
    %563 = arith.extui %562 : vector<8x512xi1> to vector<8x512xi32>
    %564 = arith.sitofp %563 : vector<8x512xi32> to vector<8x512xf32>
    %565 = arith.mulf %557, %564 : vector<8x512xf32>
    %c160_300 = arith.constant 160 : index
    %c0_301 = arith.constant 0 : index
    %566 = vector.load %arg25[%c160_300, %c0_301] : memref<392x512xf32, #tpu.memory_space<vmem>>, vector<8x512xf32>
    tpu.vector_store %arg25[%c160_300, %c0_301], %565 {strides = array<i32>} : memref<392x512xf32, #tpu.memory_space<vmem>>, vector<8x512xf32>,
    %c3_i32_302 = arith.constant 3 : i32
    %567 = tpu.dynamic_rotate %429 by %c3_i32_302 dim 1 : vector<8x512xf32>, i32 -> vector<8x512xf32>
    %c3_i32_303 = arith.constant 3 : i32
    %568 = vector.broadcast %c3_i32_303 : i32 to vector<8x512xi32>
    %569 = arith.cmpi sge, %7, %568 : vector<8x512xi32>
    %570 = arith.extui %569 : vector<8x512xi1> to vector<8x512xi32>
    %571 = arith.sitofp %570 : vector<8x512xi32> to vector<8x512xf32>
    %572 = arith.mulf %567, %571 : vector<8x512xf32>
    %c168_304 = arith.constant 168 : index
    %c0_305 = arith.constant 0 : index
    %573 = vector.load %arg25[%c168_304, %c0_305] : memref<392x512xf32, #tpu.memory_space<vmem>>, vector<8x512xf32>
    tpu.vector_store %arg25[%c168_304, %c0_305], %572 {strides = array<i32>} : memref<392x512xf32, #tpu.memory_space<vmem>>, vector<8x512xf32>,
    %c2_i32_306 = arith.constant 2 : i32
    %574 = tpu.dynamic_rotate %429 by %c2_i32_306 dim 1 : vector<8x512xf32>, i32 -> vector<8x512xf32>
    %575 = arith.mulf %574, %166 : vector<8x512xf32>
    %c176_307 = arith.constant 176 : index
    %c0_308 = arith.constant 0 : index
    %576 = vector.load %arg25[%c176_307, %c0_308] : memref<392x512xf32, #tpu.memory_space<vmem>>, vector<8x512xf32>
    tpu.vector_store %arg25[%c176_307, %c0_308], %575 {strides = array<i32>} : memref<392x512xf32, #tpu.memory_space<vmem>>, vector<8x512xf32>,
    %c1_i32_309 = arith.constant 1 : i32
    %577 = tpu.dynamic_rotate %429 by %c1_i32_309 dim 1 : vector<8x512xf32>, i32 -> vector<8x512xf32>
    %578 = arith.mulf %577, %54 : vector<8x512xf32>
    %c184_310 = arith.constant 184 : index
    %c0_311 = arith.constant 0 : index
    %579 = vector.load %arg25[%c184_310, %c0_311] : memref<392x512xf32, #tpu.memory_space<vmem>>, vector<8x512xf32>
    tpu.vector_store %arg25[%c184_310, %c0_311], %578 {strides = array<i32>} : memref<392x512xf32, #tpu.memory_space<vmem>>, vector<8x512xf32>,
    %c192_312 = arith.constant 192 : index
    %c0_313 = arith.constant 0 : index
    %580 = vector.load %arg25[%c192_312, %c0_313] : memref<392x512xf32, #tpu.memory_space<vmem>>, vector<8x512xf32>
    tpu.vector_store %arg25[%c192_312, %c0_313], %429 {strides = array<i32>} : memref<392x512xf32, #tpu.memory_space<vmem>>, vector<8x512xf32>,
    %c511_i32_314 = arith.constant 511 : i32
    %581 = tpu.dynamic_rotate %429 by %c511_i32_314 dim 1 : vector<8x512xf32>, i32 -> vector<8x512xf32>
    %582 = arith.mulf %581, %62 : vector<8x512xf32>
    %c200 = arith.constant 200 : index
    %c0_315 = arith.constant 0 : index
    %583 = vector.load %arg25[%c200, %c0_315] : memref<392x512xf32, #tpu.memory_space<vmem>>, vector<8x512xf32>
    tpu.vector_store %arg25[%c200, %c0_315], %582 {strides = array<i32>} : memref<392x512xf32, #tpu.memory_space<vmem>>, vector<8x512xf32>,
    %c510_i32_316 = arith.constant 510 : i32
    %584 = tpu.dynamic_rotate %429 by %c510_i32_316 dim 1 : vector<8x512xf32>, i32 -> vector<8x512xf32>
    %585 = arith.mulf %584, %174 : vector<8x512xf32>
    %c208 = arith.constant 208 : index
    %c0_317 = arith.constant 0 : index
    %586 = vector.load %arg25[%c208, %c0_317] : memref<392x512xf32, #tpu.memory_space<vmem>>, vector<8x512xf32>
    tpu.vector_store %arg25[%c208, %c0_317], %585 {strides = array<i32>} : memref<392x512xf32, #tpu.memory_space<vmem>>, vector<8x512xf32>,
    %c509_i32 = arith.constant 509 : i32
    %587 = tpu.dynamic_rotate %429 by %c509_i32 dim 1 : vector<8x512xf32>, i32 -> vector<8x512xf32>
    %c13_i32_318 = arith.constant 13 : i32
    %588 = vector.broadcast %c13_i32_318 : i32 to vector<8x512xi32>
    %589 = arith.cmpi slt, %7, %588 : vector<8x512xi32>
    %590 = arith.extui %589 : vector<8x512xi1> to vector<8x512xi32>
    %591 = arith.sitofp %590 : vector<8x512xi32> to vector<8x512xf32>
    %592 = arith.mulf %587, %591 : vector<8x512xf32>
    %c216 = arith.constant 216 : index
    %c0_319 = arith.constant 0 : index
    %593 = vector.load %arg25[%c216, %c0_319] : memref<392x512xf32, #tpu.memory_space<vmem>>, vector<8x512xf32>
    tpu.vector_store %arg25[%c216, %c0_319], %592 {strides = array<i32>} : memref<392x512xf32, #tpu.memory_space<vmem>>, vector<8x512xf32>,
    %c499_i32 = arith.constant 499 : i32
    %594 = tpu.dynamic_rotate %429 by %c499_i32 dim 1 : vector<8x512xf32>, i32 -> vector<8x512xf32>
    %c15_i32_320 = arith.constant 15 : i32
    %595 = vector.broadcast %c15_i32_320 : i32 to vector<8x512xi32>
    %596 = arith.cmpi slt, %4, %595 : vector<8x512xi32>
    %c3_i32_321 = arith.constant 3 : i32
    %597 = vector.broadcast %c3_i32_321 : i32 to vector<8x512xi32>
    %598 = arith.cmpi sge, %7, %597 : vector<8x512xi32>
    %599 = arith.andi %596, %598 : vector<8x512xi1>
    %600 = arith.extui %599 : vector<8x512xi1> to vector<8x512xi32>
    %601 = arith.sitofp %600 : vector<8x512xi32> to vector<8x512xf32>
    %602 = arith.mulf %594, %601 : vector<8x512xf32>
    %c224 = arith.constant 224 : index
    %c0_322 = arith.constant 0 : index
    %603 = vector.load %arg25[%c224, %c0_322] : memref<392x512xf32, #tpu.memory_space<vmem>>, vector<8x512xf32>
    tpu.vector_store %arg25[%c224, %c0_322], %602 {strides = array<i32>} : memref<392x512xf32, #tpu.memory_space<vmem>>, vector<8x512xf32>,
    %c498_i32_323 = arith.constant 498 : i32
    %604 = tpu.dynamic_rotate %429 by %c498_i32_323 dim 1 : vector<8x512xf32>, i32 -> vector<8x512xf32>
    %605 = arith.mulf %604, %292 : vector<8x512xf32>
    %c232 = arith.constant 232 : index
    %c0_324 = arith.constant 0 : index
    %606 = vector.load %arg25[%c232, %c0_324] : memref<392x512xf32, #tpu.memory_space<vmem>>, vector<8x512xf32>
    tpu.vector_store %arg25[%c232, %c0_324], %605 {strides = array<i32>} : memref<392x512xf32, #tpu.memory_space<vmem>>, vector<8x512xf32>,
    %c497_i32_325 = arith.constant 497 : i32
    %607 = tpu.dynamic_rotate %429 by %c497_i32_325 dim 1 : vector<8x512xf32>, i32 -> vector<8x512xf32>
    %608 = arith.mulf %607, %72 : vector<8x512xf32>
    %c240 = arith.constant 240 : index
    %c0_326 = arith.constant 0 : index
    %609 = vector.load %arg25[%c240, %c0_326] : memref<392x512xf32, #tpu.memory_space<vmem>>, vector<8x512xf32>
    tpu.vector_store %arg25[%c240, %c0_326], %608 {strides = array<i32>} : memref<392x512xf32, #tpu.memory_space<vmem>>, vector<8x512xf32>,
    %c496_i32_327 = arith.constant 496 : i32
    %610 = tpu.dynamic_rotate %429 by %c496_i32_327 dim 1 : vector<8x512xf32>, i32 -> vector<8x512xf32>
    %611 = arith.mulf %610, %79 : vector<8x512xf32>
    %c248 = arith.constant 248 : index
    %c0_328 = arith.constant 0 : index
    %612 = vector.load %arg25[%c248, %c0_328] : memref<392x512xf32, #tpu.memory_space<vmem>>, vector<8x512xf32>
    tpu.vector_store %arg25[%c248, %c0_328], %611 {strides = array<i32>} : memref<392x512xf32, #tpu.memory_space<vmem>>, vector<8x512xf32>,
    %c495_i32_329 = arith.constant 495 : i32
    %613 = tpu.dynamic_rotate %429 by %c495_i32_329 dim 1 : vector<8x512xf32>, i32 -> vector<8x512xf32>
    %614 = arith.mulf %613, %89 : vector<8x512xf32>
    %c256 = arith.constant 256 : index
    %c0_330 = arith.constant 0 : index
    %615 = vector.load %arg25[%c256, %c0_330] : memref<392x512xf32, #tpu.memory_space<vmem>>, vector<8x512xf32>
    tpu.vector_store %arg25[%c256, %c0_330], %614 {strides = array<i32>} : memref<392x512xf32, #tpu.memory_space<vmem>>, vector<8x512xf32>,
    %c494_i32_331 = arith.constant 494 : i32
    %616 = tpu.dynamic_rotate %429 by %c494_i32_331 dim 1 : vector<8x512xf32>, i32 -> vector<8x512xf32>
    %617 = arith.mulf %616, %311 : vector<8x512xf32>
    %c264 = arith.constant 264 : index
    %c0_332 = arith.constant 0 : index
    %618 = vector.load %arg25[%c264, %c0_332] : memref<392x512xf32, #tpu.memory_space<vmem>>, vector<8x512xf32>
    tpu.vector_store %arg25[%c264, %c0_332], %617 {strides = array<i32>} : memref<392x512xf32, #tpu.memory_space<vmem>>, vector<8x512xf32>,
    %c493_i32 = arith.constant 493 : i32
    %619 = tpu.dynamic_rotate %429 by %c493_i32 dim 1 : vector<8x512xf32>, i32 -> vector<8x512xf32>
    %c15_i32_333 = arith.constant 15 : i32
    %620 = vector.broadcast %c15_i32_333 : i32 to vector<8x512xi32>
    %621 = arith.cmpi slt, %4, %620 : vector<8x512xi32>
    %c13_i32_334 = arith.constant 13 : i32
    %622 = vector.broadcast %c13_i32_334 : i32 to vector<8x512xi32>
    %623 = arith.cmpi slt, %7, %622 : vector<8x512xi32>
    %624 = arith.andi %621, %623 : vector<8x512xi1>
    %625 = arith.extui %624 : vector<8x512xi1> to vector<8x512xi32>
    %626 = arith.sitofp %625 : vector<8x512xi32> to vector<8x512xf32>
    %627 = arith.mulf %619, %626 : vector<8x512xf32>
    %c272 = arith.constant 272 : index
    %c0_335 = arith.constant 0 : index
    %628 = vector.load %arg25[%c272, %c0_335] : memref<392x512xf32, #tpu.memory_space<vmem>>, vector<8x512xf32>
    tpu.vector_store %arg25[%c272, %c0_335], %627 {strides = array<i32>} : memref<392x512xf32, #tpu.memory_space<vmem>>, vector<8x512xf32>,
    %c483_i32 = arith.constant 483 : i32
    %629 = tpu.dynamic_rotate %429 by %c483_i32 dim 1 : vector<8x512xf32>, i32 -> vector<8x512xf32>
    %c14_i32_336 = arith.constant 14 : i32
    %630 = vector.broadcast %c14_i32_336 : i32 to vector<8x512xi32>
    %631 = arith.cmpi slt, %4, %630 : vector<8x512xi32>
    %c3_i32_337 = arith.constant 3 : i32
    %632 = vector.broadcast %c3_i32_337 : i32 to vector<8x512xi32>
    %633 = arith.cmpi sge, %7, %632 : vector<8x512xi32>
    %634 = arith.andi %631, %633 : vector<8x512xi1>
    %635 = arith.extui %634 : vector<8x512xi1> to vector<8x512xi32>
    %636 = arith.sitofp %635 : vector<8x512xi32> to vector<8x512xf32>
    %637 = arith.mulf %629, %636 : vector<8x512xf32>
    %c280 = arith.constant 280 : index
    %c0_338 = arith.constant 0 : index
    %638 = vector.load %arg25[%c280, %c0_338] : memref<392x512xf32, #tpu.memory_space<vmem>>, vector<8x512xf32>
    tpu.vector_store %arg25[%c280, %c0_338], %637 {strides = array<i32>} : memref<392x512xf32, #tpu.memory_space<vmem>>, vector<8x512xf32>,
    %c482_i32_339 = arith.constant 482 : i32
    %639 = tpu.dynamic_rotate %429 by %c482_i32_339 dim 1 : vector<8x512xf32>, i32 -> vector<8x512xf32>
    %640 = arith.mulf %639, %184 : vector<8x512xf32>
    %c288 = arith.constant 288 : index
    %c0_340 = arith.constant 0 : index
    %641 = vector.load %arg25[%c288, %c0_340] : memref<392x512xf32, #tpu.memory_space<vmem>>, vector<8x512xf32>
    tpu.vector_store %arg25[%c288, %c0_340], %640 {strides = array<i32>} : memref<392x512xf32, #tpu.memory_space<vmem>>, vector<8x512xf32>,
    %c481_i32_341 = arith.constant 481 : i32
    %642 = tpu.dynamic_rotate %429 by %c481_i32_341 dim 1 : vector<8x512xf32>, i32 -> vector<8x512xf32>
    %643 = arith.mulf %642, %324 : vector<8x512xf32>
    %c296 = arith.constant 296 : index
    %c0_342 = arith.constant 0 : index
    %644 = vector.load %arg25[%c296, %c0_342] : memref<392x512xf32, #tpu.memory_space<vmem>>, vector<8x512xf32>
    tpu.vector_store %arg25[%c296, %c0_342], %643 {strides = array<i32>} : memref<392x512xf32, #tpu.memory_space<vmem>>, vector<8x512xf32>,
    %c480_i32_343 = arith.constant 480 : i32
    %645 = tpu.dynamic_rotate %429 by %c480_i32_343 dim 1 : vector<8x512xf32>, i32 -> vector<8x512xf32>
    %646 = arith.mulf %645, %191 : vector<8x512xf32>
    %c304 = arith.constant 304 : index
    %c0_344 = arith.constant 0 : index
    %647 = vector.load %arg25[%c304, %c0_344] : memref<392x512xf32, #tpu.memory_space<vmem>>, vector<8x512xf32>
    tpu.vector_store %arg25[%c304, %c0_344], %646 {strides = array<i32>} : memref<392x512xf32, #tpu.memory_space<vmem>>, vector<8x512xf32>,
    %c479_i32_345 = arith.constant 479 : i32
    %648 = tpu.dynamic_rotate %429 by %c479_i32_345 dim 1 : vector<8x512xf32>, i32 -> vector<8x512xf32>
    %649 = arith.mulf %648, %337 : vector<8x512xf32>
    %c312 = arith.constant 312 : index
    %c0_346 = arith.constant 0 : index
    %650 = vector.load %arg25[%c312, %c0_346] : memref<392x512xf32, #tpu.memory_space<vmem>>, vector<8x512xf32>
    tpu.vector_store %arg25[%c312, %c0_346], %649 {strides = array<i32>} : memref<392x512xf32, #tpu.memory_space<vmem>>, vector<8x512xf32>,
    %c478_i32_347 = arith.constant 478 : i32
    %651 = tpu.dynamic_rotate %429 by %c478_i32_347 dim 1 : vector<8x512xf32>, i32 -> vector<8x512xf32>
    %652 = arith.mulf %651, %201 : vector<8x512xf32>
    %c320 = arith.constant 320 : index
    %c0_348 = arith.constant 0 : index
    %653 = vector.load %arg25[%c320, %c0_348] : memref<392x512xf32, #tpu.memory_space<vmem>>, vector<8x512xf32>
    tpu.vector_store %arg25[%c320, %c0_348], %652 {strides = array<i32>} : memref<392x512xf32, #tpu.memory_space<vmem>>, vector<8x512xf32>,
    %c477_i32 = arith.constant 477 : i32
    %654 = tpu.dynamic_rotate %429 by %c477_i32 dim 1 : vector<8x512xf32>, i32 -> vector<8x512xf32>
    %c14_i32_349 = arith.constant 14 : i32
    %655 = vector.broadcast %c14_i32_349 : i32 to vector<8x512xi32>
    %656 = arith.cmpi slt, %4, %655 : vector<8x512xi32>
    %c13_i32_350 = arith.constant 13 : i32
    %657 = vector.broadcast %c13_i32_350 : i32 to vector<8x512xi32>
    %658 = arith.cmpi slt, %7, %657 : vector<8x512xi32>
    %659 = arith.andi %656, %658 : vector<8x512xi1>
    %660 = arith.extui %659 : vector<8x512xi1> to vector<8x512xi32>
    %661 = arith.sitofp %660 : vector<8x512xi32> to vector<8x512xf32>
    %662 = arith.mulf %654, %661 : vector<8x512xf32>
    %c328 = arith.constant 328 : index
    %c0_351 = arith.constant 0 : index
    %663 = vector.load %arg25[%c328, %c0_351] : memref<392x512xf32, #tpu.memory_space<vmem>>, vector<8x512xf32>
    tpu.vector_store %arg25[%c328, %c0_351], %662 {strides = array<i32>} : memref<392x512xf32, #tpu.memory_space<vmem>>, vector<8x512xf32>,
    %c467_i32 = arith.constant 467 : i32
    %664 = tpu.dynamic_rotate %429 by %c467_i32 dim 1 : vector<8x512xf32>, i32 -> vector<8x512xf32>
    %c13_i32_352 = arith.constant 13 : i32
    %665 = vector.broadcast %c13_i32_352 : i32 to vector<8x512xi32>
    %666 = arith.cmpi slt, %4, %665 : vector<8x512xi32>
    %c3_i32_353 = arith.constant 3 : i32
    %667 = vector.broadcast %c3_i32_353 : i32 to vector<8x512xi32>
    %668 = arith.cmpi sge, %7, %667 : vector<8x512xi32>
    %669 = arith.andi %666, %668 : vector<8x512xi1>
    %670 = arith.extui %669 : vector<8x512xi1> to vector<8x512xi32>
    %671 = arith.sitofp %670 : vector<8x512xi32> to vector<8x512xf32>
    %672 = arith.mulf %664, %671 : vector<8x512xf32>
    %c336 = arith.constant 336 : index
    %c0_354 = arith.constant 0 : index
    %673 = vector.load %arg25[%c336, %c0_354] : memref<392x512xf32, #tpu.memory_space<vmem>>, vector<8x512xf32>
    tpu.vector_store %arg25[%c336, %c0_354], %672 {strides = array<i32>} : memref<392x512xf32, #tpu.memory_space<vmem>>, vector<8x512xf32>,
    %c466_i32 = arith.constant 466 : i32
    %674 = tpu.dynamic_rotate %429 by %c466_i32 dim 1 : vector<8x512xf32>, i32 -> vector<8x512xf32>
    %c13_i32_355 = arith.constant 13 : i32
    %675 = vector.broadcast %c13_i32_355 : i32 to vector<8x512xi32>
    %676 = arith.cmpi slt, %4, %675 : vector<8x512xi32>
    %c2_i32_356 = arith.constant 2 : i32
    %677 = vector.broadcast %c2_i32_356 : i32 to vector<8x512xi32>
    %678 = arith.cmpi sge, %7, %677 : vector<8x512xi32>
    %679 = arith.andi %676, %678 : vector<8x512xi1>
    %680 = arith.extui %679 : vector<8x512xi1> to vector<8x512xi32>
    %681 = arith.sitofp %680 : vector<8x512xi32> to vector<8x512xf32>
    %682 = arith.mulf %674, %681 : vector<8x512xf32>
    %c344 = arith.constant 344 : index
    %c0_357 = arith.constant 0 : index
    %683 = vector.load %arg25[%c344, %c0_357] : memref<392x512xf32, #tpu.memory_space<vmem>>, vector<8x512xf32>
    tpu.vector_store %arg25[%c344, %c0_357], %682 {strides = array<i32>} : memref<392x512xf32, #tpu.memory_space<vmem>>, vector<8x512xf32>,
    %c465_i32 = arith.constant 465 : i32
    %684 = tpu.dynamic_rotate %429 by %c465_i32 dim 1 : vector<8x512xf32>, i32 -> vector<8x512xf32>
    %c13_i32_358 = arith.constant 13 : i32
    %685 = vector.broadcast %c13_i32_358 : i32 to vector<8x512xi32>
    %686 = arith.cmpi slt, %4, %685 : vector<8x512xi32>
    %c1_i32_359 = arith.constant 1 : i32
    %687 = vector.broadcast %c1_i32_359 : i32 to vector<8x512xi32>
    %688 = arith.cmpi sge, %7, %687 : vector<8x512xi32>
    %689 = arith.andi %686, %688 : vector<8x512xi1>
    %690 = arith.extui %689 : vector<8x512xi1> to vector<8x512xi32>
    %691 = arith.sitofp %690 : vector<8x512xi32> to vector<8x512xf32>
    %692 = arith.mulf %684, %691 : vector<8x512xf32>
    %c352 = arith.constant 352 : index
    %c0_360 = arith.constant 0 : index
    %693 = vector.load %arg25[%c352, %c0_360] : memref<392x512xf32, #tpu.memory_space<vmem>>, vector<8x512xf32>
    tpu.vector_store %arg25[%c352, %c0_360], %692 {strides = array<i32>} : memref<392x512xf32, #tpu.memory_space<vmem>>, vector<8x512xf32>,
    %c464_i32 = arith.constant 464 : i32
    %694 = tpu.dynamic_rotate %429 by %c464_i32 dim 1 : vector<8x512xf32>, i32 -> vector<8x512xf32>
    %c13_i32_361 = arith.constant 13 : i32
    %695 = vector.broadcast %c13_i32_361 : i32 to vector<8x512xi32>
    %696 = arith.cmpi slt, %4, %695 : vector<8x512xi32>
    %697 = arith.extui %696 : vector<8x512xi1> to vector<8x512xi32>
    %698 = arith.sitofp %697 : vector<8x512xi32> to vector<8x512xf32>
    %699 = arith.mulf %694, %698 : vector<8x512xf32>
    %c360 = arith.constant 360 : index
    %c0_362 = arith.constant 0 : index
    %700 = vector.load %arg25[%c360, %c0_362] : memref<392x512xf32, #tpu.memory_space<vmem>>, vector<8x512xf32>
    tpu.vector_store %arg25[%c360, %c0_362], %699 {strides = array<i32>} : memref<392x512xf32, #tpu.memory_space<vmem>>, vector<8x512xf32>,
    %c463_i32 = arith.constant 463 : i32
    %701 = tpu.dynamic_rotate %429 by %c463_i32 dim 1 : vector<8x512xf32>, i32 -> vector<8x512xf32>
    %c13_i32_363 = arith.constant 13 : i32
    %702 = vector.broadcast %c13_i32_363 : i32 to vector<8x512xi32>
    %703 = arith.cmpi slt, %4, %702 : vector<8x512xi32>
    %c15_i32_364 = arith.constant 15 : i32
    %704 = vector.broadcast %c15_i32_364 : i32 to vector<8x512xi32>
    %705 = arith.cmpi slt, %7, %704 : vector<8x512xi32>
    %706 = arith.andi %703, %705 : vector<8x512xi1>
    %707 = arith.extui %706 : vector<8x512xi1> to vector<8x512xi32>
    %708 = arith.sitofp %707 : vector<8x512xi32> to vector<8x512xf32>
    %709 = arith.mulf %701, %708 : vector<8x512xf32>
    %c368 = arith.constant 368 : index
    %c0_365 = arith.constant 0 : index
    %710 = vector.load %arg25[%c368, %c0_365] : memref<392x512xf32, #tpu.memory_space<vmem>>, vector<8x512xf32>
    tpu.vector_store %arg25[%c368, %c0_365], %709 {strides = array<i32>} : memref<392x512xf32, #tpu.memory_space<vmem>>, vector<8x512xf32>,
    %c462_i32 = arith.constant 462 : i32
    %711 = tpu.dynamic_rotate %429 by %c462_i32 dim 1 : vector<8x512xf32>, i32 -> vector<8x512xf32>
    %c13_i32_366 = arith.constant 13 : i32
    %712 = vector.broadcast %c13_i32_366 : i32 to vector<8x512xi32>
    %713 = arith.cmpi slt, %4, %712 : vector<8x512xi32>
    %c14_i32_367 = arith.constant 14 : i32
    %714 = vector.broadcast %c14_i32_367 : i32 to vector<8x512xi32>
    %715 = arith.cmpi slt, %7, %714 : vector<8x512xi32>
    %716 = arith.andi %713, %715 : vector<8x512xi1>
    %717 = arith.extui %716 : vector<8x512xi1> to vector<8x512xi32>
    %718 = arith.sitofp %717 : vector<8x512xi32> to vector<8x512xf32>
    %719 = arith.mulf %711, %718 : vector<8x512xf32>
    %c376 = arith.constant 376 : index
    %c0_368 = arith.constant 0 : index
    %720 = vector.load %arg25[%c376, %c0_368] : memref<392x512xf32, #tpu.memory_space<vmem>>, vector<8x512xf32>
    tpu.vector_store %arg25[%c376, %c0_368], %719 {strides = array<i32>} : memref<392x512xf32, #tpu.memory_space<vmem>>, vector<8x512xf32>,
    %c461_i32 = arith.constant 461 : i32
    %721 = tpu.dynamic_rotate %429 by %c461_i32 dim 1 : vector<8x512xf32>, i32 -> vector<8x512xf32>
    %c13_i32_369 = arith.constant 13 : i32
    %722 = vector.broadcast %c13_i32_369 : i32 to vector<8x512xi32>
    %723 = arith.cmpi slt, %4, %722 : vector<8x512xi32>
    %c13_i32_370 = arith.constant 13 : i32
    %724 = vector.broadcast %c13_i32_370 : i32 to vector<8x512xi32>
    %725 = arith.cmpi slt, %7, %724 : vector<8x512xi32>
    %726 = arith.andi %723, %725 : vector<8x512xi1>
    %727 = arith.extui %726 : vector<8x512xi1> to vector<8x512xi32>
    %728 = arith.sitofp %727 : vector<8x512xi32> to vector<8x512xf32>
    %729 = arith.mulf %721, %728 : vector<8x512xf32>
    %c384 = arith.constant 384 : index
    %c0_371 = arith.constant 0 : index
    %730 = vector.load %arg25[%c384, %c0_371] : memref<392x512xf32, #tpu.memory_space<vmem>>, vector<8x512xf32>
    tpu.vector_store %arg25[%c384, %c0_371], %729 {strides = array<i32>} : memref<392x512xf32, #tpu.memory_space<vmem>>, vector<8x512xf32>,
    %c0_372 = arith.constant 0 : index
    %c0_373 = arith.constant 0 : index
    %731 = vector.load %arg18[%c0_372, %c0_373] : memref<8x392xf32, #tpu.memory_space<vmem>>, vector<8x392xf32>
    %c0_374 = arith.constant 0 : index
    %c0_375 = arith.constant 0 : index
    %732 = vector.load %arg25[%c0_374, %c0_375] : memref<392x512xf32, #tpu.memory_space<vmem>>, vector<392x512xf32>
    %cst_376 = arith.constant dense<0.000000e+00> : vector<8x512xf32>
    %733 = tpu.matmul %731, %732, %cst_376 {dimension_numbers = #tpu.dot_dimension_numbers<[1], [0], [0], [1], [0, 0, 1, 1], [], []>} : vector<8x392xf32>, vector<392x512xf32>, vector<8x512xf32> -> vector<8x512xf32>
    %c0_377 = arith.constant 0 : index
    %c0_378 = arith.constant 0 : index
    %734 = vector.load %arg19[%c0_377, %c0_378] : memref<8x1xf32, #tpu.memory_space<vmem>>, vector<8x1xf32>
    %735 = vector.broadcast %734 : vector<8x1xf32> to vector<8x512xf32>
    %736 = arith.addf %733, %735 : vector<8x512xf32>
    %cst_379 = arith.constant 0.000000e+00 : f32
    %737 = vector.broadcast %cst_379 : f32 to vector<8x512xf32>
    %738 = arith.maximumf %736, %737 : vector<8x512xf32>
    %c136_i32 = arith.constant 136 : i32
    %739 = tpu.dynamic_rotate %738 by %c136_i32 dim 1 : vector<8x512xf32>, i32 -> vector<8x512xf32>
    %c8_i32 = arith.constant 8 : i32
    %740 = vector.broadcast %c8_i32 : i32 to vector<8x512xi32>
    %741 = arith.cmpi sge, %4, %740 : vector<8x512xi32>
    %c8_i32_380 = arith.constant 8 : i32
    %742 = vector.broadcast %c8_i32_380 : i32 to vector<8x512xi32>
    %743 = arith.cmpi sge, %7, %742 : vector<8x512xi32>
    %744 = arith.andi %741, %743 : vector<8x512xi1>
    %745 = arith.extui %744 : vector<8x512xi1> to vector<8x512xi32>
    %746 = arith.sitofp %745 : vector<8x512xi32> to vector<8x512xf32>
    %747 = arith.mulf %739, %746 : vector<8x512xf32>
    %c0_381 = arith.constant 0 : index
    %c0_382 = arith.constant 0 : index
    %748 = vector.load %arg25[%c0_381, %c0_382] : memref<392x512xf32, #tpu.memory_space<vmem>>, vector<8x512xf32>
    tpu.vector_store %arg25[%c0_381, %c0_382], %747 {strides = array<i32>} : memref<392x512xf32, #tpu.memory_space<vmem>>, vector<8x512xf32>,
    %c128_i32 = arith.constant 128 : i32
    %749 = tpu.dynamic_rotate %738 by %c128_i32 dim 1 : vector<8x512xf32>, i32 -> vector<8x512xf32>
    %c8_i32_383 = arith.constant 8 : i32
    %750 = vector.broadcast %c8_i32_383 : i32 to vector<8x512xi32>
    %751 = arith.cmpi sge, %4, %750 : vector<8x512xi32>
    %752 = arith.extui %751 : vector<8x512xi1> to vector<8x512xi32>
    %753 = arith.sitofp %752 : vector<8x512xi32> to vector<8x512xf32>
    %754 = arith.mulf %749, %753 : vector<8x512xf32>
    %c8_384 = arith.constant 8 : index
    %c0_385 = arith.constant 0 : index
    %755 = vector.load %arg25[%c8_384, %c0_385] : memref<392x512xf32, #tpu.memory_space<vmem>>, vector<8x512xf32>
    tpu.vector_store %arg25[%c8_384, %c0_385], %754 {strides = array<i32>} : memref<392x512xf32, #tpu.memory_space<vmem>>, vector<8x512xf32>,
    %c120_i32 = arith.constant 120 : i32
    %756 = tpu.dynamic_rotate %738 by %c120_i32 dim 1 : vector<8x512xf32>, i32 -> vector<8x512xf32>
    %c8_i32_386 = arith.constant 8 : i32
    %757 = vector.broadcast %c8_i32_386 : i32 to vector<8x512xi32>
    %758 = arith.cmpi sge, %4, %757 : vector<8x512xi32>
    %c8_i32_387 = arith.constant 8 : i32
    %759 = vector.broadcast %c8_i32_387 : i32 to vector<8x512xi32>
    %760 = arith.cmpi slt, %7, %759 : vector<8x512xi32>
    %761 = arith.andi %758, %760 : vector<8x512xi1>
    %762 = arith.extui %761 : vector<8x512xi1> to vector<8x512xi32>
    %763 = arith.sitofp %762 : vector<8x512xi32> to vector<8x512xf32>
    %764 = arith.mulf %756, %763 : vector<8x512xf32>
    %c16_388 = arith.constant 16 : index
    %c0_389 = arith.constant 0 : index
    %765 = vector.load %arg25[%c16_388, %c0_389] : memref<392x512xf32, #tpu.memory_space<vmem>>, vector<8x512xf32>
    tpu.vector_store %arg25[%c16_388, %c0_389], %764 {strides = array<i32>} : memref<392x512xf32, #tpu.memory_space<vmem>>, vector<8x512xf32>,
    %c8_i32_390 = arith.constant 8 : i32
    %766 = tpu.dynamic_rotate %738 by %c8_i32_390 dim 1 : vector<8x512xf32>, i32 -> vector<8x512xf32>
    %c8_i32_391 = arith.constant 8 : i32
    %767 = vector.broadcast %c8_i32_391 : i32 to vector<8x512xi32>
    %768 = arith.cmpi sge, %7, %767 : vector<8x512xi32>
    %769 = arith.extui %768 : vector<8x512xi1> to vector<8x512xi32>
    %770 = arith.sitofp %769 : vector<8x512xi32> to vector<8x512xf32>
    %771 = arith.mulf %766, %770 : vector<8x512xf32>
    %c24_392 = arith.constant 24 : index
    %c0_393 = arith.constant 0 : index
    %772 = vector.load %arg25[%c24_392, %c0_393] : memref<392x512xf32, #tpu.memory_space<vmem>>, vector<8x512xf32>
    tpu.vector_store %arg25[%c24_392, %c0_393], %771 {strides = array<i32>} : memref<392x512xf32, #tpu.memory_space<vmem>>, vector<8x512xf32>,
    %c32_394 = arith.constant 32 : index
    %c0_395 = arith.constant 0 : index
    %773 = vector.load %arg25[%c32_394, %c0_395] : memref<392x512xf32, #tpu.memory_space<vmem>>, vector<8x512xf32>
    tpu.vector_store %arg25[%c32_394, %c0_395], %738 {strides = array<i32>} : memref<392x512xf32, #tpu.memory_space<vmem>>, vector<8x512xf32>,
    %c504_i32 = arith.constant 504 : i32
    %774 = tpu.dynamic_rotate %738 by %c504_i32 dim 1 : vector<8x512xf32>, i32 -> vector<8x512xf32>
    %c8_i32_396 = arith.constant 8 : i32
    %775 = vector.broadcast %c8_i32_396 : i32 to vector<8x512xi32>
    %776 = arith.cmpi slt, %7, %775 : vector<8x512xi32>
    %777 = arith.extui %776 : vector<8x512xi1> to vector<8x512xi32>
    %778 = arith.sitofp %777 : vector<8x512xi32> to vector<8x512xf32>
    %779 = arith.mulf %774, %778 : vector<8x512xf32>
    %c40_397 = arith.constant 40 : index
    %c0_398 = arith.constant 0 : index
    %780 = vector.load %arg25[%c40_397, %c0_398] : memref<392x512xf32, #tpu.memory_space<vmem>>, vector<8x512xf32>
    tpu.vector_store %arg25[%c40_397, %c0_398], %779 {strides = array<i32>} : memref<392x512xf32, #tpu.memory_space<vmem>>, vector<8x512xf32>,
    %c392_i32 = arith.constant 392 : i32
    %781 = tpu.dynamic_rotate %738 by %c392_i32 dim 1 : vector<8x512xf32>, i32 -> vector<8x512xf32>
    %c8_i32_399 = arith.constant 8 : i32
    %782 = vector.broadcast %c8_i32_399 : i32 to vector<8x512xi32>
    %783 = arith.cmpi slt, %4, %782 : vector<8x512xi32>
    %c8_i32_400 = arith.constant 8 : i32
    %784 = vector.broadcast %c8_i32_400 : i32 to vector<8x512xi32>
    %785 = arith.cmpi sge, %7, %784 : vector<8x512xi32>
    %786 = arith.andi %783, %785 : vector<8x512xi1>
    %787 = arith.extui %786 : vector<8x512xi1> to vector<8x512xi32>
    %788 = arith.sitofp %787 : vector<8x512xi32> to vector<8x512xf32>
    %789 = arith.mulf %781, %788 : vector<8x512xf32>
    %c48_401 = arith.constant 48 : index
    %c0_402 = arith.constant 0 : index
    %790 = vector.load %arg25[%c48_401, %c0_402] : memref<392x512xf32, #tpu.memory_space<vmem>>, vector<8x512xf32>
    tpu.vector_store %arg25[%c48_401, %c0_402], %789 {strides = array<i32>} : memref<392x512xf32, #tpu.memory_space<vmem>>, vector<8x512xf32>,
    %c384_i32 = arith.constant 384 : i32
    %791 = tpu.dynamic_rotate %738 by %c384_i32 dim 1 : vector<8x512xf32>, i32 -> vector<8x512xf32>
    %c8_i32_403 = arith.constant 8 : i32
    %792 = vector.broadcast %c8_i32_403 : i32 to vector<8x512xi32>
    %793 = arith.cmpi slt, %4, %792 : vector<8x512xi32>
    %794 = arith.extui %793 : vector<8x512xi1> to vector<8x512xi32>
    %795 = arith.sitofp %794 : vector<8x512xi32> to vector<8x512xf32>
    %796 = arith.mulf %791, %795 : vector<8x512xf32>
    %c56_404 = arith.constant 56 : index
    %c0_405 = arith.constant 0 : index
    %797 = vector.load %arg25[%c56_404, %c0_405] : memref<392x512xf32, #tpu.memory_space<vmem>>, vector<8x512xf32>
    tpu.vector_store %arg25[%c56_404, %c0_405], %796 {strides = array<i32>} : memref<392x512xf32, #tpu.memory_space<vmem>>, vector<8x512xf32>,
    %c376_i32 = arith.constant 376 : i32
    %798 = tpu.dynamic_rotate %738 by %c376_i32 dim 1 : vector<8x512xf32>, i32 -> vector<8x512xf32>
    %c8_i32_406 = arith.constant 8 : i32
    %799 = vector.broadcast %c8_i32_406 : i32 to vector<8x512xi32>
    %800 = arith.cmpi slt, %4, %799 : vector<8x512xi32>
    %c8_i32_407 = arith.constant 8 : i32
    %801 = vector.broadcast %c8_i32_407 : i32 to vector<8x512xi32>
    %802 = arith.cmpi slt, %7, %801 : vector<8x512xi32>
    %803 = arith.andi %800, %802 : vector<8x512xi1>
    %804 = arith.extui %803 : vector<8x512xi1> to vector<8x512xi32>
    %805 = arith.sitofp %804 : vector<8x512xi32> to vector<8x512xf32>
    %806 = arith.mulf %798, %805 : vector<8x512xf32>
    %c64_408 = arith.constant 64 : index
    %c0_409 = arith.constant 0 : index
    %807 = vector.load %arg25[%c64_408, %c0_409] : memref<392x512xf32, #tpu.memory_space<vmem>>, vector<8x512xf32>
    tpu.vector_store %arg25[%c64_408, %c0_409], %806 {strides = array<i32>} : memref<392x512xf32, #tpu.memory_space<vmem>>, vector<8x512xf32>,
    %c0_410 = arith.constant 0 : index
    %c0_411 = arith.constant 0 : index
    %808 = vector.load %arg20[%c0_410, %c0_411] : memref<8x72xf32, #tpu.memory_space<vmem>>, vector<8x72xf32>
    %c0_412 = arith.constant 0 : index
    %c0_413 = arith.constant 0 : index
    %809 = vector.load %arg25[%c0_412, %c0_413] : memref<392x512xf32, #tpu.memory_space<vmem>>, vector<72x512xf32>
    %cst_414 = arith.constant dense<0.000000e+00> : vector<8x512xf32>
    %810 = tpu.matmul %808, %809, %cst_414 {dimension_numbers = #tpu.dot_dimension_numbers<[1], [0], [0], [1], [0, 0, 1, 1], [], []>} : vector<8x72xf32>, vector<72x512xf32>, vector<8x512xf32> -> vector<8x512xf32>
    %c0_415 = arith.constant 0 : index
    %c0_416 = arith.constant 0 : index
    %811 = vector.load %arg21[%c0_415, %c0_416] : memref<8x1xf32, #tpu.memory_space<vmem>>, vector<8x1xf32>
    %812 = vector.broadcast %811 : vector<8x1xf32> to vector<8x512xf32>
    %813 = arith.addf %810, %812 : vector<8x512xf32>
    %cst_417 = arith.constant 0.000000e+00 : f32
    %814 = vector.broadcast %cst_417 : f32 to vector<8x512xf32>
    %815 = arith.maximumf %813, %814 : vector<8x512xf32>
    %816 = tpu.concatenate %99, %211, %427, %815 in 0 : vector<8x512xf32>, vector<8x512xf32>, vector<8x512xf32>, vector<8x512xf32> -> vector<32x512xf32>
    %c0_418 = arith.constant 0 : index
    %c0_419 = arith.constant 0 : index
    %817 = vector.load %arg22[%c0_418, %c0_419] : memref<32x32xf32, #tpu.memory_space<vmem>>, vector<32x32xf32>
    %cst_420 = arith.constant dense<0.000000e+00> : vector<32x512xf32>
    %818 = tpu.matmul %817, %816, %cst_420 {dimension_numbers = #tpu.dot_dimension_numbers<[1], [0], [0], [1], [0, 0, 1, 1], [], []>} : vector<32x32xf32>, vector<32x512xf32>, vector<32x512xf32> -> vector<32x512xf32>
    %c0_421 = arith.constant 0 : index
    %c0_422 = arith.constant 0 : index
    %819 = vector.load %arg23[%c0_421, %c0_422] : memref<32x1xf32, #tpu.memory_space<vmem>>, vector<32x1xf32>
    %820 = vector.broadcast %819 : vector<32x1xf32> to vector<32x512xf32>
    %821 = arith.addf %818, %820 : vector<32x512xf32>
    %cst_423 = arith.constant 0.000000e+00 : f32
    %822 = vector.broadcast %cst_423 : f32 to vector<32x512xf32>
    %823 = arith.maximumf %821, %822 : vector<32x512xf32>
    %c0_424 = arith.constant 0 : index
    %c0_425 = arith.constant 0 : index
    %c0_426 = arith.constant 0 : index
    %824 = vector.load %arg24[%c0_424, %c0_425, %c0_426] : memref<1x32x512xf32, #tpu.memory_space<vmem>>, vector<1x32x512xf32>
    %825 = vector.shape_cast %824 : vector<1x32x512xf32> to vector<32x512xf32>
    %826 = vector.shape_cast %823 : vector<32x512xf32> to vector<1x32x512xf32>
    tpu.vector_store %arg24[%c0_424, %c0_425, %c0_426], %826 {strides = array<i32>} : memref<1x32x512xf32, #tpu.memory_space<vmem>>, vector<1x32x512xf32>,
    return
  }
  func.func @transform_0(%arg0: i32) -> (i32, i32, i32) {
    %c0_i32 = arith.constant 0 : i32
    %c0_i32_0 = arith.constant 0 : i32
    %c0_i32_1 = arith.constant 0 : i32
    return %arg0, %c0_i32, %c0_i32_0 : i32, i32, i32
  }
  func.func @transform_1(%arg0: i32) -> (i32, i32) {
    %c0_i32 = arith.constant 0 : i32
    %c0_i32_0 = arith.constant 0 : i32
    %c0_i32_1 = arith.constant 0 : i32
    return %c0_i32, %c0_i32_0 : i32, i32
  }
  func.func @transform_2(%arg0: i32) -> (i32, i32) {
    %c0_i32 = arith.constant 0 : i32
    %c0_i32_0 = arith.constant 0 : i32
    %c0_i32_1 = arith.constant 0 : i32
    return %c0_i32, %c0_i32_0 : i32, i32
  }
  func.func @transform_3(%arg0: i32) -> (i32, i32) {
    %c0_i32 = arith.constant 0 : i32
    %c0_i32_0 = arith.constant 0 : i32
    %c0_i32_1 = arith.constant 0 : i32
    return %c0_i32, %c0_i32_0 : i32, i32
  }
  func.func @transform_4(%arg0: i32) -> (i32, i32) {
    %c0_i32 = arith.constant 0 : i32
    %c0_i32_0 = arith.constant 0 : i32
    %c0_i32_1 = arith.constant 0 : i32
    return %c0_i32, %c0_i32_0 : i32, i32
  }
  func.func @transform_5(%arg0: i32) -> (i32, i32) {
    %c0_i32 = arith.constant 0 : i32
    %c0_i32_0 = arith.constant 0 : i32
    %c0_i32_1 = arith.constant 0 : i32
    return %c0_i32, %c0_i32_0 : i32, i32
  }
  func.func @transform_6(%arg0: i32) -> (i32, i32) {
    %c0_i32 = arith.constant 0 : i32
    %c0_i32_0 = arith.constant 0 : i32
    %c0_i32_1 = arith.constant 0 : i32
    return %c0_i32, %c0_i32_0 : i32, i32
  }
  func.func @transform_7(%arg0: i32) -> (i32, i32) {
    %c0_i32 = arith.constant 0 : i32
    %c0_i32_0 = arith.constant 0 : i32
    %c0_i32_1 = arith.constant 0 : i32
    return %c0_i32, %c0_i32_0 : i32, i32
  }
  func.func @transform_8(%arg0: i32) -> (i32, i32) {
    %c0_i32 = arith.constant 0 : i32
    %c0_i32_0 = arith.constant 0 : i32
    %c0_i32_1 = arith.constant 0 : i32
    return %c0_i32, %c0_i32_0 : i32, i32
  }
  func.func @transform_9(%arg0: i32) -> (i32, i32) {
    %c0_i32 = arith.constant 0 : i32
    %c0_i32_0 = arith.constant 0 : i32
    %c0_i32_1 = arith.constant 0 : i32
    return %c0_i32, %c0_i32_0 : i32, i32
  }
  func.func @transform_10(%arg0: i32) -> (i32, i32) {
    %c0_i32 = arith.constant 0 : i32
    %c0_i32_0 = arith.constant 0 : i32
    %c0_i32_1 = arith.constant 0 : i32
    return %c0_i32, %c0_i32_0 : i32, i32
  }
  func.func @transform_11(%arg0: i32) -> (i32, i32) {
    %c0_i32 = arith.constant 0 : i32
    %c0_i32_0 = arith.constant 0 : i32
    %c0_i32_1 = arith.constant 0 : i32
    return %c0_i32, %c0_i32_0 : i32, i32
  }
  func.func @transform_12(%arg0: i32) -> (i32, i32) {
    %c0_i32 = arith.constant 0 : i32
    %c0_i32_0 = arith.constant 0 : i32
    %c0_i32_1 = arith.constant 0 : i32
    return %c0_i32, %c0_i32_0 : i32, i32
  }
  func.func @transform_13(%arg0: i32) -> (i32, i32) {
    %c0_i32 = arith.constant 0 : i32
    %c0_i32_0 = arith.constant 0 : i32
    %c0_i32_1 = arith.constant 0 : i32
    return %c0_i32, %c0_i32_0 : i32, i32
  }
  func.func @transform_14(%arg0: i32) -> (i32, i32) {
    %c0_i32 = arith.constant 0 : i32
    %c0_i32_0 = arith.constant 0 : i32
    %c0_i32_1 = arith.constant 0 : i32
    return %c0_i32, %c0_i32_0 : i32, i32
  }
  func.func @transform_15(%arg0: i32) -> (i32, i32) {
    %c0_i32 = arith.constant 0 : i32
    %c0_i32_0 = arith.constant 0 : i32
    %c0_i32_1 = arith.constant 0 : i32
    return %c0_i32, %c0_i32_0 : i32, i32
  }
  func.func @transform_16(%arg0: i32) -> (i32, i32) {
    %c0_i32 = arith.constant 0 : i32
    %c0_i32_0 = arith.constant 0 : i32
    %c0_i32_1 = arith.constant 0 : i32
    return %c0_i32, %c0_i32_0 : i32, i32
  }
  func.func @transform_17(%arg0: i32) -> (i32, i32) {
    %c0_i32 = arith.constant 0 : i32
    %c0_i32_0 = arith.constant 0 : i32
    %c0_i32_1 = arith.constant 0 : i32
    return %c0_i32, %c0_i32_0 : i32, i32
  }
  func.func @transform_18(%arg0: i32) -> (i32, i32) {
    %c0_i32 = arith.constant 0 : i32
    %c0_i32_0 = arith.constant 0 : i32
    %c0_i32_1 = arith.constant 0 : i32
    return %c0_i32, %c0_i32_0 : i32, i32
  }
  func.func @transform_19(%arg0: i32) -> (i32, i32) {
    %c0_i32 = arith.constant 0 : i32
    %c0_i32_0 = arith.constant 0 : i32
    %c0_i32_1 = arith.constant 0 : i32
    return %c0_i32, %c0_i32_0 : i32, i32
  }
  func.func @transform_20(%arg0: i32) -> (i32, i32) {
    %c0_i32 = arith.constant 0 : i32
    %c0_i32_0 = arith.constant 0 : i32
    %c0_i32_1 = arith.constant 0 : i32
    return %c0_i32, %c0_i32_0 : i32, i32
  }
  func.func @transform_21(%arg0: i32) -> (i32, i32) {
    %c0_i32 = arith.constant 0 : i32
    %c0_i32_0 = arith.constant 0 : i32
    %c0_i32_1 = arith.constant 0 : i32
    return %c0_i32, %c0_i32_0 : i32, i32
  }
  func.func @transform_22(%arg0: i32) -> (i32, i32) {
    %c0_i32 = arith.constant 0 : i32
    %c0_i32_0 = arith.constant 0 : i32
    %c0_i32_1 = arith.constant 0 : i32
    return %c0_i32, %c0_i32_0 : i32, i32
  }
  func.func @transform_23(%arg0: i32) -> (i32, i32, i32) {
    %c0_i32 = arith.constant 0 : i32
    %c0_i32_0 = arith.constant 0 : i32
    %c0_i32_1 = arith.constant 0 : i32
    return %arg0, %c0_i32, %c0_i32_0 : i32, i32, i32
  }
}

</mosaic_0001>

<llo_original>
// kernel: context_exploration_forward.1
$region0: #{context_exploration_forward.1}
  #allocation0 [shape = 'u32[]', space=smem, size = 0x4, offset = 0x4, fixed_abs, tag = 'smem constant byte address 0x4 - core index']
  #allocation1 [shape = 'u32[144,128]{1,0:T(1,128)}', space=vmem, size = 0x12000, scoped, tag = 'internal scratch']
  #allocation2 [shape = 'f32[392,512]{1,0:T(8,128)}', space=vmem, size = 0xc4000, scoped, tag = 'scratch operand']
  %s0 = inlined_call_operand.vmem [shape: f32[1,32,512], index: 0, kind: input, shape index: {}]
  %s1 = inlined_call_operand.vmem [shape: s32[1,512], index: 1, kind: input, shape index: {}]
  %s2 = inlined_call_operand.vmem [shape: s32[1,512], index: 2, kind: input, shape index: {}]
  %s3 = inlined_call_operand.vmem [shape: f32[32,32], index: 3, kind: input, shape index: {}]
  %s4 = inlined_call_operand.vmem [shape: f32[32,1], index: 4, kind: input, shape index: {}]
  %s5 = inlined_call_operand.vmem [shape: f32[8,8], index: 5, kind: input, shape index: {}]
  %s6 = inlined_call_operand.vmem [shape: f32[8,1], index: 6, kind: input, shape index: {}]
  %s7 = inlined_call_operand.vmem [shape: f32[8,72], index: 7, kind: input, shape index: {}]
  %s8 = inlined_call_operand.vmem [shape: f32[8,1], index: 8, kind: input, shape index: {}]
  %s9 = inlined_call_operand.vmem [shape: f32[8,72], index: 9, kind: input, shape index: {}]
  %s10 = inlined_call_operand.vmem [shape: f32[8,1], index: 10, kind: input, shape index: {}]
  %s11 = inlined_call_operand.vmem [shape: f32[8,72], index: 11, kind: input, shape index: {}]
  %s12 = inlined_call_operand.vmem [shape: f32[8,1], index: 12, kind: input, shape index: {}]
  %s13 = inlined_call_operand.vmem [shape: f32[8,200], index: 13, kind: input, shape index: {}]
  %s14 = inlined_call_operand.vmem [shape: f32[8,1], index: 14, kind: input, shape index: {}]
  %s15 = inlined_call_operand.vmem [shape: f32[8,72], index: 15, kind: input, shape index: {}]
  %s16 = inlined_call_operand.vmem [shape: f32[8,1], index: 16, kind: input, shape index: {}]
  %s17 = inlined_call_operand.vmem [shape: f32[8,392], index: 17, kind: input, shape index: {}]
  %s18 = inlined_call_operand.vmem [shape: f32[8,1], index: 18, kind: input, shape index: {}]
  %s19 = inlined_call_operand.vmem [shape: f32[8,72], index: 19, kind: input, shape index: {}]
  %s20 = inlined_call_operand.vmem [shape: f32[8,1], index: 20, kind: input, shape index: {}]
  %s21 = inlined_call_operand.vmem [shape: f32[32,32], index: 21, kind: input, shape index: {}]
  %s22 = inlined_call_operand.vmem [shape: f32[32,1], index: 22, kind: input, shape index: {}]
  %s23 = inlined_call_operand.vmem [shape: f32[1,32,512], index: 23, kind: output, shape index: {}]
  %s24 = sld [smem:[#allocation0]]
  $region102: #{context_exploration_forward.1} parent=0
    _
  %s26 = ssub.s32 1, %s24
  %s27 = scalar_select 0, %s26, %s24
  // Predicated region
  $region2: #{context_exploration_forward.1} parent=0 // pred_check
    _
  $region3: #{context_exploration_forward.1} parent=0 // pred_check_branch
    %29 = sbr.rel (0) target = $region5
  $region4: #{context_exploration_forward.1} parent=0 // pred_region
    _
  $region5: #{context_exploration_forward.1} parent=0 // pred_fallthru
    _
  // Predicated region
  $region6: #{context_exploration_forward.1} parent=0 // pred_check
    _
  $region7: #{context_exploration_forward.1} parent=0 // pred_check_branch
    %31 = sbr.rel (0) target = $region9
  $region8: #{context_exploration_forward.1} parent=0 // pred_region
    _
  $region9: #{context_exploration_forward.1} parent=0 // pred_fallthru
    _
  // Predicated region
  $region10: #{context_exploration_forward.1} parent=0 // pred_check
    _
  $region11: #{context_exploration_forward.1} parent=0 // pred_check_branch
    %33 = sbr.rel (0) target = $region13
  $region12: #{context_exploration_forward.1} parent=0 // pred_region
    _
  $region13: #{context_exploration_forward.1} parent=0 // pred_fallthru
    _
  // Predicated region
  $region14: #{context_exploration_forward.1} parent=0 // pred_check
    _
  $region15: #{context_exploration_forward.1} parent=0 // pred_check_branch
    %35 = sbr.rel (0) target = $region17
  $region16: #{context_exploration_forward.1} parent=0 // pred_region
    _
  $region17: #{context_exploration_forward.1} parent=0 // pred_fallthru
    _
  // Predicated region
  $region18: #{context_exploration_forward.1} parent=0 // pred_check
    _
  $region19: #{context_exploration_forward.1} parent=0 // pred_check_branch
    %37 = sbr.rel (0) target = $region21
  $region20: #{context_exploration_forward.1} parent=0 // pred_region
    _
  $region21: #{context_exploration_forward.1} parent=0 // pred_fallthru
    _
  // Predicated region
  $region22: #{context_exploration_forward.1} parent=0 // pred_check
    _
  $region23: #{context_exploration_forward.1} parent=0 // pred_check_branch
    %39 = sbr.rel (0) target = $region25
  $region24: #{context_exploration_forward.1} parent=0 // pred_region
    _
  $region25: #{context_exploration_forward.1} parent=0 // pred_fallthru
    _
  // Predicated region
  $region26: #{context_exploration_forward.1} parent=0 // pred_check
    _
  $region27: #{context_exploration_forward.1} parent=0 // pred_check_branch
    %41 = sbr.rel (0) target = $region29
  $region28: #{context_exploration_forward.1} parent=0 // pred_region
    _
  $region29: #{context_exploration_forward.1} parent=0 // pred_fallthru
    _
  // Predicated region
  $region30: #{context_exploration_forward.1} parent=0 // pred_check
    _
  $region31: #{context_exploration_forward.1} parent=0 // pred_check_branch
    %43 = sbr.rel (0) target = $region33
  $region32: #{context_exploration_forward.1} parent=0 // pred_region
    _
  $region33: #{context_exploration_forward.1} parent=0 // pred_fallthru
    _
  // Predicated region
  $region34: #{context_exploration_forward.1} parent=0 // pred_check
    _
  $region35: #{context_exploration_forward.1} parent=0 // pred_check_branch
    %45 = sbr.rel (0) target = $region37
  $region36: #{context_exploration_forward.1} parent=0 // pred_region
    _
  $region37: #{context_exploration_forward.1} parent=0 // pred_fallthru
    _
  // Predicated region
  $region38: #{context_exploration_forward.1} parent=0 // pred_check
    _
  $region39: #{context_exploration_forward.1} parent=0 // pred_check_branch
    %47 = sbr.rel (0) target = $region41
  $region40: #{context_exploration_forward.1} parent=0 // pred_region
    _
  $region41: #{context_exploration_forward.1} parent=0 // pred_fallthru
    _
  // Predicated region
  $region42: #{context_exploration_forward.1} parent=0 // pred_check
    _
  $region43: #{context_exploration_forward.1} parent=0 // pred_check_branch
    %49 = sbr.rel (0) target = $region45
  $region44: #{context_exploration_forward.1} parent=0 // pred_region
    _
  $region45: #{context_exploration_forward.1} parent=0 // pred_fallthru
    _
  // Predicated region
  $region46: #{context_exploration_forward.1} parent=0 // pred_check
    _
  $region47: #{context_exploration_forward.1} parent=0 // pred_check_branch
    %51 = sbr.rel (0) target = $region49
  $region48: #{context_exploration_forward.1} parent=0 // pred_region
    _
  $region49: #{context_exploration_forward.1} parent=0 // pred_fallthru
    _
  // Predicated region
  $region50: #{context_exploration_forward.1} parent=0 // pred_check
    _
  $region51: #{context_exploration_forward.1} parent=0 // pred_check_branch
    %53 = sbr.rel (0) target = $region53
  $region52: #{context_exploration_forward.1} parent=0 // pred_region
    _
  $region53: #{context_exploration_forward.1} parent=0 // pred_fallthru
    _
  // Predicated region
  $region54: #{context_exploration_forward.1} parent=0 // pred_check
    _
  $region55: #{context_exploration_forward.1} parent=0 // pred_check_branch
    %55 = sbr.rel (0) target = $region57
  $region56: #{context_exploration_forward.1} parent=0 // pred_region
    _
  $region57: #{context_exploration_forward.1} parent=0 // pred_fallthru
    _
  // Predicated region
  $region58: #{context_exploration_forward.1} parent=0 // pred_check
    _
  $region59: #{context_exploration_forward.1} parent=0 // pred_check_branch
    %57 = sbr.rel (0) target = $region61
  $region60: #{context_exploration_forward.1} parent=0 // pred_region
    _
  $region61: #{context_exploration_forward.1} parent=0 // pred_fallthru
    _
  // Predicated region
  $region62: #{context_exploration_forward.1} parent=0 // pred_check
    _
  $region63: #{context_exploration_forward.1} parent=0 // pred_check_branch
    %59 = sbr.rel (0) target = $region65
  $region64: #{context_exploration_forward.1} parent=0 // pred_region
    _
  $region65: #{context_exploration_forward.1} parent=0 // pred_fallthru
    _
  // Predicated region
  $region66: #{context_exploration_forward.1} parent=0 // pred_check
    _
  $region67: #{context_exploration_forward.1} parent=0 // pred_check_branch
    %61 = sbr.rel (0) target = $region69
  $region68: #{context_exploration_forward.1} parent=0 // pred_region
    _
  $region69: #{context_exploration_forward.1} parent=0 // pred_fallthru
    _
  // Predicated region
  $region70: #{context_exploration_forward.1} parent=0 // pred_check
    _
  $region71: #{context_exploration_forward.1} parent=0 // pred_check_branch
    %63 = sbr.rel (0) target = $region73
  $region72: #{context_exploration_forward.1} parent=0 // pred_region
    _
  $region73: #{context_exploration_forward.1} parent=0 // pred_fallthru
    _
  // Predicated region
  $region74: #{context_exploration_forward.1} parent=0 // pred_check
    _
  $region75: #{context_exploration_forward.1} parent=0 // pred_check_branch
    %65 = sbr.rel (0) target = $region77
  $region76: #{context_exploration_forward.1} parent=0 // pred_region
    _
  $region77: #{context_exploration_forward.1} parent=0 // pred_fallthru
    _
  // Predicated region
  $region78: #{context_exploration_forward.1} parent=0 // pred_check
    _
  $region79: #{context_exploration_forward.1} parent=0 // pred_check_branch
    %67 = sbr.rel (0) target = $region81
  $region80: #{context_exploration_forward.1} parent=0 // pred_region
    _
  $region81: #{context_exploration_forward.1} parent=0 // pred_fallthru
    _
  // Predicated region
  $region82: #{context_exploration_forward.1} parent=0 // pred_check
    _
  $region83: #{context_exploration_forward.1} parent=0 // pred_check_branch
    %69 = sbr.rel (0) target = $region85
  $region84: #{context_exploration_forward.1} parent=0 // pred_region
    _
  $region85: #{context_exploration_forward.1} parent=0 // pred_fallthru
    _
  // Predicated region
  $region86: #{context_exploration_forward.1} parent=0 // pred_check
    _
  $region87: #{context_exploration_forward.1} parent=0 // pred_check_branch
    %71 = sbr.rel (0) target = $region89
  $region88: #{context_exploration_forward.1} parent=0 // pred_region
    _
  $region89: #{context_exploration_forward.1} parent=0 // pred_fallthru
    _
  // Predicated region
  $region90: #{context_exploration_forward.1} parent=0 // pred_check
    _
  $region91: #{context_exploration_forward.1} parent=0 // pred_check_branch
    %73 = sbr.rel (0) target = $region93
  $region92: #{context_exploration_forward.1} parent=0 // pred_region
    _
  $region93: #{context_exploration_forward.1} parent=0 // pred_fallthru
    _
  %v74 = vld [vmem:[%s0] sm:$0xff]
  %v75 = vld [vmem:[%s0 + $0x8] sm:$0xff]
  %v76 = vld [vmem:[%s0 + $0x10] sm:$0xff]
  %v77 = vld [vmem:[%s0 + $0x18] sm:$0xff]
  %v78 = vld [vmem:[%s0 + $0x20] sm:$0xff]
  %v79 = vld [vmem:[%s0 + $0x28] sm:$0xff]
  %v80 = vld [vmem:[%s0 + $0x30] sm:$0xff]
  %v81 = vld [vmem:[%s0 + $0x38] sm:$0xff]
  %v82 = vld [vmem:[%s0 + $0x40] sm:$0xff]
  %v83 = vld [vmem:[%s0 + $0x48] sm:$0xff]
  %v84 = vld [vmem:[%s0 + $0x50] sm:$0xff]
  %v85 = vld [vmem:[%s0 + $0x58] sm:$0xff]
  %v86 = vld [vmem:[%s0 + $0x60] sm:$0xff]
  %v87 = vld [vmem:[%s0 + $0x68] sm:$0xff]
  %v88 = vld [vmem:[%s0 + $0x70] sm:$0xff]
  %v89 = vld [vmem:[%s0 + $0x78] sm:$0xff]
  %v90 = vld [vmem:[%s1] sm:$0xf]
  %v91 = vlaneseq
  %v92 = vshrl.u32 %v91, 7
  %v93 = vsub.s32 0, %v92
  %v94 = vrot.slane %v90, %v93
  %v95 = vlaneseq
  %v96 = vshrl.u32 %v95, 7
  %v97 = vsub.s32 1, %v96
  %v98 = vrot.slane %v90, %v97
  %v99 = vlaneseq
  %v100 = vshrl.u32 %v99, 7
  %v101 = vsub.s32 2, %v100
  %v102 = vrot.slane %v90, %v101
  %v103 = vlaneseq
  %v104 = vshrl.u32 %v103, 7
  %v105 = vsub.s32 3, %v104
  %v106 = vrot.slane %v90, %v105
  %v107 = vld [vmem:[%s2] sm:$0xf]
  %v108 = vlaneseq
  %v109 = vshrl.u32 %v108, 7
  %v110 = vsub.s32 0, %v109
  %v111 = vrot.slane %v107, %v110
  %v112 = vlaneseq
  %v113 = vshrl.u32 %v112, 7
  %v114 = vsub.s32 1, %v113
  %v115 = vrot.slane %v107, %v114
  %v116 = vlaneseq
  %v117 = vshrl.u32 %v116, 7
  %v118 = vsub.s32 2, %v117
  %v119 = vrot.slane %v107, %v118
  %v120 = vlaneseq
  %v121 = vshrl.u32 %v120, 7
  %v122 = vsub.s32 3, %v121
  %v123 = vrot.slane %v107, %v122
  %v124 = vld [vmem:[%s3] sm:$0xff]
  %v125 = vld [vmem:[%s3 + $0x8] sm:$0xff]
  %v126 = vld [vmem:[%s3 + $0x10] sm:$0xff]
  %v127 = vld [vmem:[%s3 + $0x18] sm:$0xff]
  %v128 = vld [vmem:[%s4] sm:$0xff]
  %v129 = vld [vmem:[%s4 + $0x8] sm:$0xff]
  %v130 = vld [vmem:[%s4 + $0x10] sm:$0xff]
  %v131 = vld [vmem:[%s4 + $0x18] sm:$0xff]
  %133 = vset.pattern.permute.xlu0 0
  %134 = vperm.xlu0 %133, %v128
  %v135 = vpop.permute.xlu0 %134
  %138 = vset.pattern.permute.xlu0 0
  %139 = vperm.xlu0 %138, %v129
  %v140 = vpop.permute.xlu0 %139
  %143 = vset.pattern.permute.xlu0 0
  %144 = vperm.xlu0 %143, %v130
  %v145 = vpop.permute.xlu0 %144
  %148 = vset.pattern.permute.xlu0 0
  %149 = vperm.xlu0 %148, %v131
  %v150 = vpop.permute.xlu0 %149
  %vm152 = vcmask 261120
  %v154 = vsel %vm152, %v124, 0
  %v157 = vsel %vm152, %v125, 0
  %v160 = vsel %vm152, %v126, 0
  %v163 = vsel %vm152, %v127, 0
  %165 = vmatprep.subr.mxu0 %v75
  %166 = vmatpush1.msra.mxu0 %v74
  %167 = vmatprep.subr.mxu0 %v79
  %168 = vmatpush1.msra.mxu0 %v78
  %169 = vmatprep.subr.mxu0 %v83
  %170 = vmatpush1.msra.mxu0 %v82
  %171 = vmatprep.subr.mxu0 %v87
  %172 = vmatpush1.msra.mxu0 %v86
  %173 = vmatprep.subr.mxu0 0.0
  %174 = vmatpush1.msra.mxu0 0.0
  %175 = vmatprep.subr.mxu0 0.0
  %176 = vmatpush1.msra.mxu0 0.0
  %177 = vmatprep.subr.mxu0 0.0
  %178 = vmatpush1.msra.mxu0 0.0
  %179 = vmatprep.subr.mxu0 0.0
  %180 = vmatpush1.msra.mxu0 0.0
  %181 = vmatprep.subr.mxu0 0.0
  %182 = vmatpush1.msra.mxu0 0.0
  %183 = vmatprep.subr.mxu0 0.0
  %184 = vmatpush1.msra.mxu0 0.0
  %185 = vmatprep.subr.mxu0 0.0
  %186 = vmatpush1.msra.mxu0 0.0
  %187 = vmatprep.subr.mxu0 0.0
  %188 = vmatpush1.msra.mxu0 0.0
  %189 = vmatprep.subr.mxu0 0.0
  %190 = vmatpush1.msra.mxu0 0.0
  %191 = vmatprep.subr.mxu0 0.0
  %192 = vmatpush1.msra.mxu0 0.0
  %193 = vmatprep.subr.mxu0 0.0
  %194 = vmatpush1.msra.mxu0 0.0
  %195 = vmatprep.subr.mxu0 0.0
  %196 = vmatpush1.msra.mxu0 0.0
  %197 = vmatprep.subr.mxu0 0.0
  %198 = vmatpush1.msra.mxu0 0.0
  %199 = vmatprep.subr.mxu0 0.0
  %200 = vmatpush1.msra.mxu0 0.0
  %201 = vmatprep.subr.mxu0 0.0
  %202 = vmatpush1.msra.mxu0 0.0
  %203 = vmatprep.subr.mxu0 0.0
  %204 = vmatpush1.msra.mxu0 0.0
  %205 = vmatprep.subr.mxu0 0.0
  %206 = vmatpush1.msra.mxu0 0.0
  %207 = vmatprep.subr.mxu0 0.0
  %208 = vmatpush1.msra.mxu0 0.0
  %209 = vmatprep.subr.mxu0 0.0
  %210 = vmatpush1.msra.mxu0 0.0
  %211 = vmatprep.subr.mxu0 0.0
  %212 = vmatpush1.msra.mxu0 0.0
  %213 = vmatprep.subr.mxu0 0.0
  %214 = vmatpush1.msra.mxu0 0.0
  %215 = vmatprep.subr.mxu0 0.0
  %216 = vmatpush1.msra.mxu0 0.0
  %217 = vmatprep.subr.mxu0 0.0
  %218 = vmatpush1.msra.mxu0 0.0
  %219 = vmatprep.subr.mxu0 0.0
  %220 = vmatpush1.msra.mxu0 0.0
  %221 = vmatprep.subr.mxu0 0.0
  %222 = vmatpush1.msra.mxu0 0.0
  %223 = vmatprep.subr.mxu0 0.0
  %224 = vmatpush1.msra.mxu0 0.0
  %225 = vmatprep.subr.mxu0 0.0
  %226 = vmatpush1.msra.mxu0 0.0
  %227 = vmatprep.subr.mxu0 0.0
  %228 = vmatpush1.msra.mxu0 0.0
  %229 = vmatprep.mubr.f32.mxu0 0.0
  %230 = vmatmul.mubr.f32.gmra.mrb[0].mxu0 %v154
  %v231 = vpop.f32.mrb[0].mxu0
  %v232 = vadd.f32 %v135, %v231
  %v233 = vpop.f32.mrb[0].mxu0
  %v234 = vadd.f32 %v135, %v233
  %235 = vmatprep.mubr.f32.mxu0 0.0
  %236 = vmatmul.mubr.f32.gmra.mrb[0].mxu0 %v157
  %v237 = vpop.f32.mrb[0].mxu0
  %v238 = vadd.f32 %v140, %v237
  %v239 = vpop.f32.mrb[0].mxu0
  %v240 = vadd.f32 %v140, %v239
  %241 = vmatprep.mubr.f32.mxu0 0.0
  %242 = vmatmul.mubr.f32.gmra.mrb[0].mxu0 %v160
  %v243 = vpop.f32.mrb[0].mxu0
  %v244 = vadd.f32 %v145, %v243
  %v245 = vpop.f32.mrb[0].mxu0
  %v246 = vadd.f32 %v145, %v245
  %247 = vmatprep.mubr.f32.mxu0 0.0
  %248 = vmatmul.mubr.f32.gmra.mrb[0].mxu0 %v163
  %v249 = vpop.f32.mrb[0].mxu0
  %v250 = vadd.f32 %v150, %v249
  %v251 = vpop.f32.mrb[0].mxu0
  %v252 = vadd.f32 %v150, %v251
  %253 = vdwg.mxu0
  %254 = vmatprep.subr.mxu0 %v77
  %255 = vmatpush1.msra.mxu0 %v76
  %256 = vmatprep.subr.mxu0 %v81
  %257 = vmatpush1.msra.mxu0 %v80
  %258 = vmatprep.subr.mxu0 %v85
  %259 = vmatpush1.msra.mxu0 %v84
  %260 = vmatprep.subr.mxu0 %v89
  %261 = vmatpush1.msra.mxu0 %v88
  %262 = vmatprep.subr.mxu0 0.0
  %263 = vmatpush1.msra.mxu0 0.0
  %264 = vmatprep.subr.mxu0 0.0
  %265 = vmatpush1.msra.mxu0 0.0
  %266 = vmatprep.subr.mxu0 0.0
  %267 = vmatpush1.msra.mxu0 0.0
  %268 = vmatprep.subr.mxu0 0.0
  %269 = vmatpush1.msra.mxu0 0.0
  %270 = vmatprep.subr.mxu0 0.0
  %271 = vmatpush1.msra.mxu0 0.0
  %272 = vmatprep.subr.mxu0 0.0
  %273 = vmatpush1.msra.mxu0 0.0
  %274 = vmatprep.subr.mxu0 0.0
  %275 = vmatpush1.msra.mxu0 0.0
  %276 = vmatprep.subr.mxu0 0.0
  %277 = vmatpush1.msra.mxu0 0.0
  %278 = vmatprep.subr.mxu0 0.0
  %279 = vmatpush1.msra.mxu0 0.0
  %280 = vmatprep.subr.mxu0 0.0
  %281 = vmatpush1.msra.mxu0 0.0
  %282 = vmatprep.subr.mxu0 0.0
  %283 = vmatpush1.msra.mxu0 0.0
  %284 = vmatprep.subr.mxu0 0.0
  %285 = vmatpush1.msra.mxu0 0.0
  %286 = vmatprep.subr.mxu0 0.0
  %287 = vmatpush1.msra.mxu0 0.0
  %288 = vmatprep.subr.mxu0 0.0
  %289 = vmatpush1.msra.mxu0 0.0
  %290 = vmatprep.subr.mxu0 0.0
  %291 = vmatpush1.msra.mxu0 0.0
  %292 = vmatprep.subr.mxu0 0.0
  %293 = vmatpush1.msra.mxu0 0.0
  %294 = vmatprep.subr.mxu0 0.0
  %295 = vmatpush1.msra.mxu0 0.0
  %296 = vmatprep.subr.mxu0 0.0
  %297 = vmatpush1.msra.mxu0 0.0
  %298 = vmatprep.subr.mxu0 0.0
  %299 = vmatpush1.msra.mxu0 0.0
  %300 = vmatprep.subr.mxu0 0.0
  %301 = vmatpush1.msra.mxu0 0.0
  %302 = vmatprep.subr.mxu0 0.0
  %303 = vmatpush1.msra.mxu0 0.0
  %304 = vmatprep.subr.mxu0 0.0
  %305 = vmatpush1.msra.mxu0 0.0
  %306 = vmatprep.subr.mxu0 0.0
  %307 = vmatpush1.msra.mxu0 0.0
  %308 = vmatprep.subr.mxu0 0.0
  %309 = vmatpush1.msra.mxu0 0.0
  %310 = vmatprep.subr.mxu0 0.0
  %311 = vmatpush1.msra.mxu0 0.0
  %312 = vmatprep.subr.mxu0 0.0
  %313 = vmatpush1.msra.mxu0 0.0
  %314 = vmatprep.subr.mxu0 0.0
  %315 = vmatpush1.msra.mxu0 0.0
  %316 = vmatprep.subr.mxu0 0.0
  %317 = vmatpush1.msra.mxu0 0.0
  %318 = vmatprep.mubr.f32.mxu0 0.0
  %319 = vmatmul.mubr.f32.gmra.mrb[0].mxu0 %v154
  %v320 = vpop.f32.mrb[0].mxu0
  %v321 = vadd.f32 %v135, %v320
  %v322 = vpop.f32.mrb[0].mxu0
  %v323 = vadd.f32 %v135, %v322
  %324 = vmatprep.mubr.f32.mxu0 0.0
  %325 = vmatmul.mubr.f32.gmra.mrb[0].mxu0 %v157
  %v326 = vpop.f32.mrb[0].mxu0
  %v327 = vadd.f32 %v140, %v326
  %v328 = vpop.f32.mrb[0].mxu0
  %v329 = vadd.f32 %v140, %v328
  %330 = vmatprep.mubr.f32.mxu0 0.0
  %331 = vmatmul.mubr.f32.gmra.mrb[0].mxu0 %v160
  %v332 = vpop.f32.mrb[0].mxu0
  %v333 = vadd.f32 %v145, %v332
  %v334 = vpop.f32.mrb[0].mxu0
  %v335 = vadd.f32 %v145, %v334
  %336 = vmatprep.mubr.f32.mxu0 0.0
  %337 = vmatmul.mubr.f32.gmra.mrb[0].mxu0 %v163
  %v338 = vpop.f32.mrb[0].mxu0
  %v339 = vadd.f32 %v150, %v338
  %v340 = vpop.f32.mrb[0].mxu0
  %v341 = vadd.f32 %v150, %v340
  %342 = vdwg.mxu0
  %v343 = vmax.f32 %v232, 0.0
  %v344 = vmax.f32 %v234, 0.0
  %v345 = vmax.f32 %v321, 0.0
  %v346 = vmax.f32 %v323, 0.0
  %v347 = vmax.f32 %v238, 0.0
  %v348 = vmax.f32 %v240, 0.0
  %v349 = vmax.f32 %v327, 0.0
  %v350 = vmax.f32 %v329, 0.0
  %v351 = vmax.f32 %v244, 0.0
  %v352 = vmax.f32 %v246, 0.0
  %v353 = vmax.f32 %v333, 0.0
  %v354 = vmax.f32 %v335, 0.0
  %v355 = vmax.f32 %v250, 0.0
  %v356 = vmax.f32 %v252, 0.0
  %v357 = vmax.f32 %v339, 0.0
  %v358 = vmax.f32 %v341, 0.0
  %v359 = vld [vmem:[%s5] sm:$0xff]
  %v360 = vld [vmem:[%s6] sm:$0xff]
  %362 = vset.pattern.permute.xlu0 0
  %363 = vperm.xlu0 %362, %v360
  %v364 = vpop.permute.xlu0 %363
  %vm366 = vcmask 64512
  %v368 = vsel %vm366, %v359, 0
  %370 = vmatprep.subr.mxu0 %v344
  %371 = vmatpush1.msra.mxu0 %v343
  %372 = vmatprep.subr.mxu0 0.0
  %373 = vmatpush1.msra.mxu0 0.0
  %374 = vmatprep.subr.mxu0 0.0
  %375 = vmatpush1.msra.mxu0 0.0
  %376 = vmatprep.subr.mxu0 0.0
  %377 = vmatpush1.msra.mxu0 0.0
  %378 = vmatprep.subr.mxu0 0.0
  %379 = vmatpush1.msra.mxu0 0.0
  %380 = vmatprep.subr.mxu0 0.0
  %381 = vmatpush1.msra.mxu0 0.0
  %382 = vmatprep.subr.mxu0 0.0
  %383 = vmatpush1.msra.mxu0 0.0
  %384 = vmatprep.subr.mxu0 0.0
  %385 = vmatpush1.msra.mxu0 0.0
  %386 = vmatprep.subr.mxu0 0.0
  %387 = vmatpush1.msra.mxu0 0.0
  %388 = vmatprep.subr.mxu0 0.0
  %389 = vmatpush1.msra.mxu0 0.0
  %390 = vmatprep.subr.mxu0 0.0
  %391 = vmatpush1.msra.mxu0 0.0
  %392 = vmatprep.subr.mxu0 0.0
  %393 = vmatpush1.msra.mxu0 0.0
  %394 = vmatprep.subr.mxu0 0.0
  %395 = vmatpush1.msra.mxu0 0.0
  %396 = vmatprep.subr.mxu0 0.0
  %397 = vmatpush1.msra.mxu0 0.0
  %398 = vmatprep.subr.mxu0 0.0
  %399 = vmatpush1.msra.mxu0 0.0
  %400 = vmatprep.subr.mxu0 0.0
  %401 = vmatpush1.msra.mxu0 0.0
  %402 = vmatprep.subr.mxu0 0.0
  %403 = vmatpush1.msra.mxu0 0.0
  %404 = vmatprep.subr.mxu0 0.0
  %405 = vmatpush1.msra.mxu0 0.0
  %406 = vmatprep.subr.mxu0 0.0
  %407 = vmatpush1.msra.mxu0 0.0
  %408 = vmatprep.subr.mxu0 0.0
  %409 = vmatpush1.msra.mxu0 0.0
  %410 = vmatprep.subr.mxu0 0.0
  %411 = vmatpush1.msra.mxu0 0.0
  %412 = vmatprep.subr.mxu0 0.0
  %413 = vmatpush1.msra.mxu0 0.0
  %414 = vmatprep.subr.mxu0 0.0
  %415 = vmatpush1.msra.mxu0 0.0
  %416 = vmatprep.subr.mxu0 0.0
  %417 = vmatpush1.msra.mxu0 0.0
  %418 = vmatprep.subr.mxu0 0.0
  %419 = vmatpush1.msra.mxu0 0.0
  %420 = vmatprep.subr.mxu0 0.0
  %421 = vmatpush1.msra.mxu0 0.0
  %422 = vmatprep.subr.mxu0 0.0
  %423 = vmatpush1.msra.mxu0 0.0
  %424 = vmatprep.subr.mxu0 0.0
  %425 = vmatpush1.msra.mxu0 0.0
  %426 = vmatprep.subr.mxu0 0.0
  %427 = vmatpush1.msra.mxu0 0.0
  %428 = vmatprep.subr.mxu0 0.0
  %429 = vmatpush1.msra.mxu0 0.0
  %430 = vmatprep.subr.mxu0 0.0
  %431 = vmatpush1.msra.mxu0 0.0
  %432 = vmatprep.subr.mxu0 0.0
  %433 = vmatpush1.msra.mxu0 0.0
  %434 = vmatprep.mubr.f32.mxu0 0.0
  %435 = vmatmul.mubr.f32.gmra.mrb[0].mxu0 %v368
  %v436 = vpop.f32.mrb[0].mxu0
  %v437 = vadd.f32 %v364, %v436
  %v438 = vpop.f32.mrb[0].mxu0
  %v439 = vadd.f32 %v364, %v438
  %440 = vdwg.mxu0
  %441 = vmatprep.subr.mxu0 %v346
  %442 = vmatpush1.msra.mxu0 %v345
  %443 = vmatprep.subr.mxu0 0.0
  %444 = vmatpush1.msra.mxu0 0.0
  %445 = vmatprep.subr.mxu0 0.0
  %446 = vmatpush1.msra.mxu0 0.0
  %447 = vmatprep.subr.mxu0 0.0
  %448 = vmatpush1.msra.mxu0 0.0
  %449 = vmatprep.subr.mxu0 0.0
  %450 = vmatpush1.msra.mxu0 0.0
  %451 = vmatprep.subr.mxu0 0.0
  %452 = vmatpush1.msra.mxu0 0.0
  %453 = vmatprep.subr.mxu0 0.0
  %454 = vmatpush1.msra.mxu0 0.0
  %455 = vmatprep.subr.mxu0 0.0
  %456 = vmatpush1.msra.mxu0 0.0
  %457 = vmatprep.subr.mxu0 0.0
  %458 = vmatpush1.msra.mxu0 0.0
  %459 = vmatprep.subr.mxu0 0.0
  %460 = vmatpush1.msra.mxu0 0.0
  %461 = vmatprep.subr.mxu0 0.0
  %462 = vmatpush1.msra.mxu0 0.0
  %463 = vmatprep.subr.mxu0 0.0
  %464 = vmatpush1.msra.mxu0 0.0
  %465 = vmatprep.subr.mxu0 0.0
  %466 = vmatpush1.msra.mxu0 0.0
  %467 = vmatprep.subr.mxu0 0.0
  %468 = vmatpush1.msra.mxu0 0.0
  %469 = vmatprep.subr.mxu0 0.0
  %470 = vmatpush1.msra.mxu0 0.0
  %471 = vmatprep.subr.mxu0 0.0
  %472 = vmatpush1.msra.mxu0 0.0
  %473 = vmatprep.subr.mxu0 0.0
  %474 = vmatpush1.msra.mxu0 0.0
  %475 = vmatprep.subr.mxu0 0.0
  %476 = vmatpush1.msra.mxu0 0.0
  %477 = vmatprep.subr.mxu0 0.0
  %478 = vmatpush1.msra.mxu0 0.0
  %479 = vmatprep.subr.mxu0 0.0
  %480 = vmatpush1.msra.mxu0 0.0
  %481 = vmatprep.subr.mxu0 0.0
  %482 = vmatpush1.msra.mxu0 0.0
  %483 = vmatprep.subr.mxu0 0.0
  %484 = vmatpush1.msra.mxu0 0.0
  %485 = vmatprep.subr.mxu0 0.0
  %486 = vmatpush1.msra.mxu0 0.0
  %487 = vmatprep.subr.mxu0 0.0
  %488 = vmatpush1.msra.mxu0 0.0
  %489 = vmatprep.subr.mxu0 0.0
  %490 = vmatpush1.msra.mxu0 0.0
  %491 = vmatprep.subr.mxu0 0.0
  %492 = vmatpush1.msra.mxu0 0.0
  %493 = vmatprep.subr.mxu0 0.0
  %494 = vmatpush1.msra.mxu0 0.0
  %495 = vmatprep.subr.mxu0 0.0
  %496 = vmatpush1.msra.mxu0 0.0
  %497 = vmatprep.subr.mxu0 0.0
  %498 = vmatpush1.msra.mxu0 0.0
  %499 = vmatprep.subr.mxu0 0.0
  %500 = vmatpush1.msra.mxu0 0.0
  %501 = vmatprep.subr.mxu0 0.0
  %502 = vmatpush1.msra.mxu0 0.0
  %503 = vmatprep.subr.mxu0 0.0
  %504 = vmatpush1.msra.mxu0 0.0
  %505 = vmatprep.mubr.f32.mxu0 0.0
  %506 = vmatmul.mubr.f32.gmra.mrb[0].mxu0 %v368
  %v507 = vpop.f32.mrb[0].mxu0
  %v508 = vadd.f32 %v364, %v507
  %v509 = vpop.f32.mrb[0].mxu0
  %v510 = vadd.f32 %v364, %v509
  %511 = vdwg.mxu0
  %v512 = vmax.f32 %v437, 0.0
  %v513 = vmax.f32 %v439, 0.0
  %v514 = vmax.f32 %v508, 0.0
  %v515 = vmax.f32 %v510, 0.0
  %516 = vrot.lane.b32.xlu0 %v512, 17
  %v517 = vpop.permute.xlu0 %516
  %518 = vrot.lane.b32.xlu0 %v513, 17
  %v519 = vpop.permute.xlu0 %518
  %520 = vrot.lane.b32.xlu0 %v514, 17
  %v521 = vpop.permute.xlu0 %520
  %522 = vrot.lane.b32.xlu0 %v515, 17
  %v523 = vpop.permute.xlu0 %522
  %v524 = vlaneseq
  %v525 = vand.u32 %v524, 127
  %vm526 = vcmp.lt.s32.totalorder %v525, 17
  %v527 = vsel %vm526, %v521, %v523
  %v528 = vsel %vm526, %v519, %v521
  %v529 = vsel %vm526, %v517, %v519
  %v530 = vsel %vm526, %v523, %v517
  %vm531 = vcmp.ge.s32.totalorder %v94, 1
  %vm532 = vcmp.ge.s32.totalorder %v98, 1
  %vm533 = vcmp.ge.s32.totalorder %v102, 1
  %vm534 = vcmp.ge.s32.totalorder %v106, 1
  %vm535 = vcmp.ge.s32.totalorder %v111, 1
  %vm536 = vcmp.ge.s32.totalorder %v115, 1
  %vm537 = vcmp.ge.s32.totalorder %v119, 1
  %vm538 = vcmp.ge.s32.totalorder %v123, 1
  %vm539 = vmand %vm531, %vm535
  %vm540 = vmand %vm532, %vm536
  %vm541 = vmand %vm533, %vm537
  %vm542 = vmand %vm534, %vm538
  %v543 = vsel %vm539, 1, 0
  %v544 = vsel %vm540, 1, 0
  %v545 = vsel %vm541, 1, 0
  %v546 = vsel %vm542, 1, 0
  %v547 = vcvt.s32.f32 %v543
  %v548 = vcvt.s32.f32 %v544
  %v549 = vcvt.s32.f32 %v545
  %v550 = vcvt.s32.f32 %v546
  %v551 = vmul.f32 %v530, %v547
  %v552 = vmul.f32 %v529, %v548
  %v553 = vmul.f32 %v528, %v549
  %v554 = vmul.f32 %v527, %v550
  %555 = vst [vmem:[#allocation2] sm:$0xff] %v551
  %556 = vst [vmem:[#allocation2 + $0x8] sm:$0xff] %v552
  %557 = vst [vmem:[#allocation2 + $0x10] sm:$0xff] %v553
  %558 = vst [vmem:[#allocation2 + $0x18] sm:$0xff] %v554
  %559 = vrot.lane.b32.xlu0 %v512, 16
  %v560 = vpop.permute.xlu0 %559
  %561 = vrot.lane.b32.xlu0 %v513, 16
  %v562 = vpop.permute.xlu0 %561
  %563 = vrot.lane.b32.xlu0 %v514, 16
  %v564 = vpop.permute.xlu0 %563
  %565 = vrot.lane.b32.xlu0 %v515, 16
  %v566 = vpop.permute.xlu0 %565
  %vm567 = vcmp.lt.s32.totalorder %v525, 16
  %v568 = vsel %vm567, %v564, %v566
  %v569 = vsel %vm567, %v562, %v564
  %v570 = vsel %vm567, %v560, %v562
  %v571 = vsel %vm567, %v566, %v560
  %v572 = vsel %vm531, 1, 0
  %v573 = vsel %vm532, 1, 0
  %v574 = vsel %vm533, 1, 0
  %v575 = vsel %vm534, 1, 0
  %v576 = vcvt.s32.f32 %v572
  %v577 = vcvt.s32.f32 %v573
  %v578 = vcvt.s32.f32 %v574
  %v579 = vcvt.s32.f32 %v575
  %v580 = vmul.f32 %v571, %v576
  %v581 = vmul.f32 %v570, %v577
  %v582 = vmul.f32 %v569, %v578
  %v583 = vmul.f32 %v568, %v579
  %584 = vst [vmem:[#allocation2 + $0x20] sm:$0xff] %v580
  %585 = vst [vmem:[#allocation2 + $0x28] sm:$0xff] %v581
  %586 = vst [vmem:[#allocation2 + $0x30] sm:$0xff] %v582
  %587 = vst [vmem:[#allocation2 + $0x38] sm:$0xff] %v583
  %588 = vrot.lane.b32.xlu0 %v512, 15
  %v589 = vpop.permute.xlu0 %588
  %590 = vrot.lane.b32.xlu0 %v513, 15
  %v591 = vpop.permute.xlu0 %590
  %592 = vrot.lane.b32.xlu0 %v514, 15
  %v593 = vpop.permute.xlu0 %592
  %594 = vrot.lane.b32.xlu0 %v515, 15
  %v595 = vpop.permute.xlu0 %594
  %vm596 = vcmp.lt.s32.totalorder %v525, 15
  %v597 = vsel %vm596, %v593, %v595
  %v598 = vsel %vm596, %v591, %v593
  %v599 = vsel %vm596, %v589, %v591
  %v600 = vsel %vm596, %v595, %v589
  %vm601 = vcmp.lt.s32.totalorder %v111, 15
  %vm602 = vcmp.lt.s32.totalorder %v115, 15
  %vm603 = vcmp.lt.s32.totalorder %v119, 15
  %vm604 = vcmp.lt.s32.totalorder %v123, 15
  %vm605 = vmand %vm531, %vm601
  %vm606 = vmand %vm532, %vm602
  %vm607 = vmand %vm533, %vm603
  %vm608 = vmand %vm534, %vm604
  %v609 = vsel %vm605, 1, 0
  %v610 = vsel %vm606, 1, 0
  %v611 = vsel %vm607, 1, 0
  %v612 = vsel %vm608, 1, 0
  %v613 = vcvt.s32.f32 %v609
  %v614 = vcvt.s32.f32 %v610
  %v615 = vcvt.s32.f32 %v611
  %v616 = vcvt.s32.f32 %v612
  %v617 = vmul.f32 %v600, %v613
  %v618 = vmul.f32 %v599, %v614
  %v619 = vmul.f32 %v598, %v615
  %v620 = vmul.f32 %v597, %v616
  %621 = vst [vmem:[#allocation2 + $0x40] sm:$0xff] %v617
  %622 = vst [vmem:[#allocation2 + $0x48] sm:$0xff] %v618
  %623 = vst [vmem:[#allocation2 + $0x50] sm:$0xff] %v619
  %624 = vst [vmem:[#allocation2 + $0x58] sm:$0xff] %v620
  %625 = vrot.lane.b32.xlu0 %v512, 1
  %v626 = vpop.permute.xlu0 %625
  %627 = vrot.lane.b32.xlu0 %v513, 1
  %v628 = vpop.permute.xlu0 %627
  %629 = vrot.lane.b32.xlu0 %v514, 1
  %v630 = vpop.permute.xlu0 %629
  %631 = vrot.lane.b32.xlu0 %v515, 1
  %v632 = vpop.permute.xlu0 %631
  %vm633 = vcmp.lt.s32.totalorder %v525, 1
  %v634 = vsel %vm633, %v630, %v632
  %v635 = vsel %vm633, %v628, %v630
  %v636 = vsel %vm633, %v626, %v628
  %v637 = vsel %vm633, %v632, %v626
  %v638 = vsel %vm535, 1, 0
  %v639 = vsel %vm536, 1, 0
  %v640 = vsel %vm537, 1, 0
  %v641 = vsel %vm538, 1, 0
  %v642 = vcvt.s32.f32 %v638
  %v643 = vcvt.s32.f32 %v639
  %v644 = vcvt.s32.f32 %v640
  %v645 = vcvt.s32.f32 %v641
  %v646 = vmul.f32 %v637, %v642
  %v647 = vmul.f32 %v636, %v643
  %v648 = vmul.f32 %v635, %v644
  %v649 = vmul.f32 %v634, %v645
  %650 = vst [vmem:[#allocation2 + $0x60] sm:$0xff] %v646
  %651 = vst [vmem:[#allocation2 + $0x68] sm:$0xff] %v647
  %652 = vst [vmem:[#allocation2 + $0x70] sm:$0xff] %v648
  %653 = vst [vmem:[#allocation2 + $0x78] sm:$0xff] %v649
  %654 = vst [vmem:[#allocation2 + $0x80] sm:$0xff] %v512
  %655 = vst [vmem:[#allocation2 + $0x88] sm:$0xff] %v513
  %656 = vst [vmem:[#allocation2 + $0x90] sm:$0xff] %v514
  %657 = vst [vmem:[#allocation2 + $0x98] sm:$0xff] %v515
  %658 = vrot.lane.b32.xlu0 %v512, 127
  %v659 = vpop.permute.xlu0 %658
  %660 = vrot.lane.b32.xlu0 %v513, 127
  %v661 = vpop.permute.xlu0 %660
  %662 = vrot.lane.b32.xlu0 %v514, 127
  %v663 = vpop.permute.xlu0 %662
  %664 = vrot.lane.b32.xlu0 %v515, 127
  %v665 = vpop.permute.xlu0 %664
  %vm666 = vcmp.lt.s32.totalorder %v525, 127
  %v667 = vsel %vm666, %v663, %v665
  %v668 = vsel %vm666, %v661, %v663
  %v669 = vsel %vm666, %v659, %v661
  %v670 = vsel %vm666, %v665, %v659
  %v671 = vsel %vm601, 1, 0
  %v672 = vsel %vm602, 1, 0
  %v673 = vsel %vm603, 1, 0
  %v674 = vsel %vm604, 1, 0
  %v675 = vcvt.s32.f32 %v671
  %v676 = vcvt.s32.f32 %v672
  %v677 = vcvt.s32.f32 %v673
  %v678 = vcvt.s32.f32 %v674
  %v679 = vmul.f32 %v669, %v675
  %v680 = vmul.f32 %v668, %v676
  %v681 = vmul.f32 %v667, %v677
  %v682 = vmul.f32 %v670, %v678
  %683 = vst [vmem:[#allocation2 + $0xa0] sm:$0xff] %v679
  %684 = vst [vmem:[#allocation2 + $0xa8] sm:$0xff] %v680
  %685 = vst [vmem:[#allocation2 + $0xb0] sm:$0xff] %v681
  %686 = vst [vmem:[#allocation2 + $0xb8] sm:$0xff] %v682
  %687 = vrot.lane.b32.xlu0 %v512, 113
  %v688 = vpop.permute.xlu0 %687
  %689 = vrot.lane.b32.xlu0 %v513, 113
  %v690 = vpop.permute.xlu0 %689
  %691 = vrot.lane.b32.xlu0 %v514, 113
  %v692 = vpop.permute.xlu0 %691
  %693 = vrot.lane.b32.xlu0 %v515, 113
  %v694 = vpop.permute.xlu0 %693
  %vm695 = vcmp.lt.s32.totalorder %v525, 113
  %v696 = vsel %vm695, %v692, %v694
  %v697 = vsel %vm695, %v690, %v692
  %v698 = vsel %vm695, %v688, %v690
  %v699 = vsel %vm695, %v694, %v688
  %vm700 = vcmp.lt.s32.totalorder %v94, 15
  %vm701 = vcmp.lt.s32.totalorder %v98, 15
  %vm702 = vcmp.lt.s32.totalorder %v102, 15
  %vm703 = vcmp.lt.s32.totalorder %v106, 15
  %vm704 = vmand %vm700, %vm535
  %vm705 = vmand %vm701, %vm536
  %vm706 = vmand %vm702, %vm537
  %vm707 = vmand %vm703, %vm538
  %v708 = vsel %vm704, 1, 0
  %v709 = vsel %vm705, 1, 0
  %v710 = vsel %vm706, 1, 0
  %v711 = vsel %vm707, 1, 0
  %v712 = vcvt.s32.f32 %v708
  %v713 = vcvt.s32.f32 %v709
  %v714 = vcvt.s32.f32 %v710
  %v715 = vcvt.s32.f32 %v711
  %v716 = vmul.f32 %v698, %v712
  %v717 = vmul.f32 %v697, %v713
  %v718 = vmul.f32 %v696, %v714
  %v719 = vmul.f32 %v699, %v715
  %720 = vst [vmem:[#allocation2 + $0xc0] sm:$0xff] %v716
  %721 = vst [vmem:[#allocation2 + $0xc8] sm:$0xff] %v717
  %722 = vst [vmem:[#allocation2 + $0xd0] sm:$0xff] %v718
  %723 = vst [vmem:[#allocation2 + $0xd8] sm:$0xff] %v719
  %724 = vrot.lane.b32.xlu0 %v512, 112
  %v725 = vpop.permute.xlu0 %724
  %726 = vrot.lane.b32.xlu0 %v513, 112
  %v727 = vpop.permute.xlu0 %726
  %728 = vrot.lane.b32.xlu0 %v514, 112
  %v729 = vpop.permute.xlu0 %728
  %730 = vrot.lane.b32.xlu0 %v515, 112
  %v731 = vpop.permute.xlu0 %730
  %vm732 = vcmp.lt.s32.totalorder %v525, 112
  %v733 = vsel %vm732, %v729, %v731
  %v734 = vsel %vm732, %v727, %v729
  %v735 = vsel %vm732, %v725, %v727
  %v736 = vsel %vm732, %v731, %v725
  %v737 = vsel %vm700, 1, 0
  %v738 = vsel %vm701, 1, 0
  %v739 = vsel %vm702, 1, 0
  %v740 = vsel %vm703, 1, 0
  %v741 = vcvt.s32.f32 %v737
  %v742 = vcvt.s32.f32 %v738
  %v743 = vcvt.s32.f32 %v739
  %v744 = vcvt.s32.f32 %v740
  %v745 = vmul.f32 %v735, %v741
  %v746 = vmul.f32 %v734, %v742
  %v747 = vmul.f32 %v733, %v743
  %v748 = vmul.f32 %v736, %v744
  %749 = vst [vmem:[#allocation2 + $0xe0] sm:$0xff] %v745
  %750 = vst [vmem:[#allocation2 + $0xe8] sm:$0xff] %v746
  %751 = vst [vmem:[#allocation2 + $0xf0] sm:$0xff] %v747
  %752 = vst [vmem:[#allocation2 + $0xf8] sm:$0xff] %v748
  %753 = vrot.lane.b32.xlu0 %v512, 111
  %v754 = vpop.permute.xlu0 %753
  %755 = vrot.lane.b32.xlu0 %v513, 111
  %v756 = vpop.permute.xlu0 %755
  %757 = vrot.lane.b32.xlu0 %v514, 111
  %v758 = vpop.permute.xlu0 %757
  %759 = vrot.lane.b32.xlu0 %v515, 111
  %v760 = vpop.permute.xlu0 %759
  %vm761 = vcmp.lt.s32.totalorder %v525, 111
  %v762 = vsel %vm761, %v758, %v760
  %v763 = vsel %vm761, %v756, %v758
  %v764 = vsel %vm761, %v754, %v756
  %v765 = vsel %vm761, %v760, %v754
  %vm766 = vmand %vm700, %vm601
  %vm767 = vmand %vm701, %vm602
  %vm768 = vmand %vm702, %vm603
  %vm769 = vmand %vm703, %vm604
  %v770 = vsel %vm766, 1, 0
  %v771 = vsel %vm767, 1, 0
  %v772 = vsel %vm768, 1, 0
  %v773 = vsel %vm769, 1, 0
  %v774 = vcvt.s32.f32 %v770
  %v775 = vcvt.s32.f32 %v771
  %v776 = vcvt.s32.f32 %v772
  %v777 = vcvt.s32.f32 %v773
  %v778 = vmul.f32 %v764, %v774
  %v779 = vmul.f32 %v763, %v775
  %v780 = vmul.f32 %v762, %v776
  %v781 = vmul.f32 %v765, %v777
  %782 = vst [vmem:[#allocation2 + $0x100] sm:$0xff] %v778
  %783 = vst [vmem:[#allocation2 + $0x108] sm:$0xff] %v779
  %784 = vst [vmem:[#allocation2 + $0x110] sm:$0xff] %v780
  %785 = vst [vmem:[#allocation2 + $0x118] sm:$0xff] %v781
  %v786 = vld [vmem:[%s7] sm:$0xff]
  %v787 = vld [vmem:[#allocation2] sm:$0xff]
  %v788 = vld [vmem:[#allocation2 + $0x8] sm:$0xff]
  %v789 = vld [vmem:[#allocation2 + $0x10] sm:$0xff]
  %v790 = vld [vmem:[#allocation2 + $0x18] sm:$0xff]
  %v791 = vld [vmem:[#allocation2 + $0x20] sm:$0xff]
  %v792 = vld [vmem:[#allocation2 + $0x28] sm:$0xff]
  %v793 = vld [vmem:[#allocation2 + $0x30] sm:$0xff]
  %v794 = vld [vmem:[#allocation2 + $0x38] sm:$0xff]
  %v795 = vld [vmem:[#allocation2 + $0x40] sm:$0xff]
  %v796 = vld [vmem:[#allocation2 + $0x48] sm:$0xff]
  %v797 = vld [vmem:[#allocation2 + $0x50] sm:$0xff]
  %v798 = vld [vmem:[#allocation2 + $0x58] sm:$0xff]
  %v799 = vld [vmem:[#allocation2 + $0x60] sm:$0xff]
  %v800 = vld [vmem:[#allocation2 + $0x68] sm:$0xff]
  %v801 = vld [vmem:[#allocation2 + $0x70] sm:$0xff]
  %v802 = vld [vmem:[#allocation2 + $0x78] sm:$0xff]
  %v803 = vld [vmem:[#allocation2 + $0x80] sm:$0xff]
  %v804 = vld [vmem:[#allocation2 + $0x88] sm:$0xff]
  %v805 = vld [vmem:[#allocation2 + $0x90] sm:$0xff]
  %v806 = vld [vmem:[#allocation2 + $0x98] sm:$0xff]
  %v807 = vld [vmem:[#allocation2 + $0xa0] sm:$0xff]
  %v808 = vld [vmem:[#allocation2 + $0xa8] sm:$0xff]
  %v809 = vld [vmem:[#allocation2 + $0xb0] sm:$0xff]
  %v810 = vld [vmem:[#allocation2 + $0xb8] sm:$0xff]
  %v811 = vld [vmem:[#allocation2 + $0xc0] sm:$0xff]
  %v812 = vld [vmem:[#allocation2 + $0xc8] sm:$0xff]
  %v813 = vld [vmem:[#allocation2 + $0xd0] sm:$0xff]
  %v814 = vld [vmem:[#allocation2 + $0xd8] sm:$0xff]
  %v815 = vld [vmem:[#allocation2 + $0xe0] sm:$0xff]
  %v816 = vld [vmem:[#allocation2 + $0xe8] sm:$0xff]
  %v817 = vld [vmem:[#allocation2 + $0xf0] sm:$0xff]
  %v818 = vld [vmem:[#allocation2 + $0xf8] sm:$0xff]
  %v819 = vld [vmem:[#allocation2 + $0x100] sm:$0xff]
  %v820 = vld [vmem:[#allocation2 + $0x108] sm:$0xff]
  %v821 = vld [vmem:[#allocation2 + $0x110] sm:$0xff]
  %v822 = vld [vmem:[#allocation2 + $0x118] sm:$0xff]
  %v823 = vld [vmem:[%s8] sm:$0xff]
  %825 = vset.pattern.permute.xlu0 0
  %826 = vperm.xlu0 %825, %v823
  %v827 = vpop.permute.xlu0 %826
  %vm829 = vcmask 588800
  %v831 = vsel %vm829, %v786, 0
  %833 = vmatprep.subr.mxu0 %v788
  %834 = vmatpush1.msra.mxu0 %v787
  %835 = vmatprep.subr.mxu0 %v792
  %836 = vmatpush1.msra.mxu0 %v791
  %837 = vmatprep.subr.mxu0 %v796
  %838 = vmatpush1.msra.mxu0 %v795
  %839 = vmatprep.subr.mxu0 %v800
  %840 = vmatpush1.msra.mxu0 %v799
  %841 = vmatprep.subr.mxu0 %v804
  %842 = vmatpush1.msra.mxu0 %v803
  %843 = vmatprep.subr.mxu0 %v808
  %844 = vmatpush1.msra.mxu0 %v807
  %845 = vmatprep.subr.mxu0 %v812
  %846 = vmatpush1.msra.mxu0 %v811
  %847 = vmatprep.subr.mxu0 %v816
  %848 = vmatpush1.msra.mxu0 %v815
  %849 = vmatprep.subr.mxu0 %v820
  %850 = vmatpush1.msra.mxu0 %v819
  %851 = vmatprep.subr.mxu0 0.0
  %852 = vmatpush1.msra.mxu0 0.0
  %853 = vmatprep.subr.mxu0 0.0
  %854 = vmatpush1.msra.mxu0 0.0
  %855 = vmatprep.subr.mxu0 0.0
  %856 = vmatpush1.msra.mxu0 0.0
  %857 = vmatprep.subr.mxu0 0.0
  %858 = vmatpush1.msra.mxu0 0.0
  %859 = vmatprep.subr.mxu0 0.0
  %860 = vmatpush1.msra.mxu0 0.0
  %861 = vmatprep.subr.mxu0 0.0
  %862 = vmatpush1.msra.mxu0 0.0
  %863 = vmatprep.subr.mxu0 0.0
  %864 = vmatpush1.msra.mxu0 0.0
  %865 = vmatprep.subr.mxu0 0.0
  %866 = vmatpush1.msra.mxu0 0.0
  %867 = vmatprep.subr.mxu0 0.0
  %868 = vmatpush1.msra.mxu0 0.0
  %869 = vmatprep.subr.mxu0 0.0
  %870 = vmatpush1.msra.mxu0 0.0
  %871 = vmatprep.subr.mxu0 0.0
  %872 = vmatpush1.msra.mxu0 0.0
  %873 = vmatprep.subr.mxu0 0.0
  %874 = vmatpush1.msra.mxu0 0.0
  %875 = vmatprep.subr.mxu0 0.0
  %876 = vmatpush1.msra.mxu0 0.0
  %877 = vmatprep.subr.mxu0 0.0
  %878 = vmatpush1.msra.mxu0 0.0
  %879 = vmatprep.subr.mxu0 0.0
  %880 = vmatpush1.msra.mxu0 0.0
  %881 = vmatprep.subr.mxu0 0.0
  %882 = vmatpush1.msra.mxu0 0.0
  %883 = vmatprep.subr.mxu0 0.0
  %884 = vmatpush1.msra.mxu0 0.0
  %885 = vmatprep.subr.mxu0 0.0
  %886 = vmatpush1.msra.mxu0 0.0
  %887 = vmatprep.subr.mxu0 0.0
  %888 = vmatpush1.msra.mxu0 0.0
  %889 = vmatprep.subr.mxu0 0.0
  %890 = vmatpush1.msra.mxu0 0.0
  %891 = vmatprep.subr.mxu0 0.0
  %892 = vmatpush1.msra.mxu0 0.0
  %893 = vmatprep.subr.mxu0 0.0
  %894 = vmatpush1.msra.mxu0 0.0
  %895 = vmatprep.subr.mxu0 0.0
  %896 = vmatpush1.msra.mxu0 0.0
  %897 = vmatprep.mubr.f32.mxu0 0.0
  %898 = vmatmul.mubr.f32.gmra.mrb[0].mxu0 %v831
  %v899 = vpop.f32.mrb[0].mxu0
  %v900 = vadd.f32 %v827, %v899
  %v901 = vpop.f32.mrb[0].mxu0
  %v902 = vadd.f32 %v827, %v901
  %903 = vdwg.mxu0
  %904 = vmatprep.subr.mxu0 %v790
  %905 = vmatpush1.msra.mxu0 %v789
  %906 = vmatprep.subr.mxu0 %v794
  %907 = vmatpush1.msra.mxu0 %v793
  %908 = vmatprep.subr.mxu0 %v798
  %909 = vmatpush1.msra.mxu0 %v797
  %910 = vmatprep.subr.mxu0 %v802
  %911 = vmatpush1.msra.mxu0 %v801
  %912 = vmatprep.subr.mxu0 %v806
  %913 = vmatpush1.msra.mxu0 %v805
  %914 = vmatprep.subr.mxu0 %v810
  %915 = vmatpush1.msra.mxu0 %v809
  %916 = vmatprep.subr.mxu0 %v814
  %917 = vmatpush1.msra.mxu0 %v813
  %918 = vmatprep.subr.mxu0 %v818
  %919 = vmatpush1.msra.mxu0 %v817
  %920 = vmatprep.subr.mxu0 %v822
  %921 = vmatpush1.msra.mxu0 %v821
  %922 = vmatprep.subr.mxu0 0.0
  %923 = vmatpush1.msra.mxu0 0.0
  %924 = vmatprep.subr.mxu0 0.0
  %925 = vmatpush1.msra.mxu0 0.0
  %926 = vmatprep.subr.mxu0 0.0
  %927 = vmatpush1.msra.mxu0 0.0
  %928 = vmatprep.subr.mxu0 0.0
  %929 = vmatpush1.msra.mxu0 0.0
  %930 = vmatprep.subr.mxu0 0.0
  %931 = vmatpush1.msra.mxu0 0.0
  %932 = vmatprep.subr.mxu0 0.0
  %933 = vmatpush1.msra.mxu0 0.0
  %934 = vmatprep.subr.mxu0 0.0
  %935 = vmatpush1.msra.mxu0 0.0
  %936 = vmatprep.subr.mxu0 0.0
  %937 = vmatpush1.msra.mxu0 0.0
  %938 = vmatprep.subr.mxu0 0.0
  %939 = vmatpush1.msra.mxu0 0.0
  %940 = vmatprep.subr.mxu0 0.0
  %941 = vmatpush1.msra.mxu0 0.0
  %942 = vmatprep.subr.mxu0 0.0
  %943 = vmatpush1.msra.mxu0 0.0
  %944 = vmatprep.subr.mxu0 0.0
  %945 = vmatpush1.msra.mxu0 0.0
  %946 = vmatprep.subr.mxu0 0.0
  %947 = vmatpush1.msra.mxu0 0.0
  %948 = vmatprep.subr.mxu0 0.0
  %949 = vmatpush1.msra.mxu0 0.0
  %950 = vmatprep.subr.mxu0 0.0
  %951 = vmatpush1.msra.mxu0 0.0
  %952 = vmatprep.subr.mxu0 0.0
  %953 = vmatpush1.msra.mxu0 0.0
  %954 = vmatprep.subr.mxu0 0.0
  %955 = vmatpush1.msra.mxu0 0.0
  %956 = vmatprep.subr.mxu0 0.0
  %957 = vmatpush1.msra.mxu0 0.0
  %958 = vmatprep.subr.mxu0 0.0
  %959 = vmatpush1.msra.mxu0 0.0
  %960 = vmatprep.subr.mxu0 0.0
  %961 = vmatpush1.msra.mxu0 0.0
  %962 = vmatprep.subr.mxu0 0.0
  %963 = vmatpush1.msra.mxu0 0.0
  %964 = vmatprep.subr.mxu0 0.0
  %965 = vmatpush1.msra.mxu0 0.0
  %966 = vmatprep.subr.mxu0 0.0
  %967 = vmatpush1.msra.mxu0 0.0
  %968 = vmatprep.mubr.f32.mxu0 0.0
  %969 = vmatmul.mubr.f32.gmra.mrb[0].mxu0 %v831
  %v970 = vpop.f32.mrb[0].mxu0
  %v971 = vadd.f32 %v827, %v970
  %v972 = vpop.f32.mrb[0].mxu0
  %v973 = vadd.f32 %v827, %v972
  %974 = vdwg.mxu0
  %v975 = vmax.f32 %v900, 0.0
  %v976 = vmax.f32 %v902, 0.0
  %v977 = vmax.f32 %v971, 0.0
  %v978 = vmax.f32 %v973, 0.0
  %v979 = vadd.f32 %v347, %v975
  %v980 = vadd.f32 %v348, %v976
  %v981 = vadd.f32 %v349, %v977
  %v982 = vadd.f32 %v350, %v978
  %983 = vrot.lane.b32.xlu0 %v979, 17
  %v984 = vpop.permute.xlu0 %983
  %985 = vrot.lane.b32.xlu0 %v980, 17
  %v986 = vpop.permute.xlu0 %985
  %987 = vrot.lane.b32.xlu0 %v981, 17
  %v988 = vpop.permute.xlu0 %987
  %989 = vrot.lane.b32.xlu0 %v982, 17
  %v990 = vpop.permute.xlu0 %989
  %v991 = vsel %vm526, %v988, %v990
  %v992 = vsel %vm526, %v986, %v988
  %v993 = vsel %vm526, %v984, %v986
  %v994 = vsel %vm526, %v990, %v984
  %v995 = vmul.f32 %v994, %v547
  %v996 = vmul.f32 %v993, %v548
  %v997 = vmul.f32 %v992, %v549
  %v998 = vmul.f32 %v991, %v550
  %999 = vst [vmem:[#allocation2] sm:$0xff] %v995
  %1000 = vst [vmem:[#allocation2 + $0x8] sm:$0xff] %v996
  %1001 = vst [vmem:[#allocation2 + $0x10] sm:$0xff] %v997
  %1002 = vst [vmem:[#allocation2 + $0x18] sm:$0xff] %v998
  %1003 = vrot.lane.b32.xlu0 %v979, 16
  %v1004 = vpop.permute.xlu0 %1003
  %1005 = vrot.lane.b32.xlu0 %v980, 16
  %v1006 = vpop.permute.xlu0 %1005
  %1007 = vrot.lane.b32.xlu0 %v981, 16
  %v1008 = vpop.permute.xlu0 %1007
  %1009 = vrot.lane.b32.xlu0 %v982, 16
  %v1010 = vpop.permute.xlu0 %1009
  %v1011 = vsel %vm567, %v1008, %v1010
  %v1012 = vsel %vm567, %v1006, %v1008
  %v1013 = vsel %vm567, %v1004, %v1006
  %v1014 = vsel %vm567, %v1010, %v1004
  %v1015 = vmul.f32 %v1014, %v576
  %v1016 = vmul.f32 %v1013, %v577
  %v1017 = vmul.f32 %v1012, %v578
  %v1018 = vmul.f32 %v1011, %v579
  %1019 = vst [vmem:[#allocation2 + $0x20] sm:$0xff] %v1015
  %1020 = vst [vmem:[#allocation2 + $0x28] sm:$0xff] %v1016
  %1021 = vst [vmem:[#allocation2 + $0x30] sm:$0xff] %v1017
  %1022 = vst [vmem:[#allocation2 + $0x38] sm:$0xff] %v1018
  %1023 = vrot.lane.b32.xlu0 %v979, 15
  %v1024 = vpop.permute.xlu0 %1023
  %1025 = vrot.lane.b32.xlu0 %v980, 15
  %v1026 = vpop.permute.xlu0 %1025
  %1027 = vrot.lane.b32.xlu0 %v981, 15
  %v1028 = vpop.permute.xlu0 %1027
  %1029 = vrot.lane.b32.xlu0 %v982, 15
  %v1030 = vpop.permute.xlu0 %1029
  %v1031 = vsel %vm596, %v1028, %v1030
  %v1032 = vsel %vm596, %v1026, %v1028
  %v1033 = vsel %vm596, %v1024, %v1026
  %v1034 = vsel %vm596, %v1030, %v1024
  %v1035 = vmul.f32 %v1034, %v613
  %v1036 = vmul.f32 %v1033, %v614
  %v1037 = vmul.f32 %v1032, %v615
  %v1038 = vmul.f32 %v1031, %v616
  %1039 = vst [vmem:[#allocation2 + $0x40] sm:$0xff] %v1035
  %1040 = vst [vmem:[#allocation2 + $0x48] sm:$0xff] %v1036
  %1041 = vst [vmem:[#allocation2 + $0x50] sm:$0xff] %v1037
  %1042 = vst [vmem:[#allocation2 + $0x58] sm:$0xff] %v1038
  %1043 = vrot.lane.b32.xlu0 %v979, 1
  %v1044 = vpop.permute.xlu0 %1043
  %1045 = vrot.lane.b32.xlu0 %v980, 1
  %v1046 = vpop.permute.xlu0 %1045
  %1047 = vrot.lane.b32.xlu0 %v981, 1
  %v1048 = vpop.permute.xlu0 %1047
  %1049 = vrot.lane.b32.xlu0 %v982, 1
  %v1050 = vpop.permute.xlu0 %1049
  %v1051 = vsel %vm633, %v1048, %v1050
  %v1052 = vsel %vm633, %v1046, %v1048
  %v1053 = vsel %vm633, %v1044, %v1046
  %v1054 = vsel %vm633, %v1050, %v1044
  %v1055 = vmul.f32 %v1054, %v642
  %v1056 = vmul.f32 %v1053, %v643
  %v1057 = vmul.f32 %v1052, %v644
  %v1058 = vmul.f32 %v1051, %v645
  %1059 = vst [vmem:[#allocation2 + $0x60] sm:$0xff] %v1055
  %1060 = vst [vmem:[#allocation2 + $0x68] sm:$0xff] %v1056
  %1061 = vst [vmem:[#allocation2 + $0x70] sm:$0xff] %v1057
  %1062 = vst [vmem:[#allocation2 + $0x78] sm:$0xff] %v1058
  %1063 = vst [vmem:[#allocation2 + $0x80] sm:$0xff] %v979
  %1064 = vst [vmem:[#allocation2 + $0x88] sm:$0xff] %v980
  %1065 = vst [vmem:[#allocation2 + $0x90] sm:$0xff] %v981
  %1066 = vst [vmem:[#allocation2 + $0x98] sm:$0xff] %v982
  %1067 = vrot.lane.b32.xlu0 %v979, 127
  %v1068 = vpop.permute.xlu0 %1067
  %1069 = vrot.lane.b32.xlu0 %v980, 127
  %v1070 = vpop.permute.xlu0 %1069
  %1071 = vrot.lane.b32.xlu0 %v981, 127
  %v1072 = vpop.permute.xlu0 %1071
  %1073 = vrot.lane.b32.xlu0 %v982, 127
  %v1074 = vpop.permute.xlu0 %1073
  %v1075 = vsel %vm666, %v1072, %v1074
  %v1076 = vsel %vm666, %v1070, %v1072
  %v1077 = vsel %vm666, %v1068, %v1070
  %v1078 = vsel %vm666, %v1074, %v1068
  %v1079 = vmul.f32 %v1077, %v675
  %v1080 = vmul.f32 %v1076, %v676
  %v1081 = vmul.f32 %v1075, %v677
  %v1082 = vmul.f32 %v1078, %v678
  %1083 = vst [vmem:[#allocation2 + $0xa0] sm:$0xff] %v1079
  %1084 = vst [vmem:[#allocation2 + $0xa8] sm:$0xff] %v1080
  %1085 = vst [vmem:[#allocation2 + $0xb0] sm:$0xff] %v1081
  %1086 = vst [vmem:[#allocation2 + $0xb8] sm:$0xff] %v1082
  %1087 = vrot.lane.b32.xlu0 %v979, 113
  %v1088 = vpop.permute.xlu0 %1087
  %1089 = vrot.lane.b32.xlu0 %v980, 113
  %v1090 = vpop.permute.xlu0 %1089
  %1091 = vrot.lane.b32.xlu0 %v981, 113
  %v1092 = vpop.permute.xlu0 %1091
  %1093 = vrot.lane.b32.xlu0 %v982, 113
  %v1094 = vpop.permute.xlu0 %1093
  %v1095 = vsel %vm695, %v1092, %v1094
  %v1096 = vsel %vm695, %v1090, %v1092
  %v1097 = vsel %vm695, %v1088, %v1090
  %v1098 = vsel %vm695, %v1094, %v1088
  %v1099 = vmul.f32 %v1097, %v712
  %v1100 = vmul.f32 %v1096, %v713
  %v1101 = vmul.f32 %v1095, %v714
  %v1102 = vmul.f32 %v1098, %v715
  %1103 = vst [vmem:[#allocation2 + $0xc0] sm:$0xff] %v1099
  %1104 = vst [vmem:[#allocation2 + $0xc8] sm:$0xff] %v1100
  %1105 = vst [vmem:[#allocation2 + $0xd0] sm:$0xff] %v1101
  %1106 = vst [vmem:[#allocation2 + $0xd8] sm:$0xff] %v1102
  %1107 = vrot.lane.b32.xlu0 %v979, 112
  %v1108 = vpop.permute.xlu0 %1107
  %1109 = vrot.lane.b32.xlu0 %v980, 112
  %v1110 = vpop.permute.xlu0 %1109
  %1111 = vrot.lane.b32.xlu0 %v981, 112
  %v1112 = vpop.permute.xlu0 %1111
  %1113 = vrot.lane.b32.xlu0 %v982, 112
  %v1114 = vpop.permute.xlu0 %1113
  %v1115 = vsel %vm732, %v1112, %v1114
  %v1116 = vsel %vm732, %v1110, %v1112
  %v1117 = vsel %vm732, %v1108, %v1110
  %v1118 = vsel %vm732, %v1114, %v1108
  %v1119 = vmul.f32 %v1117, %v741
  %v1120 = vmul.f32 %v1116, %v742
  %v1121 = vmul.f32 %v1115, %v743
  %v1122 = vmul.f32 %v1118, %v744
  %1123 = vst [vmem:[#allocation2 + $0xe0] sm:$0xff] %v1119
  %1124 = vst [vmem:[#allocation2 + $0xe8] sm:$0xff] %v1120
  %1125 = vst [vmem:[#allocation2 + $0xf0] sm:$0xff] %v1121
  %1126 = vst [vmem:[#allocation2 + $0xf8] sm:$0xff] %v1122
  %1127 = vrot.lane.b32.xlu0 %v979, 111
  %v1128 = vpop.permute.xlu0 %1127
  %1129 = vrot.lane.b32.xlu0 %v980, 111
  %v1130 = vpop.permute.xlu0 %1129
  %1131 = vrot.lane.b32.xlu0 %v981, 111
  %v1132 = vpop.permute.xlu0 %1131
  %1133 = vrot.lane.b32.xlu0 %v982, 111
  %v1134 = vpop.permute.xlu0 %1133
  %v1135 = vsel %vm761, %v1132, %v1134
  %v1136 = vsel %vm761, %v1130, %v1132
  %v1137 = vsel %vm761, %v1128, %v1130
  %v1138 = vsel %vm761, %v1134, %v1128
  %v1139 = vmul.f32 %v1137, %v774
  %v1140 = vmul.f32 %v1136, %v775
  %v1141 = vmul.f32 %v1135, %v776
  %v1142 = vmul.f32 %v1138, %v777
  %1143 = vst [vmem:[#allocation2 + $0x100] sm:$0xff] %v1139
  %1144 = vst [vmem:[#allocation2 + $0x108] sm:$0xff] %v1140
  %1145 = vst [vmem:[#allocation2 + $0x110] sm:$0xff] %v1141
  %1146 = vst [vmem:[#allocation2 + $0x118] sm:$0xff] %v1142
  %v1147 = vld [vmem:[%s9] sm:$0xff]
  %v1148 = vld [vmem:[#allocation2] sm:$0xff]
  %v1149 = vld [vmem:[#allocation2 + $0x8] sm:$0xff]
  %v1150 = vld [vmem:[#allocation2 + $0x10] sm:$0xff]
  %v1151 = vld [vmem:[#allocation2 + $0x18] sm:$0xff]
  %v1152 = vld [vmem:[#allocation2 + $0x20] sm:$0xff]
  %v1153 = vld [vmem:[#allocation2 + $0x28] sm:$0xff]
  %v1154 = vld [vmem:[#allocation2 + $0x30] sm:$0xff]
  %v1155 = vld [vmem:[#allocation2 + $0x38] sm:$0xff]
  %v1156 = vld [vmem:[#allocation2 + $0x40] sm:$0xff]
  %v1157 = vld [vmem:[#allocation2 + $0x48] sm:$0xff]
  %v1158 = vld [vmem:[#allocation2 + $0x50] sm:$0xff]
  %v1159 = vld [vmem:[#allocation2 + $0x58] sm:$0xff]
  %v1160 = vld [vmem:[#allocation2 + $0x60] sm:$0xff]
  %v1161 = vld [vmem:[#allocation2 + $0x68] sm:$0xff]
  %v1162 = vld [vmem:[#allocation2 + $0x70] sm:$0xff]
  %v1163 = vld [vmem:[#allocation2 + $0x78] sm:$0xff]
  %v1164 = vld [vmem:[#allocation2 + $0x80] sm:$0xff]
  %v1165 = vld [vmem:[#allocation2 + $0x88] sm:$0xff]
  %v1166 = vld [vmem:[#allocation2 + $0x90] sm:$0xff]
  %v1167 = vld [vmem:[#allocation2 + $0x98] sm:$0xff]
  %v1168 = vld [vmem:[#allocation2 + $0xa0] sm:$0xff]
  %v1169 = vld [vmem:[#allocation2 + $0xa8] sm:$0xff]
  %v1170 = vld [vmem:[#allocation2 + $0xb0] sm:$0xff]
  %v1171 = vld [vmem:[#allocation2 + $0xb8] sm:$0xff]
  %v1172 = vld [vmem:[#allocation2 + $0xc0] sm:$0xff]
  %v1173 = vld [vmem:[#allocation2 + $0xc8] sm:$0xff]
  %v1174 = vld [vmem:[#allocation2 + $0xd0] sm:$0xff]
  %v1175 = vld [vmem:[#allocation2 + $0xd8] sm:$0xff]
  %v1176 = vld [vmem:[#allocation2 + $0xe0] sm:$0xff]
  %v1177 = vld [vmem:[#allocation2 + $0xe8] sm:$0xff]
  %v1178 = vld [vmem:[#allocation2 + $0xf0] sm:$0xff]
  %v1179 = vld [vmem:[#allocation2 + $0xf8] sm:$0xff]
  %v1180 = vld [vmem:[#allocation2 + $0x100] sm:$0xff]
  %v1181 = vld [vmem:[#allocation2 + $0x108] sm:$0xff]
  %v1182 = vld [vmem:[#allocation2 + $0x110] sm:$0xff]
  %v1183 = vld [vmem:[#allocation2 + $0x118] sm:$0xff]
  %v1184 = vld [vmem:[%s10] sm:$0xff]
  %1186 = vset.pattern.permute.xlu0 0
  %1187 = vperm.xlu0 %1186, %v1184
  %v1188 = vpop.permute.xlu0 %1187
  %v1191 = vsel %vm829, %v1147, 0
  %1193 = vmatprep.subr.mxu0 %v1149
  %1194 = vmatpush1.msra.mxu0 %v1148
  %1195 = vmatprep.subr.mxu0 %v1153
  %1196 = vmatpush1.msra.mxu0 %v1152
  %1197 = vmatprep.subr.mxu0 %v1157
  %1198 = vmatpush1.msra.mxu0 %v1156
  %1199 = vmatprep.subr.mxu0 %v1161
  %1200 = vmatpush1.msra.mxu0 %v1160
  %1201 = vmatprep.subr.mxu0 %v1165
  %1202 = vmatpush1.msra.mxu0 %v1164
  %1203 = vmatprep.subr.mxu0 %v1169
  %1204 = vmatpush1.msra.mxu0 %v1168
  %1205 = vmatprep.subr.mxu0 %v1173
  %1206 = vmatpush1.msra.mxu0 %v1172
  %1207 = vmatprep.subr.mxu0 %v1177
  %1208 = vmatpush1.msra.mxu0 %v1176
  %1209 = vmatprep.subr.mxu0 %v1181
  %1210 = vmatpush1.msra.mxu0 %v1180
  %1211 = vmatprep.subr.mxu0 0.0
  %1212 = vmatpush1.msra.mxu0 0.0
  %1213 = vmatprep.subr.mxu0 0.0
  %1214 = vmatpush1.msra.mxu0 0.0
  %1215 = vmatprep.subr.mxu0 0.0
  %1216 = vmatpush1.msra.mxu0 0.0
  %1217 = vmatprep.subr.mxu0 0.0
  %1218 = vmatpush1.msra.mxu0 0.0
  %1219 = vmatprep.subr.mxu0 0.0
  %1220 = vmatpush1.msra.mxu0 0.0
  %1221 = vmatprep.subr.mxu0 0.0
  %1222 = vmatpush1.msra.mxu0 0.0
  %1223 = vmatprep.subr.mxu0 0.0
  %1224 = vmatpush1.msra.mxu0 0.0
  %1225 = vmatprep.subr.mxu0 0.0
  %1226 = vmatpush1.msra.mxu0 0.0
  %1227 = vmatprep.subr.mxu0 0.0
  %1228 = vmatpush1.msra.mxu0 0.0
  %1229 = vmatprep.subr.mxu0 0.0
  %1230 = vmatpush1.msra.mxu0 0.0
  %1231 = vmatprep.subr.mxu0 0.0
  %1232 = vmatpush1.msra.mxu0 0.0
  %1233 = vmatprep.subr.mxu0 0.0
  %1234 = vmatpush1.msra.mxu0 0.0
  %1235 = vmatprep.subr.mxu0 0.0
  %1236 = vmatpush1.msra.mxu0 0.0
  %1237 = vmatprep.subr.mxu0 0.0
  %1238 = vmatpush1.msra.mxu0 0.0
  %1239 = vmatprep.subr.mxu0 0.0
  %1240 = vmatpush1.msra.mxu0 0.0
  %1241 = vmatprep.subr.mxu0 0.0
  %1242 = vmatpush1.msra.mxu0 0.0
  %1243 = vmatprep.subr.mxu0 0.0
  %1244 = vmatpush1.msra.mxu0 0.0
  %1245 = vmatprep.subr.mxu0 0.0
  %1246 = vmatpush1.msra.mxu0 0.0
  %1247 = vmatprep.subr.mxu0 0.0
  %1248 = vmatpush1.msra.mxu0 0.0
  %1249 = vmatprep.subr.mxu0 0.0
  %1250 = vmatpush1.msra.mxu0 0.0
  %1251 = vmatprep.subr.mxu0 0.0
  %1252 = vmatpush1.msra.mxu0 0.0
  %1253 = vmatprep.subr.mxu0 0.0
  %1254 = vmatpush1.msra.mxu0 0.0
  %1255 = vmatprep.subr.mxu0 0.0
  %1256 = vmatpush1.msra.mxu0 0.0
  %1257 = vmatprep.mubr.f32.mxu0 0.0
  %1258 = vmatmul.mubr.f32.gmra.mrb[0].mxu0 %v1191
  %v1259 = vpop.f32.mrb[0].mxu0
  %v1260 = vadd.f32 %v1188, %v1259
  %v1261 = vpop.f32.mrb[0].mxu0
  %v1262 = vadd.f32 %v1188, %v1261
  %1263 = vdwg.mxu0
  %1264 = vmatprep.subr.mxu0 %v1151
  %1265 = vmatpush1.msra.mxu0 %v1150
  %1266 = vmatprep.subr.mxu0 %v1155
  %1267 = vmatpush1.msra.mxu0 %v1154
  %1268 = vmatprep.subr.mxu0 %v1159
  %1269 = vmatpush1.msra.mxu0 %v1158
  %1270 = vmatprep.subr.mxu0 %v1163
  %1271 = vmatpush1.msra.mxu0 %v1162
  %1272 = vmatprep.subr.mxu0 %v1167
  %1273 = vmatpush1.msra.mxu0 %v1166
  %1274 = vmatprep.subr.mxu0 %v1171
  %1275 = vmatpush1.msra.mxu0 %v1170
  %1276 = vmatprep.subr.mxu0 %v1175
  %1277 = vmatpush1.msra.mxu0 %v1174
  %1278 = vmatprep.subr.mxu0 %v1179
  %1279 = vmatpush1.msra.mxu0 %v1178
  %1280 = vmatprep.subr.mxu0 %v1183
  %1281 = vmatpush1.msra.mxu0 %v1182
  %1282 = vmatprep.subr.mxu0 0.0
  %1283 = vmatpush1.msra.mxu0 0.0
  %1284 = vmatprep.subr.mxu0 0.0
  %1285 = vmatpush1.msra.mxu0 0.0
  %1286 = vmatprep.subr.mxu0 0.0
  %1287 = vmatpush1.msra.mxu0 0.0
  %1288 = vmatprep.subr.mxu0 0.0
  %1289 = vmatpush1.msra.mxu0 0.0
  %1290 = vmatprep.subr.mxu0 0.0
  %1291 = vmatpush1.msra.mxu0 0.0
  %1292 = vmatprep.subr.mxu0 0.0
  %1293 = vmatpush1.msra.mxu0 0.0
  %1294 = vmatprep.subr.mxu0 0.0
  %1295 = vmatpush1.msra.mxu0 0.0
  %1296 = vmatprep.subr.mxu0 0.0
  %1297 = vmatpush1.msra.mxu0 0.0
  %1298 = vmatprep.subr.mxu0 0.0
  %1299 = vmatpush1.msra.mxu0 0.0
  %1300 = vmatprep.subr.mxu0 0.0
  %1301 = vmatpush1.msra.mxu0 0.0
  %1302 = vmatprep.subr.mxu0 0.0
  %1303 = vmatpush1.msra.mxu0 0.0
  %1304 = vmatprep.subr.mxu0 0.0
  %1305 = vmatpush1.msra.mxu0 0.0
  %1306 = vmatprep.subr.mxu0 0.0
  %1307 = vmatpush1.msra.mxu0 0.0
  %1308 = vmatprep.subr.mxu0 0.0
  %1309 = vmatpush1.msra.mxu0 0.0
  %1310 = vmatprep.subr.mxu0 0.0
  %1311 = vmatpush1.msra.mxu0 0.0
  %1312 = vmatprep.subr.mxu0 0.0
  %1313 = vmatpush1.msra.mxu0 0.0
  %1314 = vmatprep.subr.mxu0 0.0
  %1315 = vmatpush1.msra.mxu0 0.0
  %1316 = vmatprep.subr.mxu0 0.0
  %1317 = vmatpush1.msra.mxu0 0.0
  %1318 = vmatprep.subr.mxu0 0.0
  %1319 = vmatpush1.msra.mxu0 0.0
  %1320 = vmatprep.subr.mxu0 0.0
  %1321 = vmatpush1.msra.mxu0 0.0
  %1322 = vmatprep.subr.mxu0 0.0
  %1323 = vmatpush1.msra.mxu0 0.0
  %1324 = vmatprep.subr.mxu0 0.0
  %1325 = vmatpush1.msra.mxu0 0.0
  %1326 = vmatprep.subr.mxu0 0.0
  %1327 = vmatpush1.msra.mxu0 0.0
  %1328 = vmatprep.mubr.f32.mxu0 0.0
  %1329 = vmatmul.mubr.f32.gmra.mrb[0].mxu0 %v1191
  %v1330 = vpop.f32.mrb[0].mxu0
  %v1331 = vadd.f32 %v1188, %v1330
  %v1332 = vpop.f32.mrb[0].mxu0
  %v1333 = vadd.f32 %v1188, %v1332
  %1334 = vdwg.mxu0
  %v1335 = vmax.f32 %v1260, 0.0
  %v1336 = vmax.f32 %v1262, 0.0
  %v1337 = vmax.f32 %v1331, 0.0
  %v1338 = vmax.f32 %v1333, 0.0
  %1339 = vrot.lane.b32.xlu0 %v1335, 34
  %v1340 = vpop.permute.xlu0 %1339
  %1341 = vrot.lane.b32.xlu0 %v1336, 34
  %v1342 = vpop.permute.xlu0 %1341
  %1343 = vrot.lane.b32.xlu0 %v1337, 34
  %v1344 = vpop.permute.xlu0 %1343
  %1345 = vrot.lane.b32.xlu0 %v1338, 34
  %v1346 = vpop.permute.xlu0 %1345
  %vm1347 = vcmp.lt.s32.totalorder %v525, 34
  %v1348 = vsel %vm1347, %v1344, %v1346
  %v1349 = vsel %vm1347, %v1342, %v1344
  %v1350 = vsel %vm1347, %v1340, %v1342
  %v1351 = vsel %vm1347, %v1346, %v1340
  %vm1352 = vcmp.ge.s32.totalorder %v94, 2
  %vm1353 = vcmp.ge.s32.totalorder %v98, 2
  %vm1354 = vcmp.ge.s32.totalorder %v102, 2
  %vm1355 = vcmp.ge.s32.totalorder %v106, 2
  %vm1356 = vcmp.ge.s32.totalorder %v111, 2
  %vm1357 = vcmp.ge.s32.totalorder %v115, 2
  %vm1358 = vcmp.ge.s32.totalorder %v119, 2
  %vm1359 = vcmp.ge.s32.totalorder %v123, 2
  %vm1360 = vmand %vm1352, %vm1356
  %vm1361 = vmand %vm1353, %vm1357
  %vm1362 = vmand %vm1354, %vm1358
  %vm1363 = vmand %vm1355, %vm1359
  %v1364 = vsel %vm1360, 1, 0
  %v1365 = vsel %vm1361, 1, 0
  %v1366 = vsel %vm1362, 1, 0
  %v1367 = vsel %vm1363, 1, 0
  %v1368 = vcvt.s32.f32 %v1364
  %v1369 = vcvt.s32.f32 %v1365
  %v1370 = vcvt.s32.f32 %v1366
  %v1371 = vcvt.s32.f32 %v1367
  %v1372 = vmul.f32 %v1351, %v1368
  %v1373 = vmul.f32 %v1350, %v1369
  %v1374 = vmul.f32 %v1349, %v1370
  %v1375 = vmul.f32 %v1348, %v1371
  %1376 = vst [vmem:[#allocation2] sm:$0xff] %v1372
  %1377 = vst [vmem:[#allocation2 + $0x8] sm:$0xff] %v1373
  %1378 = vst [vmem:[#allocation2 + $0x10] sm:$0xff] %v1374
  %1379 = vst [vmem:[#allocation2 + $0x18] sm:$0xff] %v1375
  %1380 = vrot.lane.b32.xlu0 %v1335, 32
  %v1381 = vpop.permute.xlu0 %1380
  %1382 = vrot.lane.b32.xlu0 %v1336, 32
  %v1383 = vpop.permute.xlu0 %1382
  %1384 = vrot.lane.b32.xlu0 %v1337, 32
  %v1385 = vpop.permute.xlu0 %1384
  %1386 = vrot.lane.b32.xlu0 %v1338, 32
  %v1387 = vpop.permute.xlu0 %1386
  %vm1388 = vcmp.lt.s32.totalorder %v525, 32
  %v1389 = vsel %vm1388, %v1385, %v1387
  %v1390 = vsel %vm1388, %v1383, %v1385
  %v1391 = vsel %vm1388, %v1381, %v1383
  %v1392 = vsel %vm1388, %v1387, %v1381
  %v1393 = vsel %vm1352, 1, 0
  %v1394 = vsel %vm1353, 1, 0
  %v1395 = vsel %vm1354, 1, 0
  %v1396 = vsel %vm1355, 1, 0
  %v1397 = vcvt.s32.f32 %v1393
  %v1398 = vcvt.s32.f32 %v1394
  %v1399 = vcvt.s32.f32 %v1395
  %v1400 = vcvt.s32.f32 %v1396
  %v1401 = vmul.f32 %v1392, %v1397
  %v1402 = vmul.f32 %v1391, %v1398
  %v1403 = vmul.f32 %v1390, %v1399
  %v1404 = vmul.f32 %v1389, %v1400
  %1405 = vst [vmem:[#allocation2 + $0x20] sm:$0xff] %v1401
  %1406 = vst [vmem:[#allocation2 + $0x28] sm:$0xff] %v1402
  %1407 = vst [vmem:[#allocation2 + $0x30] sm:$0xff] %v1403
  %1408 = vst [vmem:[#allocation2 + $0x38] sm:$0xff] %v1404
  %1409 = vrot.lane.b32.xlu0 %v1335, 30
  %v1410 = vpop.permute.xlu0 %1409
  %1411 = vrot.lane.b32.xlu0 %v1336, 30
  %v1412 = vpop.permute.xlu0 %1411
  %1413 = vrot.lane.b32.xlu0 %v1337, 30
  %v1414 = vpop.permute.xlu0 %1413
  %1415 = vrot.lane.b32.xlu0 %v1338, 30
  %v1416 = vpop.permute.xlu0 %1415
  %vm1417 = vcmp.lt.s32.totalorder %v525, 30
  %v1418 = vsel %vm1417, %v1414, %v1416
  %v1419 = vsel %vm1417, %v1412, %v1414
  %v1420 = vsel %vm1417, %v1410, %v1412
  %v1421 = vsel %vm1417, %v1416, %v1410
  %vm1422 = vcmp.lt.s32.totalorder %v111, 14
  %vm1423 = vcmp.lt.s32.totalorder %v115, 14
  %vm1424 = vcmp.lt.s32.totalorder %v119, 14
  %vm1425 = vcmp.lt.s32.totalorder %v123, 14
  %vm1426 = vmand %vm1352, %vm1422
  %vm1427 = vmand %vm1353, %vm1423
  %vm1428 = vmand %vm1354, %vm1424
  %vm1429 = vmand %vm1355, %vm1425
  %v1430 = vsel %vm1426, 1, 0
  %v1431 = vsel %vm1427, 1, 0
  %v1432 = vsel %vm1428, 1, 0
  %v1433 = vsel %vm1429, 1, 0
  %v1434 = vcvt.s32.f32 %v1430
  %v1435 = vcvt.s32.f32 %v1431
  %v1436 = vcvt.s32.f32 %v1432
  %v1437 = vcvt.s32.f32 %v1433
  %v1438 = vmul.f32 %v1421, %v1434
  %v1439 = vmul.f32 %v1420, %v1435
  %v1440 = vmul.f32 %v1419, %v1436
  %v1441 = vmul.f32 %v1418, %v1437
  %1442 = vst [vmem:[#allocation2 + $0x40] sm:$0xff] %v1438
  %1443 = vst [vmem:[#allocation2 + $0x48] sm:$0xff] %v1439
  %1444 = vst [vmem:[#allocation2 + $0x50] sm:$0xff] %v1440
  %1445 = vst [vmem:[#allocation2 + $0x58] sm:$0xff] %v1441
  %1446 = vrot.lane.b32.xlu0 %v1335, 2
  %v1447 = vpop.permute.xlu0 %1446
  %1448 = vrot.lane.b32.xlu0 %v1336, 2
  %v1449 = vpop.permute.xlu0 %1448
  %1450 = vrot.lane.b32.xlu0 %v1337, 2
  %v1451 = vpop.permute.xlu0 %1450
  %1452 = vrot.lane.b32.xlu0 %v1338, 2
  %v1453 = vpop.permute.xlu0 %1452
  %vm1454 = vcmp.lt.s32.totalorder %v525, 2
  %v1455 = vsel %vm1454, %v1451, %v1453
  %v1456 = vsel %vm1454, %v1449, %v1451
  %v1457 = vsel %vm1454, %v1447, %v1449
  %v1458 = vsel %vm1454, %v1453, %v1447
  %v1459 = vsel %vm1356, 1, 0
  %v1460 = vsel %vm1357, 1, 0
  %v1461 = vsel %vm1358, 1, 0
  %v1462 = vsel %vm1359, 1, 0
  %v1463 = vcvt.s32.f32 %v1459
  %v1464 = vcvt.s32.f32 %v1460
  %v1465 = vcvt.s32.f32 %v1461
  %v1466 = vcvt.s32.f32 %v1462
  %v1467 = vmul.f32 %v1458, %v1463
  %v1468 = vmul.f32 %v1457, %v1464
  %v1469 = vmul.f32 %v1456, %v1465
  %v1470 = vmul.f32 %v1455, %v1466
  %1471 = vst [vmem:[#allocation2 + $0x60] sm:$0xff] %v1467
  %1472 = vst [vmem:[#allocation2 + $0x68] sm:$0xff] %v1468
  %1473 = vst [vmem:[#allocation2 + $0x70] sm:$0xff] %v1469
  %1474 = vst [vmem:[#allocation2 + $0x78] sm:$0xff] %v1470
  %1475 = vst [vmem:[#allocation2 + $0x80] sm:$0xff] %v1335
  %1476 = vst [vmem:[#allocation2 + $0x88] sm:$0xff] %v1336
  %1477 = vst [vmem:[#allocation2 + $0x90] sm:$0xff] %v1337
  %1478 = vst [vmem:[#allocation2 + $0x98] sm:$0xff] %v1338
  %1479 = vrot.lane.b32.xlu0 %v1335, 126
  %v1480 = vpop.permute.xlu0 %1479
  %1481 = vrot.lane.b32.xlu0 %v1336, 126
  %v1482 = vpop.permute.xlu0 %1481
  %1483 = vrot.lane.b32.xlu0 %v1337, 126
  %v1484 = vpop.permute.xlu0 %1483
  %1485 = vrot.lane.b32.xlu0 %v1338, 126
  %v1486 = vpop.permute.xlu0 %1485
  %vm1487 = vcmp.lt.s32.totalorder %v525, 126
  %v1488 = vsel %vm1487, %v1484, %v1486
  %v1489 = vsel %vm1487, %v1482, %v1484
  %v1490 = vsel %vm1487, %v1480, %v1482
  %v1491 = vsel %vm1487, %v1486, %v1480
  %v1492 = vsel %vm1422, 1, 0
  %v1493 = vsel %vm1423, 1, 0
  %v1494 = vsel %vm1424, 1, 0
  %v1495 = vsel %vm1425, 1, 0
  %v1496 = vcvt.s32.f32 %v1492
  %v1497 = vcvt.s32.f32 %v1493
  %v1498 = vcvt.s32.f32 %v1494
  %v1499 = vcvt.s32.f32 %v1495
  %v1500 = vmul.f32 %v1490, %v1496
  %v1501 = vmul.f32 %v1489, %v1497
  %v1502 = vmul.f32 %v1488, %v1498
  %v1503 = vmul.f32 %v1491, %v1499
  %1504 = vst [vmem:[#allocation2 + $0xa0] sm:$0xff] %v1500
  %1505 = vst [vmem:[#allocation2 + $0xa8] sm:$0xff] %v1501
  %1506 = vst [vmem:[#allocation2 + $0xb0] sm:$0xff] %v1502
  %1507 = vst [vmem:[#allocation2 + $0xb8] sm:$0xff] %v1503
  %1508 = vrot.lane.b32.xlu0 %v1335, 98
  %v1509 = vpop.permute.xlu0 %1508
  %1510 = vrot.lane.b32.xlu0 %v1336, 98
  %v1511 = vpop.permute.xlu0 %1510
  %1512 = vrot.lane.b32.xlu0 %v1337, 98
  %v1513 = vpop.permute.xlu0 %1512
  %1514 = vrot.lane.b32.xlu0 %v1338, 98
  %v1515 = vpop.permute.xlu0 %1514
  %vm1516 = vcmp.lt.s32.totalorder %v525, 98
  %v1517 = vsel %vm1516, %v1513, %v1515
  %v1518 = vsel %vm1516, %v1511, %v1513
  %v1519 = vsel %vm1516, %v1509, %v1511
  %v1520 = vsel %vm1516, %v1515, %v1509
  %vm1521 = vcmp.lt.s32.totalorder %v94, 14
  %vm1522 = vcmp.lt.s32.totalorder %v98, 14
  %vm1523 = vcmp.lt.s32.totalorder %v102, 14
  %vm1524 = vcmp.lt.s32.totalorder %v106, 14
  %vm1525 = vmand %vm1521, %vm1356
  %vm1526 = vmand %vm1522, %vm1357
  %vm1527 = vmand %vm1523, %vm1358
  %vm1528 = vmand %vm1524, %vm1359
  %v1529 = vsel %vm1525, 1, 0
  %v1530 = vsel %vm1526, 1, 0
  %v1531 = vsel %vm1527, 1, 0
  %v1532 = vsel %vm1528, 1, 0
  %v1533 = vcvt.s32.f32 %v1529
  %v1534 = vcvt.s32.f32 %v1530
  %v1535 = vcvt.s32.f32 %v1531
  %v1536 = vcvt.s32.f32 %v1532
  %v1537 = vmul.f32 %v1519, %v1533
  %v1538 = vmul.f32 %v1518, %v1534
  %v1539 = vmul.f32 %v1517, %v1535
  %v1540 = vmul.f32 %v1520, %v1536
  %1541 = vst [vmem:[#allocation2 + $0xc0] sm:$0xff] %v1537
  %1542 = vst [vmem:[#allocation2 + $0xc8] sm:$0xff] %v1538
  %1543 = vst [vmem:[#allocation2 + $0xd0] sm:$0xff] %v1539
  %1544 = vst [vmem:[#allocation2 + $0xd8] sm:$0xff] %v1540
  %1545 = vrot.lane.b32.xlu0 %v1335, 96
  %v1546 = vpop.permute.xlu0 %1545
  %1547 = vrot.lane.b32.xlu0 %v1336, 96
  %v1548 = vpop.permute.xlu0 %1547
  %1549 = vrot.lane.b32.xlu0 %v1337, 96
  %v1550 = vpop.permute.xlu0 %1549
  %1551 = vrot.lane.b32.xlu0 %v1338, 96
  %v1552 = vpop.permute.xlu0 %1551
  %vm1553 = vcmp.lt.s32.totalorder %v525, 96
  %v1554 = vsel %vm1553, %v1550, %v1552
  %v1555 = vsel %vm1553, %v1548, %v1550
  %v1556 = vsel %vm1553, %v1546, %v1548
  %v1557 = vsel %vm1553, %v1552, %v1546
  %v1558 = vsel %vm1521, 1, 0
  %v1559 = vsel %vm1522, 1, 0
  %v1560 = vsel %vm1523, 1, 0
  %v1561 = vsel %vm1524, 1, 0
  %v1562 = vcvt.s32.f32 %v1558
  %v1563 = vcvt.s32.f32 %v1559
  %v1564 = vcvt.s32.f32 %v1560
  %v1565 = vcvt.s32.f32 %v1561
  %v1566 = vmul.f32 %v1556, %v1562
  %v1567 = vmul.f32 %v1555, %v1563
  %v1568 = vmul.f32 %v1554, %v1564
  %v1569 = vmul.f32 %v1557, %v1565
  %1570 = vst [vmem:[#allocation2 + $0xe0] sm:$0xff] %v1566
  %1571 = vst [vmem:[#allocation2 + $0xe8] sm:$0xff] %v1567
  %1572 = vst [vmem:[#allocation2 + $0xf0] sm:$0xff] %v1568
  %1573 = vst [vmem:[#allocation2 + $0xf8] sm:$0xff] %v1569
  %1574 = vrot.lane.b32.xlu0 %v1335, 94
  %v1575 = vpop.permute.xlu0 %1574
  %1576 = vrot.lane.b32.xlu0 %v1336, 94
  %v1577 = vpop.permute.xlu0 %1576
  %1578 = vrot.lane.b32.xlu0 %v1337, 94
  %v1579 = vpop.permute.xlu0 %1578
  %1580 = vrot.lane.b32.xlu0 %v1338, 94
  %v1581 = vpop.permute.xlu0 %1580
  %vm1582 = vcmp.lt.s32.totalorder %v525, 94
  %v1583 = vsel %vm1582, %v1579, %v1581
  %v1584 = vsel %vm1582, %v1577, %v1579
  %v1585 = vsel %vm1582, %v1575, %v1577
  %v1586 = vsel %vm1582, %v1581, %v1575
  %vm1587 = vmand %vm1521, %vm1422
  %vm1588 = vmand %vm1522, %vm1423
  %vm1589 = vmand %vm1523, %vm1424
  %vm1590 = vmand %vm1524, %vm1425
  %v1591 = vsel %vm1587, 1, 0
  %v1592 = vsel %vm1588, 1, 0
  %v1593 = vsel %vm1589, 1, 0
  %v1594 = vsel %vm1590, 1, 0
  %v1595 = vcvt.s32.f32 %v1591
  %v1596 = vcvt.s32.f32 %v1592
  %v1597 = vcvt.s32.f32 %v1593
  %v1598 = vcvt.s32.f32 %v1594
  %v1599 = vmul.f32 %v1585, %v1595
  %v1600 = vmul.f32 %v1584, %v1596
  %v1601 = vmul.f32 %v1583, %v1597
  %v1602 = vmul.f32 %v1586, %v1598
  %1603 = vst [vmem:[#allocation2 + $0x100] sm:$0xff] %v1599
  %1604 = vst [vmem:[#allocation2 + $0x108] sm:$0xff] %v1600
  %1605 = vst [vmem:[#allocation2 + $0x110] sm:$0xff] %v1601
  %1606 = vst [vmem:[#allocation2 + $0x118] sm:$0xff] %v1602
  %v1607 = vld [vmem:[%s11] sm:$0xff]
  %v1608 = vld [vmem:[#allocation2] sm:$0xff]
  %v1609 = vld [vmem:[#allocation2 + $0x8] sm:$0xff]
  %v1610 = vld [vmem:[#allocation2 + $0x10] sm:$0xff]
  %v1611 = vld [vmem:[#allocation2 + $0x18] sm:$0xff]
  %v1612 = vld [vmem:[#allocation2 + $0x20] sm:$0xff]
  %v1613 = vld [vmem:[#allocation2 + $0x28] sm:$0xff]
  %v1614 = vld [vmem:[#allocation2 + $0x30] sm:$0xff]
  %v1615 = vld [vmem:[#allocation2 + $0x38] sm:$0xff]
  %v1616 = vld [vmem:[#allocation2 + $0x40] sm:$0xff]
  %v1617 = vld [vmem:[#allocation2 + $0x48] sm:$0xff]
  %v1618 = vld [vmem:[#allocation2 + $0x50] sm:$0xff]
  %v1619 = vld [vmem:[#allocation2 + $0x58] sm:$0xff]
  %v1620 = vld [vmem:[#allocation2 + $0x60] sm:$0xff]
  %v1621 = vld [vmem:[#allocation2 + $0x68] sm:$0xff]
  %v1622 = vld [vmem:[#allocation2 + $0x70] sm:$0xff]
  %v1623 = vld [vmem:[#allocation2 + $0x78] sm:$0xff]
  %v1624 = vld [vmem:[#allocation2 + $0x80] sm:$0xff]
  %v1625 = vld [vmem:[#allocation2 + $0x88] sm:$0xff]
  %v1626 = vld [vmem:[#allocation2 + $0x90] sm:$0xff]
  %v1627 = vld [vmem:[#allocation2 + $0x98] sm:$0xff]
  %v1628 = vld [vmem:[#allocation2 + $0xa0] sm:$0xff]
  %v1629 = vld [vmem:[#allocation2 + $0xa8] sm:$0xff]
  %v1630 = vld [vmem:[#allocation2 + $0xb0] sm:$0xff]
  %v1631 = vld [vmem:[#allocation2 + $0xb8] sm:$0xff]
  %v1632 = vld [vmem:[#allocation2 + $0xc0] sm:$0xff]
  %v1633 = vld [vmem:[#allocation2 + $0xc8] sm:$0xff]
  %v1634 = vld [vmem:[#allocation2 + $0xd0] sm:$0xff]
  %v1635 = vld [vmem:[#allocation2 + $0xd8] sm:$0xff]
  %v1636 = vld [vmem:[#allocation2 + $0xe0] sm:$0xff]
  %v1637 = vld [vmem:[#allocation2 + $0xe8] sm:$0xff]
  %v1638 = vld [vmem:[#allocation2 + $0xf0] sm:$0xff]
  %v1639 = vld [vmem:[#allocation2 + $0xf8] sm:$0xff]
  %v1640 = vld [vmem:[#allocation2 + $0x100] sm:$0xff]
  %v1641 = vld [vmem:[#allocation2 + $0x108] sm:$0xff]
  %v1642 = vld [vmem:[#allocation2 + $0x110] sm:$0xff]
  %v1643 = vld [vmem:[#allocation2 + $0x118] sm:$0xff]
  %v1644 = vld [vmem:[%s12] sm:$0xff]
  %1646 = vset.pattern.permute.xlu0 0
  %1647 = vperm.xlu0 %1646, %v1644
  %v1648 = vpop.permute.xlu0 %1647
  %v1651 = vsel %vm829, %v1607, 0
  %1653 = vmatprep.subr.mxu0 %v1609
  %1654 = vmatpush1.msra.mxu0 %v1608
  %1655 = vmatprep.subr.mxu0 %v1613
  %1656 = vmatpush1.msra.mxu0 %v1612
  %1657 = vmatprep.subr.mxu0 %v1617
  %1658 = vmatpush1.msra.mxu0 %v1616
  %1659 = vmatprep.subr.mxu0 %v1621
  %1660 = vmatpush1.msra.mxu0 %v1620
  %1661 = vmatprep.subr.mxu0 %v1625
  %1662 = vmatpush1.msra.mxu0 %v1624
  %1663 = vmatprep.subr.mxu0 %v1629
  %1664 = vmatpush1.msra.mxu0 %v1628
  %1665 = vmatprep.subr.mxu0 %v1633
  %1666 = vmatpush1.msra.mxu0 %v1632
  %1667 = vmatprep.subr.mxu0 %v1637
  %1668 = vmatpush1.msra.mxu0 %v1636
  %1669 = vmatprep.subr.mxu0 %v1641
  %1670 = vmatpush1.msra.mxu0 %v1640
  %1671 = vmatprep.subr.mxu0 0.0
  %1672 = vmatpush1.msra.mxu0 0.0
  %1673 = vmatprep.subr.mxu0 0.0
  %1674 = vmatpush1.msra.mxu0 0.0
  %1675 = vmatprep.subr.mxu0 0.0
  %1676 = vmatpush1.msra.mxu0 0.0
  %1677 = vmatprep.subr.mxu0 0.0
  %1678 = vmatpush1.msra.mxu0 0.0
  %1679 = vmatprep.subr.mxu0 0.0
  %1680 = vmatpush1.msra.mxu0 0.0
  %1681 = vmatprep.subr.mxu0 0.0
  %1682 = vmatpush1.msra.mxu0 0.0
  %1683 = vmatprep.subr.mxu0 0.0
  %1684 = vmatpush1.msra.mxu0 0.0
  %1685 = vmatprep.subr.mxu0 0.0
  %1686 = vmatpush1.msra.mxu0 0.0
  %1687 = vmatprep.subr.mxu0 0.0
  %1688 = vmatpush1.msra.mxu0 0.0
  %1689 = vmatprep.subr.mxu0 0.0
  %1690 = vmatpush1.msra.mxu0 0.0
  %1691 = vmatprep.subr.mxu0 0.0
  %1692 = vmatpush1.msra.mxu0 0.0
  %1693 = vmatprep.subr.mxu0 0.0
  %1694 = vmatpush1.msra.mxu0 0.0
  %1695 = vmatprep.subr.mxu0 0.0
  %1696 = vmatpush1.msra.mxu0 0.0
  %1697 = vmatprep.subr.mxu0 0.0
  %1698 = vmatpush1.msra.mxu0 0.0
  %1699 = vmatprep.subr.mxu0 0.0
  %1700 = vmatpush1.msra.mxu0 0.0
  %1701 = vmatprep.subr.mxu0 0.0
  %1702 = vmatpush1.msra.mxu0 0.0
  %1703 = vmatprep.subr.mxu0 0.0
  %1704 = vmatpush1.msra.mxu0 0.0
  %1705 = vmatprep.subr.mxu0 0.0
  %1706 = vmatpush1.msra.mxu0 0.0
  %1707 = vmatprep.subr.mxu0 0.0
  %1708 = vmatpush1.msra.mxu0 0.0
  %1709 = vmatprep.subr.mxu0 0.0
  %1710 = vmatpush1.msra.mxu0 0.0
  %1711 = vmatprep.subr.mxu0 0.0
  %1712 = vmatpush1.msra.mxu0 0.0
  %1713 = vmatprep.subr.mxu0 0.0
  %1714 = vmatpush1.msra.mxu0 0.0
  %1715 = vmatprep.subr.mxu0 0.0
  %1716 = vmatpush1.msra.mxu0 0.0
  %1717 = vmatprep.mubr.f32.mxu0 0.0
  %1718 = vmatmul.mubr.f32.gmra.mrb[0].mxu0 %v1651
  %v1719 = vpop.f32.mrb[0].mxu0
  %v1720 = vadd.f32 %v1648, %v1719
  %v1721 = vpop.f32.mrb[0].mxu0
  %v1722 = vadd.f32 %v1648, %v1721
  %1723 = vdwg.mxu0
  %1724 = vmatprep.subr.mxu0 %v1611
  %1725 = vmatpush1.msra.mxu0 %v1610
  %1726 = vmatprep.subr.mxu0 %v1615
  %1727 = vmatpush1.msra.mxu0 %v1614
  %1728 = vmatprep.subr.mxu0 %v1619
  %1729 = vmatpush1.msra.mxu0 %v1618
  %1730 = vmatprep.subr.mxu0 %v1623
  %1731 = vmatpush1.msra.mxu0 %v1622
  %1732 = vmatprep.subr.mxu0 %v1627
  %1733 = vmatpush1.msra.mxu0 %v1626
  %1734 = vmatprep.subr.mxu0 %v1631
  %1735 = vmatpush1.msra.mxu0 %v1630
  %1736 = vmatprep.subr.mxu0 %v1635
  %1737 = vmatpush1.msra.mxu0 %v1634
  %1738 = vmatprep.subr.mxu0 %v1639
  %1739 = vmatpush1.msra.mxu0 %v1638
  %1740 = vmatprep.subr.mxu0 %v1643
  %1741 = vmatpush1.msra.mxu0 %v1642
  %1742 = vmatprep.subr.mxu0 0.0
  %1743 = vmatpush1.msra.mxu0 0.0
  %1744 = vmatprep.subr.mxu0 0.0
  %1745 = vmatpush1.msra.mxu0 0.0
  %1746 = vmatprep.subr.mxu0 0.0
  %1747 = vmatpush1.msra.mxu0 0.0
  %1748 = vmatprep.subr.mxu0 0.0
  %1749 = vmatpush1.msra.mxu0 0.0
  %1750 = vmatprep.subr.mxu0 0.0
  %1751 = vmatpush1.msra.mxu0 0.0
  %1752 = vmatprep.subr.mxu0 0.0
  %1753 = vmatpush1.msra.mxu0 0.0
  %1754 = vmatprep.subr.mxu0 0.0
  %1755 = vmatpush1.msra.mxu0 0.0
  %1756 = vmatprep.subr.mxu0 0.0
  %1757 = vmatpush1.msra.mxu0 0.0
  %1758 = vmatprep.subr.mxu0 0.0
  %1759 = vmatpush1.msra.mxu0 0.0
  %1760 = vmatprep.subr.mxu0 0.0
  %1761 = vmatpush1.msra.mxu0 0.0
  %1762 = vmatprep.subr.mxu0 0.0
  %1763 = vmatpush1.msra.mxu0 0.0
  %1764 = vmatprep.subr.mxu0 0.0
  %1765 = vmatpush1.msra.mxu0 0.0
  %1766 = vmatprep.subr.mxu0 0.0
  %1767 = vmatpush1.msra.mxu0 0.0
  %1768 = vmatprep.subr.mxu0 0.0
  %1769 = vmatpush1.msra.mxu0 0.0
  %1770 = vmatprep.subr.mxu0 0.0
  %1771 = vmatpush1.msra.mxu0 0.0
  %1772 = vmatprep.subr.mxu0 0.0
  %1773 = vmatpush1.msra.mxu0 0.0
  %1774 = vmatprep.subr.mxu0 0.0
  %1775 = vmatpush1.msra.mxu0 0.0
  %1776 = vmatprep.subr.mxu0 0.0
  %1777 = vmatpush1.msra.mxu0 0.0
  %1778 = vmatprep.subr.mxu0 0.0
  %1779 = vmatpush1.msra.mxu0 0.0
  %1780 = vmatprep.subr.mxu0 0.0
  %1781 = vmatpush1.msra.mxu0 0.0
  %1782 = vmatprep.subr.mxu0 0.0
  %1783 = vmatpush1.msra.mxu0 0.0
  %1784 = vmatprep.subr.mxu0 0.0
  %1785 = vmatpush1.msra.mxu0 0.0
  %1786 = vmatprep.subr.mxu0 0.0
  %1787 = vmatpush1.msra.mxu0 0.0
  %1788 = vmatprep.mubr.f32.mxu0 0.0
  %1789 = vmatmul.mubr.f32.gmra.mrb[0].mxu0 %v1651
  %v1790 = vpop.f32.mrb[0].mxu0
  %v1791 = vadd.f32 %v1648, %v1790
  %v1792 = vpop.f32.mrb[0].mxu0
  %v1793 = vadd.f32 %v1648, %v1792
  %1794 = vdwg.mxu0
  %v1795 = vmax.f32 %v1720, 0.0
  %v1796 = vmax.f32 %v1722, 0.0
  %v1797 = vmax.f32 %v1791, 0.0
  %v1798 = vmax.f32 %v1793, 0.0
  %v1799 = vadd.f32 %v351, %v1795
  %v1800 = vadd.f32 %v352, %v1796
  %v1801 = vadd.f32 %v353, %v1797
  %v1802 = vadd.f32 %v354, %v1798
  %1803 = vrot.lane.b32.xlu0 %v1799, 34
  %v1804 = vpop.permute.xlu0 %1803
  %1805 = vrot.lane.b32.xlu0 %v1800, 34
  %v1806 = vpop.permute.xlu0 %1805
  %1807 = vrot.lane.b32.xlu0 %v1801, 34
  %v1808 = vpop.permute.xlu0 %1807
  %1809 = vrot.lane.b32.xlu0 %v1802, 34
  %v1810 = vpop.permute.xlu0 %1809
  %v1811 = vsel %vm1347, %v1808, %v1810
  %v1812 = vsel %vm1347, %v1806, %v1808
  %v1813 = vsel %vm1347, %v1804, %v1806
  %v1814 = vsel %vm1347, %v1810, %v1804
  %v1815 = vmul.f32 %v1814, %v1368
  %v1816 = vmul.f32 %v1813, %v1369
  %v1817 = vmul.f32 %v1812, %v1370
  %v1818 = vmul.f32 %v1811, %v1371
  %1819 = vst [vmem:[#allocation2] sm:$0xff] %v1815
  %1820 = vst [vmem:[#allocation2 + $0x8] sm:$0xff] %v1816
  %1821 = vst [vmem:[#allocation2 + $0x10] sm:$0xff] %v1817
  %1822 = vst [vmem:[#allocation2 + $0x18] sm:$0xff] %v1818
  %1823 = vrot.lane.b32.xlu0 %v1799, 33
  %v1824 = vpop.permute.xlu0 %1823
  %1825 = vrot.lane.b32.xlu0 %v1800, 33
  %v1826 = vpop.permute.xlu0 %1825
  %1827 = vrot.lane.b32.xlu0 %v1801, 33
  %v1828 = vpop.permute.xlu0 %1827
  %1829 = vrot.lane.b32.xlu0 %v1802, 33
  %v1830 = vpop.permute.xlu0 %1829
  %vm1831 = vcmp.lt.s32.totalorder %v525, 33
  %v1832 = vsel %vm1831, %v1828, %v1830
  %v1833 = vsel %vm1831, %v1826, %v1828
  %v1834 = vsel %vm1831, %v1824, %v1826
  %v1835 = vsel %vm1831, %v1830, %v1824
  %vm1836 = vmand %vm1352, %vm535
  %vm1837 = vmand %vm1353, %vm536
  %vm1838 = vmand %vm1354, %vm537
  %vm1839 = vmand %vm1355, %vm538
  %v1840 = vsel %vm1836, 1, 0
  %v1841 = vsel %vm1837, 1, 0
  %v1842 = vsel %vm1838, 1, 0
  %v1843 = vsel %vm1839, 1, 0
  %v1844 = vcvt.s32.f32 %v1840
  %v1845 = vcvt.s32.f32 %v1841
  %v1846 = vcvt.s32.f32 %v1842
  %v1847 = vcvt.s32.f32 %v1843
  %v1848 = vmul.f32 %v1835, %v1844
  %v1849 = vmul.f32 %v1834, %v1845
  %v1850 = vmul.f32 %v1833, %v1846
  %v1851 = vmul.f32 %v1832, %v1847
  %1852 = vst [vmem:[#allocation2 + $0x20] sm:$0xff] %v1848
  %1853 = vst [vmem:[#allocation2 + $0x28] sm:$0xff] %v1849
  %1854 = vst [vmem:[#allocation2 + $0x30] sm:$0xff] %v1850
  %1855 = vst [vmem:[#allocation2 + $0x38] sm:$0xff] %v1851
  %1856 = vrot.lane.b32.xlu0 %v1799, 32
  %v1857 = vpop.permute.xlu0 %1856
  %1858 = vrot.lane.b32.xlu0 %v1800, 32
  %v1859 = vpop.permute.xlu0 %1858
  %1860 = vrot.lane.b32.xlu0 %v1801, 32
  %v1861 = vpop.permute.xlu0 %1860
  %1862 = vrot.lane.b32.xlu0 %v1802, 32
  %v1863 = vpop.permute.xlu0 %1862
  %v1864 = vsel %vm1388, %v1861, %v1863
  %v1865 = vsel %vm1388, %v1859, %v1861
  %v1866 = vsel %vm1388, %v1857, %v1859
  %v1867 = vsel %vm1388, %v1863, %v1857
  %v1868 = vmul.f32 %v1867, %v1397
  %v1869 = vmul.f32 %v1866, %v1398
  %v1870 = vmul.f32 %v1865, %v1399
  %v1871 = vmul.f32 %v1864, %v1400
  %1872 = vst [vmem:[#allocation2 + $0x40] sm:$0xff] %v1868
  %1873 = vst [vmem:[#allocation2 + $0x48] sm:$0xff] %v1869
  %1874 = vst [vmem:[#allocation2 + $0x50] sm:$0xff] %v1870
  %1875 = vst [vmem:[#allocation2 + $0x58] sm:$0xff] %v1871
  %1876 = vrot.lane.b32.xlu0 %v1799, 31
  %v1877 = vpop.permute.xlu0 %1876
  %1878 = vrot.lane.b32.xlu0 %v1800, 31
  %v1879 = vpop.permute.xlu0 %1878
  %1880 = vrot.lane.b32.xlu0 %v1801, 31
  %v1881 = vpop.permute.xlu0 %1880
  %1882 = vrot.lane.b32.xlu0 %v1802, 31
  %v1883 = vpop.permute.xlu0 %1882
  %vm1884 = vcmp.lt.s32.totalorder %v525, 31
  %v1885 = vsel %vm1884, %v1881, %v1883
  %v1886 = vsel %vm1884, %v1879, %v1881
  %v1887 = vsel %vm1884, %v1877, %v1879
  %v1888 = vsel %vm1884, %v1883, %v1877
  %vm1889 = vmand %vm1352, %vm601
  %vm1890 = vmand %vm1353, %vm602
  %vm1891 = vmand %vm1354, %vm603
  %vm1892 = vmand %vm1355, %vm604
  %v1893 = vsel %vm1889, 1, 0
  %v1894 = vsel %vm1890, 1, 0
  %v1895 = vsel %vm1891, 1, 0
  %v1896 = vsel %vm1892, 1, 0
  %v1897 = vcvt.s32.f32 %v1893
  %v1898 = vcvt.s32.f32 %v1894
  %v1899 = vcvt.s32.f32 %v1895
  %v1900 = vcvt.s32.f32 %v1896
  %v1901 = vmul.f32 %v1888, %v1897
  %v1902 = vmul.f32 %v1887, %v1898
  %v1903 = vmul.f32 %v1886, %v1899
  %v1904 = vmul.f32 %v1885, %v1900
  %1905 = vst [vmem:[#allocation2 + $0x60] sm:$0xff] %v1901
  %1906 = vst [vmem:[#allocation2 + $0x68] sm:$0xff] %v1902
  %1907 = vst [vmem:[#allocation2 + $0x70] sm:$0xff] %v1903
  %1908 = vst [vmem:[#allocation2 + $0x78] sm:$0xff] %v1904
  %1909 = vrot.lane.b32.xlu0 %v1799, 30
  %v1910 = vpop.permute.xlu0 %1909
  %1911 = vrot.lane.b32.xlu0 %v1800, 30
  %v1912 = vpop.permute.xlu0 %1911
  %1913 = vrot.lane.b32.xlu0 %v1801, 30
  %v1914 = vpop.permute.xlu0 %1913
  %1915 = vrot.lane.b32.xlu0 %v1802, 30
  %v1916 = vpop.permute.xlu0 %1915
  %v1917 = vsel %vm1417, %v1914, %v1916
  %v1918 = vsel %vm1417, %v1912, %v1914
  %v1919 = vsel %vm1417, %v1910, %v1912
  %v1920 = vsel %vm1417, %v1916, %v1910
  %v1921 = vmul.f32 %v1920, %v1434
  %v1922 = vmul.f32 %v1919, %v1435
  %v1923 = vmul.f32 %v1918, %v1436
  %v1924 = vmul.f32 %v1917, %v1437
  %1925 = vst [vmem:[#allocation2 + $0x80] sm:$0xff] %v1921
  %1926 = vst [vmem:[#allocation2 + $0x88] sm:$0xff] %v1922
  %1927 = vst [vmem:[#allocation2 + $0x90] sm:$0xff] %v1923
  %1928 = vst [vmem:[#allocation2 + $0x98] sm:$0xff] %v1924
  %1929 = vrot.lane.b32.xlu0 %v1799, 18
  %v1930 = vpop.permute.xlu0 %1929
  %1931 = vrot.lane.b32.xlu0 %v1800, 18
  %v1932 = vpop.permute.xlu0 %1931
  %1933 = vrot.lane.b32.xlu0 %v1801, 18
  %v1934 = vpop.permute.xlu0 %1933
  %1935 = vrot.lane.b32.xlu0 %v1802, 18
  %v1936 = vpop.permute.xlu0 %1935
  %vm1937 = vcmp.lt.s32.totalorder %v525, 18
  %v1938 = vsel %vm1937, %v1934, %v1936
  %v1939 = vsel %vm1937, %v1932, %v1934
  %v1940 = vsel %vm1937, %v1930, %v1932
  %v1941 = vsel %vm1937, %v1936, %v1930
  %vm1942 = vmand %vm531, %vm1356
  %vm1943 = vmand %vm532, %vm1357
  %vm1944 = vmand %vm533, %vm1358
  %vm1945 = vmand %vm534, %vm1359
  %v1946 = vsel %vm1942, 1, 0
  %v1947 = vsel %vm1943, 1, 0
  %v1948 = vsel %vm1944, 1, 0
  %v1949 = vsel %vm1945, 1, 0
  %v1950 = vcvt.s32.f32 %v1946
  %v1951 = vcvt.s32.f32 %v1947
  %v1952 = vcvt.s32.f32 %v1948
  %v1953 = vcvt.s32.f32 %v1949
  %v1954 = vmul.f32 %v1941, %v1950
  %v1955 = vmul.f32 %v1940, %v1951
  %v1956 = vmul.f32 %v1939, %v1952
  %v1957 = vmul.f32 %v1938, %v1953
  %1958 = vst [vmem:[#allocation2 + $0xa0] sm:$0xff] %v1954
  %1959 = vst [vmem:[#allocation2 + $0xa8] sm:$0xff] %v1955
  %1960 = vst [vmem:[#allocation2 + $0xb0] sm:$0xff] %v1956
  %1961 = vst [vmem:[#allocation2 + $0xb8] sm:$0xff] %v1957
  %1962 = vrot.lane.b32.xlu0 %v1799, 17
  %v1963 = vpop.permute.xlu0 %1962
  %1964 = vrot.lane.b32.xlu0 %v1800, 17
  %v1965 = vpop.permute.xlu0 %1964
  %1966 = vrot.lane.b32.xlu0 %v1801, 17
  %v1967 = vpop.permute.xlu0 %1966
  %1968 = vrot.lane.b32.xlu0 %v1802, 17
  %v1969 = vpop.permute.xlu0 %1968
  %v1970 = vsel %vm526, %v1967, %v1969
  %v1971 = vsel %vm526, %v1965, %v1967
  %v1972 = vsel %vm526, %v1963, %v1965
  %v1973 = vsel %vm526, %v1969, %v1963
  %v1974 = vmul.f32 %v1973, %v547
  %v1975 = vmul.f32 %v1972, %v548
  %v1976 = vmul.f32 %v1971, %v549
  %v1977 = vmul.f32 %v1970, %v550
  %1978 = vst [vmem:[#allocation2 + $0xc0] sm:$0xff] %v1974
  %1979 = vst [vmem:[#allocation2 + $0xc8] sm:$0xff] %v1975
  %1980 = vst [vmem:[#allocation2 + $0xd0] sm:$0xff] %v1976
  %1981 = vst [vmem:[#allocation2 + $0xd8] sm:$0xff] %v1977
  %1982 = vrot.lane.b32.xlu0 %v1799, 16
  %v1983 = vpop.permute.xlu0 %1982
  %1984 = vrot.lane.b32.xlu0 %v1800, 16
  %v1985 = vpop.permute.xlu0 %1984
  %1986 = vrot.lane.b32.xlu0 %v1801, 16
  %v1987 = vpop.permute.xlu0 %1986
  %1988 = vrot.lane.b32.xlu0 %v1802, 16
  %v1989 = vpop.permute.xlu0 %1988
  %v1990 = vsel %vm567, %v1987, %v1989
  %v1991 = vsel %vm567, %v1985, %v1987
  %v1992 = vsel %vm567, %v1983, %v1985
  %v1993 = vsel %vm567, %v1989, %v1983
  %v1994 = vmul.f32 %v1993, %v576
  %v1995 = vmul.f32 %v1992, %v577
  %v1996 = vmul.f32 %v1991, %v578
  %v1997 = vmul.f32 %v1990, %v579
  %1998 = vst [vmem:[#allocation2 + $0xe0] sm:$0xff] %v1994
  %1999 = vst [vmem:[#allocation2 + $0xe8] sm:$0xff] %v1995
  %2000 = vst [vmem:[#allocation2 + $0xf0] sm:$0xff] %v1996
  %2001 = vst [vmem:[#allocation2 + $0xf8] sm:$0xff] %v1997
  %2002 = vrot.lane.b32.xlu0 %v1799, 15
  %v2003 = vpop.permute.xlu0 %2002
  %2004 = vrot.lane.b32.xlu0 %v1800, 15
  %v2005 = vpop.permute.xlu0 %2004
  %2006 = vrot.lane.b32.xlu0 %v1801, 15
  %v2007 = vpop.permute.xlu0 %2006
  %2008 = vrot.lane.b32.xlu0 %v1802, 15
  %v2009 = vpop.permute.xlu0 %2008
  %v2010 = vsel %vm596, %v2007, %v2009
  %v2011 = vsel %vm596, %v2005, %v2007
  %v2012 = vsel %vm596, %v2003, %v2005
  %v2013 = vsel %vm596, %v2009, %v2003
  %v2014 = vmul.f32 %v2013, %v613
  %v2015 = vmul.f32 %v2012, %v614
  %v2016 = vmul.f32 %v2011, %v615
  %v2017 = vmul.f32 %v2010, %v616
  %2018 = vst [vmem:[#allocation2 + $0x100] sm:$0xff] %v2014
  %2019 = vst [vmem:[#allocation2 + $0x108] sm:$0xff] %v2015
  %2020 = vst [vmem:[#allocation2 + $0x110] sm:$0xff] %v2016
  %2021 = vst [vmem:[#allocation2 + $0x118] sm:$0xff] %v2017
  %2022 = vrot.lane.b32.xlu0 %v1799, 14
  %v2023 = vpop.permute.xlu0 %2022
  %2024 = vrot.lane.b32.xlu0 %v1800, 14
  %v2025 = vpop.permute.xlu0 %2024
  %2026 = vrot.lane.b32.xlu0 %v1801, 14
  %v2027 = vpop.permute.xlu0 %2026
  %2028 = vrot.lane.b32.xlu0 %v1802, 14
  %v2029 = vpop.permute.xlu0 %2028
  %vm2030 = vcmp.lt.s32.totalorder %v525, 14
  %v2031 = vsel %vm2030, %v2027, %v2029
  %v2032 = vsel %vm2030, %v2025, %v2027
  %v2033 = vsel %vm2030, %v2023, %v2025
  %v2034 = vsel %vm2030, %v2029, %v2023
  %vm2035 = vmand %vm531, %vm1422
  %vm2036 = vmand %vm532, %vm1423
  %vm2037 = vmand %vm533, %vm1424
  %vm2038 = vmand %vm534, %vm1425
  %v2039 = vsel %vm2035, 1, 0
  %v2040 = vsel %vm2036, 1, 0
  %v2041 = vsel %vm2037, 1, 0
  %v2042 = vsel %vm2038, 1, 0
  %v2043 = vcvt.s32.f32 %v2039
  %v2044 = vcvt.s32.f32 %v2040
  %v2045 = vcvt.s32.f32 %v2041
  %v2046 = vcvt.s32.f32 %v2042
  %v2047 = vmul.f32 %v2034, %v2043
  %v2048 = vmul.f32 %v2033, %v2044
  %v2049 = vmul.f32 %v2032, %v2045
  %v2050 = vmul.f32 %v2031, %v2046
  %2051 = vst [vmem:[#allocation2 + $0x120] sm:$0xff] %v2047
  %2052 = vst [vmem:[#allocation2 + $0x128] sm:$0xff] %v2048
  %2053 = vst [vmem:[#allocation2 + $0x130] sm:$0xff] %v2049
  %2054 = vst [vmem:[#allocation2 + $0x138] sm:$0xff] %v2050
  %2055 = vrot.lane.b32.xlu0 %v1799, 2
  %v2056 = vpop.permute.xlu0 %2055
  %2057 = vrot.lane.b32.xlu0 %v1800, 2
  %v2058 = vpop.permute.xlu0 %2057
  %2059 = vrot.lane.b32.xlu0 %v1801, 2
  %v2060 = vpop.permute.xlu0 %2059
  %2061 = vrot.lane.b32.xlu0 %v1802, 2
  %v2062 = vpop.permute.xlu0 %2061
  %v2063 = vsel %vm1454, %v2060, %v2062
  %v2064 = vsel %vm1454, %v2058, %v2060
  %v2065 = vsel %vm1454, %v2056, %v2058
  %v2066 = vsel %vm1454, %v2062, %v2056
  %v2067 = vmul.f32 %v2066, %v1463
  %v2068 = vmul.f32 %v2065, %v1464
  %v2069 = vmul.f32 %v2064, %v1465
  %v2070 = vmul.f32 %v2063, %v1466
  %2071 = vst [vmem:[#allocation2 + $0x140] sm:$0xff] %v2067
  %2072 = vst [vmem:[#allocation2 + $0x148] sm:$0xff] %v2068
  %2073 = vst [vmem:[#allocation2 + $0x150] sm:$0xff] %v2069
  %2074 = vst [vmem:[#allocation2 + $0x158] sm:$0xff] %v2070
  %2075 = vrot.lane.b32.xlu0 %v1799, 1
  %v2076 = vpop.permute.xlu0 %2075
  %2077 = vrot.lane.b32.xlu0 %v1800, 1
  %v2078 = vpop.permute.xlu0 %2077
  %2079 = vrot.lane.b32.xlu0 %v1801, 1
  %v2080 = vpop.permute.xlu0 %2079
  %2081 = vrot.lane.b32.xlu0 %v1802, 1
  %v2082 = vpop.permute.xlu0 %2081
  %v2083 = vsel %vm633, %v2080, %v2082
  %v2084 = vsel %vm633, %v2078, %v2080
  %v2085 = vsel %vm633, %v2076, %v2078
  %v2086 = vsel %vm633, %v2082, %v2076
  %v2087 = vmul.f32 %v2086, %v642
  %v2088 = vmul.f32 %v2085, %v643
  %v2089 = vmul.f32 %v2084, %v644
  %v2090 = vmul.f32 %v2083, %v645
  %2091 = vst [vmem:[#allocation2 + $0x160] sm:$0xff] %v2087
  %2092 = vst [vmem:[#allocation2 + $0x168] sm:$0xff] %v2088
  %2093 = vst [vmem:[#allocation2 + $0x170] sm:$0xff] %v2089
  %2094 = vst [vmem:[#allocation2 + $0x178] sm:$0xff] %v2090
  %2095 = vst [vmem:[#allocation2 + $0x180] sm:$0xff] %v1799
  %2096 = vst [vmem:[#allocation2 + $0x188] sm:$0xff] %v1800
  %2097 = vst [vmem:[#allocation2 + $0x190] sm:$0xff] %v1801
  %2098 = vst [vmem:[#allocation2 + $0x198] sm:$0xff] %v1802
  %2099 = vrot.lane.b32.xlu0 %v1799, 127
  %v2100 = vpop.permute.xlu0 %2099
  %2101 = vrot.lane.b32.xlu0 %v1800, 127
  %v2102 = vpop.permute.xlu0 %2101
  %2103 = vrot.lane.b32.xlu0 %v1801, 127
  %v2104 = vpop.permute.xlu0 %2103
  %2105 = vrot.lane.b32.xlu0 %v1802, 127
  %v2106 = vpop.permute.xlu0 %2105
  %v2107 = vsel %vm666, %v2104, %v2106
  %v2108 = vsel %vm666, %v2102, %v2104
  %v2109 = vsel %vm666, %v2100, %v2102
  %v2110 = vsel %vm666, %v2106, %v2100
  %v2111 = vmul.f32 %v2109, %v675
  %v2112 = vmul.f32 %v2108, %v676
  %v2113 = vmul.f32 %v2107, %v677
  %v2114 = vmul.f32 %v2110, %v678
  %2115 = vst [vmem:[#allocation2 + $0x1a0] sm:$0xff] %v2111
  %2116 = vst [vmem:[#allocation2 + $0x1a8] sm:$0xff] %v2112
  %2117 = vst [vmem:[#allocation2 + $0x1b0] sm:$0xff] %v2113
  %2118 = vst [vmem:[#allocation2 + $0x1b8] sm:$0xff] %v2114
  %2119 = vrot.lane.b32.xlu0 %v1799, 126
  %v2120 = vpop.permute.xlu0 %2119
  %2121 = vrot.lane.b32.xlu0 %v1800, 126
  %v2122 = vpop.permute.xlu0 %2121
  %2123 = vrot.lane.b32.xlu0 %v1801, 126
  %v2124 = vpop.permute.xlu0 %2123
  %2125 = vrot.lane.b32.xlu0 %v1802, 126
  %v2126 = vpop.permute.xlu0 %2125
  %v2127 = vsel %vm1487, %v2124, %v2126
  %v2128 = vsel %vm1487, %v2122, %v2124
  %v2129 = vsel %vm1487, %v2120, %v2122
  %v2130 = vsel %vm1487, %v2126, %v2120
  %v2131 = vmul.f32 %v2129, %v1496
  %v2132 = vmul.f32 %v2128, %v1497
  %v2133 = vmul.f32 %v2127, %v1498
  %v2134 = vmul.f32 %v2130, %v1499
  %2135 = vst [vmem:[#allocation2 + $0x1c0] sm:$0xff] %v2131
  %2136 = vst [vmem:[#allocation2 + $0x1c8] sm:$0xff] %v2132
  %2137 = vst [vmem:[#allocation2 + $0x1d0] sm:$0xff] %v2133
  %2138 = vst [vmem:[#allocation2 + $0x1d8] sm:$0xff] %v2134
  %2139 = vrot.lane.b32.xlu0 %v1799, 114
  %v2140 = vpop.permute.xlu0 %2139
  %2141 = vrot.lane.b32.xlu0 %v1800, 114
  %v2142 = vpop.permute.xlu0 %2141
  %2143 = vrot.lane.b32.xlu0 %v1801, 114
  %v2144 = vpop.permute.xlu0 %2143
  %2145 = vrot.lane.b32.xlu0 %v1802, 114
  %v2146 = vpop.permute.xlu0 %2145
  %vm2147 = vcmp.lt.s32.totalorder %v525, 114
  %v2148 = vsel %vm2147, %v2144, %v2146
  %v2149 = vsel %vm2147, %v2142, %v2144
  %v2150 = vsel %vm2147, %v2140, %v2142
  %v2151 = vsel %vm2147, %v2146, %v2140
  %vm2152 = vmand %vm700, %vm1356
  %vm2153 = vmand %vm701, %vm1357
  %vm2154 = vmand %vm702, %vm1358
  %vm2155 = vmand %vm703, %vm1359
  %v2156 = vsel %vm2152, 1, 0
  %v2157 = vsel %vm2153, 1, 0
  %v2158 = vsel %vm2154, 1, 0
  %v2159 = vsel %vm2155, 1, 0
  %v2160 = vcvt.s32.f32 %v2156
  %v2161 = vcvt.s32.f32 %v2157
  %v2162 = vcvt.s32.f32 %v2158
  %v2163 = vcvt.s32.f32 %v2159
  %v2164 = vmul.f32 %v2150, %v2160
  %v2165 = vmul.f32 %v2149, %v2161
  %v2166 = vmul.f32 %v2148, %v2162
  %v2167 = vmul.f32 %v2151, %v2163
  %2168 = vst [vmem:[#allocation2 + $0x1e0] sm:$0xff] %v2164
  %2169 = vst [vmem:[#allocation2 + $0x1e8] sm:$0xff] %v2165
  %2170 = vst [vmem:[#allocation2 + $0x1f0] sm:$0xff] %v2166
  %2171 = vst [vmem:[#allocation2 + $0x1f8] sm:$0xff] %v2167
  %2172 = vrot.lane.b32.xlu0 %v1799, 113
  %v2173 = vpop.permute.xlu0 %2172
  %2174 = vrot.lane.b32.xlu0 %v1800, 113
  %v2175 = vpop.permute.xlu0 %2174
  %2176 = vrot.lane.b32.xlu0 %v1801, 113
  %v2177 = vpop.permute.xlu0 %2176
  %2178 = vrot.lane.b32.xlu0 %v1802, 113
  %v2179 = vpop.permute.xlu0 %2178
  %v2180 = vsel %vm695, %v2177, %v2179
  %v2181 = vsel %vm695, %v2175, %v2177
  %v2182 = vsel %vm695, %v2173, %v2175
  %v2183 = vsel %vm695, %v2179, %v2173
  %v2184 = vmul.f32 %v2182, %v712
  %v2185 = vmul.f32 %v2181, %v713
  %v2186 = vmul.f32 %v2180, %v714
  %v2187 = vmul.f32 %v2183, %v715
  %2188 = vst [vmem:[#allocation2 + $0x200] sm:$0xff] %v2184
  %2189 = vst [vmem:[#allocation2 + $0x208] sm:$0xff] %v2185
  %2190 = vst [vmem:[#allocation2 + $0x210] sm:$0xff] %v2186
  %2191 = vst [vmem:[#allocation2 + $0x218] sm:$0xff] %v2187
  %2192 = vrot.lane.b32.xlu0 %v1799, 112
  %v2193 = vpop.permute.xlu0 %2192
  %2194 = vrot.lane.b32.xlu0 %v1800, 112
  %v2195 = vpop.permute.xlu0 %2194
  %2196 = vrot.lane.b32.xlu0 %v1801, 112
  %v2197 = vpop.permute.xlu0 %2196
  %2198 = vrot.lane.b32.xlu0 %v1802, 112
  %v2199 = vpop.permute.xlu0 %2198
  %v2200 = vsel %vm732, %v2197, %v2199
  %v2201 = vsel %vm732, %v2195, %v2197
  %v2202 = vsel %vm732, %v2193, %v2195
  %v2203 = vsel %vm732, %v2199, %v2193
  %v2204 = vmul.f32 %v2202, %v741
  %v2205 = vmul.f32 %v2201, %v742
  %v2206 = vmul.f32 %v2200, %v743
  %v2207 = vmul.f32 %v2203, %v744
  %2208 = vst [vmem:[#allocation2 + $0x220] sm:$0xff] %v2204
  %2209 = vst [vmem:[#allocation2 + $0x228] sm:$0xff] %v2205
  %2210 = vst [vmem:[#allocation2 + $0x230] sm:$0xff] %v2206
  %2211 = vst [vmem:[#allocation2 + $0x238] sm:$0xff] %v2207
  %2212 = vrot.lane.b32.xlu0 %v1799, 111
  %v2213 = vpop.permute.xlu0 %2212
  %2214 = vrot.lane.b32.xlu0 %v1800, 111
  %v2215 = vpop.permute.xlu0 %2214
  %2216 = vrot.lane.b32.xlu0 %v1801, 111
  %v2217 = vpop.permute.xlu0 %2216
  %2218 = vrot.lane.b32.xlu0 %v1802, 111
  %v2219 = vpop.permute.xlu0 %2218
  %v2220 = vsel %vm761, %v2217, %v2219
  %v2221 = vsel %vm761, %v2215, %v2217
  %v2222 = vsel %vm761, %v2213, %v2215
  %v2223 = vsel %vm761, %v2219, %v2213
  %v2224 = vmul.f32 %v2222, %v774
  %v2225 = vmul.f32 %v2221, %v775
  %v2226 = vmul.f32 %v2220, %v776
  %v2227 = vmul.f32 %v2223, %v777
  %2228 = vst [vmem:[#allocation2 + $0x240] sm:$0xff] %v2224
  %2229 = vst [vmem:[#allocation2 + $0x248] sm:$0xff] %v2225
  %2230 = vst [vmem:[#allocation2 + $0x250] sm:$0xff] %v2226
  %2231 = vst [vmem:[#allocation2 + $0x258] sm:$0xff] %v2227
  %2232 = vrot.lane.b32.xlu0 %v1799, 110
  %v2233 = vpop.permute.xlu0 %2232
  %2234 = vrot.lane.b32.xlu0 %v1800, 110
  %v2235 = vpop.permute.xlu0 %2234
  %2236 = vrot.lane.b32.xlu0 %v1801, 110
  %v2237 = vpop.permute.xlu0 %2236
  %2238 = vrot.lane.b32.xlu0 %v1802, 110
  %v2239 = vpop.permute.xlu0 %2238
  %vm2240 = vcmp.lt.s32.totalorder %v525, 110
  %v2241 = vsel %vm2240, %v2237, %v2239
  %v2242 = vsel %vm2240, %v2235, %v2237
  %v2243 = vsel %vm2240, %v2233, %v2235
  %v2244 = vsel %vm2240, %v2239, %v2233
  %vm2245 = vmand %vm700, %vm1422
  %vm2246 = vmand %vm701, %vm1423
  %vm2247 = vmand %vm702, %vm1424
  %vm2248 = vmand %vm703, %vm1425
  %v2249 = vsel %vm2245, 1, 0
  %v2250 = vsel %vm2246, 1, 0
  %v2251 = vsel %vm2247, 1, 0
  %v2252 = vsel %vm2248, 1, 0
  %v2253 = vcvt.s32.f32 %v2249
  %v2254 = vcvt.s32.f32 %v2250
  %v2255 = vcvt.s32.f32 %v2251
  %v2256 = vcvt.s32.f32 %v2252
  %v2257 = vmul.f32 %v2243, %v2253
  %v2258 = vmul.f32 %v2242, %v2254
  %v2259 = vmul.f32 %v2241, %v2255
  %v2260 = vmul.f32 %v2244, %v2256
  %2261 = vst [vmem:[#allocation2 + $0x260] sm:$0xff] %v2257
  %2262 = vst [vmem:[#allocation2 + $0x268] sm:$0xff] %v2258
  %2263 = vst [vmem:[#allocation2 + $0x270] sm:$0xff] %v2259
  %2264 = vst [vmem:[#allocation2 + $0x278] sm:$0xff] %v2260
  %2265 = vrot.lane.b32.xlu0 %v1799, 98
  %v2266 = vpop.permute.xlu0 %2265
  %2267 = vrot.lane.b32.xlu0 %v1800, 98
  %v2268 = vpop.permute.xlu0 %2267
  %2269 = vrot.lane.b32.xlu0 %v1801, 98
  %v2270 = vpop.permute.xlu0 %2269
  %2271 = vrot.lane.b32.xlu0 %v1802, 98
  %v2272 = vpop.permute.xlu0 %2271
  %v2273 = vsel %vm1516, %v2270, %v2272
  %v2274 = vsel %vm1516, %v2268, %v2270
  %v2275 = vsel %vm1516, %v2266, %v2268
  %v2276 = vsel %vm1516, %v2272, %v2266
  %v2277 = vmul.f32 %v2275, %v1533
  %v2278 = vmul.f32 %v2274, %v1534
  %v2279 = vmul.f32 %v2273, %v1535
  %v2280 = vmul.f32 %v2276, %v1536
  %2281 = vst [vmem:[#allocation2 + $0x280] sm:$0xff] %v2277
  %2282 = vst [vmem:[#allocation2 + $0x288] sm:$0xff] %v2278
  %2283 = vst [vmem:[#allocation2 + $0x290] sm:$0xff] %v2279
  %2284 = vst [vmem:[#allocation2 + $0x298] sm:$0xff] %v2280
  %2285 = vrot.lane.b32.xlu0 %v1799, 97
  %v2286 = vpop.permute.xlu0 %2285
  %2287 = vrot.lane.b32.xlu0 %v1800, 97
  %v2288 = vpop.permute.xlu0 %2287
  %2289 = vrot.lane.b32.xlu0 %v1801, 97
  %v2290 = vpop.permute.xlu0 %2289
  %2291 = vrot.lane.b32.xlu0 %v1802, 97
  %v2292 = vpop.permute.xlu0 %2291
  %vm2293 = vcmp.lt.s32.totalorder %v525, 97
  %v2294 = vsel %vm2293, %v2290, %v2292
  %v2295 = vsel %vm2293, %v2288, %v2290
  %v2296 = vsel %vm2293, %v2286, %v2288
  %v2297 = vsel %vm2293, %v2292, %v2286
  %vm2298 = vmand %vm1521, %vm535
  %vm2299 = vmand %vm1522, %vm536
  %vm2300 = vmand %vm1523, %vm537
  %vm2301 = vmand %vm1524, %vm538
  %v2302 = vsel %vm2298, 1, 0
  %v2303 = vsel %vm2299, 1, 0
  %v2304 = vsel %vm2300, 1, 0
  %v2305 = vsel %vm2301, 1, 0
  %v2306 = vcvt.s32.f32 %v2302
  %v2307 = vcvt.s32.f32 %v2303
  %v2308 = vcvt.s32.f32 %v2304
  %v2309 = vcvt.s32.f32 %v2305
  %v2310 = vmul.f32 %v2296, %v2306
  %v2311 = vmul.f32 %v2295, %v2307
  %v2312 = vmul.f32 %v2294, %v2308
  %v2313 = vmul.f32 %v2297, %v2309
  %2314 = vst [vmem:[#allocation2 + $0x2a0] sm:$0xff] %v2310
  %2315 = vst [vmem:[#allocation2 + $0x2a8] sm:$0xff] %v2311
  %2316 = vst [vmem:[#allocation2 + $0x2b0] sm:$0xff] %v2312
  %2317 = vst [vmem:[#allocation2 + $0x2b8] sm:$0xff] %v2313
  %2318 = vrot.lane.b32.xlu0 %v1799, 96
  %v2319 = vpop.permute.xlu0 %2318
  %2320 = vrot.lane.b32.xlu0 %v1800, 96
  %v2321 = vpop.permute.xlu0 %2320
  %2322 = vrot.lane.b32.xlu0 %v1801, 96
  %v2323 = vpop.permute.xlu0 %2322
  %2324 = vrot.lane.b32.xlu0 %v1802, 96
  %v2325 = vpop.permute.xlu0 %2324
  %v2326 = vsel %vm1553, %v2323, %v2325
  %v2327 = vsel %vm1553, %v2321, %v2323
  %v2328 = vsel %vm1553, %v2319, %v2321
  %v2329 = vsel %vm1553, %v2325, %v2319
  %v2330 = vmul.f32 %v2328, %v1562
  %v2331 = vmul.f32 %v2327, %v1563
  %v2332 = vmul.f32 %v2326, %v1564
  %v2333 = vmul.f32 %v2329, %v1565
  %2334 = vst [vmem:[#allocation2 + $0x2c0] sm:$0xff] %v2330
  %2335 = vst [vmem:[#allocation2 + $0x2c8] sm:$0xff] %v2331
  %2336 = vst [vmem:[#allocation2 + $0x2d0] sm:$0xff] %v2332
  %2337 = vst [vmem:[#allocation2 + $0x2d8] sm:$0xff] %v2333
  %2338 = vrot.lane.b32.xlu0 %v1799, 95
  %v2339 = vpop.permute.xlu0 %2338
  %2340 = vrot.lane.b32.xlu0 %v1800, 95
  %v2341 = vpop.permute.xlu0 %2340
  %2342 = vrot.lane.b32.xlu0 %v1801, 95
  %v2343 = vpop.permute.xlu0 %2342
  %2344 = vrot.lane.b32.xlu0 %v1802, 95
  %v2345 = vpop.permute.xlu0 %2344
  %vm2346 = vcmp.lt.s32.totalorder %v525, 95
  %v2347 = vsel %vm2346, %v2343, %v2345
  %v2348 = vsel %vm2346, %v2341, %v2343
  %v2349 = vsel %vm2346, %v2339, %v2341
  %v2350 = vsel %vm2346, %v2345, %v2339
  %vm2351 = vmand %vm1521, %vm601
  %vm2352 = vmand %vm1522, %vm602
  %vm2353 = vmand %vm1523, %vm603
  %vm2354 = vmand %vm1524, %vm604
  %v2355 = vsel %vm2351, 1, 0
  %v2356 = vsel %vm2352, 1, 0
  %v2357 = vsel %vm2353, 1, 0
  %v2358 = vsel %vm2354, 1, 0
  %v2359 = vcvt.s32.f32 %v2355
  %v2360 = vcvt.s32.f32 %v2356
  %v2361 = vcvt.s32.f32 %v2357
  %v2362 = vcvt.s32.f32 %v2358
  %v2363 = vmul.f32 %v2349, %v2359
  %v2364 = vmul.f32 %v2348, %v2360
  %v2365 = vmul.f32 %v2347, %v2361
  %v2366 = vmul.f32 %v2350, %v2362
  %2367 = vst [vmem:[#allocation2 + $0x2e0] sm:$0xff] %v2363
  %2368 = vst [vmem:[#allocation2 + $0x2e8] sm:$0xff] %v2364
  %2369 = vst [vmem:[#allocation2 + $0x2f0] sm:$0xff] %v2365
  %2370 = vst [vmem:[#allocation2 + $0x2f8] sm:$0xff] %v2366
  %2371 = vrot.lane.b32.xlu0 %v1799, 94
  %v2372 = vpop.permute.xlu0 %2371
  %2373 = vrot.lane.b32.xlu0 %v1800, 94
  %v2374 = vpop.permute.xlu0 %2373
  %2375 = vrot.lane.b32.xlu0 %v1801, 94
  %v2376 = vpop.permute.xlu0 %2375
  %2377 = vrot.lane.b32.xlu0 %v1802, 94
  %v2378 = vpop.permute.xlu0 %2377
  %v2379 = vsel %vm1582, %v2376, %v2378
  %v2380 = vsel %vm1582, %v2374, %v2376
  %v2381 = vsel %vm1582, %v2372, %v2374
  %v2382 = vsel %vm1582, %v2378, %v2372
  %v2383 = vmul.f32 %v2381, %v1595
  %v2384 = vmul.f32 %v2380, %v1596
  %v2385 = vmul.f32 %v2379, %v1597
  %v2386 = vmul.f32 %v2382, %v1598
  %2387 = vst [vmem:[#allocation2 + $0x300] sm:$0xff] %v2383
  %2388 = vst [vmem:[#allocation2 + $0x308] sm:$0xff] %v2384
  %2389 = vst [vmem:[#allocation2 + $0x310] sm:$0xff] %v2385
  %2390 = vst [vmem:[#allocation2 + $0x318] sm:$0xff] %v2386
  %v2391 = vld [vmem:[%s13] sm:$0xff]
  %v2392 = vld [vmem:[%s13 + $0x8] sm:$0xff]
  %v2393 = vld [vmem:[#allocation2] sm:$0xff]
  %v2394 = vld [vmem:[#allocation2 + $0x8] sm:$0xff]
  %v2395 = vld [vmem:[#allocation2 + $0x10] sm:$0xff]
  %v2396 = vld [vmem:[#allocation2 + $0x18] sm:$0xff]
  %v2397 = vld [vmem:[#allocation2 + $0x20] sm:$0xff]
  %v2398 = vld [vmem:[#allocation2 + $0x28] sm:$0xff]
  %v2399 = vld [vmem:[#allocation2 + $0x30] sm:$0xff]
  %v2400 = vld [vmem:[#allocation2 + $0x38] sm:$0xff]
  %v2401 = vld [vmem:[#allocation2 + $0x40] sm:$0xff]
  %v2402 = vld [vmem:[#allocation2 + $0x48] sm:$0xff]
  %v2403 = vld [vmem:[#allocation2 + $0x50] sm:$0xff]
  %v2404 = vld [vmem:[#allocation2 + $0x58] sm:$0xff]
  %v2405 = vld [vmem:[#allocation2 + $0x60] sm:$0xff]
  %v2406 = vld [vmem:[#allocation2 + $0x68] sm:$0xff]
  %v2407 = vld [vmem:[#allocation2 + $0x70] sm:$0xff]
  %v2408 = vld [vmem:[#allocation2 + $0x78] sm:$0xff]
  %v2409 = vld [vmem:[#allocation2 + $0x80] sm:$0xff]
  %v2410 = vld [vmem:[#allocation2 + $0x88] sm:$0xff]
  %v2411 = vld [vmem:[#allocation2 + $0x90] sm:$0xff]
  %v2412 = vld [vmem:[#allocation2 + $0x98] sm:$0xff]
  %v2413 = vld [vmem:[#allocation2 + $0xa0] sm:$0xff]
  %v2414 = vld [vmem:[#allocation2 + $0xa8] sm:$0xff]
  %v2415 = vld [vmem:[#allocation2 + $0xb0] sm:$0xff]
  %v2416 = vld [vmem:[#allocation2 + $0xb8] sm:$0xff]
  %v2417 = vld [vmem:[#allocation2 + $0xc0] sm:$0xff]
  %v2418 = vld [vmem:[#allocation2 + $0xc8] sm:$0xff]
  %v2419 = vld [vmem:[#allocation2 + $0xd0] sm:$0xff]
  %v2420 = vld [vmem:[#allocation2 + $0xd8] sm:$0xff]
  %v2421 = vld [vmem:[#allocation2 + $0xe0] sm:$0xff]
  %v2422 = vld [vmem:[#allocation2 + $0xe8] sm:$0xff]
  %v2423 = vld [vmem:[#allocation2 + $0xf0] sm:$0xff]
  %v2424 = vld [vmem:[#allocation2 + $0xf8] sm:$0xff]
  %v2425 = vld [vmem:[#allocation2 + $0x100] sm:$0xff]
  %v2426 = vld [vmem:[#allocation2 + $0x108] sm:$0xff]
  %v2427 = vld [vmem:[#allocation2 + $0x110] sm:$0xff]
  %v2428 = vld [vmem:[#allocation2 + $0x118] sm:$0xff]
  %v2429 = vld [vmem:[#allocation2 + $0x120] sm:$0xff]
  %v2430 = vld [vmem:[#allocation2 + $0x128] sm:$0xff]
  %v2431 = vld [vmem:[#allocation2 + $0x130] sm:$0xff]
  %v2432 = vld [vmem:[#allocation2 + $0x138] sm:$0xff]
  %v2433 = vld [vmem:[#allocation2 + $0x140] sm:$0xff]
  %v2434 = vld [vmem:[#allocation2 + $0x148] sm:$0xff]
  %v2435 = vld [vmem:[#allocation2 + $0x150] sm:$0xff]
  %v2436 = vld [vmem:[#allocation2 + $0x158] sm:$0xff]
  %v2437 = vld [vmem:[#allocation2 + $0x160] sm:$0xff]
  %v2438 = vld [vmem:[#allocation2 + $0x168] sm:$0xff]
  %v2439 = vld [vmem:[#allocation2 + $0x170] sm:$0xff]
  %v2440 = vld [vmem:[#allocation2 + $0x178] sm:$0xff]
  %v2441 = vld [vmem:[#allocation2 + $0x180] sm:$0xff]
  %v2442 = vld [vmem:[#allocation2 + $0x188] sm:$0xff]
  %v2443 = vld [vmem:[#allocation2 + $0x190] sm:$0xff]
  %v2444 = vld [vmem:[#allocation2 + $0x198] sm:$0xff]
  %v2445 = vld [vmem:[#allocation2 + $0x1a0] sm:$0xff]
  %v2446 = vld [vmem:[#allocation2 + $0x1a8] sm:$0xff]
  %v2447 = vld [vmem:[#allocation2 + $0x1b0] sm:$0xff]
  %v2448 = vld [vmem:[#allocation2 + $0x1b8] sm:$0xff]
  %v2449 = vld [vmem:[#allocation2 + $0x1c0] sm:$0xff]
  %v2450 = vld [vmem:[#allocation2 + $0x1c8] sm:$0xff]
  %v2451 = vld [vmem:[#allocation2 + $0x1d0] sm:$0xff]
  %v2452 = vld [vmem:[#allocation2 + $0x1d8] sm:$0xff]
  %v2453 = vld [vmem:[#allocation2 + $0x1e0] sm:$0xff]
  %v2454 = vld [vmem:[#allocation2 + $0x1e8] sm:$0xff]
  %v2455 = vld [vmem:[#allocation2 + $0x1f0] sm:$0xff]
  %v2456 = vld [vmem:[#allocation2 + $0x1f8] sm:$0xff]
  %v2457 = vld [vmem:[#allocation2 + $0x200] sm:$0xff]
  %v2458 = vld [vmem:[#allocation2 + $0x208] sm:$0xff]
  %v2459 = vld [vmem:[#allocation2 + $0x210] sm:$0xff]
  %v2460 = vld [vmem:[#allocation2 + $0x218] sm:$0xff]
  %v2461 = vld [vmem:[#allocation2 + $0x220] sm:$0xff]
  %v2462 = vld [vmem:[#allocation2 + $0x228] sm:$0xff]
  %v2463 = vld [vmem:[#allocation2 + $0x230] sm:$0xff]
  %v2464 = vld [vmem:[#allocation2 + $0x238] sm:$0xff]
  %v2465 = vld [vmem:[#allocation2 + $0x240] sm:$0xff]
  %v2466 = vld [vmem:[#allocation2 + $0x248] sm:$0xff]
  %v2467 = vld [vmem:[#allocation2 + $0x250] sm:$0xff]
  %v2468 = vld [vmem:[#allocation2 + $0x258] sm:$0xff]
  %v2469 = vld [vmem:[#allocation2 + $0x260] sm:$0xff]
  %v2470 = vld [vmem:[#allocation2 + $0x268] sm:$0xff]
  %v2471 = vld [vmem:[#allocation2 + $0x270] sm:$0xff]
  %v2472 = vld [vmem:[#allocation2 + $0x278] sm:$0xff]
  %v2473 = vld [vmem:[#allocation2 + $0x280] sm:$0xff]
  %v2474 = vld [vmem:[#allocation2 + $0x288] sm:$0xff]
  %v2475 = vld [vmem:[#allocation2 + $0x290] sm:$0xff]
  %v2476 = vld [vmem:[#allocation2 + $0x298] sm:$0xff]
  %v2477 = vld [vmem:[#allocation2 + $0x2a0] sm:$0xff]
  %v2478 = vld [vmem:[#allocation2 + $0x2a8] sm:$0xff]
  %v2479 = vld [vmem:[#allocation2 + $0x2b0] sm:$0xff]
  %v2480 = vld [vmem:[#allocation2 + $0x2b8] sm:$0xff]
  %v2481 = vld [vmem:[#allocation2 + $0x2c0] sm:$0xff]
  %v2482 = vld [vmem:[#allocation2 + $0x2c8] sm:$0xff]
  %v2483 = vld [vmem:[#allocation2 + $0x2d0] sm:$0xff]
  %v2484 = vld [vmem:[#allocation2 + $0x2d8] sm:$0xff]
  %v2485 = vld [vmem:[#allocation2 + $0x2e0] sm:$0xff]
  %v2486 = vld [vmem:[#allocation2 + $0x2e8] sm:$0xff]
  %v2487 = vld [vmem:[#allocation2 + $0x2f0] sm:$0xff]
  %v2488 = vld [vmem:[#allocation2 + $0x2f8] sm:$0xff]
  %v2489 = vld [vmem:[#allocation2 + $0x300] sm:$0xff]
  %v2490 = vld [vmem:[#allocation2 + $0x308] sm:$0xff]
  %v2491 = vld [vmem:[#allocation2 + $0x310] sm:$0xff]
  %v2492 = vld [vmem:[#allocation2 + $0x318] sm:$0xff]
  %v2493 = vld [vmem:[%s14] sm:$0xff]
  %2495 = vset.pattern.permute.xlu0 0
  %2496 = vperm.xlu0 %2495, %v2493
  %v2497 = vpop.permute.xlu0 %2496
  %v2500 = vsel %vm829, %v2392, 0
  %2502 = vmatprep.subr.mxu0 %v2394
  %2503 = vmatpush1.msra.mxu0 %v2393
  %2504 = vmatprep.subr.mxu0 %v2398
  %2505 = vmatpush1.msra.mxu0 %v2397
  %2506 = vmatprep.subr.mxu0 %v2402
  %2507 = vmatpush1.msra.mxu0 %v2401
  %2508 = vmatprep.subr.mxu0 %v2406
  %2509 = vmatpush1.msra.mxu0 %v2405
  %2510 = vmatprep.subr.mxu0 %v2410
  %2511 = vmatpush1.msra.mxu0 %v2409
  %2512 = vmatprep.subr.mxu0 %v2414
  %2513 = vmatpush1.msra.mxu0 %v2413
  %2514 = vmatprep.subr.mxu0 %v2418
  %2515 = vmatpush1.msra.mxu0 %v2417
  %2516 = vmatprep.subr.mxu0 %v2422
  %2517 = vmatpush1.msra.mxu0 %v2421
  %2518 = vmatprep.subr.mxu0 %v2426
  %2519 = vmatpush1.msra.mxu0 %v2425
  %2520 = vmatprep.subr.mxu0 %v2430
  %2521 = vmatpush1.msra.mxu0 %v2429
  %2522 = vmatprep.subr.mxu0 %v2434
  %2523 = vmatpush1.msra.mxu0 %v2433
  %2524 = vmatprep.subr.mxu0 %v2438
  %2525 = vmatpush1.msra.mxu0 %v2437
  %2526 = vmatprep.subr.mxu0 %v2442
  %2527 = vmatpush1.msra.mxu0 %v2441
  %2528 = vmatprep.subr.mxu0 %v2446
  %2529 = vmatpush1.msra.mxu0 %v2445
  %2530 = vmatprep.subr.mxu0 %v2450
  %2531 = vmatpush1.msra.mxu0 %v2449
  %2532 = vmatprep.subr.mxu0 %v2454
  %2533 = vmatpush1.msra.mxu0 %v2453
  %2534 = vmatprep.subr.mxu0 %v2458
  %2535 = vmatpush1.msra.mxu0 %v2457
  %2536 = vmatprep.subr.mxu0 %v2462
  %2537 = vmatpush1.msra.mxu0 %v2461
  %2538 = vmatprep.subr.mxu0 %v2466
  %2539 = vmatpush1.msra.mxu0 %v2465
  %2540 = vmatprep.subr.mxu0 %v2470
  %2541 = vmatpush1.msra.mxu0 %v2469
  %2542 = vmatprep.subr.mxu0 %v2474
  %2543 = vmatpush1.msra.mxu0 %v2473
  %2544 = vmatprep.subr.mxu0 %v2478
  %2545 = vmatpush1.msra.mxu0 %v2477
  %2546 = vmatprep.subr.mxu0 %v2482
  %2547 = vmatpush1.msra.mxu0 %v2481
  %2548 = vmatprep.subr.mxu0 %v2486
  %2549 = vmatpush1.msra.mxu0 %v2485
  %2550 = vmatprep.subr.mxu0 %v2490
  %2551 = vmatpush1.msra.mxu0 %v2489
  %2552 = vmatprep.subr.mxu0 0.0
  %2553 = vmatpush1.msra.mxu0 0.0
  %2554 = vmatprep.subr.mxu0 0.0
  %2555 = vmatpush1.msra.mxu0 0.0
  %2556 = vmatprep.subr.mxu0 0.0
  %2557 = vmatpush1.msra.mxu0 0.0
  %2558 = vmatprep.subr.mxu0 0.0
  %2559 = vmatpush1.msra.mxu0 0.0
  %2560 = vmatprep.subr.mxu0 0.0
  %2561 = vmatpush1.msra.mxu0 0.0
  %2562 = vmatprep.subr.mxu0 0.0
  %2563 = vmatpush1.msra.mxu0 0.0
  %2564 = vmatprep.subr.mxu0 0.0
  %2565 = vmatpush1.msra.mxu0 0.0
  %2566 = vmatprep.mubr.f32.mxu0 %v2500
  %2567 = vmatmul.mubr.f32.gmra.mrb[0].mxu0 %v2391
  %v2568 = vpop.f32.mrb[0].mxu0
  %v2569 = vadd.f32 %v2497, %v2568
  %v2570 = vpop.f32.mrb[0].mxu0
  %v2571 = vadd.f32 %v2497, %v2570
  %2572 = vdwg.mxu0
  %2573 = vmatprep.subr.mxu0 %v2396
  %2574 = vmatpush1.msra.mxu0 %v2395
  %2575 = vmatprep.subr.mxu0 %v2400
  %2576 = vmatpush1.msra.mxu0 %v2399
  %2577 = vmatprep.subr.mxu0 %v2404
  %2578 = vmatpush1.msra.mxu0 %v2403
  %2579 = vmatprep.subr.mxu0 %v2408
  %2580 = vmatpush1.msra.mxu0 %v2407
  %2581 = vmatprep.subr.mxu0 %v2412
  %2582 = vmatpush1.msra.mxu0 %v2411
  %2583 = vmatprep.subr.mxu0 %v2416
  %2584 = vmatpush1.msra.mxu0 %v2415
  %2585 = vmatprep.subr.mxu0 %v2420
  %2586 = vmatpush1.msra.mxu0 %v2419
  %2587 = vmatprep.subr.mxu0 %v2424
  %2588 = vmatpush1.msra.mxu0 %v2423
  %2589 = vmatprep.subr.mxu0 %v2428
  %2590 = vmatpush1.msra.mxu0 %v2427
  %2591 = vmatprep.subr.mxu0 %v2432
  %2592 = vmatpush1.msra.mxu0 %v2431
  %2593 = vmatprep.subr.mxu0 %v2436
  %2594 = vmatpush1.msra.mxu0 %v2435
  %2595 = vmatprep.subr.mxu0 %v2440
  %2596 = vmatpush1.msra.mxu0 %v2439
  %2597 = vmatprep.subr.mxu0 %v2444
  %2598 = vmatpush1.msra.mxu0 %v2443
  %2599 = vmatprep.subr.mxu0 %v2448
  %2600 = vmatpush1.msra.mxu0 %v2447
  %2601 = vmatprep.subr.mxu0 %v2452
  %2602 = vmatpush1.msra.mxu0 %v2451
  %2603 = vmatprep.subr.mxu0 %v2456
  %2604 = vmatpush1.msra.mxu0 %v2455
  %2605 = vmatprep.subr.mxu0 %v2460
  %2606 = vmatpush1.msra.mxu0 %v2459
  %2607 = vmatprep.subr.mxu0 %v2464
  %2608 = vmatpush1.msra.mxu0 %v2463
  %2609 = vmatprep.subr.mxu0 %v2468
  %2610 = vmatpush1.msra.mxu0 %v2467
  %2611 = vmatprep.subr.mxu0 %v2472
  %2612 = vmatpush1.msra.mxu0 %v2471
  %2613 = vmatprep.subr.mxu0 %v2476
  %2614 = vmatpush1.msra.mxu0 %v2475
  %2615 = vmatprep.subr.mxu0 %v2480
  %2616 = vmatpush1.msra.mxu0 %v2479
  %2617 = vmatprep.subr.mxu0 %v2484
  %2618 = vmatpush1.msra.mxu0 %v2483
  %2619 = vmatprep.subr.mxu0 %v2488
  %2620 = vmatpush1.msra.mxu0 %v2487
  %2621 = vmatprep.subr.mxu0 %v2492
  %2622 = vmatpush1.msra.mxu0 %v2491
  %2623 = vmatprep.subr.mxu0 0.0
  %2624 = vmatpush1.msra.mxu0 0.0
  %2625 = vmatprep.subr.mxu0 0.0
  %2626 = vmatpush1.msra.mxu0 0.0
  %2627 = vmatprep.subr.mxu0 0.0
  %2628 = vmatpush1.msra.mxu0 0.0
  %2629 = vmatprep.subr.mxu0 0.0
  %2630 = vmatpush1.msra.mxu0 0.0
  %2631 = vmatprep.subr.mxu0 0.0
  %2632 = vmatpush1.msra.mxu0 0.0
  %2633 = vmatprep.subr.mxu0 0.0
  %2634 = vmatpush1.msra.mxu0 0.0
  %2635 = vmatprep.subr.mxu0 0.0
  %2636 = vmatpush1.msra.mxu0 0.0
  %2637 = vmatprep.mubr.f32.mxu0 %v2500
  %2638 = vmatmul.mubr.f32.gmra.mrb[0].mxu0 %v2391
  %v2639 = vpop.f32.mrb[0].mxu0
  %v2640 = vadd.f32 %v2497, %v2639
  %v2641 = vpop.f32.mrb[0].mxu0
  %v2642 = vadd.f32 %v2497, %v2641
  %2643 = vdwg.mxu0
  %v2644 = vmax.f32 %v2569, 0.0
  %v2645 = vmax.f32 %v2571, 0.0
  %v2646 = vmax.f32 %v2640, 0.0
  %v2647 = vmax.f32 %v2642, 0.0
  %2648 = vrot.lane.b32.xlu0 %v2644, 68
  %v2649 = vpop.permute.xlu0 %2648
  %2650 = vrot.lane.b32.xlu0 %v2645, 68
  %v2651 = vpop.permute.xlu0 %2650
  %2652 = vrot.lane.b32.xlu0 %v2646, 68
  %v2653 = vpop.permute.xlu0 %2652
  %2654 = vrot.lane.b32.xlu0 %v2647, 68
  %v2655 = vpop.permute.xlu0 %2654
  %vm2656 = vcmp.lt.s32.totalorder %v525, 68
  %v2657 = vsel %vm2656, %v2653, %v2655
  %v2658 = vsel %vm2656, %v2651, %v2653
  %v2659 = vsel %vm2656, %v2649, %v2651
  %v2660 = vsel %vm2656, %v2655, %v2649
  %vm2661 = vcmp.ge.s32.totalorder %v94, 4
  %vm2662 = vcmp.ge.s32.totalorder %v98, 4
  %vm2663 = vcmp.ge.s32.totalorder %v102, 4
  %vm2664 = vcmp.ge.s32.totalorder %v106, 4
  %vm2665 = vcmp.ge.s32.totalorder %v111, 4
  %vm2666 = vcmp.ge.s32.totalorder %v115, 4
  %vm2667 = vcmp.ge.s32.totalorder %v119, 4
  %vm2668 = vcmp.ge.s32.totalorder %v123, 4
  %vm2669 = vmand %vm2661, %vm2665
  %vm2670 = vmand %vm2662, %vm2666
  %vm2671 = vmand %vm2663, %vm2667
  %vm2672 = vmand %vm2664, %vm2668
  %v2673 = vsel %vm2669, 1, 0
  %v2674 = vsel %vm2670, 1, 0
  %v2675 = vsel %vm2671, 1, 0
  %v2676 = vsel %vm2672, 1, 0
  %v2677 = vcvt.s32.f32 %v2673
  %v2678 = vcvt.s32.f32 %v2674
  %v2679 = vcvt.s32.f32 %v2675
  %v2680 = vcvt.s32.f32 %v2676
  %v2681 = vmul.f32 %v2660, %v2677
  %v2682 = vmul.f32 %v2659, %v2678
  %v2683 = vmul.f32 %v2658, %v2679
  %v2684 = vmul.f32 %v2657, %v2680
  %2685 = vst [vmem:[#allocation2] sm:$0xff] %v2681
  %2686 = vst [vmem:[#allocation2 + $0x8] sm:$0xff] %v2682
  %2687 = vst [vmem:[#allocation2 + $0x10] sm:$0xff] %v2683
  %2688 = vst [vmem:[#allocation2 + $0x18] sm:$0xff] %v2684
  %2689 = vrot.lane.b32.xlu0 %v2644, 64
  %v2690 = vpop.permute.xlu0 %2689
  %2691 = vrot.lane.b32.xlu0 %v2645, 64
  %v2692 = vpop.permute.xlu0 %2691
  %2693 = vrot.lane.b32.xlu0 %v2646, 64
  %v2694 = vpop.permute.xlu0 %2693
  %2695 = vrot.lane.b32.xlu0 %v2647, 64
  %v2696 = vpop.permute.xlu0 %2695
  %vm2697 = vcmp.lt.s32.totalorder %v525, 64
  %v2698 = vsel %vm2697, %v2694, %v2696
  %v2699 = vsel %vm2697, %v2692, %v2694
  %v2700 = vsel %vm2697, %v2690, %v2692
  %v2701 = vsel %vm2697, %v2696, %v2690
  %v2702 = vsel %vm2661, 1, 0
  %v2703 = vsel %vm2662, 1, 0
  %v2704 = vsel %vm2663, 1, 0
  %v2705 = vsel %vm2664, 1, 0
  %v2706 = vcvt.s32.f32 %v2702
  %v2707 = vcvt.s32.f32 %v2703
  %v2708 = vcvt.s32.f32 %v2704
  %v2709 = vcvt.s32.f32 %v2705
  %v2710 = vmul.f32 %v2701, %v2706
  %v2711 = vmul.f32 %v2700, %v2707
  %v2712 = vmul.f32 %v2699, %v2708
  %v2713 = vmul.f32 %v2698, %v2709
  %2714 = vst [vmem:[#allocation2 + $0x20] sm:$0xff] %v2710
  %2715 = vst [vmem:[#allocation2 + $0x28] sm:$0xff] %v2711
  %2716 = vst [vmem:[#allocation2 + $0x30] sm:$0xff] %v2712
  %2717 = vst [vmem:[#allocation2 + $0x38] sm:$0xff] %v2713
  %2718 = vrot.lane.b32.xlu0 %v2644, 60
  %v2719 = vpop.permute.xlu0 %2718
  %2720 = vrot.lane.b32.xlu0 %v2645, 60
  %v2721 = vpop.permute.xlu0 %2720
  %2722 = vrot.lane.b32.xlu0 %v2646, 60
  %v2723 = vpop.permute.xlu0 %2722
  %2724 = vrot.lane.b32.xlu0 %v2647, 60
  %v2725 = vpop.permute.xlu0 %2724
  %vm2726 = vcmp.lt.s32.totalorder %v525, 60
  %v2727 = vsel %vm2726, %v2723, %v2725
  %v2728 = vsel %vm2726, %v2721, %v2723
  %v2729 = vsel %vm2726, %v2719, %v2721
  %v2730 = vsel %vm2726, %v2725, %v2719
  %vm2731 = vcmp.lt.s32.totalorder %v111, 12
  %vm2732 = vcmp.lt.s32.totalorder %v115, 12
  %vm2733 = vcmp.lt.s32.totalorder %v119, 12
  %vm2734 = vcmp.lt.s32.totalorder %v123, 12
  %vm2735 = vmand %vm2661, %vm2731
  %vm2736 = vmand %vm2662, %vm2732
  %vm2737 = vmand %vm2663, %vm2733
  %vm2738 = vmand %vm2664, %vm2734
  %v2739 = vsel %vm2735, 1, 0
  %v2740 = vsel %vm2736, 1, 0
  %v2741 = vsel %vm2737, 1, 0
  %v2742 = vsel %vm2738, 1, 0
  %v2743 = vcvt.s32.f32 %v2739
  %v2744 = vcvt.s32.f32 %v2740
  %v2745 = vcvt.s32.f32 %v2741
  %v2746 = vcvt.s32.f32 %v2742
  %v2747 = vmul.f32 %v2730, %v2743
  %v2748 = vmul.f32 %v2729, %v2744
  %v2749 = vmul.f32 %v2728, %v2745
  %v2750 = vmul.f32 %v2727, %v2746
  %2751 = vst [vmem:[#allocation2 + $0x40] sm:$0xff] %v2747
  %2752 = vst [vmem:[#allocation2 + $0x48] sm:$0xff] %v2748
  %2753 = vst [vmem:[#allocation2 + $0x50] sm:$0xff] %v2749
  %2754 = vst [vmem:[#allocation2 + $0x58] sm:$0xff] %v2750
  %2755 = vrot.lane.b32.xlu0 %v2644, 4
  %v2756 = vpop.permute.xlu0 %2755
  %2757 = vrot.lane.b32.xlu0 %v2645, 4
  %v2758 = vpop.permute.xlu0 %2757
  %2759 = vrot.lane.b32.xlu0 %v2646, 4
  %v2760 = vpop.permute.xlu0 %2759
  %2761 = vrot.lane.b32.xlu0 %v2647, 4
  %v2762 = vpop.permute.xlu0 %2761
  %vm2763 = vcmp.lt.s32.totalorder %v525, 4
  %v2764 = vsel %vm2763, %v2760, %v2762
  %v2765 = vsel %vm2763, %v2758, %v2760
  %v2766 = vsel %vm2763, %v2756, %v2758
  %v2767 = vsel %vm2763, %v2762, %v2756
  %v2768 = vsel %vm2665, 1, 0
  %v2769 = vsel %vm2666, 1, 0
  %v2770 = vsel %vm2667, 1, 0
  %v2771 = vsel %vm2668, 1, 0
  %v2772 = vcvt.s32.f32 %v2768
  %v2773 = vcvt.s32.f32 %v2769
  %v2774 = vcvt.s32.f32 %v2770
  %v2775 = vcvt.s32.f32 %v2771
  %v2776 = vmul.f32 %v2767, %v2772
  %v2777 = vmul.f32 %v2766, %v2773
  %v2778 = vmul.f32 %v2765, %v2774
  %v2779 = vmul.f32 %v2764, %v2775
  %2780 = vst [vmem:[#allocation2 + $0x60] sm:$0xff] %v2776
  %2781 = vst [vmem:[#allocation2 + $0x68] sm:$0xff] %v2777
  %2782 = vst [vmem:[#allocation2 + $0x70] sm:$0xff] %v2778
  %2783 = vst [vmem:[#allocation2 + $0x78] sm:$0xff] %v2779
  %2784 = vst [vmem:[#allocation2 + $0x80] sm:$0xff] %v2644
  %2785 = vst [vmem:[#allocation2 + $0x88] sm:$0xff] %v2645
  %2786 = vst [vmem:[#allocation2 + $0x90] sm:$0xff] %v2646
  %2787 = vst [vmem:[#allocation2 + $0x98] sm:$0xff] %v2647
  %2788 = vrot.lane.b32.xlu0 %v2644, 124
  %v2789 = vpop.permute.xlu0 %2788
  %2790 = vrot.lane.b32.xlu0 %v2645, 124
  %v2791 = vpop.permute.xlu0 %2790
  %2792 = vrot.lane.b32.xlu0 %v2646, 124
  %v2793 = vpop.permute.xlu0 %2792
  %2794 = vrot.lane.b32.xlu0 %v2647, 124
  %v2795 = vpop.permute.xlu0 %2794
  %vm2796 = vcmp.lt.s32.totalorder %v525, 124
  %v2797 = vsel %vm2796, %v2793, %v2795
  %v2798 = vsel %vm2796, %v2791, %v2793
  %v2799 = vsel %vm2796, %v2789, %v2791
  %v2800 = vsel %vm2796, %v2795, %v2789
  %v2801 = vsel %vm2731, 1, 0
  %v2802 = vsel %vm2732, 1, 0
  %v2803 = vsel %vm2733, 1, 0
  %v2804 = vsel %vm2734, 1, 0
  %v2805 = vcvt.s32.f32 %v2801
  %v2806 = vcvt.s32.f32 %v2802
  %v2807 = vcvt.s32.f32 %v2803
  %v2808 = vcvt.s32.f32 %v2804
  %v2809 = vmul.f32 %v2799, %v2805
  %v2810 = vmul.f32 %v2798, %v2806
  %v2811 = vmul.f32 %v2797, %v2807
  %v2812 = vmul.f32 %v2800, %v2808
  %2813 = vst [vmem:[#allocation2 + $0xa0] sm:$0xff] %v2809
  %2814 = vst [vmem:[#allocation2 + $0xa8] sm:$0xff] %v2810
  %2815 = vst [vmem:[#allocation2 + $0xb0] sm:$0xff] %v2811
  %2816 = vst [vmem:[#allocation2 + $0xb8] sm:$0xff] %v2812
  %vm2817 = vcmp.lt.s32.totalorder %v94, 12
  %vm2818 = vcmp.lt.s32.totalorder %v98, 12
  %vm2819 = vcmp.lt.s32.totalorder %v102, 12
  %vm2820 = vcmp.lt.s32.totalorder %v106, 12
  %vm2821 = vmand %vm2817, %vm2665
  %vm2822 = vmand %vm2818, %vm2666
  %vm2823 = vmand %vm2819, %vm2667
  %vm2824 = vmand %vm2820, %vm2668
  %v2825 = vsel %vm2821, 1, 0
  %v2826 = vsel %vm2822, 1, 0
  %v2827 = vsel %vm2823, 1, 0
  %v2828 = vsel %vm2824, 1, 0
  %v2829 = vcvt.s32.f32 %v2825
  %v2830 = vcvt.s32.f32 %v2826
  %v2831 = vcvt.s32.f32 %v2827
  %v2832 = vcvt.s32.f32 %v2828
  %v2833 = vmul.f32 %v2659, %v2829
  %v2834 = vmul.f32 %v2658, %v2830
  %v2835 = vmul.f32 %v2657, %v2831
  %v2836 = vmul.f32 %v2660, %v2832
  %2837 = vst [vmem:[#allocation2 + $0xc0] sm:$0xff] %v2833
  %2838 = vst [vmem:[#allocation2 + $0xc8] sm:$0xff] %v2834
  %2839 = vst [vmem:[#allocation2 + $0xd0] sm:$0xff] %v2835
  %2840 = vst [vmem:[#allocation2 + $0xd8] sm:$0xff] %v2836
  %v2841 = vsel %vm2817, 1, 0
  %v2842 = vsel %vm2818, 1, 0
  %v2843 = vsel %vm2819, 1, 0
  %v2844 = vsel %vm2820, 1, 0
  %v2845 = vcvt.s32.f32 %v2841
  %v2846 = vcvt.s32.f32 %v2842
  %v2847 = vcvt.s32.f32 %v2843
  %v2848 = vcvt.s32.f32 %v2844
  %v2849 = vmul.f32 %v2700, %v2845
  %v2850 = vmul.f32 %v2699, %v2846
  %v2851 = vmul.f32 %v2698, %v2847
  %v2852 = vmul.f32 %v2701, %v2848
  %2853 = vst [vmem:[#allocation2 + $0xe0] sm:$0xff] %v2849
  %2854 = vst [vmem:[#allocation2 + $0xe8] sm:$0xff] %v2850
  %2855 = vst [vmem:[#allocation2 + $0xf0] sm:$0xff] %v2851
  %2856 = vst [vmem:[#allocation2 + $0xf8] sm:$0xff] %v2852
  %vm2857 = vmand %vm2817, %vm2731
  %vm2858 = vmand %vm2818, %vm2732
  %vm2859 = vmand %vm2819, %vm2733
  %vm2860 = vmand %vm2820, %vm2734
  %v2861 = vsel %vm2857, 1, 0
  %v2862 = vsel %vm2858, 1, 0
  %v2863 = vsel %vm2859, 1, 0
  %v2864 = vsel %vm2860, 1, 0
  %v2865 = vcvt.s32.f32 %v2861
  %v2866 = vcvt.s32.f32 %v2862
  %v2867 = vcvt.s32.f32 %v2863
  %v2868 = vcvt.s32.f32 %v2864
  %v2869 = vmul.f32 %v2729, %v2865
  %v2870 = vmul.f32 %v2728, %v2866
  %v2871 = vmul.f32 %v2727, %v2867
  %v2872 = vmul.f32 %v2730, %v2868
  %2873 = vst [vmem:[#allocation2 + $0x100] sm:$0xff] %v2869
  %2874 = vst [vmem:[#allocation2 + $0x108] sm:$0xff] %v2870
  %2875 = vst [vmem:[#allocation2 + $0x110] sm:$0xff] %v2871
  %2876 = vst [vmem:[#allocation2 + $0x118] sm:$0xff] %v2872
  %v2877 = vld [vmem:[%s15] sm:$0xff]
  %v2878 = vld [vmem:[#allocation2] sm:$0xff]
  %v2879 = vld [vmem:[#allocation2 + $0x8] sm:$0xff]
  %v2880 = vld [vmem:[#allocation2 + $0x10] sm:$0xff]
  %v2881 = vld [vmem:[#allocation2 + $0x18] sm:$0xff]
  %v2882 = vld [vmem:[#allocation2 + $0x20] sm:$0xff]
  %v2883 = vld [vmem:[#allocation2 + $0x28] sm:$0xff]
  %v2884 = vld [vmem:[#allocation2 + $0x30] sm:$0xff]
  %v2885 = vld [vmem:[#allocation2 + $0x38] sm:$0xff]
  %v2886 = vld [vmem:[#allocation2 + $0x40] sm:$0xff]
  %v2887 = vld [vmem:[#allocation2 + $0x48] sm:$0xff]
  %v2888 = vld [vmem:[#allocation2 + $0x50] sm:$0xff]
  %v2889 = vld [vmem:[#allocation2 + $0x58] sm:$0xff]
  %v2890 = vld [vmem:[#allocation2 + $0x60] sm:$0xff]
  %v2891 = vld [vmem:[#allocation2 + $0x68] sm:$0xff]
  %v2892 = vld [vmem:[#allocation2 + $0x70] sm:$0xff]
  %v2893 = vld [vmem:[#allocation2 + $0x78] sm:$0xff]
  %v2894 = vld [vmem:[#allocation2 + $0x80] sm:$0xff]
  %v2895 = vld [vmem:[#allocation2 + $0x88] sm:$0xff]
  %v2896 = vld [vmem:[#allocation2 + $0x90] sm:$0xff]
  %v2897 = vld [vmem:[#allocation2 + $0x98] sm:$0xff]
  %v2898 = vld [vmem:[#allocation2 + $0xa0] sm:$0xff]
  %v2899 = vld [vmem:[#allocation2 + $0xa8] sm:$0xff]
  %v2900 = vld [vmem:[#allocation2 + $0xb0] sm:$0xff]
  %v2901 = vld [vmem:[#allocation2 + $0xb8] sm:$0xff]
  %v2902 = vld [vmem:[#allocation2 + $0xc0] sm:$0xff]
  %v2903 = vld [vmem:[#allocation2 + $0xc8] sm:$0xff]
  %v2904 = vld [vmem:[#allocation2 + $0xd0] sm:$0xff]
  %v2905 = vld [vmem:[#allocation2 + $0xd8] sm:$0xff]
  %v2906 = vld [vmem:[#allocation2 + $0xe0] sm:$0xff]
  %v2907 = vld [vmem:[#allocation2 + $0xe8] sm:$0xff]
  %v2908 = vld [vmem:[#allocation2 + $0xf0] sm:$0xff]
  %v2909 = vld [vmem:[#allocation2 + $0xf8] sm:$0xff]
  %v2910 = vld [vmem:[#allocation2 + $0x100] sm:$0xff]
  %v2911 = vld [vmem:[#allocation2 + $0x108] sm:$0xff]
  %v2912 = vld [vmem:[#allocation2 + $0x110] sm:$0xff]
  %v2913 = vld [vmem:[#allocation2 + $0x118] sm:$0xff]
  %v2914 = vld [vmem:[%s16] sm:$0xff]
  %2916 = vset.pattern.permute.xlu0 0
  %2917 = vperm.xlu0 %2916, %v2914
  %v2918 = vpop.permute.xlu0 %2917
  %v2921 = vsel %vm829, %v2877, 0
  %2923 = vmatprep.subr.mxu0 %v2879
  %2924 = vmatpush1.msra.mxu0 %v2878
  %2925 = vmatprep.subr.mxu0 %v2883
  %2926 = vmatpush1.msra.mxu0 %v2882
  %2927 = vmatprep.subr.mxu0 %v2887
  %2928 = vmatpush1.msra.mxu0 %v2886
  %2929 = vmatprep.subr.mxu0 %v2891
  %2930 = vmatpush1.msra.mxu0 %v2890
  %2931 = vmatprep.subr.mxu0 %v2895
  %2932 = vmatpush1.msra.mxu0 %v2894
  %2933 = vmatprep.subr.mxu0 %v2899
  %2934 = vmatpush1.msra.mxu0 %v2898
  %2935 = vmatprep.subr.mxu0 %v2903
  %2936 = vmatpush1.msra.mxu0 %v2902
  %2937 = vmatprep.subr.mxu0 %v2907
  %2938 = vmatpush1.msra.mxu0 %v2906
  %2939 = vmatprep.subr.mxu0 %v2911
  %2940 = vmatpush1.msra.mxu0 %v2910
  %2941 = vmatprep.subr.mxu0 0.0
  %2942 = vmatpush1.msra.mxu0 0.0
  %2943 = vmatprep.subr.mxu0 0.0
  %2944 = vmatpush1.msra.mxu0 0.0
  %2945 = vmatprep.subr.mxu0 0.0
  %2946 = vmatpush1.msra.mxu0 0.0
  %2947 = vmatprep.subr.mxu0 0.0
  %2948 = vmatpush1.msra.mxu0 0.0
  %2949 = vmatprep.subr.mxu0 0.0
  %2950 = vmatpush1.msra.mxu0 0.0
  %2951 = vmatprep.subr.mxu0 0.0
  %2952 = vmatpush1.msra.mxu0 0.0
  %2953 = vmatprep.subr.mxu0 0.0
  %2954 = vmatpush1.msra.mxu0 0.0
  %2955 = vmatprep.subr.mxu0 0.0
  %2956 = vmatpush1.msra.mxu0 0.0
  %2957 = vmatprep.subr.mxu0 0.0
  %2958 = vmatpush1.msra.mxu0 0.0
  %2959 = vmatprep.subr.mxu0 0.0
  %2960 = vmatpush1.msra.mxu0 0.0
  %2961 = vmatprep.subr.mxu0 0.0
  %2962 = vmatpush1.msra.mxu0 0.0
  %2963 = vmatprep.subr.mxu0 0.0
  %2964 = vmatpush1.msra.mxu0 0.0
  %2965 = vmatprep.subr.mxu0 0.0
  %2966 = vmatpush1.msra.mxu0 0.0
  %2967 = vmatprep.subr.mxu0 0.0
  %2968 = vmatpush1.msra.mxu0 0.0
  %2969 = vmatprep.subr.mxu0 0.0
  %2970 = vmatpush1.msra.mxu0 0.0
  %2971 = vmatprep.subr.mxu0 0.0
  %2972 = vmatpush1.msra.mxu0 0.0
  %2973 = vmatprep.subr.mxu0 0.0
  %2974 = vmatpush1.msra.mxu0 0.0
  %2975 = vmatprep.subr.mxu0 0.0
  %2976 = vmatpush1.msra.mxu0 0.0
  %2977 = vmatprep.subr.mxu0 0.0
  %2978 = vmatpush1.msra.mxu0 0.0
  %2979 = vmatprep.subr.mxu0 0.0
  %2980 = vmatpush1.msra.mxu0 0.0
  %2981 = vmatprep.subr.mxu0 0.0
  %2982 = vmatpush1.msra.mxu0 0.0
  %2983 = vmatprep.subr.mxu0 0.0
  %2984 = vmatpush1.msra.mxu0 0.0
  %2985 = vmatprep.subr.mxu0 0.0
  %2986 = vmatpush1.msra.mxu0 0.0
  %2987 = vmatprep.mubr.f32.mxu0 0.0
  %2988 = vmatmul.mubr.f32.gmra.mrb[0].mxu0 %v2921
  %v2989 = vpop.f32.mrb[0].mxu0
  %v2990 = vadd.f32 %v2918, %v2989
  %v2991 = vpop.f32.mrb[0].mxu0
  %v2992 = vadd.f32 %v2918, %v2991
  %2993 = vdwg.mxu0
  %2994 = vmatprep.subr.mxu0 %v2881
  %2995 = vmatpush1.msra.mxu0 %v2880
  %2996 = vmatprep.subr.mxu0 %v2885
  %2997 = vmatpush1.msra.mxu0 %v2884
  %2998 = vmatprep.subr.mxu0 %v2889
  %2999 = vmatpush1.msra.mxu0 %v2888
  %3000 = vmatprep.subr.mxu0 %v2893
  %3001 = vmatpush1.msra.mxu0 %v2892
  %3002 = vmatprep.subr.mxu0 %v2897
  %3003 = vmatpush1.msra.mxu0 %v2896
  %3004 = vmatprep.subr.mxu0 %v2901
  %3005 = vmatpush1.msra.mxu0 %v2900
  %3006 = vmatprep.subr.mxu0 %v2905
  %3007 = vmatpush1.msra.mxu0 %v2904
  %3008 = vmatprep.subr.mxu0 %v2909
  %3009 = vmatpush1.msra.mxu0 %v2908
  %3010 = vmatprep.subr.mxu0 %v2913
  %3011 = vmatpush1.msra.mxu0 %v2912
  %3012 = vmatprep.subr.mxu0 0.0
  %3013 = vmatpush1.msra.mxu0 0.0
  %3014 = vmatprep.subr.mxu0 0.0
  %3015 = vmatpush1.msra.mxu0 0.0
  %3016 = vmatprep.subr.mxu0 0.0
  %3017 = vmatpush1.msra.mxu0 0.0
  %3018 = vmatprep.subr.mxu0 0.0
  %3019 = vmatpush1.msra.mxu0 0.0
  %3020 = vmatprep.subr.mxu0 0.0
  %3021 = vmatpush1.msra.mxu0 0.0
  %3022 = vmatprep.subr.mxu0 0.0
  %3023 = vmatpush1.msra.mxu0 0.0
  %3024 = vmatprep.subr.mxu0 0.0
  %3025 = vmatpush1.msra.mxu0 0.0
  %3026 = vmatprep.subr.mxu0 0.0
  %3027 = vmatpush1.msra.mxu0 0.0
  %3028 = vmatprep.subr.mxu0 0.0
  %3029 = vmatpush1.msra.mxu0 0.0
  %3030 = vmatprep.subr.mxu0 0.0
  %3031 = vmatpush1.msra.mxu0 0.0
  %3032 = vmatprep.subr.mxu0 0.0
  %3033 = vmatpush1.msra.mxu0 0.0
  %3034 = vmatprep.subr.mxu0 0.0
  %3035 = vmatpush1.msra.mxu0 0.0
  %3036 = vmatprep.subr.mxu0 0.0
  %3037 = vmatpush1.msra.mxu0 0.0
  %3038 = vmatprep.subr.mxu0 0.0
  %3039 = vmatpush1.msra.mxu0 0.0
  %3040 = vmatprep.subr.mxu0 0.0
  %3041 = vmatpush1.msra.mxu0 0.0
  %3042 = vmatprep.subr.mxu0 0.0
  %3043 = vmatpush1.msra.mxu0 0.0
  %3044 = vmatprep.subr.mxu0 0.0
  %3045 = vmatpush1.msra.mxu0 0.0
  %3046 = vmatprep.subr.mxu0 0.0
  %3047 = vmatpush1.msra.mxu0 0.0
  %3048 = vmatprep.subr.mxu0 0.0
  %3049 = vmatpush1.msra.mxu0 0.0
  %3050 = vmatprep.subr.mxu0 0.0
  %3051 = vmatpush1.msra.mxu0 0.0
  %3052 = vmatprep.subr.mxu0 0.0
  %3053 = vmatpush1.msra.mxu0 0.0
  %3054 = vmatprep.subr.mxu0 0.0
  %3055 = vmatpush1.msra.mxu0 0.0
  %3056 = vmatprep.subr.mxu0 0.0
  %3057 = vmatpush1.msra.mxu0 0.0
  %3058 = vmatprep.mubr.f32.mxu0 0.0
  %3059 = vmatmul.mubr.f32.gmra.mrb[0].mxu0 %v2921
  %v3060 = vpop.f32.mrb[0].mxu0
  %v3061 = vadd.f32 %v2918, %v3060
  %v3062 = vpop.f32.mrb[0].mxu0
  %v3063 = vadd.f32 %v2918, %v3062
  %3064 = vdwg.mxu0
  %v3065 = vmax.f32 %v2990, 0.0
  %v3066 = vmax.f32 %v2992, 0.0
  %v3067 = vmax.f32 %v3061, 0.0
  %v3068 = vmax.f32 %v3063, 0.0
  %v3069 = vadd.f32 %v355, %v3065
  %v3070 = vadd.f32 %v356, %v3066
  %v3071 = vadd.f32 %v357, %v3067
  %v3072 = vadd.f32 %v358, %v3068
  %3073 = vrot.lane.b32.xlu0 %v3069, 51
  %v3074 = vpop.permute.xlu0 %3073
  %3075 = vrot.lane.b32.xlu0 %v3070, 51
  %v3076 = vpop.permute.xlu0 %3075
  %3077 = vrot.lane.b32.xlu0 %v3071, 51
  %v3078 = vpop.permute.xlu0 %3077
  %3079 = vrot.lane.b32.xlu0 %v3072, 51
  %v3080 = vpop.permute.xlu0 %3079
  %vm3081 = vcmp.lt.s32.totalorder %v525, 51
  %v3082 = vsel %vm3081, %v3078, %v3080
  %v3083 = vsel %vm3081, %v3076, %v3078
  %v3084 = vsel %vm3081, %v3074, %v3076
  %v3085 = vsel %vm3081, %v3080, %v3074
  %vm3086 = vcmp.ge.s32.totalorder %v94, 3
  %vm3087 = vcmp.ge.s32.totalorder %v98, 3
  %vm3088 = vcmp.ge.s32.totalorder %v102, 3
  %vm3089 = vcmp.ge.s32.totalorder %v106, 3
  %vm3090 = vcmp.ge.s32.totalorder %v111, 3
  %vm3091 = vcmp.ge.s32.totalorder %v115, 3
  %vm3092 = vcmp.ge.s32.totalorder %v119, 3
  %vm3093 = vcmp.ge.s32.totalorder %v123, 3
  %vm3094 = vmand %vm3086, %vm3090
  %vm3095 = vmand %vm3087, %vm3091
  %vm3096 = vmand %vm3088, %vm3092
  %vm3097 = vmand %vm3089, %vm3093
  %v3098 = vsel %vm3094, 1, 0
  %v3099 = vsel %vm3095, 1, 0
  %v3100 = vsel %vm3096, 1, 0
  %v3101 = vsel %vm3097, 1, 0
  %v3102 = vcvt.s32.f32 %v3098
  %v3103 = vcvt.s32.f32 %v3099
  %v3104 = vcvt.s32.f32 %v3100
  %v3105 = vcvt.s32.f32 %v3101
  %v3106 = vmul.f32 %v3085, %v3102
  %v3107 = vmul.f32 %v3084, %v3103
  %v3108 = vmul.f32 %v3083, %v3104
  %v3109 = vmul.f32 %v3082, %v3105
  %3110 = vst [vmem:[#allocation2] sm:$0xff] %v3106
  %3111 = vst [vmem:[#allocation2 + $0x8] sm:$0xff] %v3107
  %3112 = vst [vmem:[#allocation2 + $0x10] sm:$0xff] %v3108
  %3113 = vst [vmem:[#allocation2 + $0x18] sm:$0xff] %v3109
  %3114 = vrot.lane.b32.xlu0 %v3069, 50
  %v3115 = vpop.permute.xlu0 %3114
  %3116 = vrot.lane.b32.xlu0 %v3070, 50
  %v3117 = vpop.permute.xlu0 %3116
  %3118 = vrot.lane.b32.xlu0 %v3071, 50
  %v3119 = vpop.permute.xlu0 %3118
  %3120 = vrot.lane.b32.xlu0 %v3072, 50
  %v3121 = vpop.permute.xlu0 %3120
  %vm3122 = vcmp.lt.s32.totalorder %v525, 50
  %v3123 = vsel %vm3122, %v3119, %v3121
  %v3124 = vsel %vm3122, %v3117, %v3119
  %v3125 = vsel %vm3122, %v3115, %v3117
  %v3126 = vsel %vm3122, %v3121, %v3115
  %vm3127 = vmand %vm3086, %vm1356
  %vm3128 = vmand %vm3087, %vm1357
  %vm3129 = vmand %vm3088, %vm1358
  %vm3130 = vmand %vm3089, %vm1359
  %v3131 = vsel %vm3127, 1, 0
  %v3132 = vsel %vm3128, 1, 0
  %v3133 = vsel %vm3129, 1, 0
  %v3134 = vsel %vm3130, 1, 0
  %v3135 = vcvt.s32.f32 %v3131
  %v3136 = vcvt.s32.f32 %v3132
  %v3137 = vcvt.s32.f32 %v3133
  %v3138 = vcvt.s32.f32 %v3134
  %v3139 = vmul.f32 %v3126, %v3135
  %v3140 = vmul.f32 %v3125, %v3136
  %v3141 = vmul.f32 %v3124, %v3137
  %v3142 = vmul.f32 %v3123, %v3138
  %3143 = vst [vmem:[#allocation2 + $0x20] sm:$0xff] %v3139
  %3144 = vst [vmem:[#allocation2 + $0x28] sm:$0xff] %v3140
  %3145 = vst [vmem:[#allocation2 + $0x30] sm:$0xff] %v3141
  %3146 = vst [vmem:[#allocation2 + $0x38] sm:$0xff] %v3142
  %3147 = vrot.lane.b32.xlu0 %v3069, 49
  %v3148 = vpop.permute.xlu0 %3147
  %3149 = vrot.lane.b32.xlu0 %v3070, 49
  %v3150 = vpop.permute.xlu0 %3149
  %3151 = vrot.lane.b32.xlu0 %v3071, 49
  %v3152 = vpop.permute.xlu0 %3151
  %3153 = vrot.lane.b32.xlu0 %v3072, 49
  %v3154 = vpop.permute.xlu0 %3153
  %vm3155 = vcmp.lt.s32.totalorder %v525, 49
  %v3156 = vsel %vm3155, %v3152, %v3154
  %v3157 = vsel %vm3155, %v3150, %v3152
  %v3158 = vsel %vm3155, %v3148, %v3150
  %v3159 = vsel %vm3155, %v3154, %v3148
  %vm3160 = vmand %vm3086, %vm535
  %vm3161 = vmand %vm3087, %vm536
  %vm3162 = vmand %vm3088, %vm537
  %vm3163 = vmand %vm3089, %vm538
  %v3164 = vsel %vm3160, 1, 0
  %v3165 = vsel %vm3161, 1, 0
  %v3166 = vsel %vm3162, 1, 0
  %v3167 = vsel %vm3163, 1, 0
  %v3168 = vcvt.s32.f32 %v3164
  %v3169 = vcvt.s32.f32 %v3165
  %v3170 = vcvt.s32.f32 %v3166
  %v3171 = vcvt.s32.f32 %v3167
  %v3172 = vmul.f32 %v3159, %v3168
  %v3173 = vmul.f32 %v3158, %v3169
  %v3174 = vmul.f32 %v3157, %v3170
  %v3175 = vmul.f32 %v3156, %v3171
  %3176 = vst [vmem:[#allocation2 + $0x40] sm:$0xff] %v3172
  %3177 = vst [vmem:[#allocation2 + $0x48] sm:$0xff] %v3173
  %3178 = vst [vmem:[#allocation2 + $0x50] sm:$0xff] %v3174
  %3179 = vst [vmem:[#allocation2 + $0x58] sm:$0xff] %v3175
  %3180 = vrot.lane.b32.xlu0 %v3069, 48
  %v3181 = vpop.permute.xlu0 %3180
  %3182 = vrot.lane.b32.xlu0 %v3070, 48
  %v3183 = vpop.permute.xlu0 %3182
  %3184 = vrot.lane.b32.xlu0 %v3071, 48
  %v3185 = vpop.permute.xlu0 %3184
  %3186 = vrot.lane.b32.xlu0 %v3072, 48
  %v3187 = vpop.permute.xlu0 %3186
  %vm3188 = vcmp.lt.s32.totalorder %v525, 48
  %v3189 = vsel %vm3188, %v3185, %v3187
  %v3190 = vsel %vm3188, %v3183, %v3185
  %v3191 = vsel %vm3188, %v3181, %v3183
  %v3192 = vsel %vm3188, %v3187, %v3181
  %v3193 = vsel %vm3086, 1, 0
  %v3194 = vsel %vm3087, 1, 0
  %v3195 = vsel %vm3088, 1, 0
  %v3196 = vsel %vm3089, 1, 0
  %v3197 = vcvt.s32.f32 %v3193
  %v3198 = vcvt.s32.f32 %v3194
  %v3199 = vcvt.s32.f32 %v3195
  %v3200 = vcvt.s32.f32 %v3196
  %v3201 = vmul.f32 %v3192, %v3197
  %v3202 = vmul.f32 %v3191, %v3198
  %v3203 = vmul.f32 %v3190, %v3199
  %v3204 = vmul.f32 %v3189, %v3200
  %3205 = vst [vmem:[#allocation2 + $0x60] sm:$0xff] %v3201
  %3206 = vst [vmem:[#allocation2 + $0x68] sm:$0xff] %v3202
  %3207 = vst [vmem:[#allocation2 + $0x70] sm:$0xff] %v3203
  %3208 = vst [vmem:[#allocation2 + $0x78] sm:$0xff] %v3204
  %3209 = vrot.lane.b32.xlu0 %v3069, 47
  %v3210 = vpop.permute.xlu0 %3209
  %3211 = vrot.lane.b32.xlu0 %v3070, 47
  %v3212 = vpop.permute.xlu0 %3211
  %3213 = vrot.lane.b32.xlu0 %v3071, 47
  %v3214 = vpop.permute.xlu0 %3213
  %3215 = vrot.lane.b32.xlu0 %v3072, 47
  %v3216 = vpop.permute.xlu0 %3215
  %vm3217 = vcmp.lt.s32.totalorder %v525, 47
  %v3218 = vsel %vm3217, %v3214, %v3216
  %v3219 = vsel %vm3217, %v3212, %v3214
  %v3220 = vsel %vm3217, %v3210, %v3212
  %v3221 = vsel %vm3217, %v3216, %v3210
  %vm3222 = vmand %vm3086, %vm601
  %vm3223 = vmand %vm3087, %vm602
  %vm3224 = vmand %vm3088, %vm603
  %vm3225 = vmand %vm3089, %vm604
  %v3226 = vsel %vm3222, 1, 0
  %v3227 = vsel %vm3223, 1, 0
  %v3228 = vsel %vm3224, 1, 0
  %v3229 = vsel %vm3225, 1, 0
  %v3230 = vcvt.s32.f32 %v3226
  %v3231 = vcvt.s32.f32 %v3227
  %v3232 = vcvt.s32.f32 %v3228
  %v3233 = vcvt.s32.f32 %v3229
  %v3234 = vmul.f32 %v3221, %v3230
  %v3235 = vmul.f32 %v3220, %v3231
  %v3236 = vmul.f32 %v3219, %v3232
  %v3237 = vmul.f32 %v3218, %v3233
  %3238 = vst [vmem:[#allocation2 + $0x80] sm:$0xff] %v3234
  %3239 = vst [vmem:[#allocation2 + $0x88] sm:$0xff] %v3235
  %3240 = vst [vmem:[#allocation2 + $0x90] sm:$0xff] %v3236
  %3241 = vst [vmem:[#allocation2 + $0x98] sm:$0xff] %v3237
  %3242 = vrot.lane.b32.xlu0 %v3069, 46
  %v3243 = vpop.permute.xlu0 %3242
  %3244 = vrot.lane.b32.xlu0 %v3070, 46
  %v3245 = vpop.permute.xlu0 %3244
  %3246 = vrot.lane.b32.xlu0 %v3071, 46
  %v3247 = vpop.permute.xlu0 %3246
  %3248 = vrot.lane.b32.xlu0 %v3072, 46
  %v3249 = vpop.permute.xlu0 %3248
  %vm3250 = vcmp.lt.s32.totalorder %v525, 46
  %v3251 = vsel %vm3250, %v3247, %v3249
  %v3252 = vsel %vm3250, %v3245, %v3247
  %v3253 = vsel %vm3250, %v3243, %v3245
  %v3254 = vsel %vm3250, %v3249, %v3243
  %vm3255 = vmand %vm3086, %vm1422
  %vm3256 = vmand %vm3087, %vm1423
  %vm3257 = vmand %vm3088, %vm1424
  %vm3258 = vmand %vm3089, %vm1425
  %v3259 = vsel %vm3255, 1, 0
  %v3260 = vsel %vm3256, 1, 0
  %v3261 = vsel %vm3257, 1, 0
  %v3262 = vsel %vm3258, 1, 0
  %v3263 = vcvt.s32.f32 %v3259
  %v3264 = vcvt.s32.f32 %v3260
  %v3265 = vcvt.s32.f32 %v3261
  %v3266 = vcvt.s32.f32 %v3262
  %v3267 = vmul.f32 %v3254, %v3263
  %v3268 = vmul.f32 %v3253, %v3264
  %v3269 = vmul.f32 %v3252, %v3265
  %v3270 = vmul.f32 %v3251, %v3266
  %3271 = vst [vmem:[#allocation2 + $0xa0] sm:$0xff] %v3267
  %3272 = vst [vmem:[#allocation2 + $0xa8] sm:$0xff] %v3268
  %3273 = vst [vmem:[#allocation2 + $0xb0] sm:$0xff] %v3269
  %3274 = vst [vmem:[#allocation2 + $0xb8] sm:$0xff] %v3270
  %3275 = vrot.lane.b32.xlu0 %v3069, 45
  %v3276 = vpop.permute.xlu0 %3275
  %3277 = vrot.lane.b32.xlu0 %v3070, 45
  %v3278 = vpop.permute.xlu0 %3277
  %3279 = vrot.lane.b32.xlu0 %v3071, 45
  %v3280 = vpop.permute.xlu0 %3279
  %3281 = vrot.lane.b32.xlu0 %v3072, 45
  %v3282 = vpop.permute.xlu0 %3281
  %vm3283 = vcmp.lt.s32.totalorder %v525, 45
  %v3284 = vsel %vm3283, %v3280, %v3282
  %v3285 = vsel %vm3283, %v3278, %v3280
  %v3286 = vsel %vm3283, %v3276, %v3278
  %v3287 = vsel %vm3283, %v3282, %v3276
  %vm3288 = vcmp.lt.s32.totalorder %v111, 13
  %vm3289 = vcmp.lt.s32.totalorder %v115, 13
  %vm3290 = vcmp.lt.s32.totalorder %v119, 13
  %vm3291 = vcmp.lt.s32.totalorder %v123, 13
  %vm3292 = vmand %vm3086, %vm3288
  %vm3293 = vmand %vm3087, %vm3289
  %vm3294 = vmand %vm3088, %vm3290
  %vm3295 = vmand %vm3089, %vm3291
  %v3296 = vsel %vm3292, 1, 0
  %v3297 = vsel %vm3293, 1, 0
  %v3298 = vsel %vm3294, 1, 0
  %v3299 = vsel %vm3295, 1, 0
  %v3300 = vcvt.s32.f32 %v3296
  %v3301 = vcvt.s32.f32 %v3297
  %v3302 = vcvt.s32.f32 %v3298
  %v3303 = vcvt.s32.f32 %v3299
  %v3304 = vmul.f32 %v3287, %v3300
  %v3305 = vmul.f32 %v3286, %v3301
  %v3306 = vmul.f32 %v3285, %v3302
  %v3307 = vmul.f32 %v3284, %v3303
  %3308 = vst [vmem:[#allocation2 + $0xc0] sm:$0xff] %v3304
  %3309 = vst [vmem:[#allocation2 + $0xc8] sm:$0xff] %v3305
  %3310 = vst [vmem:[#allocation2 + $0xd0] sm:$0xff] %v3306
  %3311 = vst [vmem:[#allocation2 + $0xd8] sm:$0xff] %v3307
  %3312 = vrot.lane.b32.xlu0 %v3069, 35
  %v3313 = vpop.permute.xlu0 %3312
  %3314 = vrot.lane.b32.xlu0 %v3070, 35
  %v3315 = vpop.permute.xlu0 %3314
  %3316 = vrot.lane.b32.xlu0 %v3071, 35
  %v3317 = vpop.permute.xlu0 %3316
  %3318 = vrot.lane.b32.xlu0 %v3072, 35
  %v3319 = vpop.permute.xlu0 %3318
  %vm3320 = vcmp.lt.s32.totalorder %v525, 35
  %v3321 = vsel %vm3320, %v3317, %v3319
  %v3322 = vsel %vm3320, %v3315, %v3317
  %v3323 = vsel %vm3320, %v3313, %v3315
  %v3324 = vsel %vm3320, %v3319, %v3313
  %vm3325 = vmand %vm1352, %vm3090
  %vm3326 = vmand %vm1353, %vm3091
  %vm3327 = vmand %vm1354, %vm3092
  %vm3328 = vmand %vm1355, %vm3093
  %v3329 = vsel %vm3325, 1, 0
  %v3330 = vsel %vm3326, 1, 0
  %v3331 = vsel %vm3327, 1, 0
  %v3332 = vsel %vm3328, 1, 0
  %v3333 = vcvt.s32.f32 %v3329
  %v3334 = vcvt.s32.f32 %v3330
  %v3335 = vcvt.s32.f32 %v3331
  %v3336 = vcvt.s32.f32 %v3332
  %v3337 = vmul.f32 %v3324, %v3333
  %v3338 = vmul.f32 %v3323, %v3334
  %v3339 = vmul.f32 %v3322, %v3335
  %v3340 = vmul.f32 %v3321, %v3336
  %3341 = vst [vmem:[#allocation2 + $0xe0] sm:$0xff] %v3337
  %3342 = vst [vmem:[#allocation2 + $0xe8] sm:$0xff] %v3338
  %3343 = vst [vmem:[#allocation2 + $0xf0] sm:$0xff] %v3339
  %3344 = vst [vmem:[#allocation2 + $0xf8] sm:$0xff] %v3340
  %3345 = vrot.lane.b32.xlu0 %v3069, 34
  %v3346 = vpop.permute.xlu0 %3345
  %3347 = vrot.lane.b32.xlu0 %v3070, 34
  %v3348 = vpop.permute.xlu0 %3347
  %3349 = vrot.lane.b32.xlu0 %v3071, 34
  %v3350 = vpop.permute.xlu0 %3349
  %3351 = vrot.lane.b32.xlu0 %v3072, 34
  %v3352 = vpop.permute.xlu0 %3351
  %v3353 = vsel %vm1347, %v3350, %v3352
  %v3354 = vsel %vm1347, %v3348, %v3350
  %v3355 = vsel %vm1347, %v3346, %v3348
  %v3356 = vsel %vm1347, %v3352, %v3346
  %v3357 = vmul.f32 %v3356, %v1368
  %v3358 = vmul.f32 %v3355, %v1369
  %v3359 = vmul.f32 %v3354, %v1370
  %v3360 = vmul.f32 %v3353, %v1371
  %3361 = vst [vmem:[#allocation2 + $0x100] sm:$0xff] %v3357
  %3362 = vst [vmem:[#allocation2 + $0x108] sm:$0xff] %v3358
  %3363 = vst [vmem:[#allocation2 + $0x110] sm:$0xff] %v3359
  %3364 = vst [vmem:[#allocation2 + $0x118] sm:$0xff] %v3360
  %3365 = vrot.lane.b32.xlu0 %v3069, 33
  %v3366 = vpop.permute.xlu0 %3365
  %3367 = vrot.lane.b32.xlu0 %v3070, 33
  %v3368 = vpop.permute.xlu0 %3367
  %3369 = vrot.lane.b32.xlu0 %v3071, 33
  %v3370 = vpop.permute.xlu0 %3369
  %3371 = vrot.lane.b32.xlu0 %v3072, 33
  %v3372 = vpop.permute.xlu0 %3371
  %v3373 = vsel %vm1831, %v3370, %v3372
  %v3374 = vsel %vm1831, %v3368, %v3370
  %v3375 = vsel %vm1831, %v3366, %v3368
  %v3376 = vsel %vm1831, %v3372, %v3366
  %v3377 = vmul.f32 %v3376, %v1844
  %v3378 = vmul.f32 %v3375, %v1845
  %v3379 = vmul.f32 %v3374, %v1846
  %v3380 = vmul.f32 %v3373, %v1847
  %3381 = vst [vmem:[#allocation2 + $0x120] sm:$0xff] %v3377
  %3382 = vst [vmem:[#allocation2 + $0x128] sm:$0xff] %v3378
  %3383 = vst [vmem:[#allocation2 + $0x130] sm:$0xff] %v3379
  %3384 = vst [vmem:[#allocation2 + $0x138] sm:$0xff] %v3380
  %3385 = vrot.lane.b32.xlu0 %v3069, 32
  %v3386 = vpop.permute.xlu0 %3385
  %3387 = vrot.lane.b32.xlu0 %v3070, 32
  %v3388 = vpop.permute.xlu0 %3387
  %3389 = vrot.lane.b32.xlu0 %v3071, 32
  %v3390 = vpop.permute.xlu0 %3389
  %3391 = vrot.lane.b32.xlu0 %v3072, 32
  %v3392 = vpop.permute.xlu0 %3391
  %v3393 = vsel %vm1388, %v3390, %v3392
  %v3394 = vsel %vm1388, %v3388, %v3390
  %v3395 = vsel %vm1388, %v3386, %v3388
  %v3396 = vsel %vm1388, %v3392, %v3386
  %v3397 = vmul.f32 %v3396, %v1397
  %v3398 = vmul.f32 %v3395, %v1398
  %v3399 = vmul.f32 %v3394, %v1399
  %v3400 = vmul.f32 %v3393, %v1400
  %3401 = vst [vmem:[#allocation2 + $0x140] sm:$0xff] %v3397
  %3402 = vst [vmem:[#allocation2 + $0x148] sm:$0xff] %v3398
  %3403 = vst [vmem:[#allocation2 + $0x150] sm:$0xff] %v3399
  %3404 = vst [vmem:[#allocation2 + $0x158] sm:$0xff] %v3400
  %3405 = vrot.lane.b32.xlu0 %v3069, 31
  %v3406 = vpop.permute.xlu0 %3405
  %3407 = vrot.lane.b32.xlu0 %v3070, 31
  %v3408 = vpop.permute.xlu0 %3407
  %3409 = vrot.lane.b32.xlu0 %v3071, 31
  %v3410 = vpop.permute.xlu0 %3409
  %3411 = vrot.lane.b32.xlu0 %v3072, 31
  %v3412 = vpop.permute.xlu0 %3411
  %v3413 = vsel %vm1884, %v3410, %v3412
  %v3414 = vsel %vm1884, %v3408, %v3410
  %v3415 = vsel %vm1884, %v3406, %v3408
  %v3416 = vsel %vm1884, %v3412, %v3406
  %v3417 = vmul.f32 %v3416, %v1897
  %v3418 = vmul.f32 %v3415, %v1898
  %v3419 = vmul.f32 %v3414, %v1899
  %v3420 = vmul.f32 %v3413, %v1900
  %3421 = vst [vmem:[#allocation2 + $0x160] sm:$0xff] %v3417
  %3422 = vst [vmem:[#allocation2 + $0x168] sm:$0xff] %v3418
  %3423 = vst [vmem:[#allocation2 + $0x170] sm:$0xff] %v3419
  %3424 = vst [vmem:[#allocation2 + $0x178] sm:$0xff] %v3420
  %3425 = vrot.lane.b32.xlu0 %v3069, 30
  %v3426 = vpop.permute.xlu0 %3425
  %3427 = vrot.lane.b32.xlu0 %v3070, 30
  %v3428 = vpop.permute.xlu0 %3427
  %3429 = vrot.lane.b32.xlu0 %v3071, 30
  %v3430 = vpop.permute.xlu0 %3429
  %3431 = vrot.lane.b32.xlu0 %v3072, 30
  %v3432 = vpop.permute.xlu0 %3431
  %v3433 = vsel %vm1417, %v3430, %v3432
  %v3434 = vsel %vm1417, %v3428, %v3430
  %v3435 = vsel %vm1417, %v3426, %v3428
  %v3436 = vsel %vm1417, %v3432, %v3426
  %v3437 = vmul.f32 %v3436, %v1434
  %v3438 = vmul.f32 %v3435, %v1435
  %v3439 = vmul.f32 %v3434, %v1436
  %v3440 = vmul.f32 %v3433, %v1437
  %3441 = vst [vmem:[#allocation2 + $0x180] sm:$0xff] %v3437
  %3442 = vst [vmem:[#allocation2 + $0x188] sm:$0xff] %v3438
  %3443 = vst [vmem:[#allocation2 + $0x190] sm:$0xff] %v3439
  %3444 = vst [vmem:[#allocation2 + $0x198] sm:$0xff] %v3440
  %3445 = vrot.lane.b32.xlu0 %v3069, 29
  %v3446 = vpop.permute.xlu0 %3445
  %3447 = vrot.lane.b32.xlu0 %v3070, 29
  %v3448 = vpop.permute.xlu0 %3447
  %3449 = vrot.lane.b32.xlu0 %v3071, 29
  %v3450 = vpop.permute.xlu0 %3449
  %3451 = vrot.lane.b32.xlu0 %v3072, 29
  %v3452 = vpop.permute.xlu0 %3451
  %vm3453 = vcmp.lt.s32.totalorder %v525, 29
  %v3454 = vsel %vm3453, %v3450, %v3452
  %v3455 = vsel %vm3453, %v3448, %v3450
  %v3456 = vsel %vm3453, %v3446, %v3448
  %v3457 = vsel %vm3453, %v3452, %v3446
  %vm3458 = vmand %vm1352, %vm3288
  %vm3459 = vmand %vm1353, %vm3289
  %vm3460 = vmand %vm1354, %vm3290
  %vm3461 = vmand %vm1355, %vm3291
  %v3462 = vsel %vm3458, 1, 0
  %v3463 = vsel %vm3459, 1, 0
  %v3464 = vsel %vm3460, 1, 0
  %v3465 = vsel %vm3461, 1, 0
  %v3466 = vcvt.s32.f32 %v3462
  %v3467 = vcvt.s32.f32 %v3463
  %v3468 = vcvt.s32.f32 %v3464
  %v3469 = vcvt.s32.f32 %v3465
  %v3470 = vmul.f32 %v3457, %v3466
  %v3471 = vmul.f32 %v3456, %v3467
  %v3472 = vmul.f32 %v3455, %v3468
  %v3473 = vmul.f32 %v3454, %v3469
  %3474 = vst [vmem:[#allocation2 + $0x1a0] sm:$0xff] %v3470
  %3475 = vst [vmem:[#allocation2 + $0x1a8] sm:$0xff] %v3471
  %3476 = vst [vmem:[#allocation2 + $0x1b0] sm:$0xff] %v3472
  %3477 = vst [vmem:[#allocation2 + $0x1b8] sm:$0xff] %v3473
  %3478 = vrot.lane.b32.xlu0 %v3069, 19
  %v3479 = vpop.permute.xlu0 %3478
  %3480 = vrot.lane.b32.xlu0 %v3070, 19
  %v3481 = vpop.permute.xlu0 %3480
  %3482 = vrot.lane.b32.xlu0 %v3071, 19
  %v3483 = vpop.permute.xlu0 %3482
  %3484 = vrot.lane.b32.xlu0 %v3072, 19
  %v3485 = vpop.permute.xlu0 %3484
  %vm3486 = vcmp.lt.s32.totalorder %v525, 19
  %v3487 = vsel %vm3486, %v3483, %v3485
  %v3488 = vsel %vm3486, %v3481, %v3483
  %v3489 = vsel %vm3486, %v3479, %v3481
  %v3490 = vsel %vm3486, %v3485, %v3479
  %vm3491 = vmand %vm531, %vm3090
  %vm3492 = vmand %vm532, %vm3091
  %vm3493 = vmand %vm533, %vm3092
  %vm3494 = vmand %vm534, %vm3093
  %v3495 = vsel %vm3491, 1, 0
  %v3496 = vsel %vm3492, 1, 0
  %v3497 = vsel %vm3493, 1, 0
  %v3498 = vsel %vm3494, 1, 0
  %v3499 = vcvt.s32.f32 %v3495
  %v3500 = vcvt.s32.f32 %v3496
  %v3501 = vcvt.s32.f32 %v3497
  %v3502 = vcvt.s32.f32 %v3498
  %v3503 = vmul.f32 %v3490, %v3499
  %v3504 = vmul.f32 %v3489, %v3500
  %v3505 = vmul.f32 %v3488, %v3501
  %v3506 = vmul.f32 %v3487, %v3502
  %3507 = vst [vmem:[#allocation2 + $0x1c0] sm:$0xff] %v3503
  %3508 = vst [vmem:[#allocation2 + $0x1c8] sm:$0xff] %v3504
  %3509 = vst [vmem:[#allocation2 + $0x1d0] sm:$0xff] %v3505
  %3510 = vst [vmem:[#allocation2 + $0x1d8] sm:$0xff] %v3506
  %3511 = vrot.lane.b32.xlu0 %v3069, 18
  %v3512 = vpop.permute.xlu0 %3511
  %3513 = vrot.lane.b32.xlu0 %v3070, 18
  %v3514 = vpop.permute.xlu0 %3513
  %3515 = vrot.lane.b32.xlu0 %v3071, 18
  %v3516 = vpop.permute.xlu0 %3515
  %3517 = vrot.lane.b32.xlu0 %v3072, 18
  %v3518 = vpop.permute.xlu0 %3517
  %v3519 = vsel %vm1937, %v3516, %v3518
  %v3520 = vsel %vm1937, %v3514, %v3516
  %v3521 = vsel %vm1937, %v3512, %v3514
  %v3522 = vsel %vm1937, %v3518, %v3512
  %v3523 = vmul.f32 %v3522, %v1950
  %v3524 = vmul.f32 %v3521, %v1951
  %v3525 = vmul.f32 %v3520, %v1952
  %v3526 = vmul.f32 %v3519, %v1953
  %3527 = vst [vmem:[#allocation2 + $0x1e0] sm:$0xff] %v3523
  %3528 = vst [vmem:[#allocation2 + $0x1e8] sm:$0xff] %v3524
  %3529 = vst [vmem:[#allocation2 + $0x1f0] sm:$0xff] %v3525
  %3530 = vst [vmem:[#allocation2 + $0x1f8] sm:$0xff] %v3526
  %3531 = vrot.lane.b32.xlu0 %v3069, 17
  %v3532 = vpop.permute.xlu0 %3531
  %3533 = vrot.lane.b32.xlu0 %v3070, 17
  %v3534 = vpop.permute.xlu0 %3533
  %3535 = vrot.lane.b32.xlu0 %v3071, 17
  %v3536 = vpop.permute.xlu0 %3535
  %3537 = vrot.lane.b32.xlu0 %v3072, 17
  %v3538 = vpop.permute.xlu0 %3537
  %v3539 = vsel %vm526, %v3536, %v3538
  %v3540 = vsel %vm526, %v3534, %v3536
  %v3541 = vsel %vm526, %v3532, %v3534
  %v3542 = vsel %vm526, %v3538, %v3532
  %v3543 = vmul.f32 %v3542, %v547
  %v3544 = vmul.f32 %v3541, %v548
  %v3545 = vmul.f32 %v3540, %v549
  %v3546 = vmul.f32 %v3539, %v550
  %3547 = vst [vmem:[#allocation2 + $0x200] sm:$0xff] %v3543
  %3548 = vst [vmem:[#allocation2 + $0x208] sm:$0xff] %v3544
  %3549 = vst [vmem:[#allocation2 + $0x210] sm:$0xff] %v3545
  %3550 = vst [vmem:[#allocation2 + $0x218] sm:$0xff] %v3546
  %3551 = vrot.lane.b32.xlu0 %v3069, 16
  %v3552 = vpop.permute.xlu0 %3551
  %3553 = vrot.lane.b32.xlu0 %v3070, 16
  %v3554 = vpop.permute.xlu0 %3553
  %3555 = vrot.lane.b32.xlu0 %v3071, 16
  %v3556 = vpop.permute.xlu0 %3555
  %3557 = vrot.lane.b32.xlu0 %v3072, 16
  %v3558 = vpop.permute.xlu0 %3557
  %v3559 = vsel %vm567, %v3556, %v3558
  %v3560 = vsel %vm567, %v3554, %v3556
  %v3561 = vsel %vm567, %v3552, %v3554
  %v3562 = vsel %vm567, %v3558, %v3552
  %v3563 = vmul.f32 %v3562, %v576
  %v3564 = vmul.f32 %v3561, %v577
  %v3565 = vmul.f32 %v3560, %v578
  %v3566 = vmul.f32 %v3559, %v579
  %3567 = vst [vmem:[#allocation2 + $0x220] sm:$0xff] %v3563
  %3568 = vst [vmem:[#allocation2 + $0x228] sm:$0xff] %v3564
  %3569 = vst [vmem:[#allocation2 + $0x230] sm:$0xff] %v3565
  %3570 = vst [vmem:[#allocation2 + $0x238] sm:$0xff] %v3566
  %3571 = vrot.lane.b32.xlu0 %v3069, 15
  %v3572 = vpop.permute.xlu0 %3571
  %3573 = vrot.lane.b32.xlu0 %v3070, 15
  %v3574 = vpop.permute.xlu0 %3573
  %3575 = vrot.lane.b32.xlu0 %v3071, 15
  %v3576 = vpop.permute.xlu0 %3575
  %3577 = vrot.lane.b32.xlu0 %v3072, 15
  %v3578 = vpop.permute.xlu0 %3577
  %v3579 = vsel %vm596, %v3576, %v3578
  %v3580 = vsel %vm596, %v3574, %v3576
  %v3581 = vsel %vm596, %v3572, %v3574
  %v3582 = vsel %vm596, %v3578, %v3572
  %v3583 = vmul.f32 %v3582, %v613
  %v3584 = vmul.f32 %v3581, %v614
  %v3585 = vmul.f32 %v3580, %v615
  %v3586 = vmul.f32 %v3579, %v616
  %3587 = vst [vmem:[#allocation2 + $0x240] sm:$0xff] %v3583
  %3588 = vst [vmem:[#allocation2 + $0x248] sm:$0xff] %v3584
  %3589 = vst [vmem:[#allocation2 + $0x250] sm:$0xff] %v3585
  %3590 = vst [vmem:[#allocation2 + $0x258] sm:$0xff] %v3586
  %3591 = vrot.lane.b32.xlu0 %v3069, 14
  %v3592 = vpop.permute.xlu0 %3591
  %3593 = vrot.lane.b32.xlu0 %v3070, 14
  %v3594 = vpop.permute.xlu0 %3593
  %3595 = vrot.lane.b32.xlu0 %v3071, 14
  %v3596 = vpop.permute.xlu0 %3595
  %3597 = vrot.lane.b32.xlu0 %v3072, 14
  %v3598 = vpop.permute.xlu0 %3597
  %v3599 = vsel %vm2030, %v3596, %v3598
  %v3600 = vsel %vm2030, %v3594, %v3596
  %v3601 = vsel %vm2030, %v3592, %v3594
  %v3602 = vsel %vm2030, %v3598, %v3592
  %v3603 = vmul.f32 %v3602, %v2043
  %v3604 = vmul.f32 %v3601, %v2044
  %v3605 = vmul.f32 %v3600, %v2045
  %v3606 = vmul.f32 %v3599, %v2046
  %3607 = vst [vmem:[#allocation2 + $0x260] sm:$0xff] %v3603
  %3608 = vst [vmem:[#allocation2 + $0x268] sm:$0xff] %v3604
  %3609 = vst [vmem:[#allocation2 + $0x270] sm:$0xff] %v3605
  %3610 = vst [vmem:[#allocation2 + $0x278] sm:$0xff] %v3606
  %3611 = vrot.lane.b32.xlu0 %v3069, 13
  %v3612 = vpop.permute.xlu0 %3611
  %3613 = vrot.lane.b32.xlu0 %v3070, 13
  %v3614 = vpop.permute.xlu0 %3613
  %3615 = vrot.lane.b32.xlu0 %v3071, 13
  %v3616 = vpop.permute.xlu0 %3615
  %3617 = vrot.lane.b32.xlu0 %v3072, 13
  %v3618 = vpop.permute.xlu0 %3617
  %vm3619 = vcmp.lt.s32.totalorder %v525, 13
  %v3620 = vsel %vm3619, %v3616, %v3618
  %v3621 = vsel %vm3619, %v3614, %v3616
  %v3622 = vsel %vm3619, %v3612, %v3614
  %v3623 = vsel %vm3619, %v3618, %v3612
  %vm3624 = vmand %vm531, %vm3288
  %vm3625 = vmand %vm532, %vm3289
  %vm3626 = vmand %vm533, %vm3290
  %vm3627 = vmand %vm534, %vm3291
  %v3628 = vsel %vm3624, 1, 0
  %v3629 = vsel %vm3625, 1, 0
  %v3630 = vsel %vm3626, 1, 0
  %v3631 = vsel %vm3627, 1, 0
  %v3632 = vcvt.s32.f32 %v3628
  %v3633 = vcvt.s32.f32 %v3629
  %v3634 = vcvt.s32.f32 %v3630
  %v3635 = vcvt.s32.f32 %v3631
  %v3636 = vmul.f32 %v3623, %v3632
  %v3637 = vmul.f32 %v3622, %v3633
  %v3638 = vmul.f32 %v3621, %v3634
  %v3639 = vmul.f32 %v3620, %v3635
  %3640 = vst [vmem:[#allocation2 + $0x280] sm:$0xff] %v3636
  %3641 = vst [vmem:[#allocation2 + $0x288] sm:$0xff] %v3637
  %3642 = vst [vmem:[#allocation2 + $0x290] sm:$0xff] %v3638
  %3643 = vst [vmem:[#allocation2 + $0x298] sm:$0xff] %v3639
  %3644 = vrot.lane.b32.xlu0 %v3069, 3
  %v3645 = vpop.permute.xlu0 %3644
  %3646 = vrot.lane.b32.xlu0 %v3070, 3
  %v3647 = vpop.permute.xlu0 %3646
  %3648 = vrot.lane.b32.xlu0 %v3071, 3
  %v3649 = vpop.permute.xlu0 %3648
  %3650 = vrot.lane.b32.xlu0 %v3072, 3
  %v3651 = vpop.permute.xlu0 %3650
  %vm3652 = vcmp.lt.s32.totalorder %v525, 3
  %v3653 = vsel %vm3652, %v3649, %v3651
  %v3654 = vsel %vm3652, %v3647, %v3649
  %v3655 = vsel %vm3652, %v3645, %v3647
  %v3656 = vsel %vm3652, %v3651, %v3645
  %v3657 = vsel %vm3090, 1, 0
  %v3658 = vsel %vm3091, 1, 0
  %v3659 = vsel %vm3092, 1, 0
  %v3660 = vsel %vm3093, 1, 0
  %v3661 = vcvt.s32.f32 %v3657
  %v3662 = vcvt.s32.f32 %v3658
  %v3663 = vcvt.s32.f32 %v3659
  %v3664 = vcvt.s32.f32 %v3660
  %v3665 = vmul.f32 %v3656, %v3661
  %v3666 = vmul.f32 %v3655, %v3662
  %v3667 = vmul.f32 %v3654, %v3663
  %v3668 = vmul.f32 %v3653, %v3664
  %3669 = vst [vmem:[#allocation2 + $0x2a0] sm:$0xff] %v3665
  %3670 = vst [vmem:[#allocation2 + $0x2a8] sm:$0xff] %v3666
  %3671 = vst [vmem:[#allocation2 + $0x2b0] sm:$0xff] %v3667
  %3672 = vst [vmem:[#allocation2 + $0x2b8] sm:$0xff] %v3668
  %3673 = vrot.lane.b32.xlu0 %v3069, 2
  %v3674 = vpop.permute.xlu0 %3673
  %3675 = vrot.lane.b32.xlu0 %v3070, 2
  %v3676 = vpop.permute.xlu0 %3675
  %3677 = vrot.lane.b32.xlu0 %v3071, 2
  %v3678 = vpop.permute.xlu0 %3677
  %3679 = vrot.lane.b32.xlu0 %v3072, 2
  %v3680 = vpop.permute.xlu0 %3679
  %v3681 = vsel %vm1454, %v3678, %v3680
  %v3682 = vsel %vm1454, %v3676, %v3678
  %v3683 = vsel %vm1454, %v3674, %v3676
  %v3684 = vsel %vm1454, %v3680, %v3674
  %v3685 = vmul.f32 %v3684, %v1463
  %v3686 = vmul.f32 %v3683, %v1464
  %v3687 = vmul.f32 %v3682, %v1465
  %v3688 = vmul.f32 %v3681, %v1466
  %3689 = vst [vmem:[#allocation2 + $0x2c0] sm:$0xff] %v3685
  %3690 = vst [vmem:[#allocation2 + $0x2c8] sm:$0xff] %v3686
  %3691 = vst [vmem:[#allocation2 + $0x2d0] sm:$0xff] %v3687
  %3692 = vst [vmem:[#allocation2 + $0x2d8] sm:$0xff] %v3688
  %3693 = vrot.lane.b32.xlu0 %v3069, 1
  %v3694 = vpop.permute.xlu0 %3693
  %3695 = vrot.lane.b32.xlu0 %v3070, 1
  %v3696 = vpop.permute.xlu0 %3695
  %3697 = vrot.lane.b32.xlu0 %v3071, 1
  %v3698 = vpop.permute.xlu0 %3697
  %3699 = vrot.lane.b32.xlu0 %v3072, 1
  %v3700 = vpop.permute.xlu0 %3699
  %v3701 = vsel %vm633, %v3698, %v3700
  %v3702 = vsel %vm633, %v3696, %v3698
  %v3703 = vsel %vm633, %v3694, %v3696
  %v3704 = vsel %vm633, %v3700, %v3694
  %v3705 = vmul.f32 %v3704, %v642
  %v3706 = vmul.f32 %v3703, %v643
  %v3707 = vmul.f32 %v3702, %v644
  %v3708 = vmul.f32 %v3701, %v645
  %3709 = vst [vmem:[#allocation2 + $0x2e0] sm:$0xff] %v3705
  %3710 = vst [vmem:[#allocation2 + $0x2e8] sm:$0xff] %v3706
  %3711 = vst [vmem:[#allocation2 + $0x2f0] sm:$0xff] %v3707
  %3712 = vst [vmem:[#allocation2 + $0x2f8] sm:$0xff] %v3708
  %3713 = vst [vmem:[#allocation2 + $0x300] sm:$0xff] %v3069
  %3714 = vst [vmem:[#allocation2 + $0x308] sm:$0xff] %v3070
  %3715 = vst [vmem:[#allocation2 + $0x310] sm:$0xff] %v3071
  %3716 = vst [vmem:[#allocation2 + $0x318] sm:$0xff] %v3072
  %3717 = vrot.lane.b32.xlu0 %v3069, 127
  %v3718 = vpop.permute.xlu0 %3717
  %3719 = vrot.lane.b32.xlu0 %v3070, 127
  %v3720 = vpop.permute.xlu0 %3719
  %3721 = vrot.lane.b32.xlu0 %v3071, 127
  %v3722 = vpop.permute.xlu0 %3721
  %3723 = vrot.lane.b32.xlu0 %v3072, 127
  %v3724 = vpop.permute.xlu0 %3723
  %v3725 = vsel %vm666, %v3722, %v3724
  %v3726 = vsel %vm666, %v3720, %v3722
  %v3727 = vsel %vm666, %v3718, %v3720
  %v3728 = vsel %vm666, %v3724, %v3718
  %v3729 = vmul.f32 %v3727, %v675
  %v3730 = vmul.f32 %v3726, %v676
  %v3731 = vmul.f32 %v3725, %v677
  %v3732 = vmul.f32 %v3728, %v678
  %3733 = vst [vmem:[#allocation2 + $0x320] sm:$0xff] %v3729
  %3734 = vst [vmem:[#allocation2 + $0x328] sm:$0xff] %v3730
  %3735 = vst [vmem:[#allocation2 + $0x330] sm:$0xff] %v3731
  %3736 = vst [vmem:[#allocation2 + $0x338] sm:$0xff] %v3732
  %3737 = vrot.lane.b32.xlu0 %v3069, 126
  %v3738 = vpop.permute.xlu0 %3737
  %3739 = vrot.lane.b32.xlu0 %v3070, 126
  %v3740 = vpop.permute.xlu0 %3739
  %3741 = vrot.lane.b32.xlu0 %v3071, 126
  %v3742 = vpop.permute.xlu0 %3741
  %3743 = vrot.lane.b32.xlu0 %v3072, 126
  %v3744 = vpop.permute.xlu0 %3743
  %v3745 = vsel %vm1487, %v3742, %v3744
  %v3746 = vsel %vm1487, %v3740, %v3742
  %v3747 = vsel %vm1487, %v3738, %v3740
  %v3748 = vsel %vm1487, %v3744, %v3738
  %v3749 = vmul.f32 %v3747, %v1496
  %v3750 = vmul.f32 %v3746, %v1497
  %v3751 = vmul.f32 %v3745, %v1498
  %v3752 = vmul.f32 %v3748, %v1499
  %3753 = vst [vmem:[#allocation2 + $0x340] sm:$0xff] %v3749
  %3754 = vst [vmem:[#allocation2 + $0x348] sm:$0xff] %v3750
  %3755 = vst [vmem:[#allocation2 + $0x350] sm:$0xff] %v3751
  %3756 = vst [vmem:[#allocation2 + $0x358] sm:$0xff] %v3752
  %3757 = vrot.lane.b32.xlu0 %v3069, 125
  %v3758 = vpop.permute.xlu0 %3757
  %3759 = vrot.lane.b32.xlu0 %v3070, 125
  %v3760 = vpop.permute.xlu0 %3759
  %3761 = vrot.lane.b32.xlu0 %v3071, 125
  %v3762 = vpop.permute.xlu0 %3761
  %3763 = vrot.lane.b32.xlu0 %v3072, 125
  %v3764 = vpop.permute.xlu0 %3763
  %vm3765 = vcmp.lt.s32.totalorder %v525, 125
  %v3766 = vsel %vm3765, %v3762, %v3764
  %v3767 = vsel %vm3765, %v3760, %v3762
  %v3768 = vsel %vm3765, %v3758, %v3760
  %v3769 = vsel %vm3765, %v3764, %v3758
  %v3770 = vsel %vm3288, 1, 0
  %v3771 = vsel %vm3289, 1, 0
  %v3772 = vsel %vm3290, 1, 0
  %v3773 = vsel %vm3291, 1, 0
  %v3774 = vcvt.s32.f32 %v3770
  %v3775 = vcvt.s32.f32 %v3771
  %v3776 = vcvt.s32.f32 %v3772
  %v3777 = vcvt.s32.f32 %v3773
  %v3778 = vmul.f32 %v3768, %v3774
  %v3779 = vmul.f32 %v3767, %v3775
  %v3780 = vmul.f32 %v3766, %v3776
  %v3781 = vmul.f32 %v3769, %v3777
  %3782 = vst [vmem:[#allocation2 + $0x360] sm:$0xff] %v3778
  %3783 = vst [vmem:[#allocation2 + $0x368] sm:$0xff] %v3779
  %3784 = vst [vmem:[#allocation2 + $0x370] sm:$0xff] %v3780
  %3785 = vst [vmem:[#allocation2 + $0x378] sm:$0xff] %v3781
  %3786 = vrot.lane.b32.xlu0 %v3069, 115
  %v3787 = vpop.permute.xlu0 %3786
  %3788 = vrot.lane.b32.xlu0 %v3070, 115
  %v3789 = vpop.permute.xlu0 %3788
  %3790 = vrot.lane.b32.xlu0 %v3071, 115
  %v3791 = vpop.permute.xlu0 %3790
  %3792 = vrot.lane.b32.xlu0 %v3072, 115
  %v3793 = vpop.permute.xlu0 %3792
  %vm3794 = vcmp.lt.s32.totalorder %v525, 115
  %v3795 = vsel %vm3794, %v3791, %v3793
  %v3796 = vsel %vm3794, %v3789, %v3791
  %v3797 = vsel %vm3794, %v3787, %v3789
  %v3798 = vsel %vm3794, %v3793, %v3787
  %vm3799 = vmand %vm700, %vm3090
  %vm3800 = vmand %vm701, %vm3091
  %vm3801 = vmand %vm702, %vm3092
  %vm3802 = vmand %vm703, %vm3093
  %v3803 = vsel %vm3799, 1, 0
  %v3804 = vsel %vm3800, 1, 0
  %v3805 = vsel %vm3801, 1, 0
  %v3806 = vsel %vm3802, 1, 0
  %v3807 = vcvt.s32.f32 %v3803
  %v3808 = vcvt.s32.f32 %v3804
  %v3809 = vcvt.s32.f32 %v3805
  %v3810 = vcvt.s32.f32 %v3806
  %v3811 = vmul.f32 %v3797, %v3807
  %v3812 = vmul.f32 %v3796, %v3808
  %v3813 = vmul.f32 %v3795, %v3809
  %v3814 = vmul.f32 %v3798, %v3810
  %3815 = vst [vmem:[#allocation2 + $0x380] sm:$0xff] %v3811
  %3816 = vst [vmem:[#allocation2 + $0x388] sm:$0xff] %v3812
  %3817 = vst [vmem:[#allocation2 + $0x390] sm:$0xff] %v3813
  %3818 = vst [vmem:[#allocation2 + $0x398] sm:$0xff] %v3814
  %3819 = vrot.lane.b32.xlu0 %v3069, 114
  %v3820 = vpop.permute.xlu0 %3819
  %3821 = vrot.lane.b32.xlu0 %v3070, 114
  %v3822 = vpop.permute.xlu0 %3821
  %3823 = vrot.lane.b32.xlu0 %v3071, 114
  %v3824 = vpop.permute.xlu0 %3823
  %3825 = vrot.lane.b32.xlu0 %v3072, 114
  %v3826 = vpop.permute.xlu0 %3825
  %v3827 = vsel %vm2147, %v3824, %v3826
  %v3828 = vsel %vm2147, %v3822, %v3824
  %v3829 = vsel %vm2147, %v3820, %v3822
  %v3830 = vsel %vm2147, %v3826, %v3820
  %v3831 = vmul.f32 %v3829, %v2160
  %v3832 = vmul.f32 %v3828, %v2161
  %v3833 = vmul.f32 %v3827, %v2162
  %v3834 = vmul.f32 %v3830, %v2163
  %3835 = vst [vmem:[#allocation2 + $0x3a0] sm:$0xff] %v3831
  %3836 = vst [vmem:[#allocation2 + $0x3a8] sm:$0xff] %v3832
  %3837 = vst [vmem:[#allocation2 + $0x3b0] sm:$0xff] %v3833
  %3838 = vst [vmem:[#allocation2 + $0x3b8] sm:$0xff] %v3834
  %3839 = vrot.lane.b32.xlu0 %v3069, 113
  %v3840 = vpop.permute.xlu0 %3839
  %3841 = vrot.lane.b32.xlu0 %v3070, 113
  %v3842 = vpop.permute.xlu0 %3841
  %3843 = vrot.lane.b32.xlu0 %v3071, 113
  %v3844 = vpop.permute.xlu0 %3843
  %3845 = vrot.lane.b32.xlu0 %v3072, 113
  %v3846 = vpop.permute.xlu0 %3845
  %v3847 = vsel %vm695, %v3844, %v3846
  %v3848 = vsel %vm695, %v3842, %v3844
  %v3849 = vsel %vm695, %v3840, %v3842
  %v3850 = vsel %vm695, %v3846, %v3840
  %v3851 = vmul.f32 %v3849, %v712
  %v3852 = vmul.f32 %v3848, %v713
  %v3853 = vmul.f32 %v3847, %v714
  %v3854 = vmul.f32 %v3850, %v715
  %3855 = vst [vmem:[#allocation2 + $0x3c0] sm:$0xff] %v3851
  %3856 = vst [vmem:[#allocation2 + $0x3c8] sm:$0xff] %v3852
  %3857 = vst [vmem:[#allocation2 + $0x3d0] sm:$0xff] %v3853
  %3858 = vst [vmem:[#allocation2 + $0x3d8] sm:$0xff] %v3854
  %3859 = vrot.lane.b32.xlu0 %v3069, 112
  %v3860 = vpop.permute.xlu0 %3859
  %3861 = vrot.lane.b32.xlu0 %v3070, 112
  %v3862 = vpop.permute.xlu0 %3861
  %3863 = vrot.lane.b32.xlu0 %v3071, 112
  %v3864 = vpop.permute.xlu0 %3863
  %3865 = vrot.lane.b32.xlu0 %v3072, 112
  %v3866 = vpop.permute.xlu0 %3865
  %v3867 = vsel %vm732, %v3864, %v3866
  %v3868 = vsel %vm732, %v3862, %v3864
  %v3869 = vsel %vm732, %v3860, %v3862
  %v3870 = vsel %vm732, %v3866, %v3860
  %v3871 = vmul.f32 %v3869, %v741
  %v3872 = vmul.f32 %v3868, %v742
  %v3873 = vmul.f32 %v3867, %v743
  %v3874 = vmul.f32 %v3870, %v744
  %3875 = vst [vmem:[#allocation2 + $0x3e0] sm:$0xff] %v3871
  %3876 = vst [vmem:[#allocation2 + $0x3e8] sm:$0xff] %v3872
  %3877 = vst [vmem:[#allocation2 + $0x3f0] sm:$0xff] %v3873
  %3878 = vst [vmem:[#allocation2 + $0x3f8] sm:$0xff] %v3874
  %3879 = vrot.lane.b32.xlu0 %v3069, 111
  %v3880 = vpop.permute.xlu0 %3879
  %3881 = vrot.lane.b32.xlu0 %v3070, 111
  %v3882 = vpop.permute.xlu0 %3881
  %3883 = vrot.lane.b32.xlu0 %v3071, 111
  %v3884 = vpop.permute.xlu0 %3883
  %3885 = vrot.lane.b32.xlu0 %v3072, 111
  %v3886 = vpop.permute.xlu0 %3885
  %v3887 = vsel %vm761, %v3884, %v3886
  %v3888 = vsel %vm761, %v3882, %v3884
  %v3889 = vsel %vm761, %v3880, %v3882
  %v3890 = vsel %vm761, %v3886, %v3880
  %v3891 = vmul.f32 %v3889, %v774
  %v3892 = vmul.f32 %v3888, %v775
  %v3893 = vmul.f32 %v3887, %v776
  %v3894 = vmul.f32 %v3890, %v777
  %3895 = vst [vmem:[#allocation2 + $0x400] sm:$0xff] %v3891
  %3896 = vst [vmem:[#allocation2 + $0x408] sm:$0xff] %v3892
  %3897 = vst [vmem:[#allocation2 + $0x410] sm:$0xff] %v3893
  %3898 = vst [vmem:[#allocation2 + $0x418] sm:$0xff] %v3894
  %3899 = vrot.lane.b32.xlu0 %v3069, 110
  %v3900 = vpop.permute.xlu0 %3899
  %3901 = vrot.lane.b32.xlu0 %v3070, 110
  %v3902 = vpop.permute.xlu0 %3901
  %3903 = vrot.lane.b32.xlu0 %v3071, 110
  %v3904 = vpop.permute.xlu0 %3903
  %3905 = vrot.lane.b32.xlu0 %v3072, 110
  %v3906 = vpop.permute.xlu0 %3905
  %v3907 = vsel %vm2240, %v3904, %v3906
  %v3908 = vsel %vm2240, %v3902, %v3904
  %v3909 = vsel %vm2240, %v3900, %v3902
  %v3910 = vsel %vm2240, %v3906, %v3900
  %v3911 = vmul.f32 %v3909, %v2253
  %v3912 = vmul.f32 %v3908, %v2254
  %v3913 = vmul.f32 %v3907, %v2255
  %v3914 = vmul.f32 %v3910, %v2256
  %3915 = vst [vmem:[#allocation2 + $0x420] sm:$0xff] %v3911
  %3916 = vst [vmem:[#allocation2 + $0x428] sm:$0xff] %v3912
  %3917 = vst [vmem:[#allocation2 + $0x430] sm:$0xff] %v3913
  %3918 = vst [vmem:[#allocation2 + $0x438] sm:$0xff] %v3914
  %3919 = vrot.lane.b32.xlu0 %v3069, 109
  %v3920 = vpop.permute.xlu0 %3919
  %3921 = vrot.lane.b32.xlu0 %v3070, 109
  %v3922 = vpop.permute.xlu0 %3921
  %3923 = vrot.lane.b32.xlu0 %v3071, 109
  %v3924 = vpop.permute.xlu0 %3923
  %3925 = vrot.lane.b32.xlu0 %v3072, 109
  %v3926 = vpop.permute.xlu0 %3925
  %vm3927 = vcmp.lt.s32.totalorder %v525, 109
  %v3928 = vsel %vm3927, %v3924, %v3926
  %v3929 = vsel %vm3927, %v3922, %v3924
  %v3930 = vsel %vm3927, %v3920, %v3922
  %v3931 = vsel %vm3927, %v3926, %v3920
  %vm3932 = vmand %vm700, %vm3288
  %vm3933 = vmand %vm701, %vm3289
  %vm3934 = vmand %vm702, %vm3290
  %vm3935 = vmand %vm703, %vm3291
  %v3936 = vsel %vm3932, 1, 0
  %v3937 = vsel %vm3933, 1, 0
  %v3938 = vsel %vm3934, 1, 0
  %v3939 = vsel %vm3935, 1, 0
  %v3940 = vcvt.s32.f32 %v3936
  %v3941 = vcvt.s32.f32 %v3937
  %v3942 = vcvt.s32.f32 %v3938
  %v3943 = vcvt.s32.f32 %v3939
  %v3944 = vmul.f32 %v3930, %v3940
  %v3945 = vmul.f32 %v3929, %v3941
  %v3946 = vmul.f32 %v3928, %v3942
  %v3947 = vmul.f32 %v3931, %v3943
  %3948 = vst [vmem:[#allocation2 + $0x440] sm:$0xff] %v3944
  %3949 = vst [vmem:[#allocation2 + $0x448] sm:$0xff] %v3945
  %3950 = vst [vmem:[#allocation2 + $0x450] sm:$0xff] %v3946
  %3951 = vst [vmem:[#allocation2 + $0x458] sm:$0xff] %v3947
  %3952 = vrot.lane.b32.xlu0 %v3069, 99
  %v3953 = vpop.permute.xlu0 %3952
  %3954 = vrot.lane.b32.xlu0 %v3070, 99
  %v3955 = vpop.permute.xlu0 %3954
  %3956 = vrot.lane.b32.xlu0 %v3071, 99
  %v3957 = vpop.permute.xlu0 %3956
  %3958 = vrot.lane.b32.xlu0 %v3072, 99
  %v3959 = vpop.permute.xlu0 %3958
  %vm3960 = vcmp.lt.s32.totalorder %v525, 99
  %v3961 = vsel %vm3960, %v3957, %v3959
  %v3962 = vsel %vm3960, %v3955, %v3957
  %v3963 = vsel %vm3960, %v3953, %v3955
  %v3964 = vsel %vm3960, %v3959, %v3953
  %vm3965 = vmand %vm1521, %vm3090
  %vm3966 = vmand %vm1522, %vm3091
  %vm3967 = vmand %vm1523, %vm3092
  %vm3968 = vmand %vm1524, %vm3093
  %v3969 = vsel %vm3965, 1, 0
  %v3970 = vsel %vm3966, 1, 0
  %v3971 = vsel %vm3967, 1, 0
  %v3972 = vsel %vm3968, 1, 0
  %v3973 = vcvt.s32.f32 %v3969
  %v3974 = vcvt.s32.f32 %v3970
  %v3975 = vcvt.s32.f32 %v3971
  %v3976 = vcvt.s32.f32 %v3972
  %v3977 = vmul.f32 %v3963, %v3973
  %v3978 = vmul.f32 %v3962, %v3974
  %v3979 = vmul.f32 %v3961, %v3975
  %v3980 = vmul.f32 %v3964, %v3976
  %3981 = vst [vmem:[#allocation2 + $0x460] sm:$0xff] %v3977
  %3982 = vst [vmem:[#allocation2 + $0x468] sm:$0xff] %v3978
  %3983 = vst [vmem:[#allocation2 + $0x470] sm:$0xff] %v3979
  %3984 = vst [vmem:[#allocation2 + $0x478] sm:$0xff] %v3980
  %3985 = vrot.lane.b32.xlu0 %v3069, 98
  %v3986 = vpop.permute.xlu0 %3985
  %3987 = vrot.lane.b32.xlu0 %v3070, 98
  %v3988 = vpop.permute.xlu0 %3987
  %3989 = vrot.lane.b32.xlu0 %v3071, 98
  %v3990 = vpop.permute.xlu0 %3989
  %3991 = vrot.lane.b32.xlu0 %v3072, 98
  %v3992 = vpop.permute.xlu0 %3991
  %v3993 = vsel %vm1516, %v3990, %v3992
  %v3994 = vsel %vm1516, %v3988, %v3990
  %v3995 = vsel %vm1516, %v3986, %v3988
  %v3996 = vsel %vm1516, %v3992, %v3986
  %v3997 = vmul.f32 %v3995, %v1533
  %v3998 = vmul.f32 %v3994, %v1534
  %v3999 = vmul.f32 %v3993, %v1535
  %v4000 = vmul.f32 %v3996, %v1536
  %4001 = vst [vmem:[#allocation2 + $0x480] sm:$0xff] %v3997
  %4002 = vst [vmem:[#allocation2 + $0x488] sm:$0xff] %v3998
  %4003 = vst [vmem:[#allocation2 + $0x490] sm:$0xff] %v3999
  %4004 = vst [vmem:[#allocation2 + $0x498] sm:$0xff] %v4000
  %4005 = vrot.lane.b32.xlu0 %v3069, 97
  %v4006 = vpop.permute.xlu0 %4005
  %4007 = vrot.lane.b32.xlu0 %v3070, 97
  %v4008 = vpop.permute.xlu0 %4007
  %4009 = vrot.lane.b32.xlu0 %v3071, 97
  %v4010 = vpop.permute.xlu0 %4009
  %4011 = vrot.lane.b32.xlu0 %v3072, 97
  %v4012 = vpop.permute.xlu0 %4011
  %v4013 = vsel %vm2293, %v4010, %v4012
  %v4014 = vsel %vm2293, %v4008, %v4010
  %v4015 = vsel %vm2293, %v4006, %v4008
  %v4016 = vsel %vm2293, %v4012, %v4006
  %v4017 = vmul.f32 %v4015, %v2306
  %v4018 = vmul.f32 %v4014, %v2307
  %v4019 = vmul.f32 %v4013, %v2308
  %v4020 = vmul.f32 %v4016, %v2309
  %4021 = vst [vmem:[#allocation2 + $0x4a0] sm:$0xff] %v4017
  %4022 = vst [vmem:[#allocation2 + $0x4a8] sm:$0xff] %v4018
  %4023 = vst [vmem:[#allocation2 + $0x4b0] sm:$0xff] %v4019
  %4024 = vst [vmem:[#allocation2 + $0x4b8] sm:$0xff] %v4020
  %4025 = vrot.lane.b32.xlu0 %v3069, 96
  %v4026 = vpop.permute.xlu0 %4025
  %4027 = vrot.lane.b32.xlu0 %v3070, 96
  %v4028 = vpop.permute.xlu0 %4027
  %4029 = vrot.lane.b32.xlu0 %v3071, 96
  %v4030 = vpop.permute.xlu0 %4029
  %4031 = vrot.lane.b32.xlu0 %v3072, 96
  %v4032 = vpop.permute.xlu0 %4031
  %v4033 = vsel %vm1553, %v4030, %v4032
  %v4034 = vsel %vm1553, %v4028, %v4030
  %v4035 = vsel %vm1553, %v4026, %v4028
  %v4036 = vsel %vm1553, %v4032, %v4026
  %v4037 = vmul.f32 %v4035, %v1562
  %v4038 = vmul.f32 %v4034, %v1563
  %v4039 = vmul.f32 %v4033, %v1564
  %v4040 = vmul.f32 %v4036, %v1565
  %4041 = vst [vmem:[#allocation2 + $0x4c0] sm:$0xff] %v4037
  %4042 = vst [vmem:[#allocation2 + $0x4c8] sm:$0xff] %v4038
  %4043 = vst [vmem:[#allocation2 + $0x4d0] sm:$0xff] %v4039
  %4044 = vst [vmem:[#allocation2 + $0x4d8] sm:$0xff] %v4040
  %4045 = vrot.lane.b32.xlu0 %v3069, 95
  %v4046 = vpop.permute.xlu0 %4045
  %4047 = vrot.lane.b32.xlu0 %v3070, 95
  %v4048 = vpop.permute.xlu0 %4047
  %4049 = vrot.lane.b32.xlu0 %v3071, 95
  %v4050 = vpop.permute.xlu0 %4049
  %4051 = vrot.lane.b32.xlu0 %v3072, 95
  %v4052 = vpop.permute.xlu0 %4051
  %v4053 = vsel %vm2346, %v4050, %v4052
  %v4054 = vsel %vm2346, %v4048, %v4050
  %v4055 = vsel %vm2346, %v4046, %v4048
  %v4056 = vsel %vm2346, %v4052, %v4046
  %v4057 = vmul.f32 %v4055, %v2359
  %v4058 = vmul.f32 %v4054, %v2360
  %v4059 = vmul.f32 %v4053, %v2361
  %v4060 = vmul.f32 %v4056, %v2362
  %4061 = vst [vmem:[#allocation2 + $0x4e0] sm:$0xff] %v4057
  %4062 = vst [vmem:[#allocation2 + $0x4e8] sm:$0xff] %v4058
  %4063 = vst [vmem:[#allocation2 + $0x4f0] sm:$0xff] %v4059
  %4064 = vst [vmem:[#allocation2 + $0x4f8] sm:$0xff] %v4060
  %4065 = vrot.lane.b32.xlu0 %v3069, 94
  %v4066 = vpop.permute.xlu0 %4065
  %4067 = vrot.lane.b32.xlu0 %v3070, 94
  %v4068 = vpop.permute.xlu0 %4067
  %4069 = vrot.lane.b32.xlu0 %v3071, 94
  %v4070 = vpop.permute.xlu0 %4069
  %4071 = vrot.lane.b32.xlu0 %v3072, 94
  %v4072 = vpop.permute.xlu0 %4071
  %v4073 = vsel %vm1582, %v4070, %v4072
  %v4074 = vsel %vm1582, %v4068, %v4070
  %v4075 = vsel %vm1582, %v4066, %v4068
  %v4076 = vsel %vm1582, %v4072, %v4066
  %v4077 = vmul.f32 %v4075, %v1595
  %v4078 = vmul.f32 %v4074, %v1596
  %v4079 = vmul.f32 %v4073, %v1597
  %v4080 = vmul.f32 %v4076, %v1598
  %4081 = vst [vmem:[#allocation2 + $0x500] sm:$0xff] %v4077
  %4082 = vst [vmem:[#allocation2 + $0x508] sm:$0xff] %v4078
  %4083 = vst [vmem:[#allocation2 + $0x510] sm:$0xff] %v4079
  %4084 = vst [vmem:[#allocation2 + $0x518] sm:$0xff] %v4080
  %4085 = vrot.lane.b32.xlu0 %v3069, 93
  %v4086 = vpop.permute.xlu0 %4085
  %4087 = vrot.lane.b32.xlu0 %v3070, 93
  %v4088 = vpop.permute.xlu0 %4087
  %4089 = vrot.lane.b32.xlu0 %v3071, 93
  %v4090 = vpop.permute.xlu0 %4089
  %4091 = vrot.lane.b32.xlu0 %v3072, 93
  %v4092 = vpop.permute.xlu0 %4091
  %vm4093 = vcmp.lt.s32.totalorder %v525, 93
  %v4094 = vsel %vm4093, %v4090, %v4092
  %v4095 = vsel %vm4093, %v4088, %v4090
  %v4096 = vsel %vm4093, %v4086, %v4088
  %v4097 = vsel %vm4093, %v4092, %v4086
  %vm4098 = vmand %vm1521, %vm3288
  %vm4099 = vmand %vm1522, %vm3289
  %vm4100 = vmand %vm1523, %vm3290
  %vm4101 = vmand %vm1524, %vm3291
  %v4102 = vsel %vm4098, 1, 0
  %v4103 = vsel %vm4099, 1, 0
  %v4104 = vsel %vm4100, 1, 0
  %v4105 = vsel %vm4101, 1, 0
  %v4106 = vcvt.s32.f32 %v4102
  %v4107 = vcvt.s32.f32 %v4103
  %v4108 = vcvt.s32.f32 %v4104
  %v4109 = vcvt.s32.f32 %v4105
  %v4110 = vmul.f32 %v4096, %v4106
  %v4111 = vmul.f32 %v4095, %v4107
  %v4112 = vmul.f32 %v4094, %v4108
  %v4113 = vmul.f32 %v4097, %v4109
  %4114 = vst [vmem:[#allocation2 + $0x520] sm:$0xff] %v4110
  %4115 = vst [vmem:[#allocation2 + $0x528] sm:$0xff] %v4111
  %4116 = vst [vmem:[#allocation2 + $0x530] sm:$0xff] %v4112
  %4117 = vst [vmem:[#allocation2 + $0x538] sm:$0xff] %v4113
  %4118 = vrot.lane.b32.xlu0 %v3069, 83
  %v4119 = vpop.permute.xlu0 %4118
  %4120 = vrot.lane.b32.xlu0 %v3070, 83
  %v4121 = vpop.permute.xlu0 %4120
  %4122 = vrot.lane.b32.xlu0 %v3071, 83
  %v4123 = vpop.permute.xlu0 %4122
  %4124 = vrot.lane.b32.xlu0 %v3072, 83
  %v4125 = vpop.permute.xlu0 %4124
  %vm4126 = vcmp.lt.s32.totalorder %v525, 83
  %v4127 = vsel %vm4126, %v4123, %v4125
  %v4128 = vsel %vm4126, %v4121, %v4123
  %v4129 = vsel %vm4126, %v4119, %v4121
  %v4130 = vsel %vm4126, %v4125, %v4119
  %vm4131 = vcmp.lt.s32.totalorder %v94, 13
  %vm4132 = vcmp.lt.s32.totalorder %v98, 13
  %vm4133 = vcmp.lt.s32.totalorder %v102, 13
  %vm4134 = vcmp.lt.s32.totalorder %v106, 13
  %vm4135 = vmand %vm4131, %vm3090
  %vm4136 = vmand %vm4132, %vm3091
  %vm4137 = vmand %vm4133, %vm3092
  %vm4138 = vmand %vm4134, %vm3093
  %v4139 = vsel %vm4135, 1, 0
  %v4140 = vsel %vm4136, 1, 0
  %v4141 = vsel %vm4137, 1, 0
  %v4142 = vsel %vm4138, 1, 0
  %v4143 = vcvt.s32.f32 %v4139
  %v4144 = vcvt.s32.f32 %v4140
  %v4145 = vcvt.s32.f32 %v4141
  %v4146 = vcvt.s32.f32 %v4142
  %v4147 = vmul.f32 %v4129, %v4143
  %v4148 = vmul.f32 %v4128, %v4144
  %v4149 = vmul.f32 %v4127, %v4145
  %v4150 = vmul.f32 %v4130, %v4146
  %4151 = vst [vmem:[#allocation2 + $0x540] sm:$0xff] %v4147
  %4152 = vst [vmem:[#allocation2 + $0x548] sm:$0xff] %v4148
  %4153 = vst [vmem:[#allocation2 + $0x550] sm:$0xff] %v4149
  %4154 = vst [vmem:[#allocation2 + $0x558] sm:$0xff] %v4150
  %4155 = vrot.lane.b32.xlu0 %v3069, 82
  %v4156 = vpop.permute.xlu0 %4155
  %4157 = vrot.lane.b32.xlu0 %v3070, 82
  %v4158 = vpop.permute.xlu0 %4157
  %4159 = vrot.lane.b32.xlu0 %v3071, 82
  %v4160 = vpop.permute.xlu0 %4159
  %4161 = vrot.lane.b32.xlu0 %v3072, 82
  %v4162 = vpop.permute.xlu0 %4161
  %vm4163 = vcmp.lt.s32.totalorder %v525, 82
  %v4164 = vsel %vm4163, %v4160, %v4162
  %v4165 = vsel %vm4163, %v4158, %v4160
  %v4166 = vsel %vm4163, %v4156, %v4158
  %v4167 = vsel %vm4163, %v4162, %v4156
  %vm4168 = vmand %vm4131, %vm1356
  %vm4169 = vmand %vm4132, %vm1357
  %vm4170 = vmand %vm4133, %vm1358
  %vm4171 = vmand %vm4134, %vm1359
  %v4172 = vsel %vm4168, 1, 0
  %v4173 = vsel %vm4169, 1, 0
  %v4174 = vsel %vm4170, 1, 0
  %v4175 = vsel %vm4171, 1, 0
  %v4176 = vcvt.s32.f32 %v4172
  %v4177 = vcvt.s32.f32 %v4173
  %v4178 = vcvt.s32.f32 %v4174
  %v4179 = vcvt.s32.f32 %v4175
  %v4180 = vmul.f32 %v4166, %v4176
  %v4181 = vmul.f32 %v4165, %v4177
  %v4182 = vmul.f32 %v4164, %v4178
  %v4183 = vmul.f32 %v4167, %v4179
  %4184 = vst [vmem:[#allocation2 + $0x560] sm:$0xff] %v4180
  %4185 = vst [vmem:[#allocation2 + $0x568] sm:$0xff] %v4181
  %4186 = vst [vmem:[#allocation2 + $0x570] sm:$0xff] %v4182
  %4187 = vst [vmem:[#allocation2 + $0x578] sm:$0xff] %v4183
  %4188 = vrot.lane.b32.xlu0 %v3069, 81
  %v4189 = vpop.permute.xlu0 %4188
  %4190 = vrot.lane.b32.xlu0 %v3070, 81
  %v4191 = vpop.permute.xlu0 %4190
  %4192 = vrot.lane.b32.xlu0 %v3071, 81
  %v4193 = vpop.permute.xlu0 %4192
  %4194 = vrot.lane.b32.xlu0 %v3072, 81
  %v4195 = vpop.permute.xlu0 %4194
  %vm4196 = vcmp.lt.s32.totalorder %v525, 81
  %v4197 = vsel %vm4196, %v4193, %v4195
  %v4198 = vsel %vm4196, %v4191, %v4193
  %v4199 = vsel %vm4196, %v4189, %v4191
  %v4200 = vsel %vm4196, %v4195, %v4189
  %vm4201 = vmand %vm4131, %vm535
  %vm4202 = vmand %vm4132, %vm536
  %vm4203 = vmand %vm4133, %vm537
  %vm4204 = vmand %vm4134, %vm538
  %v4205 = vsel %vm4201, 1, 0
  %v4206 = vsel %vm4202, 1, 0
  %v4207 = vsel %vm4203, 1, 0
  %v4208 = vsel %vm4204, 1, 0
  %v4209 = vcvt.s32.f32 %v4205
  %v4210 = vcvt.s32.f32 %v4206
  %v4211 = vcvt.s32.f32 %v4207
  %v4212 = vcvt.s32.f32 %v4208
  %v4213 = vmul.f32 %v4199, %v4209
  %v4214 = vmul.f32 %v4198, %v4210
  %v4215 = vmul.f32 %v4197, %v4211
  %v4216 = vmul.f32 %v4200, %v4212
  %4217 = vst [vmem:[#allocation2 + $0x580] sm:$0xff] %v4213
  %4218 = vst [vmem:[#allocation2 + $0x588] sm:$0xff] %v4214
  %4219 = vst [vmem:[#allocation2 + $0x590] sm:$0xff] %v4215
  %4220 = vst [vmem:[#allocation2 + $0x598] sm:$0xff] %v4216
  %4221 = vrot.lane.b32.xlu0 %v3069, 80
  %v4222 = vpop.permute.xlu0 %4221
  %4223 = vrot.lane.b32.xlu0 %v3070, 80
  %v4224 = vpop.permute.xlu0 %4223
  %4225 = vrot.lane.b32.xlu0 %v3071, 80
  %v4226 = vpop.permute.xlu0 %4225
  %4227 = vrot.lane.b32.xlu0 %v3072, 80
  %v4228 = vpop.permute.xlu0 %4227
  %vm4229 = vcmp.lt.s32.totalorder %v525, 80
  %v4230 = vsel %vm4229, %v4226, %v4228
  %v4231 = vsel %vm4229, %v4224, %v4226
  %v4232 = vsel %vm4229, %v4222, %v4224
  %v4233 = vsel %vm4229, %v4228, %v4222
  %v4234 = vsel %vm4131, 1, 0
  %v4235 = vsel %vm4132, 1, 0
  %v4236 = vsel %vm4133, 1, 0
  %v4237 = vsel %vm4134, 1, 0
  %v4238 = vcvt.s32.f32 %v4234
  %v4239 = vcvt.s32.f32 %v4235
  %v4240 = vcvt.s32.f32 %v4236
  %v4241 = vcvt.s32.f32 %v4237
  %v4242 = vmul.f32 %v4232, %v4238
  %v4243 = vmul.f32 %v4231, %v4239
  %v4244 = vmul.f32 %v4230, %v4240
  %v4245 = vmul.f32 %v4233, %v4241
  %4246 = vst [vmem:[#allocation2 + $0x5a0] sm:$0xff] %v4242
  %4247 = vst [vmem:[#allocation2 + $0x5a8] sm:$0xff] %v4243
  %4248 = vst [vmem:[#allocation2 + $0x5b0] sm:$0xff] %v4244
  %4249 = vst [vmem:[#allocation2 + $0x5b8] sm:$0xff] %v4245
  %4250 = vrot.lane.b32.xlu0 %v3069, 79
  %v4251 = vpop.permute.xlu0 %4250
  %4252 = vrot.lane.b32.xlu0 %v3070, 79
  %v4253 = vpop.permute.xlu0 %4252
  %4254 = vrot.lane.b32.xlu0 %v3071, 79
  %v4255 = vpop.permute.xlu0 %4254
  %4256 = vrot.lane.b32.xlu0 %v3072, 79
  %v4257 = vpop.permute.xlu0 %4256
  %vm4258 = vcmp.lt.s32.totalorder %v525, 79
  %v4259 = vsel %vm4258, %v4255, %v4257
  %v4260 = vsel %vm4258, %v4253, %v4255
  %v4261 = vsel %vm4258, %v4251, %v4253
  %v4262 = vsel %vm4258, %v4257, %v4251
  %vm4263 = vmand %vm4131, %vm601
  %vm4264 = vmand %vm4132, %vm602
  %vm4265 = vmand %vm4133, %vm603
  %vm4266 = vmand %vm4134, %vm604
  %v4267 = vsel %vm4263, 1, 0
  %v4268 = vsel %vm4264, 1, 0
  %v4269 = vsel %vm4265, 1, 0
  %v4270 = vsel %vm4266, 1, 0
  %v4271 = vcvt.s32.f32 %v4267
  %v4272 = vcvt.s32.f32 %v4268
  %v4273 = vcvt.s32.f32 %v4269
  %v4274 = vcvt.s32.f32 %v4270
  %v4275 = vmul.f32 %v4261, %v4271
  %v4276 = vmul.f32 %v4260, %v4272
  %v4277 = vmul.f32 %v4259, %v4273
  %v4278 = vmul.f32 %v4262, %v4274
  %4279 = vst [vmem:[#allocation2 + $0x5c0] sm:$0xff] %v4275
  %4280 = vst [vmem:[#allocation2 + $0x5c8] sm:$0xff] %v4276
  %4281 = vst [vmem:[#allocation2 + $0x5d0] sm:$0xff] %v4277
  %4282 = vst [vmem:[#allocation2 + $0x5d8] sm:$0xff] %v4278
  %4283 = vrot.lane.b32.xlu0 %v3069, 78
  %v4284 = vpop.permute.xlu0 %4283
  %4285 = vrot.lane.b32.xlu0 %v3070, 78
  %v4286 = vpop.permute.xlu0 %4285
  %4287 = vrot.lane.b32.xlu0 %v3071, 78
  %v4288 = vpop.permute.xlu0 %4287
  %4289 = vrot.lane.b32.xlu0 %v3072, 78
  %v4290 = vpop.permute.xlu0 %4289
  %vm4291 = vcmp.lt.s32.totalorder %v525, 78
  %v4292 = vsel %vm4291, %v4288, %v4290
  %v4293 = vsel %vm4291, %v4286, %v4288
  %v4294 = vsel %vm4291, %v4284, %v4286
  %v4295 = vsel %vm4291, %v4290, %v4284
  %vm4296 = vmand %vm4131, %vm1422
  %vm4297 = vmand %vm4132, %vm1423
  %vm4298 = vmand %vm4133, %vm1424
  %vm4299 = vmand %vm4134, %vm1425
  %v4300 = vsel %vm4296, 1, 0
  %v4301 = vsel %vm4297, 1, 0
  %v4302 = vsel %vm4298, 1, 0
  %v4303 = vsel %vm4299, 1, 0
  %v4304 = vcvt.s32.f32 %v4300
  %v4305 = vcvt.s32.f32 %v4301
  %v4306 = vcvt.s32.f32 %v4302
  %v4307 = vcvt.s32.f32 %v4303
  %v4308 = vmul.f32 %v4294, %v4304
  %v4309 = vmul.f32 %v4293, %v4305
  %v4310 = vmul.f32 %v4292, %v4306
  %v4311 = vmul.f32 %v4295, %v4307
  %4312 = vst [vmem:[#allocation2 + $0x5e0] sm:$0xff] %v4308
  %4313 = vst [vmem:[#allocation2 + $0x5e8] sm:$0xff] %v4309
  %4314 = vst [vmem:[#allocation2 + $0x5f0] sm:$0xff] %v4310
  %4315 = vst [vmem:[#allocation2 + $0x5f8] sm:$0xff] %v4311
  %4316 = vrot.lane.b32.xlu0 %v3069, 77
  %v4317 = vpop.permute.xlu0 %4316
  %4318 = vrot.lane.b32.xlu0 %v3070, 77
  %v4319 = vpop.permute.xlu0 %4318
  %4320 = vrot.lane.b32.xlu0 %v3071, 77
  %v4321 = vpop.permute.xlu0 %4320
  %4322 = vrot.lane.b32.xlu0 %v3072, 77
  %v4323 = vpop.permute.xlu0 %4322
  %vm4324 = vcmp.lt.s32.totalorder %v525, 77
  %v4325 = vsel %vm4324, %v4321, %v4323
  %v4326 = vsel %vm4324, %v4319, %v4321
  %v4327 = vsel %vm4324, %v4317, %v4319
  %v4328 = vsel %vm4324, %v4323, %v4317
  %vm4329 = vmand %vm4131, %vm3288
  %vm4330 = vmand %vm4132, %vm3289
  %vm4331 = vmand %vm4133, %vm3290
  %vm4332 = vmand %vm4134, %vm3291
  %v4333 = vsel %vm4329, 1, 0
  %v4334 = vsel %vm4330, 1, 0
  %v4335 = vsel %vm4331, 1, 0
  %v4336 = vsel %vm4332, 1, 0
  %v4337 = vcvt.s32.f32 %v4333
  %v4338 = vcvt.s32.f32 %v4334
  %v4339 = vcvt.s32.f32 %v4335
  %v4340 = vcvt.s32.f32 %v4336
  %v4341 = vmul.f32 %v4327, %v4337
  %v4342 = vmul.f32 %v4326, %v4338
  %v4343 = vmul.f32 %v4325, %v4339
  %v4344 = vmul.f32 %v4328, %v4340
  %4345 = vst [vmem:[#allocation2 + $0x600] sm:$0xff] %v4341
  %4346 = vst [vmem:[#allocation2 + $0x608] sm:$0xff] %v4342
  %4347 = vst [vmem:[#allocation2 + $0x610] sm:$0xff] %v4343
  %4348 = vst [vmem:[#allocation2 + $0x618] sm:$0xff] %v4344
  %v4349 = vld [vmem:[%s17] sm:$0xff]
  %v4350 = vld [vmem:[%s17 + $0x8] sm:$0xff]
  %v4351 = vld [vmem:[%s17 + $0x10] sm:$0xff]
  %v4352 = vld [vmem:[%s17 + $0x18] sm:$0xff]
  %v4353 = vld [vmem:[#allocation2] sm:$0xff]
  %v4354 = vld [vmem:[#allocation2 + $0x8] sm:$0xff]
  %v4355 = vld [vmem:[#allocation2 + $0x10] sm:$0xff]
  %v4356 = vld [vmem:[#allocation2 + $0x18] sm:$0xff]
  %v4357 = vld [vmem:[#allocation2 + $0x20] sm:$0xff]
  %v4358 = vld [vmem:[#allocation2 + $0x28] sm:$0xff]
  %v4359 = vld [vmem:[#allocation2 + $0x30] sm:$0xff]
  %v4360 = vld [vmem:[#allocation2 + $0x38] sm:$0xff]
  %v4361 = vld [vmem:[#allocation2 + $0x40] sm:$0xff]
  %v4362 = vld [vmem:[#allocation2 + $0x48] sm:$0xff]
  %v4363 = vld [vmem:[#allocation2 + $0x50] sm:$0xff]
  %v4364 = vld [vmem:[#allocation2 + $0x58] sm:$0xff]
  %v4365 = vld [vmem:[#allocation2 + $0x60] sm:$0xff]
  %v4366 = vld [vmem:[#allocation2 + $0x68] sm:$0xff]
  %v4367 = vld [vmem:[#allocation2 + $0x70] sm:$0xff]
  %v4368 = vld [vmem:[#allocation2 + $0x78] sm:$0xff]
  %v4369 = vld [vmem:[#allocation2 + $0x80] sm:$0xff]
  %v4370 = vld [vmem:[#allocation2 + $0x88] sm:$0xff]
  %v4371 = vld [vmem:[#allocation2 + $0x90] sm:$0xff]
  %v4372 = vld [vmem:[#allocation2 + $0x98] sm:$0xff]
  %v4373 = vld [vmem:[#allocation2 + $0xa0] sm:$0xff]
  %v4374 = vld [vmem:[#allocation2 + $0xa8] sm:$0xff]
  %v4375 = vld [vmem:[#allocation2 + $0xb0] sm:$0xff]
  %v4376 = vld [vmem:[#allocation2 + $0xb8] sm:$0xff]
  %v4377 = vld [vmem:[#allocation2 + $0xc0] sm:$0xff]
  %v4378 = vld [vmem:[#allocation2 + $0xc8] sm:$0xff]
  %v4379 = vld [vmem:[#allocation2 + $0xd0] sm:$0xff]
  %v4380 = vld [vmem:[#allocation2 + $0xd8] sm:$0xff]
  %v4381 = vld [vmem:[#allocation2 + $0xe0] sm:$0xff]
  %v4382 = vld [vmem:[#allocation2 + $0xe8] sm:$0xff]
  %v4383 = vld [vmem:[#allocation2 + $0xf0] sm:$0xff]
  %v4384 = vld [vmem:[#allocation2 + $0xf8] sm:$0xff]
  %v4385 = vld [vmem:[#allocation2 + $0x100] sm:$0xff]
  %v4386 = vld [vmem:[#allocation2 + $0x108] sm:$0xff]
  %v4387 = vld [vmem:[#allocation2 + $0x110] sm:$0xff]
  %v4388 = vld [vmem:[#allocation2 + $0x118] sm:$0xff]
  %v4389 = vld [vmem:[#allocation2 + $0x120] sm:$0xff]
  %v4390 = vld [vmem:[#allocation2 + $0x128] sm:$0xff]
  %v4391 = vld [vmem:[#allocation2 + $0x130] sm:$0xff]
  %v4392 = vld [vmem:[#allocation2 + $0x138] sm:$0xff]
  %v4393 = vld [vmem:[#allocation2 + $0x140] sm:$0xff]
  %v4394 = vld [vmem:[#allocation2 + $0x148] sm:$0xff]
  %v4395 = vld [vmem:[#allocation2 + $0x150] sm:$0xff]
  %v4396 = vld [vmem:[#allocation2 + $0x158] sm:$0xff]
  %v4397 = vld [vmem:[#allocation2 + $0x160] sm:$0xff]
  %v4398 = vld [vmem:[#allocation2 + $0x168] sm:$0xff]
  %v4399 = vld [vmem:[#allocation2 + $0x170] sm:$0xff]
  %v4400 = vld [vmem:[#allocation2 + $0x178] sm:$0xff]
  %v4401 = vld [vmem:[#allocation2 + $0x180] sm:$0xff]
  %v4402 = vld [vmem:[#allocation2 + $0x188] sm:$0xff]
  %v4403 = vld [vmem:[#allocation2 + $0x190] sm:$0xff]
  %v4404 = vld [vmem:[#allocation2 + $0x198] sm:$0xff]
  %v4405 = vld [vmem:[#allocation2 + $0x1a0] sm:$0xff]
  %v4406 = vld [vmem:[#allocation2 + $0x1a8] sm:$0xff]
  %v4407 = vld [vmem:[#allocation2 + $0x1b0] sm:$0xff]
  %v4408 = vld [vmem:[#allocation2 + $0x1b8] sm:$0xff]
  %v4409 = vld [vmem:[#allocation2 + $0x1c0] sm:$0xff]
  %v4410 = vld [vmem:[#allocation2 + $0x1c8] sm:$0xff]
  %v4411 = vld [vmem:[#allocation2 + $0x1d0] sm:$0xff]
  %v4412 = vld [vmem:[#allocation2 + $0x1d8] sm:$0xff]
  %v4413 = vld [vmem:[#allocation2 + $0x1e0] sm:$0xff]
  %v4414 = vld [vmem:[#allocation2 + $0x1e8] sm:$0xff]
  %v4415 = vld [vmem:[#allocation2 + $0x1f0] sm:$0xff]
  %v4416 = vld [vmem:[#allocation2 + $0x1f8] sm:$0xff]
  %v4417 = vld [vmem:[#allocation2 + $0x200] sm:$0xff]
  %v4418 = vld [vmem:[#allocation2 + $0x208] sm:$0xff]
  %v4419 = vld [vmem:[#allocation2 + $0x210] sm:$0xff]
  %v4420 = vld [vmem:[#allocation2 + $0x218] sm:$0xff]
  %v4421 = vld [vmem:[#allocation2 + $0x220] sm:$0xff]
  %v4422 = vld [vmem:[#allocation2 + $0x228] sm:$0xff]
  %v4423 = vld [vmem:[#allocation2 + $0x230] sm:$0xff]
  %v4424 = vld [vmem:[#allocation2 + $0x238] sm:$0xff]
  %v4425 = vld [vmem:[#allocation2 + $0x240] sm:$0xff]
  %v4426 = vld [vmem:[#allocation2 + $0x248] sm:$0xff]
  %v4427 = vld [vmem:[#allocation2 + $0x250] sm:$0xff]
  %v4428 = vld [vmem:[#allocation2 + $0x258] sm:$0xff]
  %v4429 = vld [vmem:[#allocation2 + $0x260] sm:$0xff]
  %v4430 = vld [vmem:[#allocation2 + $0x268] sm:$0xff]
  %v4431 = vld [vmem:[#allocation2 + $0x270] sm:$0xff]
  %v4432 = vld [vmem:[#allocation2 + $0x278] sm:$0xff]
  %v4433 = vld [vmem:[#allocation2 + $0x280] sm:$0xff]
  %v4434 = vld [vmem:[#allocation2 + $0x288] sm:$0xff]
  %v4435 = vld [vmem:[#allocation2 + $0x290] sm:$0xff]
  %v4436 = vld [vmem:[#allocation2 + $0x298] sm:$0xff]
  %v4437 = vld [vmem:[#allocation2 + $0x2a0] sm:$0xff]
  %v4438 = vld [vmem:[#allocation2 + $0x2a8] sm:$0xff]
  %v4439 = vld [vmem:[#allocation2 + $0x2b0] sm:$0xff]
  %v4440 = vld [vmem:[#allocation2 + $0x2b8] sm:$0xff]
  %v4441 = vld [vmem:[#allocation2 + $0x2c0] sm:$0xff]
  %v4442 = vld [vmem:[#allocation2 + $0x2c8] sm:$0xff]
  %v4443 = vld [vmem:[#allocation2 + $0x2d0] sm:$0xff]
  %v4444 = vld [vmem:[#allocation2 + $0x2d8] sm:$0xff]
  %v4445 = vld [vmem:[#allocation2 + $0x2e0] sm:$0xff]
  %v4446 = vld [vmem:[#allocation2 + $0x2e8] sm:$0xff]
  %v4447 = vld [vmem:[#allocation2 + $0x2f0] sm:$0xff]
  %v4448 = vld [vmem:[#allocation2 + $0x2f8] sm:$0xff]
  %v4449 = vld [vmem:[#allocation2 + $0x300] sm:$0xff]
  %v4450 = vld [vmem:[#allocation2 + $0x308] sm:$0xff]
  %v4451 = vld [vmem:[#allocation2 + $0x310] sm:$0xff]
  %v4452 = vld [vmem:[#allocation2 + $0x318] sm:$0xff]
  %v4453 = vld [vmem:[#allocation2 + $0x320] sm:$0xff]
  %v4454 = vld [vmem:[#allocation2 + $0x328] sm:$0xff]
  %v4455 = vld [vmem:[#allocation2 + $0x330] sm:$0xff]
  %v4456 = vld [vmem:[#allocation2 + $0x338] sm:$0xff]
  %v4457 = vld [vmem:[#allocation2 + $0x340] sm:$0xff]
  %v4458 = vld [vmem:[#allocation2 + $0x348] sm:$0xff]
  %v4459 = vld [vmem:[#allocation2 + $0x350] sm:$0xff]
  %v4460 = vld [vmem:[#allocation2 + $0x358] sm:$0xff]
  %v4461 = vld [vmem:[#allocation2 + $0x360] sm:$0xff]
  %v4462 = vld [vmem:[#allocation2 + $0x368] sm:$0xff]
  %v4463 = vld [vmem:[#allocation2 + $0x370] sm:$0xff]
  %v4464 = vld [vmem:[#allocation2 + $0x378] sm:$0xff]
  %v4465 = vld [vmem:[#allocation2 + $0x380] sm:$0xff]
  %v4466 = vld [vmem:[#allocation2 + $0x388] sm:$0xff]
  %v4467 = vld [vmem:[#allocation2 + $0x390] sm:$0xff]
  %v4468 = vld [vmem:[#allocation2 + $0x398] sm:$0xff]
  %v4469 = vld [vmem:[#allocation2 + $0x3a0] sm:$0xff]
  %v4470 = vld [vmem:[#allocation2 + $0x3a8] sm:$0xff]
  %v4471 = vld [vmem:[#allocation2 + $0x3b0] sm:$0xff]
  %v4472 = vld [vmem:[#allocation2 + $0x3b8] sm:$0xff]
  %v4473 = vld [vmem:[#allocation2 + $0x3c0] sm:$0xff]
  %v4474 = vld [vmem:[#allocation2 + $0x3c8] sm:$0xff]
  %v4475 = vld [vmem:[#allocation2 + $0x3d0] sm:$0xff]
  %v4476 = vld [vmem:[#allocation2 + $0x3d8] sm:$0xff]
  %v4477 = vld [vmem:[#allocation2 + $0x3e0] sm:$0xff]
  %v4478 = vld [vmem:[#allocation2 + $0x3e8] sm:$0xff]
  %v4479 = vld [vmem:[#allocation2 + $0x3f0] sm:$0xff]
  %v4480 = vld [vmem:[#allocation2 + $0x3f8] sm:$0xff]
  %v4481 = vld [vmem:[#allocation2 + $0x400] sm:$0xff]
  %v4482 = vld [vmem:[#allocation2 + $0x408] sm:$0xff]
  %v4483 = vld [vmem:[#allocation2 + $0x410] sm:$0xff]
  %v4484 = vld [vmem:[#allocation2 + $0x418] sm:$0xff]
  %v4485 = vld [vmem:[#allocation2 + $0x420] sm:$0xff]
  %v4486 = vld [vmem:[#allocation2 + $0x428] sm:$0xff]
  %v4487 = vld [vmem:[#allocation2 + $0x430] sm:$0xff]
  %v4488 = vld [vmem:[#allocation2 + $0x438] sm:$0xff]
  %v4489 = vld [vmem:[#allocation2 + $0x440] sm:$0xff]
  %v4490 = vld [vmem:[#allocation2 + $0x448] sm:$0xff]
  %v4491 = vld [vmem:[#allocation2 + $0x450] sm:$0xff]
  %v4492 = vld [vmem:[#allocation2 + $0x458] sm:$0xff]
  %v4493 = vld [vmem:[#allocation2 + $0x460] sm:$0xff]
  %v4494 = vld [vmem:[#allocation2 + $0x468] sm:$0xff]
  %v4495 = vld [vmem:[#allocation2 + $0x470] sm:$0xff]
  %v4496 = vld [vmem:[#allocation2 + $0x478] sm:$0xff]
  %v4497 = vld [vmem:[#allocation2 + $0x480] sm:$0xff]
  %v4498 = vld [vmem:[#allocation2 + $0x488] sm:$0xff]
  %v4499 = vld [vmem:[#allocation2 + $0x490] sm:$0xff]
  %v4500 = vld [vmem:[#allocation2 + $0x498] sm:$0xff]
  %v4501 = vld [vmem:[#allocation2 + $0x4a0] sm:$0xff]
  %v4502 = vld [vmem:[#allocation2 + $0x4a8] sm:$0xff]
  %v4503 = vld [vmem:[#allocation2 + $0x4b0] sm:$0xff]
  %v4504 = vld [vmem:[#allocation2 + $0x4b8] sm:$0xff]
  %v4505 = vld [vmem:[#allocation2 + $0x4c0] sm:$0xff]
  %v4506 = vld [vmem:[#allocation2 + $0x4c8] sm:$0xff]
  %v4507 = vld [vmem:[#allocation2 + $0x4d0] sm:$0xff]
  %v4508 = vld [vmem:[#allocation2 + $0x4d8] sm:$0xff]
  %v4509 = vld [vmem:[#allocation2 + $0x4e0] sm:$0xff]
  %v4510 = vld [vmem:[#allocation2 + $0x4e8] sm:$0xff]
  %v4511 = vld [vmem:[#allocation2 + $0x4f0] sm:$0xff]
  %v4512 = vld [vmem:[#allocation2 + $0x4f8] sm:$0xff]
  %v4513 = vld [vmem:[#allocation2 + $0x500] sm:$0xff]
  %v4514 = vld [vmem:[#allocation2 + $0x508] sm:$0xff]
  %v4515 = vld [vmem:[#allocation2 + $0x510] sm:$0xff]
  %v4516 = vld [vmem:[#allocation2 + $0x518] sm:$0xff]
  %v4517 = vld [vmem:[#allocation2 + $0x520] sm:$0xff]
  %v4518 = vld [vmem:[#allocation2 + $0x528] sm:$0xff]
  %v4519 = vld [vmem:[#allocation2 + $0x530] sm:$0xff]
  %v4520 = vld [vmem:[#allocation2 + $0x538] sm:$0xff]
  %v4521 = vld [vmem:[#allocation2 + $0x540] sm:$0xff]
  %v4522 = vld [vmem:[#allocation2 + $0x548] sm:$0xff]
  %v4523 = vld [vmem:[#allocation2 + $0x550] sm:$0xff]
  %v4524 = vld [vmem:[#allocation2 + $0x558] sm:$0xff]
  %v4525 = vld [vmem:[#allocation2 + $0x560] sm:$0xff]
  %v4526 = vld [vmem:[#allocation2 + $0x568] sm:$0xff]
  %v4527 = vld [vmem:[#allocation2 + $0x570] sm:$0xff]
  %v4528 = vld [vmem:[#allocation2 + $0x578] sm:$0xff]
  %v4529 = vld [vmem:[#allocation2 + $0x580] sm:$0xff]
  %v4530 = vld [vmem:[#allocation2 + $0x588] sm:$0xff]
  %v4531 = vld [vmem:[#allocation2 + $0x590] sm:$0xff]
  %v4532 = vld [vmem:[#allocation2 + $0x598] sm:$0xff]
  %v4533 = vld [vmem:[#allocation2 + $0x5a0] sm:$0xff]
  %v4534 = vld [vmem:[#allocation2 + $0x5a8] sm:$0xff]
  %v4535 = vld [vmem:[#allocation2 + $0x5b0] sm:$0xff]
  %v4536 = vld [vmem:[#allocation2 + $0x5b8] sm:$0xff]
  %v4537 = vld [vmem:[#allocation2 + $0x5c0] sm:$0xff]
  %v4538 = vld [vmem:[#allocation2 + $0x5c8] sm:$0xff]
  %v4539 = vld [vmem:[#allocation2 + $0x5d0] sm:$0xff]
  %v4540 = vld [vmem:[#allocation2 + $0x5d8] sm:$0xff]
  %v4541 = vld [vmem:[#allocation2 + $0x5e0] sm:$0xff]
  %v4542 = vld [vmem:[#allocation2 + $0x5e8] sm:$0xff]
  %v4543 = vld [vmem:[#allocation2 + $0x5f0] sm:$0xff]
  %v4544 = vld [vmem:[#allocation2 + $0x5f8] sm:$0xff]
  %v4545 = vld [vmem:[#allocation2 + $0x600] sm:$0xff]
  %v4546 = vld [vmem:[#allocation2 + $0x608] sm:$0xff]
  %v4547 = vld [vmem:[#allocation2 + $0x610] sm:$0xff]
  %v4548 = vld [vmem:[#allocation2 + $0x618] sm:$0xff]
  %v4549 = vld [vmem:[%s18] sm:$0xff]
  %4551 = vset.pattern.permute.xlu0 0
  %4552 = vperm.xlu0 %4551, %v4549
  %v4553 = vpop.permute.xlu0 %4552
  %v4556 = vsel %vm366, %v4352, 0
  %4558 = vmatprep.subr.mxu0 %v4354
  %4559 = vmatpush1.msra.mxu0 %v4353
  %4560 = vmatprep.subr.mxu0 %v4358
  %4561 = vmatpush1.msra.mxu0 %v4357
  %4562 = vmatprep.subr.mxu0 %v4362
  %4563 = vmatpush1.msra.mxu0 %v4361
  %4564 = vmatprep.subr.mxu0 %v4366
  %4565 = vmatpush1.msra.mxu0 %v4365
  %4566 = vmatprep.subr.mxu0 %v4370
  %4567 = vmatpush1.msra.mxu0 %v4369
  %4568 = vmatprep.subr.mxu0 %v4374
  %4569 = vmatpush1.msra.mxu0 %v4373
  %4570 = vmatprep.subr.mxu0 %v4378
  %4571 = vmatpush1.msra.mxu0 %v4377
  %4572 = vmatprep.subr.mxu0 %v4382
  %4573 = vmatpush1.msra.mxu0 %v4381
  %4574 = vmatprep.subr.mxu0 %v4386
  %4575 = vmatpush1.msra.mxu0 %v4385
  %4576 = vmatprep.subr.mxu0 %v4390
  %4577 = vmatpush1.msra.mxu0 %v4389
  %4578 = vmatprep.subr.mxu0 %v4394
  %4579 = vmatpush1.msra.mxu0 %v4393
  %4580 = vmatprep.subr.mxu0 %v4398
  %4581 = vmatpush1.msra.mxu0 %v4397
  %4582 = vmatprep.subr.mxu0 %v4402
  %4583 = vmatpush1.msra.mxu0 %v4401
  %4584 = vmatprep.subr.mxu0 %v4406
  %4585 = vmatpush1.msra.mxu0 %v4405
  %4586 = vmatprep.subr.mxu0 %v4410
  %4587 = vmatpush1.msra.mxu0 %v4409
  %4588 = vmatprep.subr.mxu0 %v4414
  %4589 = vmatpush1.msra.mxu0 %v4413
  %4590 = vmatprep.subr.mxu0 %v4418
  %4591 = vmatpush1.msra.mxu0 %v4417
  %4592 = vmatprep.subr.mxu0 %v4422
  %4593 = vmatpush1.msra.mxu0 %v4421
  %4594 = vmatprep.subr.mxu0 %v4426
  %4595 = vmatpush1.msra.mxu0 %v4425
  %4596 = vmatprep.subr.mxu0 %v4430
  %4597 = vmatpush1.msra.mxu0 %v4429
  %4598 = vmatprep.subr.mxu0 %v4434
  %4599 = vmatpush1.msra.mxu0 %v4433
  %4600 = vmatprep.subr.mxu0 %v4438
  %4601 = vmatpush1.msra.mxu0 %v4437
  %4602 = vmatprep.subr.mxu0 %v4442
  %4603 = vmatpush1.msra.mxu0 %v4441
  %4604 = vmatprep.subr.mxu0 %v4446
  %4605 = vmatpush1.msra.mxu0 %v4445
  %4606 = vmatprep.subr.mxu0 %v4450
  %4607 = vmatpush1.msra.mxu0 %v4449
  %4608 = vmatprep.subr.mxu0 %v4454
  %4609 = vmatpush1.msra.mxu0 %v4453
  %4610 = vmatprep.subr.mxu0 %v4458
  %4611 = vmatpush1.msra.mxu0 %v4457
  %4612 = vmatprep.subr.mxu0 %v4462
  %4613 = vmatpush1.msra.mxu0 %v4461
  %4614 = vmatprep.subr.mxu0 %v4466
  %4615 = vmatpush1.msra.mxu0 %v4465
  %4616 = vmatprep.subr.mxu0 %v4470
  %4617 = vmatpush1.msra.mxu0 %v4469
  %4618 = vmatprep.subr.mxu0 %v4474
  %4619 = vmatpush1.msra.mxu0 %v4473
  %4620 = vmatprep.subr.mxu0 %v4478
  %4621 = vmatpush1.msra.mxu0 %v4477
  %4622 = vmatprep.mubr.f32.mxu0 %v4350
  %4623 = vmatmul.mubr.f32.gmra.mrb[0].mxu0 %v4349
  %v4624 = vpop.f32.mrb[0].mxu0
  %v4625 = vadd.f32 %v4553, %v4624
  %v4626 = vpop.f32.mrb[0].mxu0
  %v4627 = vadd.f32 %v4553, %v4626
  %4628 = vdwg.mxu0
  %4629 = vmatprep.subr.mxu0 %v4482
  %4630 = vmatpush1.msra.mxu0 %v4481
  %4631 = vmatprep.subr.mxu0 %v4486
  %4632 = vmatpush1.msra.mxu0 %v4485
  %4633 = vmatprep.subr.mxu0 %v4490
  %4634 = vmatpush1.msra.mxu0 %v4489
  %4635 = vmatprep.subr.mxu0 %v4494
  %4636 = vmatpush1.msra.mxu0 %v4493
  %4637 = vmatprep.subr.mxu0 %v4498
  %4638 = vmatpush1.msra.mxu0 %v4497
  %4639 = vmatprep.subr.mxu0 %v4502
  %4640 = vmatpush1.msra.mxu0 %v4501
  %4641 = vmatprep.subr.mxu0 %v4506
  %4642 = vmatpush1.msra.mxu0 %v4505
  %4643 = vmatprep.subr.mxu0 %v4510
  %4644 = vmatpush1.msra.mxu0 %v4509
  %4645 = vmatprep.subr.mxu0 %v4514
  %4646 = vmatpush1.msra.mxu0 %v4513
  %4647 = vmatprep.subr.mxu0 %v4518
  %4648 = vmatpush1.msra.mxu0 %v4517
  %4649 = vmatprep.subr.mxu0 %v4522
  %4650 = vmatpush1.msra.mxu0 %v4521
  %4651 = vmatprep.subr.mxu0 %v4526
  %4652 = vmatpush1.msra.mxu0 %v4525
  %4653 = vmatprep.subr.mxu0 %v4530
  %4654 = vmatpush1.msra.mxu0 %v4529
  %4655 = vmatprep.subr.mxu0 %v4534
  %4656 = vmatpush1.msra.mxu0 %v4533
  %4657 = vmatprep.subr.mxu0 %v4538
  %4658 = vmatpush1.msra.mxu0 %v4537
  %4659 = vmatprep.subr.mxu0 %v4542
  %4660 = vmatpush1.msra.mxu0 %v4541
  %4661 = vmatprep.subr.mxu0 %v4546
  %4662 = vmatpush1.msra.mxu0 %v4545
  %4663 = vmatprep.subr.mxu0 0.0
  %4664 = vmatpush1.msra.mxu0 0.0
  %4665 = vmatprep.subr.mxu0 0.0
  %4666 = vmatpush1.msra.mxu0 0.0
  %4667 = vmatprep.subr.mxu0 0.0
  %4668 = vmatpush1.msra.mxu0 0.0
  %4669 = vmatprep.subr.mxu0 0.0
  %4670 = vmatpush1.msra.mxu0 0.0
  %4671 = vmatprep.subr.mxu0 0.0
  %4672 = vmatpush1.msra.mxu0 0.0
  %4673 = vmatprep.subr.mxu0 0.0
  %4674 = vmatpush1.msra.mxu0 0.0
  %4675 = vmatprep.subr.mxu0 0.0
  %4676 = vmatpush1.msra.mxu0 0.0
  %4677 = vmatprep.subr.mxu0 0.0
  %4678 = vmatpush1.msra.mxu0 0.0
  %4679 = vmatprep.subr.mxu0 0.0
  %4680 = vmatpush1.msra.mxu0 0.0
  %4681 = vmatprep.subr.mxu0 0.0
  %4682 = vmatpush1.msra.mxu0 0.0
  %4683 = vmatprep.subr.mxu0 0.0
  %4684 = vmatpush1.msra.mxu0 0.0
  %4685 = vmatprep.subr.mxu0 0.0
  %4686 = vmatpush1.msra.mxu0 0.0
  %4687 = vmatprep.subr.mxu0 0.0
  %4688 = vmatpush1.msra.mxu0 0.0
  %4689 = vmatprep.subr.mxu0 0.0
  %4690 = vmatpush1.msra.mxu0 0.0
  %4691 = vmatprep.subr.mxu0 0.0
  %4692 = vmatpush1.msra.mxu0 0.0
  %4693 = vmatprep.mubr.f32.mxu0 %v4556
  %4694 = vmatmul.mubr.f32.gmra.mrb[0].mxu0 %v4351
  %v4695 = vpop.f32.mrb[0].mxu0
  %v4696 = vadd.f32 %v4625, %v4695
  %v4697 = vpop.f32.mrb[0].mxu0
  %v4698 = vadd.f32 %v4627, %v4697
  %4699 = vdwg.mxu0
  %4700 = vmatprep.subr.mxu0 %v4356
  %4701 = vmatpush1.msra.mxu0 %v4355
  %4702 = vmatprep.subr.mxu0 %v4360
  %4703 = vmatpush1.msra.mxu0 %v4359
  %4704 = vmatprep.subr.mxu0 %v4364
  %4705 = vmatpush1.msra.mxu0 %v4363
  %4706 = vmatprep.subr.mxu0 %v4368
  %4707 = vmatpush1.msra.mxu0 %v4367
  %4708 = vmatprep.subr.mxu0 %v4372
  %4709 = vmatpush1.msra.mxu0 %v4371
  %4710 = vmatprep.subr.mxu0 %v4376
  %4711 = vmatpush1.msra.mxu0 %v4375
  %4712 = vmatprep.subr.mxu0 %v4380
  %4713 = vmatpush1.msra.mxu0 %v4379
  %4714 = vmatprep.subr.mxu0 %v4384
  %4715 = vmatpush1.msra.mxu0 %v4383
  %4716 = vmatprep.subr.mxu0 %v4388
  %4717 = vmatpush1.msra.mxu0 %v4387
  %4718 = vmatprep.subr.mxu0 %v4392
  %4719 = vmatpush1.msra.mxu0 %v4391
  %4720 = vmatprep.subr.mxu0 %v4396
  %4721 = vmatpush1.msra.mxu0 %v4395
  %4722 = vmatprep.subr.mxu0 %v4400
  %4723 = vmatpush1.msra.mxu0 %v4399
  %4724 = vmatprep.subr.mxu0 %v4404
  %4725 = vmatpush1.msra.mxu0 %v4403
  %4726 = vmatprep.subr.mxu0 %v4408
  %4727 = vmatpush1.msra.mxu0 %v4407
  %4728 = vmatprep.subr.mxu0 %v4412
  %4729 = vmatpush1.msra.mxu0 %v4411
  %4730 = vmatprep.subr.mxu0 %v4416
  %4731 = vmatpush1.msra.mxu0 %v4415
  %4732 = vmatprep.subr.mxu0 %v4420
  %4733 = vmatpush1.msra.mxu0 %v4419
  %4734 = vmatprep.subr.mxu0 %v4424
  %4735 = vmatpush1.msra.mxu0 %v4423
  %4736 = vmatprep.subr.mxu0 %v4428
  %4737 = vmatpush1.msra.mxu0 %v4427
  %4738 = vmatprep.subr.mxu0 %v4432
  %4739 = vmatpush1.msra.mxu0 %v4431
  %4740 = vmatprep.subr.mxu0 %v4436
  %4741 = vmatpush1.msra.mxu0 %v4435
  %4742 = vmatprep.subr.mxu0 %v4440
  %4743 = vmatpush1.msra.mxu0 %v4439
  %4744 = vmatprep.subr.mxu0 %v4444
  %4745 = vmatpush1.msra.mxu0 %v4443
  %4746 = vmatprep.subr.mxu0 %v4448
  %4747 = vmatpush1.msra.mxu0 %v4447
  %4748 = vmatprep.subr.mxu0 %v4452
  %4749 = vmatpush1.msra.mxu0 %v4451
  %4750 = vmatprep.subr.mxu0 %v4456
  %4751 = vmatpush1.msra.mxu0 %v4455
  %4752 = vmatprep.subr.mxu0 %v4460
  %4753 = vmatpush1.msra.mxu0 %v4459
  %4754 = vmatprep.subr.mxu0 %v4464
  %4755 = vmatpush1.msra.mxu0 %v4463
  %4756 = vmatprep.subr.mxu0 %v4468
  %4757 = vmatpush1.msra.mxu0 %v4467
  %4758 = vmatprep.subr.mxu0 %v4472
  %4759 = vmatpush1.msra.mxu0 %v4471
  %4760 = vmatprep.subr.mxu0 %v4476
  %4761 = vmatpush1.msra.mxu0 %v4475
  %4762 = vmatprep.subr.mxu0 %v4480
  %4763 = vmatpush1.msra.mxu0 %v4479
  %4764 = vmatprep.mubr.f32.mxu0 %v4350
  %4765 = vmatmul.mubr.f32.gmra.mrb[0].mxu0 %v4349
  %v4766 = vpop.f32.mrb[0].mxu0
  %v4767 = vadd.f32 %v4553, %v4766
  %v4768 = vpop.f32.mrb[0].mxu0
  %v4769 = vadd.f32 %v4553, %v4768
  %4770 = vdwg.mxu0
  %4771 = vmatprep.subr.mxu0 %v4484
  %4772 = vmatpush1.msra.mxu0 %v4483
  %4773 = vmatprep.subr.mxu0 %v4488
  %4774 = vmatpush1.msra.mxu0 %v4487
  %4775 = vmatprep.subr.mxu0 %v4492
  %4776 = vmatpush1.msra.mxu0 %v4491
  %4777 = vmatprep.subr.mxu0 %v4496
  %4778 = vmatpush1.msra.mxu0 %v4495
  %4779 = vmatprep.subr.mxu0 %v4500
  %4780 = vmatpush1.msra.mxu0 %v4499
  %4781 = vmatprep.subr.mxu0 %v4504
  %4782 = vmatpush1.msra.mxu0 %v4503
  %4783 = vmatprep.subr.mxu0 %v4508
  %4784 = vmatpush1.msra.mxu0 %v4507
  %4785 = vmatprep.subr.mxu0 %v4512
  %4786 = vmatpush1.msra.mxu0 %v4511
  %4787 = vmatprep.subr.mxu0 %v4516
  %4788 = vmatpush1.msra.mxu0 %v4515
  %4789 = vmatprep.subr.mxu0 %v4520
  %4790 = vmatpush1.msra.mxu0 %v4519
  %4791 = vmatprep.subr.mxu0 %v4524
  %4792 = vmatpush1.msra.mxu0 %v4523
  %4793 = vmatprep.subr.mxu0 %v4528
  %4794 = vmatpush1.msra.mxu0 %v4527
  %4795 = vmatprep.subr.mxu0 %v4532
  %4796 = vmatpush1.msra.mxu0 %v4531
  %4797 = vmatprep.subr.mxu0 %v4536
  %4798 = vmatpush1.msra.mxu0 %v4535
  %4799 = vmatprep.subr.mxu0 %v4540
  %4800 = vmatpush1.msra.mxu0 %v4539
  %4801 = vmatprep.subr.mxu0 %v4544
  %4802 = vmatpush1.msra.mxu0 %v4543
  %4803 = vmatprep.subr.mxu0 %v4548
  %4804 = vmatpush1.msra.mxu0 %v4547
  %4805 = vmatprep.subr.mxu0 0.0
  %4806 = vmatpush1.msra.mxu0 0.0
  %4807 = vmatprep.subr.mxu0 0.0
  %4808 = vmatpush1.msra.mxu0 0.0
  %4809 = vmatprep.subr.mxu0 0.0
  %4810 = vmatpush1.msra.mxu0 0.0
  %4811 = vmatprep.subr.mxu0 0.0
  %4812 = vmatpush1.msra.mxu0 0.0
  %4813 = vmatprep.subr.mxu0 0.0
  %4814 = vmatpush1.msra.mxu0 0.0
  %4815 = vmatprep.subr.mxu0 0.0
  %4816 = vmatpush1.msra.mxu0 0.0
  %4817 = vmatprep.subr.mxu0 0.0
  %4818 = vmatpush1.msra.mxu0 0.0
  %4819 = vmatprep.subr.mxu0 0.0
  %4820 = vmatpush1.msra.mxu0 0.0
  %4821 = vmatprep.subr.mxu0 0.0
  %4822 = vmatpush1.msra.mxu0 0.0
  %4823 = vmatprep.subr.mxu0 0.0
  %4824 = vmatpush1.msra.mxu0 0.0
  %4825 = vmatprep.subr.mxu0 0.0
  %4826 = vmatpush1.msra.mxu0 0.0
  %4827 = vmatprep.subr.mxu0 0.0
  %4828 = vmatpush1.msra.mxu0 0.0
  %4829 = vmatprep.subr.mxu0 0.0
  %4830 = vmatpush1.msra.mxu0 0.0
  %4831 = vmatprep.subr.mxu0 0.0
  %4832 = vmatpush1.msra.mxu0 0.0
  %4833 = vmatprep.subr.mxu0 0.0
  %4834 = vmatpush1.msra.mxu0 0.0
  %4835 = vmatprep.mubr.f32.mxu0 %v4556
  %4836 = vmatmul.mubr.f32.gmra.mrb[0].mxu0 %v4351
  %v4837 = vpop.f32.mrb[0].mxu0
  %v4838 = vadd.f32 %v4767, %v4837
  %v4839 = vpop.f32.mrb[0].mxu0
  %v4840 = vadd.f32 %v4769, %v4839
  %4841 = vdwg.mxu0
  %v4842 = vmax.f32 %v4696, 0.0
  %v4843 = vmax.f32 %v4698, 0.0
  %v4844 = vmax.f32 %v4838, 0.0
  %v4845 = vmax.f32 %v4840, 0.0
  %4846 = vrot.lane.b32.xlu0 %v4842, 8
  %v4847 = vpop.permute.xlu0 %4846
  %4848 = vrot.lane.b32.xlu0 %v4843, 8
  %v4849 = vpop.permute.xlu0 %4848
  %4850 = vrot.lane.b32.xlu0 %v4844, 8
  %v4851 = vpop.permute.xlu0 %4850
  %4852 = vrot.lane.b32.xlu0 %v4845, 8
  %v4853 = vpop.permute.xlu0 %4852
  %vm4854 = vcmp.lt.s32.totalorder %v525, 8
  %v4855 = vsel %vm4854, %v4851, %v4853
  %v4856 = vsel %vm4854, %v4849, %v4851
  %v4857 = vsel %vm4854, %v4847, %v4849
  %v4858 = vsel %vm4854, %v4853, %v4847
  %vm4859 = vcmp.ge.s32.totalorder %v94, 8
  %vm4860 = vcmp.ge.s32.totalorder %v98, 8
  %vm4861 = vcmp.ge.s32.totalorder %v102, 8
  %vm4862 = vcmp.ge.s32.totalorder %v106, 8
  %vm4863 = vcmp.ge.s32.totalorder %v111, 8
  %vm4864 = vcmp.ge.s32.totalorder %v115, 8
  %vm4865 = vcmp.ge.s32.totalorder %v119, 8
  %vm4866 = vcmp.ge.s32.totalorder %v123, 8
  %vm4867 = vmand %vm4859, %vm4863
  %vm4868 = vmand %vm4860, %vm4864
  %vm4869 = vmand %vm4861, %vm4865
  %vm4870 = vmand %vm4862, %vm4866
  %v4871 = vsel %vm4867, 1, 0
  %v4872 = vsel %vm4868, 1, 0
  %v4873 = vsel %vm4869, 1, 0
  %v4874 = vsel %vm4870, 1, 0
  %v4875 = vcvt.s32.f32 %v4871
  %v4876 = vcvt.s32.f32 %v4872
  %v4877 = vcvt.s32.f32 %v4873
  %v4878 = vcvt.s32.f32 %v4874
  %v4879 = vmul.f32 %v4855, %v4875
  %v4880 = vmul.f32 %v4858, %v4876
  %v4881 = vmul.f32 %v4857, %v4877
  %v4882 = vmul.f32 %v4856, %v4878
  %4883 = vst [vmem:[#allocation2] sm:$0xff] %v4879
  %4884 = vst [vmem:[#allocation2 + $0x8] sm:$0xff] %v4880
  %4885 = vst [vmem:[#allocation2 + $0x10] sm:$0xff] %v4881
  %4886 = vst [vmem:[#allocation2 + $0x18] sm:$0xff] %v4882
  %v4887 = vsel %vm4859, 1, 0
  %v4888 = vsel %vm4860, 1, 0
  %v4889 = vsel %vm4861, 1, 0
  %v4890 = vsel %vm4862, 1, 0
  %v4891 = vcvt.s32.f32 %v4887
  %v4892 = vcvt.s32.f32 %v4888
  %v4893 = vcvt.s32.f32 %v4889
  %v4894 = vcvt.s32.f32 %v4890
  %v4895 = vmul.f32 %v4845, %v4891
  %v4896 = vmul.f32 %v4842, %v4892
  %v4897 = vmul.f32 %v4843, %v4893
  %v4898 = vmul.f32 %v4844, %v4894
  %4899 = vst [vmem:[#allocation2 + $0x20] sm:$0xff] %v4895
  %4900 = vst [vmem:[#allocation2 + $0x28] sm:$0xff] %v4896
  %4901 = vst [vmem:[#allocation2 + $0x30] sm:$0xff] %v4897
  %4902 = vst [vmem:[#allocation2 + $0x38] sm:$0xff] %v4898
  %4903 = vrot.lane.b32.xlu0 %v4842, 120
  %v4904 = vpop.permute.xlu0 %4903
  %4905 = vrot.lane.b32.xlu0 %v4843, 120
  %v4906 = vpop.permute.xlu0 %4905
  %4907 = vrot.lane.b32.xlu0 %v4844, 120
  %v4908 = vpop.permute.xlu0 %4907
  %4909 = vrot.lane.b32.xlu0 %v4845, 120
  %v4910 = vpop.permute.xlu0 %4909
  %vm4911 = vcmp.lt.s32.totalorder %v525, 120
  %v4912 = vsel %vm4911, %v4908, %v4910
  %v4913 = vsel %vm4911, %v4906, %v4908
  %v4914 = vsel %vm4911, %v4904, %v4906
  %v4915 = vsel %vm4911, %v4910, %v4904
  %vm4916 = vcmp.lt.s32.totalorder %v111, 8
  %vm4917 = vcmp.lt.s32.totalorder %v115, 8
  %vm4918 = vcmp.lt.s32.totalorder %v119, 8
  %vm4919 = vcmp.lt.s32.totalorder %v123, 8
  %vm4920 = vmand %vm4859, %vm4916
  %vm4921 = vmand %vm4860, %vm4917
  %vm4922 = vmand %vm4861, %vm4918
  %vm4923 = vmand %vm4862, %vm4919
  %v4924 = vsel %vm4920, 1, 0
  %v4925 = vsel %vm4921, 1, 0
  %v4926 = vsel %vm4922, 1, 0
  %v4927 = vsel %vm4923, 1, 0
  %v4928 = vcvt.s32.f32 %v4924
  %v4929 = vcvt.s32.f32 %v4925
  %v4930 = vcvt.s32.f32 %v4926
  %v4931 = vcvt.s32.f32 %v4927
  %v4932 = vmul.f32 %v4915, %v4928
  %v4933 = vmul.f32 %v4914, %v4929
  %v4934 = vmul.f32 %v4913, %v4930
  %v4935 = vmul.f32 %v4912, %v4931
  %4936 = vst [vmem:[#allocation2 + $0x40] sm:$0xff] %v4932
  %4937 = vst [vmem:[#allocation2 + $0x48] sm:$0xff] %v4933
  %4938 = vst [vmem:[#allocation2 + $0x50] sm:$0xff] %v4934
  %4939 = vst [vmem:[#allocation2 + $0x58] sm:$0xff] %v4935
  %v4940 = vsel %vm4863, 1, 0
  %v4941 = vsel %vm4864, 1, 0
  %v4942 = vsel %vm4865, 1, 0
  %v4943 = vsel %vm4866, 1, 0
  %v4944 = vcvt.s32.f32 %v4940
  %v4945 = vcvt.s32.f32 %v4941
  %v4946 = vcvt.s32.f32 %v4942
  %v4947 = vcvt.s32.f32 %v4943
  %v4948 = vmul.f32 %v4858, %v4944
  %v4949 = vmul.f32 %v4857, %v4945
  %v4950 = vmul.f32 %v4856, %v4946
  %v4951 = vmul.f32 %v4855, %v4947
  %4952 = vst [vmem:[#allocation2 + $0x60] sm:$0xff] %v4948
  %4953 = vst [vmem:[#allocation2 + $0x68] sm:$0xff] %v4949
  %4954 = vst [vmem:[#allocation2 + $0x70] sm:$0xff] %v4950
  %4955 = vst [vmem:[#allocation2 + $0x78] sm:$0xff] %v4951
  %4956 = vst [vmem:[#allocation2 + $0x80] sm:$0xff] %v4842
  %4957 = vst [vmem:[#allocation2 + $0x88] sm:$0xff] %v4843
  %4958 = vst [vmem:[#allocation2 + $0x90] sm:$0xff] %v4844
  %4959 = vst [vmem:[#allocation2 + $0x98] sm:$0xff] %v4845
  %v4960 = vsel %vm4916, 1, 0
  %v4961 = vsel %vm4917, 1, 0
  %v4962 = vsel %vm4918, 1, 0
  %v4963 = vsel %vm4919, 1, 0
  %v4964 = vcvt.s32.f32 %v4960
  %v4965 = vcvt.s32.f32 %v4961
  %v4966 = vcvt.s32.f32 %v4962
  %v4967 = vcvt.s32.f32 %v4963
  %v4968 = vmul.f32 %v4914, %v4964
  %v4969 = vmul.f32 %v4913, %v4965
  %v4970 = vmul.f32 %v4912, %v4966
  %v4971 = vmul.f32 %v4915, %v4967
  %4972 = vst [vmem:[#allocation2 + $0xa0] sm:$0xff] %v4968
  %4973 = vst [vmem:[#allocation2 + $0xa8] sm:$0xff] %v4969
  %4974 = vst [vmem:[#allocation2 + $0xb0] sm:$0xff] %v4970
  %4975 = vst [vmem:[#allocation2 + $0xb8] sm:$0xff] %v4971
  %vm4976 = vcmp.lt.s32.totalorder %v94, 8
  %vm4977 = vcmp.lt.s32.totalorder %v98, 8
  %vm4978 = vcmp.lt.s32.totalorder %v102, 8
  %vm4979 = vcmp.lt.s32.totalorder %v106, 8
  %vm4980 = vmand %vm4976, %vm4863
  %vm4981 = vmand %vm4977, %vm4864
  %vm4982 = vmand %vm4978, %vm4865
  %vm4983 = vmand %vm4979, %vm4866
  %v4984 = vsel %vm4980, 1, 0
  %v4985 = vsel %vm4981, 1, 0
  %v4986 = vsel %vm4982, 1, 0
  %v4987 = vsel %vm4983, 1, 0
  %v4988 = vcvt.s32.f32 %v4984
  %v4989 = vcvt.s32.f32 %v4985
  %v4990 = vcvt.s32.f32 %v4986
  %v4991 = vcvt.s32.f32 %v4987
  %v4992 = vmul.f32 %v4857, %v4988
  %v4993 = vmul.f32 %v4856, %v4989
  %v4994 = vmul.f32 %v4855, %v4990
  %v4995 = vmul.f32 %v4858, %v4991
  %4996 = vst [vmem:[#allocation2 + $0xc0] sm:$0xff] %v4992
  %4997 = vst [vmem:[#allocation2 + $0xc8] sm:$0xff] %v4993
  %4998 = vst [vmem:[#allocation2 + $0xd0] sm:$0xff] %v4994
  %4999 = vst [vmem:[#allocation2 + $0xd8] sm:$0xff] %v4995
  %v5000 = vsel %vm4976, 1, 0
  %v5001 = vsel %vm4977, 1, 0
  %v5002 = vsel %vm4978, 1, 0
  %v5003 = vsel %vm4979, 1, 0
  %v5004 = vcvt.s32.f32 %v5000
  %v5005 = vcvt.s32.f32 %v5001
  %v5006 = vcvt.s32.f32 %v5002
  %v5007 = vcvt.s32.f32 %v5003
  %v5008 = vmul.f32 %v4843, %v5004
  %v5009 = vmul.f32 %v4844, %v5005
  %v5010 = vmul.f32 %v4845, %v5006
  %v5011 = vmul.f32 %v4842, %v5007
  %5012 = vst [vmem:[#allocation2 + $0xe0] sm:$0xff] %v5008
  %5013 = vst [vmem:[#allocation2 + $0xe8] sm:$0xff] %v5009
  %5014 = vst [vmem:[#allocation2 + $0xf0] sm:$0xff] %v5010
  %5015 = vst [vmem:[#allocation2 + $0xf8] sm:$0xff] %v5011
  %vm5016 = vmand %vm4976, %vm4916
  %vm5017 = vmand %vm4977, %vm4917
  %vm5018 = vmand %vm4978, %vm4918
  %vm5019 = vmand %vm4979, %vm4919
  %v5020 = vsel %vm5016, 1, 0
  %v5021 = vsel %vm5017, 1, 0
  %v5022 = vsel %vm5018, 1, 0
  %v5023 = vsel %vm5019, 1, 0
  %v5024 = vcvt.s32.f32 %v5020
  %v5025 = vcvt.s32.f32 %v5021
  %v5026 = vcvt.s32.f32 %v5022
  %v5027 = vcvt.s32.f32 %v5023
  %v5028 = vmul.f32 %v4913, %v5024
  %v5029 = vmul.f32 %v4912, %v5025
  %v5030 = vmul.f32 %v4915, %v5026
  %v5031 = vmul.f32 %v4914, %v5027
  %5032 = vst [vmem:[#allocation2 + $0x100] sm:$0xff] %v5028
  %5033 = vst [vmem:[#allocation2 + $0x108] sm:$0xff] %v5029
  %5034 = vst [vmem:[#allocation2 + $0x110] sm:$0xff] %v5030
  %5035 = vst [vmem:[#allocation2 + $0x118] sm:$0xff] %v5031
  %v5036 = vld [vmem:[%s19] sm:$0xff]
  %v5037 = vld [vmem:[#allocation2] sm:$0xff]
  %v5038 = vld [vmem:[#allocation2 + $0x8] sm:$0xff]
  %v5039 = vld [vmem:[#allocation2 + $0x10] sm:$0xff]
  %v5040 = vld [vmem:[#allocation2 + $0x18] sm:$0xff]
  %v5041 = vld [vmem:[#allocation2 + $0x20] sm:$0xff]
  %v5042 = vld [vmem:[#allocation2 + $0x28] sm:$0xff]
  %v5043 = vld [vmem:[#allocation2 + $0x30] sm:$0xff]
  %v5044 = vld [vmem:[#allocation2 + $0x38] sm:$0xff]
  %v5045 = vld [vmem:[#allocation2 + $0x40] sm:$0xff]
  %v5046 = vld [vmem:[#allocation2 + $0x48] sm:$0xff]
  %v5047 = vld [vmem:[#allocation2 + $0x50] sm:$0xff]
  %v5048 = vld [vmem:[#allocation2 + $0x58] sm:$0xff]
  %v5049 = vld [vmem:[#allocation2 + $0x60] sm:$0xff]
  %v5050 = vld [vmem:[#allocation2 + $0x68] sm:$0xff]
  %v5051 = vld [vmem:[#allocation2 + $0x70] sm:$0xff]
  %v5052 = vld [vmem:[#allocation2 + $0x78] sm:$0xff]
  %v5053 = vld [vmem:[#allocation2 + $0x80] sm:$0xff]
  %v5054 = vld [vmem:[#allocation2 + $0x88] sm:$0xff]
  %v5055 = vld [vmem:[#allocation2 + $0x90] sm:$0xff]
  %v5056 = vld [vmem:[#allocation2 + $0x98] sm:$0xff]
  %v5057 = vld [vmem:[#allocation2 + $0xa0] sm:$0xff]
  %v5058 = vld [vmem:[#allocation2 + $0xa8] sm:$0xff]
  %v5059 = vld [vmem:[#allocation2 + $0xb0] sm:$0xff]
  %v5060 = vld [vmem:[#allocation2 + $0xb8] sm:$0xff]
  %v5061 = vld [vmem:[#allocation2 + $0xc0] sm:$0xff]
  %v5062 = vld [vmem:[#allocation2 + $0xc8] sm:$0xff]
  %v5063 = vld [vmem:[#allocation2 + $0xd0] sm:$0xff]
  %v5064 = vld [vmem:[#allocation2 + $0xd8] sm:$0xff]
  %v5065 = vld [vmem:[#allocation2 + $0xe0] sm:$0xff]
  %v5066 = vld [vmem:[#allocation2 + $0xe8] sm:$0xff]
  %v5067 = vld [vmem:[#allocation2 + $0xf0] sm:$0xff]
  %v5068 = vld [vmem:[#allocation2 + $0xf8] sm:$0xff]
  %v5069 = vld [vmem:[#allocation2 + $0x100] sm:$0xff]
  %v5070 = vld [vmem:[#allocation2 + $0x108] sm:$0xff]
  %v5071 = vld [vmem:[#allocation2 + $0x110] sm:$0xff]
  %v5072 = vld [vmem:[#allocation2 + $0x118] sm:$0xff]
  %v5073 = vld [vmem:[%s20] sm:$0xff]
  %5075 = vset.pattern.permute.xlu0 0
  %5076 = vperm.xlu0 %5075, %v5073
  %v5077 = vpop.permute.xlu0 %5076
  %v5080 = vsel %vm829, %v5036, 0
  %5082 = vmatprep.subr.mxu0 %v5038
  %5083 = vmatpush1.msra.mxu0 %v5037
  %5084 = vmatprep.subr.mxu0 %v5042
  %5085 = vmatpush1.msra.mxu0 %v5041
  %5086 = vmatprep.subr.mxu0 %v5046
  %5087 = vmatpush1.msra.mxu0 %v5045
  %5088 = vmatprep.subr.mxu0 %v5050
  %5089 = vmatpush1.msra.mxu0 %v5049
  %5090 = vmatprep.subr.mxu0 %v5054
  %5091 = vmatpush1.msra.mxu0 %v5053
  %5092 = vmatprep.subr.mxu0 %v5058
  %5093 = vmatpush1.msra.mxu0 %v5057
  %5094 = vmatprep.subr.mxu0 %v5062
  %5095 = vmatpush1.msra.mxu0 %v5061
  %5096 = vmatprep.subr.mxu0 %v5066
  %5097 = vmatpush1.msra.mxu0 %v5065
  %5098 = vmatprep.subr.mxu0 %v5070
  %5099 = vmatpush1.msra.mxu0 %v5069
  %5100 = vmatprep.subr.mxu0 0.0
  %5101 = vmatpush1.msra.mxu0 0.0
  %5102 = vmatprep.subr.mxu0 0.0
  %5103 = vmatpush1.msra.mxu0 0.0
  %5104 = vmatprep.subr.mxu0 0.0
  %5105 = vmatpush1.msra.mxu0 0.0
  %5106 = vmatprep.subr.mxu0 0.0
  %5107 = vmatpush1.msra.mxu0 0.0
  %5108 = vmatprep.subr.mxu0 0.0
  %5109 = vmatpush1.msra.mxu0 0.0
  %5110 = vmatprep.subr.mxu0 0.0
  %5111 = vmatpush1.msra.mxu0 0.0
  %5112 = vmatprep.subr.mxu0 0.0
  %5113 = vmatpush1.msra.mxu0 0.0
  %5114 = vmatprep.subr.mxu0 0.0
  %5115 = vmatpush1.msra.mxu0 0.0
  %5116 = vmatprep.subr.mxu0 0.0
  %5117 = vmatpush1.msra.mxu0 0.0
  %5118 = vmatprep.subr.mxu0 0.0
  %5119 = vmatpush1.msra.mxu0 0.0
  %5120 = vmatprep.subr.mxu0 0.0
  %5121 = vmatpush1.msra.mxu0 0.0
  %5122 = vmatprep.subr.mxu0 0.0
  %5123 = vmatpush1.msra.mxu0 0.0
  %5124 = vmatprep.subr.mxu0 0.0
  %5125 = vmatpush1.msra.mxu0 0.0
  %5126 = vmatprep.subr.mxu0 0.0
  %5127 = vmatpush1.msra.mxu0 0.0
  %5128 = vmatprep.subr.mxu0 0.0
  %5129 = vmatpush1.msra.mxu0 0.0
  %5130 = vmatprep.subr.mxu0 0.0
  %5131 = vmatpush1.msra.mxu0 0.0
  %5132 = vmatprep.subr.mxu0 0.0
  %5133 = vmatpush1.msra.mxu0 0.0
  %5134 = vmatprep.subr.mxu0 0.0
  %5135 = vmatpush1.msra.mxu0 0.0
  %5136 = vmatprep.subr.mxu0 0.0
  %5137 = vmatpush1.msra.mxu0 0.0
  %5138 = vmatprep.subr.mxu0 0.0
  %5139 = vmatpush1.msra.mxu0 0.0
  %5140 = vmatprep.subr.mxu0 0.0
  %5141 = vmatpush1.msra.mxu0 0.0
  %5142 = vmatprep.subr.mxu0 0.0
  %5143 = vmatpush1.msra.mxu0 0.0
  %5144 = vmatprep.subr.mxu0 0.0
  %5145 = vmatpush1.msra.mxu0 0.0
  %5146 = vmatprep.mubr.f32.mxu0 0.0
  %5147 = vmatmul.mubr.f32.gmra.mrb[0].mxu0 %v5080
  %v5148 = vpop.f32.mrb[0].mxu0
  %v5149 = vadd.f32 %v5077, %v5148
  %v5150 = vpop.f32.mrb[0].mxu0
  %v5151 = vadd.f32 %v5077, %v5150
  %5152 = vdwg.mxu0
  %5153 = vmatprep.subr.mxu0 %v5040
  %5154 = vmatpush1.msra.mxu0 %v5039
  %5155 = vmatprep.subr.mxu0 %v5044
  %5156 = vmatpush1.msra.mxu0 %v5043
  %5157 = vmatprep.subr.mxu0 %v5048
  %5158 = vmatpush1.msra.mxu0 %v5047
  %5159 = vmatprep.subr.mxu0 %v5052
  %5160 = vmatpush1.msra.mxu0 %v5051
  %5161 = vmatprep.subr.mxu0 %v5056
  %5162 = vmatpush1.msra.mxu0 %v5055
  %5163 = vmatprep.subr.mxu0 %v5060
  %5164 = vmatpush1.msra.mxu0 %v5059
  %5165 = vmatprep.subr.mxu0 %v5064
  %5166 = vmatpush1.msra.mxu0 %v5063
  %5167 = vmatprep.subr.mxu0 %v5068
  %5168 = vmatpush1.msra.mxu0 %v5067
  %5169 = vmatprep.subr.mxu0 %v5072
  %5170 = vmatpush1.msra.mxu0 %v5071
  %5171 = vmatprep.subr.mxu0 0.0
  %5172 = vmatpush1.msra.mxu0 0.0
  %5173 = vmatprep.subr.mxu0 0.0
  %5174 = vmatpush1.msra.mxu0 0.0
  %5175 = vmatprep.subr.mxu0 0.0
  %5176 = vmatpush1.msra.mxu0 0.0
  %5177 = vmatprep.subr.mxu0 0.0
  %5178 = vmatpush1.msra.mxu0 0.0
  %5179 = vmatprep.subr.mxu0 0.0
  %5180 = vmatpush1.msra.mxu0 0.0
  %5181 = vmatprep.subr.mxu0 0.0
  %5182 = vmatpush1.msra.mxu0 0.0
  %5183 = vmatprep.subr.mxu0 0.0
  %5184 = vmatpush1.msra.mxu0 0.0
  %5185 = vmatprep.subr.mxu0 0.0
  %5186 = vmatpush1.msra.mxu0 0.0
  %5187 = vmatprep.subr.mxu0 0.0
  %5188 = vmatpush1.msra.mxu0 0.0
  %5189 = vmatprep.subr.mxu0 0.0
  %5190 = vmatpush1.msra.mxu0 0.0
  %5191 = vmatprep.subr.mxu0 0.0
  %5192 = vmatpush1.msra.mxu0 0.0
  %5193 = vmatprep.subr.mxu0 0.0
  %5194 = vmatpush1.msra.mxu0 0.0
  %5195 = vmatprep.subr.mxu0 0.0
  %5196 = vmatpush1.msra.mxu0 0.0
  %5197 = vmatprep.subr.mxu0 0.0
  %5198 = vmatpush1.msra.mxu0 0.0
  %5199 = vmatprep.subr.mxu0 0.0
  %5200 = vmatpush1.msra.mxu0 0.0
  %5201 = vmatprep.subr.mxu0 0.0
  %5202 = vmatpush1.msra.mxu0 0.0
  %5203 = vmatprep.subr.mxu0 0.0
  %5204 = vmatpush1.msra.mxu0 0.0
  %5205 = vmatprep.subr.mxu0 0.0
  %5206 = vmatpush1.msra.mxu0 0.0
  %5207 = vmatprep.subr.mxu0 0.0
  %5208 = vmatpush1.msra.mxu0 0.0
  %5209 = vmatprep.subr.mxu0 0.0
  %5210 = vmatpush1.msra.mxu0 0.0
  %5211 = vmatprep.subr.mxu0 0.0
  %5212 = vmatpush1.msra.mxu0 0.0
  %5213 = vmatprep.subr.mxu0 0.0
  %5214 = vmatpush1.msra.mxu0 0.0
  %5215 = vmatprep.subr.mxu0 0.0
  %5216 = vmatpush1.msra.mxu0 0.0
  %5217 = vmatprep.mubr.f32.mxu0 0.0
  %5218 = vmatmul.mubr.f32.gmra.mrb[0].mxu0 %v5080
  %v5219 = vpop.f32.mrb[0].mxu0
  %v5220 = vadd.f32 %v5077, %v5219
  %v5221 = vpop.f32.mrb[0].mxu0
  %v5222 = vadd.f32 %v5077, %v5221
  %5223 = vdwg.mxu0
  %v5224 = vmax.f32 %v5149, 0.0
  %v5225 = vmax.f32 %v5151, 0.0
  %v5226 = vmax.f32 %v5220, 0.0
  %v5227 = vmax.f32 %v5222, 0.0
  %v5228 = vld [vmem:[%s21] sm:$0xff]
  %v5229 = vld [vmem:[%s21 + $0x8] sm:$0xff]
  %v5230 = vld [vmem:[%s21 + $0x10] sm:$0xff]
  %v5231 = vld [vmem:[%s21 + $0x18] sm:$0xff]
  %v5232 = vld [vmem:[%s22] sm:$0xff]
  %v5233 = vld [vmem:[%s22 + $0x8] sm:$0xff]
  %v5234 = vld [vmem:[%s22 + $0x10] sm:$0xff]
  %v5235 = vld [vmem:[%s22 + $0x18] sm:$0xff]
  %5237 = vset.pattern.permute.xlu0 0
  %5238 = vperm.xlu0 %5237, %v5232
  %v5239 = vpop.permute.xlu0 %5238
  %5242 = vset.pattern.permute.xlu0 0
  %5243 = vperm.xlu0 %5242, %v5233
  %v5244 = vpop.permute.xlu0 %5243
  %5247 = vset.pattern.permute.xlu0 0
  %5248 = vperm.xlu0 %5247, %v5234
  %v5249 = vpop.permute.xlu0 %5248
  %5252 = vset.pattern.permute.xlu0 0
  %5253 = vperm.xlu0 %5252, %v5235
  %v5254 = vpop.permute.xlu0 %5253
  %v5257 = vsel %vm152, %v5228, 0
  %v5260 = vsel %vm152, %v5229, 0
  %v5263 = vsel %vm152, %v5230, 0
  %v5266 = vsel %vm152, %v5231, 0
  %5268 = vmatprep.subr.mxu0 %v976
  %5269 = vmatpush1.msra.mxu0 %v975
  %5270 = vmatprep.subr.mxu0 %v1796
  %5271 = vmatpush1.msra.mxu0 %v1795
  %5272 = vmatprep.subr.mxu0 %v3066
  %5273 = vmatpush1.msra.mxu0 %v3065
  %5274 = vmatprep.subr.mxu0 %v5225
  %5275 = vmatpush1.msra.mxu0 %v5224
  %5276 = vmatprep.subr.mxu0 0.0
  %5277 = vmatpush1.msra.mxu0 0.0
  %5278 = vmatprep.subr.mxu0 0.0
  %5279 = vmatpush1.msra.mxu0 0.0
  %5280 = vmatprep.subr.mxu0 0.0
  %5281 = vmatpush1.msra.mxu0 0.0
  %5282 = vmatprep.subr.mxu0 0.0
  %5283 = vmatpush1.msra.mxu0 0.0
  %5284 = vmatprep.subr.mxu0 0.0
  %5285 = vmatpush1.msra.mxu0 0.0
  %5286 = vmatprep.subr.mxu0 0.0
  %5287 = vmatpush1.msra.mxu0 0.0
  %5288 = vmatprep.subr.mxu0 0.0
  %5289 = vmatpush1.msra.mxu0 0.0
  %5290 = vmatprep.subr.mxu0 0.0
  %5291 = vmatpush1.msra.mxu0 0.0
  %5292 = vmatprep.subr.mxu0 0.0
  %5293 = vmatpush1.msra.mxu0 0.0
  %5294 = vmatprep.subr.mxu0 0.0
  %5295 = vmatpush1.msra.mxu0 0.0
  %5296 = vmatprep.subr.mxu0 0.0
  %5297 = vmatpush1.msra.mxu0 0.0
  %5298 = vmatprep.subr.mxu0 0.0
  %5299 = vmatpush1.msra.mxu0 0.0
  %5300 = vmatprep.subr.mxu0 0.0
  %5301 = vmatpush1.msra.mxu0 0.0
  %5302 = vmatprep.subr.mxu0 0.0
  %5303 = vmatpush1.msra.mxu0 0.0
  %5304 = vmatprep.subr.mxu0 0.0
  %5305 = vmatpush1.msra.mxu0 0.0
  %5306 = vmatprep.subr.mxu0 0.0
  %5307 = vmatpush1.msra.mxu0 0.0
  %5308 = vmatprep.subr.mxu0 0.0
  %5309 = vmatpush1.msra.mxu0 0.0
  %5310 = vmatprep.subr.mxu0 0.0
  %5311 = vmatpush1.msra.mxu0 0.0
  %5312 = vmatprep.subr.mxu0 0.0
  %5313 = vmatpush1.msra.mxu0 0.0
  %5314 = vmatprep.subr.mxu0 0.0
  %5315 = vmatpush1.msra.mxu0 0.0
  %5316 = vmatprep.subr.mxu0 0.0
  %5317 = vmatpush1.msra.mxu0 0.0
  %5318 = vmatprep.subr.mxu0 0.0
  %5319 = vmatpush1.msra.mxu0 0.0
  %5320 = vmatprep.subr.mxu0 0.0
  %5321 = vmatpush1.msra.mxu0 0.0
  %5322 = vmatprep.subr.mxu0 0.0
  %5323 = vmatpush1.msra.mxu0 0.0
  %5324 = vmatprep.subr.mxu0 0.0
  %5325 = vmatpush1.msra.mxu0 0.0
  %5326 = vmatprep.subr.mxu0 0.0
  %5327 = vmatpush1.msra.mxu0 0.0
  %5328 = vmatprep.subr.mxu0 0.0
  %5329 = vmatpush1.msra.mxu0 0.0
  %5330 = vmatprep.subr.mxu0 0.0
  %5331 = vmatpush1.msra.mxu0 0.0
  %5332 = vmatprep.mubr.f32.mxu0 0.0
  %5333 = vmatmul.mubr.f32.gmra.mrb[0].mxu0 %v5257
  %v5334 = vpop.f32.mrb[0].mxu0
  %v5335 = vadd.f32 %v5239, %v5334
  %v5336 = vpop.f32.mrb[0].mxu0
  %v5337 = vadd.f32 %v5239, %v5336
  %5338 = vmatprep.mubr.f32.mxu0 0.0
  %5339 = vmatmul.mubr.f32.gmra.mrb[0].mxu0 %v5260
  %v5340 = vpop.f32.mrb[0].mxu0
  %v5341 = vadd.f32 %v5244, %v5340
  %v5342 = vpop.f32.mrb[0].mxu0
  %v5343 = vadd.f32 %v5244, %v5342
  %5344 = vmatprep.mubr.f32.mxu0 0.0
  %5345 = vmatmul.mubr.f32.gmra.mrb[0].mxu0 %v5263
  %v5346 = vpop.f32.mrb[0].mxu0
  %v5347 = vadd.f32 %v5249, %v5346
  %v5348 = vpop.f32.mrb[0].mxu0
  %v5349 = vadd.f32 %v5249, %v5348
  %5350 = vmatprep.mubr.f32.mxu0 0.0
  %5351 = vmatmul.mubr.f32.gmra.mrb[0].mxu0 %v5266
  %v5352 = vpop.f32.mrb[0].mxu0
  %v5353 = vadd.f32 %v5254, %v5352
  %v5354 = vpop.f32.mrb[0].mxu0
  %v5355 = vadd.f32 %v5254, %v5354
  %5356 = vdwg.mxu0
  %5357 = vmatprep.subr.mxu0 %v978
  %5358 = vmatpush1.msra.mxu0 %v977
  %5359 = vmatprep.subr.mxu0 %v1798
  %5360 = vmatpush1.msra.mxu0 %v1797
  %5361 = vmatprep.subr.mxu0 %v3068
  %5362 = vmatpush1.msra.mxu0 %v3067
  %5363 = vmatprep.subr.mxu0 %v5227
  %5364 = vmatpush1.msra.mxu0 %v5226
  %5365 = vmatprep.subr.mxu0 0.0
  %5366 = vmatpush1.msra.mxu0 0.0
  %5367 = vmatprep.subr.mxu0 0.0
  %5368 = vmatpush1.msra.mxu0 0.0
  %5369 = vmatprep.subr.mxu0 0.0
  %5370 = vmatpush1.msra.mxu0 0.0
  %5371 = vmatprep.subr.mxu0 0.0
  %5372 = vmatpush1.msra.mxu0 0.0
  %5373 = vmatprep.subr.mxu0 0.0
  %5374 = vmatpush1.msra.mxu0 0.0
  %5375 = vmatprep.subr.mxu0 0.0
  %5376 = vmatpush1.msra.mxu0 0.0
  %5377 = vmatprep.subr.mxu0 0.0
  %5378 = vmatpush1.msra.mxu0 0.0
  %5379 = vmatprep.subr.mxu0 0.0
  %5380 = vmatpush1.msra.mxu0 0.0
  %5381 = vmatprep.subr.mxu0 0.0
  %5382 = vmatpush1.msra.mxu0 0.0
  %5383 = vmatprep.subr.mxu0 0.0
  %5384 = vmatpush1.msra.mxu0 0.0
  %5385 = vmatprep.subr.mxu0 0.0
  %5386 = vmatpush1.msra.mxu0 0.0
  %5387 = vmatprep.subr.mxu0 0.0
  %5388 = vmatpush1.msra.mxu0 0.0
  %5389 = vmatprep.subr.mxu0 0.0
  %5390 = vmatpush1.msra.mxu0 0.0
  %5391 = vmatprep.subr.mxu0 0.0
  %5392 = vmatpush1.msra.mxu0 0.0
  %5393 = vmatprep.subr.mxu0 0.0
  %5394 = vmatpush1.msra.mxu0 0.0
  %5395 = vmatprep.subr.mxu0 0.0
  %5396 = vmatpush1.msra.mxu0 0.0
  %5397 = vmatprep.subr.mxu0 0.0
  %5398 = vmatpush1.msra.mxu0 0.0
  %5399 = vmatprep.subr.mxu0 0.0
  %5400 = vmatpush1.msra.mxu0 0.0
  %5401 = vmatprep.subr.mxu0 0.0
  %5402 = vmatpush1.msra.mxu0 0.0
  %5403 = vmatprep.subr.mxu0 0.0
  %5404 = vmatpush1.msra.mxu0 0.0
  %5405 = vmatprep.subr.mxu0 0.0
  %5406 = vmatpush1.msra.mxu0 0.0
  %5407 = vmatprep.subr.mxu0 0.0
  %5408 = vmatpush1.msra.mxu0 0.0
  %5409 = vmatprep.subr.mxu0 0.0
  %5410 = vmatpush1.msra.mxu0 0.0
  %5411 = vmatprep.subr.mxu0 0.0
  %5412 = vmatpush1.msra.mxu0 0.0
  %5413 = vmatprep.subr.mxu0 0.0
  %5414 = vmatpush1.msra.mxu0 0.0
  %5415 = vmatprep.subr.mxu0 0.0
  %5416 = vmatpush1.msra.mxu0 0.0
  %5417 = vmatprep.subr.mxu0 0.0
  %5418 = vmatpush1.msra.mxu0 0.0
  %5419 = vmatprep.subr.mxu0 0.0
  %5420 = vmatpush1.msra.mxu0 0.0
  %5421 = vmatprep.mubr.f32.mxu0 0.0
  %5422 = vmatmul.mubr.f32.gmra.mrb[0].mxu0 %v5257
  %v5423 = vpop.f32.mrb[0].mxu0
  %v5424 = vadd.f32 %v5239, %v5423
  %v5425 = vpop.f32.mrb[0].mxu0
  %v5426 = vadd.f32 %v5239, %v5425
  %5427 = vmatprep.mubr.f32.mxu0 0.0
  %5428 = vmatmul.mubr.f32.gmra.mrb[0].mxu0 %v5260
  %v5429 = vpop.f32.mrb[0].mxu0
  %v5430 = vadd.f32 %v5244, %v5429
  %v5431 = vpop.f32.mrb[0].mxu0
  %v5432 = vadd.f32 %v5244, %v5431
  %5433 = vmatprep.mubr.f32.mxu0 0.0
  %5434 = vmatmul.mubr.f32.gmra.mrb[0].mxu0 %v5263
  %v5435 = vpop.f32.mrb[0].mxu0
  %v5436 = vadd.f32 %v5249, %v5435
  %v5437 = vpop.f32.mrb[0].mxu0
  %v5438 = vadd.f32 %v5249, %v5437
  %5439 = vmatprep.mubr.f32.mxu0 0.0
  %5440 = vmatmul.mubr.f32.gmra.mrb[0].mxu0 %v5266
  %v5441 = vpop.f32.mrb[0].mxu0
  %v5442 = vadd.f32 %v5254, %v5441
  %v5443 = vpop.f32.mrb[0].mxu0
  %v5444 = vadd.f32 %v5254, %v5443
  %5445 = vdwg.mxu0
  %v5446 = vmax.f32 %v5335, 0.0
  %v5447 = vmax.f32 %v5337, 0.0
  %v5448 = vmax.f32 %v5424, 0.0
  %v5449 = vmax.f32 %v5426, 0.0
  %v5450 = vmax.f32 %v5341, 0.0
  %v5451 = vmax.f32 %v5343, 0.0
  %v5452 = vmax.f32 %v5430, 0.0
  %v5453 = vmax.f32 %v5432, 0.0
  %v5454 = vmax.f32 %v5347, 0.0
  %v5455 = vmax.f32 %v5349, 0.0
  %v5456 = vmax.f32 %v5436, 0.0
  %v5457 = vmax.f32 %v5438, 0.0
  %v5458 = vmax.f32 %v5353, 0.0
  %v5459 = vmax.f32 %v5355, 0.0
  %v5460 = vmax.f32 %v5442, 0.0
  %v5461 = vmax.f32 %v5444, 0.0
  %5462 = vst [vmem:[%s23] sm:$0xff] %v5446
  %5463 = vst [vmem:[%s23 + $0x8] sm:$0xff] %v5447
  %5464 = vst [vmem:[%s23 + $0x10] sm:$0xff] %v5448
  %5465 = vst [vmem:[%s23 + $0x18] sm:$0xff] %v5449
  %5466 = vst [vmem:[%s23 + $0x20] sm:$0xff] %v5450
  %5467 = vst [vmem:[%s23 + $0x28] sm:$0xff] %v5451
  %5468 = vst [vmem:[%s23 + $0x30] sm:$0xff] %v5452
  %5469 = vst [vmem:[%s23 + $0x38] sm:$0xff] %v5453
  %5470 = vst [vmem:[%s23 + $0x40] sm:$0xff] %v5454
  %5471 = vst [vmem:[%s23 + $0x48] sm:$0xff] %v5455
  %5472 = vst [vmem:[%s23 + $0x50] sm:$0xff] %v5456
  %5473 = vst [vmem:[%s23 + $0x58] sm:$0xff] %v5457
  %5474 = vst [vmem:[%s23 + $0x60] sm:$0xff] %v5458
  %5475 = vst [vmem:[%s23 + $0x68] sm:$0xff] %v5459
  %5476 = vst [vmem:[%s23 + $0x70] sm:$0xff] %v5460
  %5477 = vst [vmem:[%s23 + $0x78] sm:$0xff] %v5461
  // Predicated region
  $region94: #{context_exploration_forward.1} parent=0 // pred_check
    _
  $region95: #{context_exploration_forward.1} parent=0 // pred_check_branch
    %5479 = sbr.rel (0) target = $region97
  $region96: #{context_exploration_forward.1} parent=0 // pred_region
    _
  $region97: #{context_exploration_forward.1} parent=0 // pred_fallthru
    _
  // Predicated region
  $region98: #{context_exploration_forward.1} parent=0 // pred_check
    _
  $region99: #{context_exploration_forward.1} parent=0 // pred_check_branch
    %5481 = sbr.rel (0) target = $region101
  $region100: #{context_exploration_forward.1} parent=0 // pred_region
    _
  $region101: #{context_exploration_forward.1} parent=0 // pred_fallthru
    _

</llo_original>
